<compile_context>
chip_gen: v7x
topology: tpu7x:2x2x1
jax: 0.10.0
libtpu: 0.0.40
codegen_flags: <defaults>
</compile_context>

<pallas_src>
import functools

import jax
import jax.numpy as jnp
from jax import lax
from jax.experimental import pallas as pl
from jax.experimental.pallas import tpu as pltpu

_EPS = 1e-5


def _round_up(x, m):
    return ((x + m - 1) // m) * m


def _pick_tile_h(H, W, cin, cout, budget_bytes=4 << 20):
    """Largest divisor of H whose per-step working set stays within budget."""
    c = max(cin, cout, 1)
    ow = _round_up(W, 8) + 8
    best = 1
    for th in range(1, H + 1):
        if H % th:
            continue
        est = (th * ow * 9 * c * 4                     # im2col / per-tap pieces
               + (th + 2) * (ow + 2) * c * 4 * 3       # halo tile + activations
               + th * (ow + 2) * cout * 4 * 4)         # double-buffered blocks
        if est <= budget_bytes:
            best = th
    return best


# ----------------------------------------------------------------------------
# Parameter init (deterministic, synthetic — shapes follow the module __init__)
# ----------------------------------------------------------------------------
def init_params(key, cin, cout, use_skip_conv):
    ks = jax.random.split(key, 12)
    n = lambda k, s: 0.1 * jax.random.normal(k, s, jnp.float32)
    p = {
        "g1": 1.0 + n(ks[0], (cin,)),
        "be1": n(ks[1], (cin,)),
        "w1": n(ks[2], (3, 3, cin, cout)),     # HWIO
        "b1": n(ks[3], (cout,)),
        "g2": 1.0 + n(ks[4], (cout,)),
        "be2": n(ks[5], (cout,)),
        "w2": n(ks[6], (3, 3, cout, cout)),    # HWIO
        "b2": n(ks[7], (cout,)),
    }
    if use_skip_conv:
        p["ws"] = n(ks[8], (cin, cout))        # 1x1 conv, no bias
        p["gs"] = 1.0 + n(ks[9], (cout,))
        p["bes"] = n(ks[10], (cout,))
    return p


# ----------------------------------------------------------------------------
# In-kernel helpers
# ----------------------------------------------------------------------------
def _activate(halo, scale, shift, th, lo, hi, vt, vb, out_dtype):
    """Folded BN affine + ReLU on a (th+2, width, c) halo tile, then zero the
    spatial-pad columns (outside [lo, hi]) and invalid halo rows."""
    width = halo.shape[1]
    col = lax.broadcasted_iota(jnp.int32, (1, width, 1), 1)
    row = lax.broadcasted_iota(jnp.int32, (th + 2, 1, 1), 0)
    colmask = (col >= lo) & (col <= hi)
    rowmask = (((row >= 1) & (row <= th))
               | ((row == 0) & vt) | ((row == th + 1) & vb))
    mask = (colmask & rowmask).astype(jnp.float32)
    a = jnp.maximum(halo * scale + shift, 0.0) * mask
    return a.astype(out_dtype)


def _conv3x3(act, w_ref, th, ow):
    """3x3 'valid' conv over an activated halo tile.

    act:   (th+2, iw, c) with iw >= ow + 2, already activated + masked.
    w_ref: (9*c, cout) ref  -> one im2col matmul (lane-aligned c), or
           (9, c, cout) ref -> 9 accumulated matmuls (arbitrary / narrow c).
    returns (th*ow, cout) float32.
    """
    c = act.shape[-1]
    if len(w_ref.shape) == 2:
        patches = jnp.concatenate(
            [act[dy:dy + th, dx:dx + ow, :]
             for dy in range(3) for dx in range(3)], axis=-1)
        patches = patches.reshape(th * ow, 9 * c)
        return jnp.dot(patches, w_ref[...], preferred_element_type=jnp.float32)
    acc = None
    for dy in range(3):
        for dx in range(3):
            piece = act[dy:dy + th, dx:dx + ow, :].reshape(th * ow, c)
            t = jnp.dot(piece, w_ref[dy * 3 + dx],
                        preferred_element_type=jnp.float32)
            acc = t if acc is None else acc + t
    return acc


# ----------------------------------------------------------------------------
# Kernels
# ----------------------------------------------------------------------------
def _pass1_kernel(*refs, th, w, w_y, gh, use_skip, mm_dtype):
    """BN1 -> ReLU -> Conv3x3 (+ skip 1x1 conv) for a TH-row block.

    Emits y1 (conv-pad column layout, width w_y), the skip pre-activation, and
    block-reduced sum / sum-of-squares partials for BN2 / skip-BN.
    """
    if use_skip:
        (xt, xm, xb, sc1, sh1, w1, b1, ws,
         y1_ref, sumy_ref, sqy_ref, s_ref, sums_ref, sqs_ref) = refs
    else:
        (xt, xm, xb, sc1, sh1, w1, b1,
         y1_ref, sumy_ref, sqy_ref) = refs

    h = pl.program_id(1)
    vt = h > 0                    # top halo row is a real image row
    vb = h < gh - 1               # bottom halo row is a real image row

    halo = jnp.concatenate([xt[...][None], xm[...], xb[...][None]], axis=0)
    # x stored col u+2 <-> image col u; valid stored cols are 2..w+1.
    act = _activate(halo.astype(jnp.float32), sc1[...], sh1[...],
                    th, lo=2, hi=w + 1, vt=vt, vb=vb, out_dtype=mm_dtype)

    cout = b1.shape[-1]
    y1 = _conv3x3(act, w1, th, w_y) + b1[...]          # (th*w_y, cout) f32
    y1 = y1.reshape(th, w_y, cout)

    # y1 stored col j <-> image col j-1; zero pad/junk columns so that
    # (a) pass-2 conv padding is exact, (b) the BN2 stats exclude them.
    col = lax.broadcasted_iota(jnp.int32, (1, w_y, 1), 1)
    y1 = y1 * ((col >= 1) & (col <= w)).astype(jnp.float32)

    y1_2d = y1.reshape(th * w_y, cout)
    sumy_ref[...] = jnp.sum(y1_2d, axis=0, keepdims=True)
    sqy_ref[...] = jnp.sum(y1_2d * y1_2d, axis=0, keepdims=True)
    y1_ref[...] = y1.astype(y1_ref.dtype)

    if use_skip:
        w8 = s_ref.shape[1]
        cin = xm.shape[-1]
        xin = xm[...][:, 2:2 + w8, :].astype(mm_dtype).reshape(th * w8, cin)
        s = jnp.dot(xin, ws[...], preferred_element_type=jnp.float32)
        s = s.reshape(th, w8, cout)
        scol = lax.broadcasted_iota(jnp.int32, (1, w8, 1), 1)
        s = s * (scol < w).astype(jnp.float32)
        s_2d = s.reshape(th * w8, cout)
        sums_ref[...] = jnp.sum(s_2d, axis=0, keepdims=True)
        sqs_ref[...] = jnp.sum(s_2d * s_2d, axis=0, keepdims=True)
        s_ref[...] = s.astype(s_ref.dtype)


def _pass2_kernel(*refs, th, w, w8, gh, use_skip, mm_dtype):
    """BN2 -> ReLU -> Conv3x3, skip-BN affine (or identity), add, final ReLU."""
    if use_skip:
        (yt, ym, yb, sm, sc2, sh2, w2, b2, scs, shs, o_ref) = refs
    else:
        (yt, ym, yb, xm, sc2, sh2, w2, b2, o_ref) = refs

    h = pl.program_id(1)
    vt = h > 0
    vb = h < gh - 1

    halo = jnp.concatenate([yt[...][None], ym[...], yb[...][None]], axis=0)
    # y1 stored col j <-> image col j-1; valid stored cols are 1..w.
    act = _activate(halo.astype(jnp.float32), sc2[...], sh2[...],
                    th, lo=1, hi=w, vt=vt, vb=vb, out_dtype=mm_dtype)

    cout = b2.shape[-1]
    y2 = _conv3x3(act, w2, th, w8) + b2[...]           # (th*w8, cout) f32

    if use_skip:
        ident = (sm[...].astype(jnp.float32).reshape(th * w8, cout)
                 * scs[...] + shs[...])
    else:
        cin = xm.shape[-1]
        ident = xm[...][:, 2:2 + w8, :].reshape(th * w8, cin).astype(jnp.float32)

    out = jnp.maximum(y2 + ident, 0.0).reshape(th, w8, cout)
    o_ref[...] = out[:, :w, :]


# ----------------------------------------------------------------------------
# Wrapper
# ----------------------------------------------------------------------------
def residual_block_pallas(x_nchw, p, use_skip_conv, *, mm_dtype=jnp.bfloat16):
    N, Cin, H, W = x_nchw.shape
    Cout = p["w1"].shape[-1]

    W8 = _round_up(W, 8)          # pass-2 compute width (>= W, sublane aligned)
    YW = W8 + 8                   # y1 stored width (image col j-1 at stored col j)
    XW = YW + 2                   # x stored width  (image col u at stored col u+2)

    x = jnp.transpose(x_nchw, (0, 2, 3, 1)).astype(jnp.float32)      # NHWC

    # BN1 batch stats + folded per-channel affine (tiny global reduction).
    m1 = jnp.mean(x, axis=(0, 1, 2))
    v1 = jnp.mean(jnp.square(x), axis=(0, 1, 2)) - jnp.square(m1)
    sc1v = p["g1"] * lax.rsqrt(v1 + _EPS)
    sh1v = p["be1"] - m1 * sc1v
    sc1 = sc1v.reshape(1, Cin).astype(jnp.float32)
    sh1 = sh1v.reshape(1, Cin).astype(jnp.float32)

    xp = jnp.pad(x, ((0, 0), (0, 0), (2, XW - W - 2), (0, 0)))       # (N,H,XW,Cin)

    def pack3x3(w_hwio, c_in):
        w_ = jnp.asarray(w_hwio, jnp.float32).reshape(9, c_in, w_hwio.shape[-1])
        if c_in % 128 == 0:
            return w_.reshape(9 * c_in, -1).astype(mm_dtype)   # single im2col matmul
        return w_.astype(mm_dtype)                             # per-tap matmuls

    w1k = pack3x3(p["w1"], Cin)
    w2k = pack3x3(p["w2"], Cout)
    b1 = p["b1"].reshape(1, Cout).astype(jnp.float32)
    b2 = p["b2"].reshape(1, Cout).astype(jnp.float32)

    TH = _pick_tile_h(H, W, Cin, Cout)
    GH = H // TH
    grid = (N, GH)
    cp = pltpu.CompilerParams(dimension_semantics=("parallel", "parallel"))

    def top_spec(width, ch):      # one row above the block (clamped, masked in-kernel)
        return pl.BlockSpec((None, None, width, ch),
                            lambda n, h: (n, jnp.maximum(h * TH - 1, 0), 0, 0))

    def bot_spec(width, ch):      # one row below the block (clamped, masked in-kernel)
        return pl.BlockSpec((None, None, width, ch),
                            lambda n, h: (n, jnp.minimum(h * TH + TH, H - 1), 0, 0))

    def mid_spec(width, ch):
        return pl.BlockSpec((None, TH, width, ch), lambda n, h: (n, h, 0, 0))

    def full_spec(arr):
        nd = arr.ndim
        return pl.BlockSpec(arr.shape, lambda n, h: (0,) * nd)

    def stat_spec():
        return pl.BlockSpec((None, None, 1, Cout), lambda n, h: (n, h, 0, 0))

    stat_shape = jax.ShapeDtypeStruct((N, GH, 1, Cout), jnp.float32)

    # ---------------- pass 1: BN1 -> ReLU -> Conv1 (+ skip 1x1 + stat partials)
    in_specs = [top_spec(XW, Cin), mid_spec(XW, Cin), bot_spec(XW, Cin),
                full_spec(sc1), full_spec(sh1), full_spec(w1k), full_spec(b1)]
    args = [xp, xp, xp, sc1, sh1, w1k, b1]
    out_specs = [mid_spec(YW, Cout), stat_spec(), stat_spec()]
    out_shapes = [jax.ShapeDtypeStruct((N, H, YW, Cout), mm_dtype),
                  stat_shape, stat_shape]
    if use_skip_conv:
        wsk = jnp.asarray(p["ws"], jnp.float32).astype(mm_dtype)     # (Cin, Cout)
        in_specs.append(full_spec(wsk))
        args.append(wsk)
        out_specs += [mid_spec(W8, Cout), stat_spec(), stat_spec()]
        out_shapes += [jax.ShapeDtypeStruct((N, H, W8, Cout), mm_dtype),
                       stat_shape, stat_shape]

    kernel1 = functools.partial(_pass1_kernel, th=TH, w=W, w_y=YW, gh=GH,
                                use_skip=use_skip_conv, mm_dtype=mm_dtype)
    res1 = pl.pallas_call(kernel1, grid=grid, in_specs=in_specs,
                          out_specs=out_specs, out_shape=out_shapes,
                          compiler_params=cp)(*args)
    if use_skip_conv:
        y1, sum_y, sq_y, s_pre, sum_s, sq_s = res1
    else:
        y1, sum_y, sq_y = res1

    # Finalize BN2 / skip-BN folded affines from the block partials.
    cnt = float(N * H * W)
    m2 = jnp.sum(sum_y, axis=(0, 1, 2)) / cnt
    v2 = jnp.sum(sq_y, axis=(0, 1, 2)) / cnt - jnp.square(m2)
    sc2v = p["g2"] * lax.rsqrt(v2 + _EPS)
    sh2v = p["be2"] - m2 * sc2v
    sc2 = sc2v.reshape(1, Cout).astype(jnp.float32)
    sh2 = sh2v.reshape(1, Cout).astype(jnp.float32)
    if use_skip_conv:
        ms = jnp.sum(sum_s, axis=(0, 1, 2)) / cnt
        vs = jnp.sum(sq_s, axis=(0, 1, 2)) / cnt - jnp.square(ms)
        scsv = p["gs"] * lax.rsqrt(vs + _EPS)
        shsv = p["bes"] - ms * scsv
        scs = scsv.reshape(1, Cout).astype(jnp.float32)
        shs = shsv.reshape(1, Cout).astype(jnp.float32)

    # ---------------- pass 2: BN2 -> ReLU -> Conv2 + skip + add + final ReLU
    in_specs2 = [top_spec(YW, Cout), mid_spec(YW, Cout), bot_spec(YW, Cout)]
    args2 = [y1, y1, y1]
    if use_skip_conv:
        in_specs2.append(mid_spec(W8, Cout))
        args2.append(s_pre)
    else:
        in_specs2.append(mid_spec(XW, Cin))
        args2.append(xp)
    in_specs2 += [full_spec(sc2), full_spec(sh2), full_spec(w2k), full_spec(b2)]
    args2 += [sc2, sh2, w2k, b2]
    if use_skip_conv:
        in_specs2 += [full_spec(scs), full_spec(shs)]
        args2 += [scs, shs]

    kernel2 = functools.partial(_pass2_kernel, th=TH, w=W, w8=W8, gh=GH,
                                use_skip=use_skip_conv, mm_dtype=mm_dtype)
    out = pl.pallas_call(kernel2, grid=grid, in_specs=in_specs2,
                         out_specs=mid_spec(W, Cout),
                         out_shape=jax.ShapeDtypeStruct((N, H, W, Cout),
                                                        jnp.float32),
                         compiler_params=cp)(*args2)

    return jnp.transpose(out, (0, 3, 1, 2))            # back to NCHW


# ----------------------------------------------------------------------------
# Pure-JAX reference (for correctness check)
# ----------------------------------------------------------------------------
def _bn_ref(x, g, b):  # x: NHWC, batch stats over (N,H,W), biased variance
    m = jnp.mean(x, axis=(0, 1, 2), keepdims=True)
    v = jnp.mean((x - m) ** 2, axis=(0, 1, 2), keepdims=True)
    return (x - m) * g.reshape(1, 1, 1, -1) / jnp.sqrt(v + _EPS) + b.reshape(1, 1, 1, -1)


def _conv3x3_ref(x, w_hwio, b):
    y = jax.lax.conv_general_dilated(
        x, w_hwio, (1, 1), "SAME",
        dimension_numbers=("NHWC", "HWIO", "NHWC"))
    return y + b.reshape(1, 1, 1, -1)


def residual_block_ref(x_nchw, p, use_skip_conv):
    x = jnp.transpose(x_nchw, (0, 2, 3, 1)).astype(jnp.float32)
    a = jax.nn.relu(_bn_ref(x, p["g1"], p["be1"]))
    y = _conv3x3_ref(a, p["w1"], p["b1"])
    a = jax.nn.relu(_bn_ref(y, p["g2"], p["be2"]))
    y = _conv3x3_ref(a, p["w2"], p["b2"])
    if use_skip_conv:
        s = jnp.einsum("nhwc,cd->nhwd", x, p["ws"])
        s = _bn_ref(s, p["gs"], p["bes"])
    else:
        s = x
    return jnp.transpose(jax.nn.relu(y + s), (0, 3, 1, 2))


# ----------------------------------------------------------------------------
if __name__ == "__main__":
    key = jax.random.PRNGKey(0)
    k1, k2, k3, k4 = jax.random.split(key, 4)

    # Case 1: in_channels != out_channels -> skip = Conv1x1 + BN
    N, Cin, Cout, H, W = 2, 4, 8, 16, 16
    x = jax.random.normal(k1, (N, Cin, H, W), jnp.float32)
    params = init_params(k2, Cin, Cout, use_skip_conv=True)
    ref = residual_block_ref(x, params, True)

    # Tight structural check with f32 matmuls.
    out_f32 = residual_block_pallas(x, params, True, mm_dtype=jnp.float32)
    jax.block_until_ready(out_f32)
    assert out_f32.shape == (N, Cout, H, W)
    err = float(jnp.max(jnp.abs(out_f32 - ref)))
    assert err < 2e-3, f"case1 f32 mismatch, max abs err = {err}"

    # Default bf16-MXU path; looser tolerance covers the cast error only.
    out_bf = residual_block_pallas(x, params, True)
    jax.block_until_ready(out_bf)
    errb = float(jnp.max(jnp.abs(out_bf - ref)))
    assert errb < 1e-1, f"case1 bf16 mismatch, max abs err = {errb}"

    # Case 2: in_channels == out_channels, stride=1 -> identity skip
    C = 8
    x2 = jax.random.normal(k3, (N, C, H, W), jnp.float32)
    params2 = init_params(k4, C, C, use_skip_conv=False)
    ref2 = residual_block_ref(x2, params2, False)

    out2_f32 = residual_block_pallas(x2, params2, False, mm_dtype=jnp.float32)
    jax.block_until_ready(out2_f32)
    assert out2_f32.shape == (N, C, H, W)
    err2 = float(jnp.max(jnp.abs(out2_f32 - ref2)))
    assert err2 < 2e-3, f"case2 f32 mismatch, max abs err = {err2}"

    out2_bf = residual_block_pallas(x2, params2, False)
    jax.block_until_ready(out2_bf)
    err2b = float(jnp.max(jnp.abs(out2_bf - ref2)))
    assert err2b < 1e-1, f"case2 bf16 mismatch, max abs err = {err2b}"

    print("KERNEL_OK")
</pallas_src>

<mosaic_0001>
module attributes {stable_mosaic.version = 11 : i64} {
  func.func @_pass1_kernel(%arg0: i32, %arg1: i32, %arg2: memref<1x1x26x4xf32, #tpu.memory_space<vmem>>, %arg3: memref<1x16x26x4xf32, #tpu.memory_space<vmem>>, %arg4: memref<1x1x26x4xf32, #tpu.memory_space<vmem>>, %arg5: memref<1x4xf32, #tpu.memory_space<vmem>>, %arg6: memref<1x4xf32, #tpu.memory_space<vmem>>, %arg7: memref<9x4x8xf32, #tpu.memory_space<vmem>>, %arg8: memref<1x8xf32, #tpu.memory_space<vmem>>, %arg9: memref<4x8xf32, #tpu.memory_space<vmem>>, %arg10: memref<1x16x24x8xf32, #tpu.memory_space<vmem>>, %arg11: memref<1x1x1x8xf32, #tpu.memory_space<vmem>>, %arg12: memref<1x1x1x8xf32, #tpu.memory_space<vmem>>, %arg13: memref<1x16x16x8xf32, #tpu.memory_space<vmem>>, %arg14: memref<1x1x1x8xf32, #tpu.memory_space<vmem>>, %arg15: memref<1x1x1x8xf32, #tpu.memory_space<vmem>>) attributes {dimension_semantics = [#tpu.dimension_semantics<parallel>, #tpu.dimension_semantics<parallel>], iteration_bounds = array<i64: 2, 1>, scalar_prefetch = 0 : i64, scratch_operands = 0 : i64, tpu.core_type = #tpu.core_type<tc>, window_params = [{transform_indices = @transform_0, window_bounds = array<i64: 1, 1, 26, 4>}, {transform_indices = @transform_1, window_bounds = array<i64: 1, 16, 26, 4>}, {transform_indices = @transform_2, window_bounds = array<i64: 1, 1, 26, 4>}, {pipeline_mode = #tpu.pipeline_mode<synchronous>, transform_indices = @transform_3, window_bounds = array<i64: 1, 4>}, {pipeline_mode = #tpu.pipeline_mode<synchronous>, transform_indices = @transform_4, window_bounds = array<i64: 1, 4>}, {pipeline_mode = #tpu.pipeline_mode<synchronous>, transform_indices = @transform_5, window_bounds = array<i64: 9, 4, 8>}, {pipeline_mode = #tpu.pipeline_mode<synchronous>, transform_indices = @transform_6, window_bounds = array<i64: 1, 8>}, {pipeline_mode = #tpu.pipeline_mode<synchronous>, transform_indices = @transform_7, window_bounds = array<i64: 4, 8>}, {transform_indices = @transform_8, window_bounds = array<i64: 1, 16, 24, 8>}, {transform_indices = @transform_9, window_bounds = array<i64: 1, 1, 1, 8>}, {transform_indices = @transform_10, window_bounds = array<i64: 1, 1, 1, 8>}, {transform_indices = @transform_11, window_bounds = array<i64: 1, 16, 16, 8>}, {transform_indices = @transform_12, window_bounds = array<i64: 1, 1, 1, 8>}, {transform_indices = @transform_13, window_bounds = array<i64: 1, 1, 1, 8>}]} {
    %c0_i32 = arith.constant 0 : i32
    %0 = arith.cmpi sgt, %arg1, %c0_i32 : i32
    %c0_i32_0 = arith.constant 0 : i32
    %1 = arith.cmpi slt, %arg1, %c0_i32_0 : i32
    %c0 = arith.constant 0 : index
    %c0_1 = arith.constant 0 : index
    %c0_2 = arith.constant 0 : index
    %c0_3 = arith.constant 0 : index
    %2 = vector.load %arg2[%c0, %c0_1, %c0_2, %c0_3] : memref<1x1x26x4xf32, #tpu.memory_space<vmem>>, vector<1x1x26x4xf32>
    %3 = vector.shape_cast %2 : vector<1x1x26x4xf32> to vector<26x4xf32>
    %4 = vector.shape_cast %3 : vector<26x4xf32> to vector<1x26x4xf32>
    %c0_4 = arith.constant 0 : index
    %c0_5 = arith.constant 0 : index
    %c0_6 = arith.constant 0 : index
    %c0_7 = arith.constant 0 : index
    %5 = vector.load %arg3[%c0_4, %c0_5, %c0_6, %c0_7] : memref<1x16x26x4xf32, #tpu.memory_space<vmem>>, vector<1x16x26x4xf32>
    %6 = vector.shape_cast %5 : vector<1x16x26x4xf32> to vector<16x26x4xf32>
    %c0_8 = arith.constant 0 : index
    %c0_9 = arith.constant 0 : index
    %c0_10 = arith.constant 0 : index
    %c0_11 = arith.constant 0 : index
    %7 = vector.load %arg4[%c0_8, %c0_9, %c0_10, %c0_11] : memref<1x1x26x4xf32, #tpu.memory_space<vmem>>, vector<1x1x26x4xf32>
    %8 = vector.shape_cast %7 : vector<1x1x26x4xf32> to vector<26x4xf32>
    %9 = vector.shape_cast %8 : vector<26x4xf32> to vector<1x26x4xf32>
    %10 = tpu.concatenate %4, %6, %9 in 0 : vector<1x26x4xf32>, vector<16x26x4xf32>, vector<1x26x4xf32> -> vector<18x26x4xf32>
    %c0_12 = arith.constant 0 : index
    %c0_13 = arith.constant 0 : index
    %11 = vector.load %arg5[%c0_12, %c0_13] : memref<1x4xf32, #tpu.memory_space<vmem>>, vector<1x4xf32>
    %c0_14 = arith.constant 0 : index
    %c0_15 = arith.constant 0 : index
    %12 = vector.load %arg6[%c0_14, %c0_15] : memref<1x4xf32, #tpu.memory_space<vmem>>, vector<1x4xf32>
    %13 = tpu.iota {dimensions = array<i32: 1>} : vector<1x26x1xi32>
    %14 = tpu.iota {dimensions = array<i32: 0>} : vector<18x1x1xi32>
    %c2_i32 = arith.constant 2 : i32
    %15 = vector.broadcast %c2_i32 : i32 to vector<1x26x1xi32>
    %16 = arith.cmpi sge, %13, %15 : vector<1x26x1xi32>
    %c17_i32 = arith.constant 17 : i32
    %17 = vector.broadcast %c17_i32 : i32 to vector<1x26x1xi32>
    %18 = arith.cmpi sle, %13, %17 : vector<1x26x1xi32>
    %19 = arith.andi %16, %18 : vector<1x26x1xi1>
    %c1_i32 = arith.constant 1 : i32
    %20 = vector.broadcast %c1_i32 : i32 to vector<18x1x1xi32>
    %21 = arith.cmpi sge, %14, %20 : vector<18x1x1xi32>
    %c16_i32 = arith.constant 16 : i32
    %22 = vector.broadcast %c16_i32 : i32 to vector<18x1x1xi32>
    %23 = arith.cmpi sle, %14, %22 : vector<18x1x1xi32>
    %24 = arith.andi %21, %23 : vector<18x1x1xi1>
    %c0_i32_16 = arith.constant 0 : i32
    %25 = vector.broadcast %c0_i32_16 : i32 to vector<18x1x1xi32>
    %26 = arith.cmpi eq, %14, %25 : vector<18x1x1xi32>
    %27 = vector.broadcast %0 : i1 to vector<18x1x1xi1>
    %28 = arith.andi %26, %27 : vector<18x1x1xi1>
    %29 = arith.ori %24, %28 : vector<18x1x1xi1>
    %c17_i32_17 = arith.constant 17 : i32
    %30 = vector.broadcast %c17_i32_17 : i32 to vector<18x1x1xi32>
    %31 = arith.cmpi eq, %14, %30 : vector<18x1x1xi32>
    %32 = vector.broadcast %1 : i1 to vector<18x1x1xi1>
    %33 = arith.andi %31, %32 : vector<18x1x1xi1>
    %34 = arith.ori %29, %33 : vector<18x1x1xi1>
    %35 = vector.broadcast %19 : vector<1x26x1xi1> to vector<18x26x1xi1>
    %36 = vector.broadcast %34 : vector<18x1x1xi1> to vector<18x26x1xi1>
    %37 = arith.andi %35, %36 : vector<18x26x1xi1>
    %38 = arith.extui %37 : vector<18x26x1xi1> to vector<18x26x1xi32>
    %39 = arith.sitofp %38 : vector<18x26x1xi32> to vector<18x26x1xf32>
    %40 = vector.shape_cast %11 : vector<1x4xf32> to vector<1x1x4xf32>
    %41 = vector.broadcast %40 : vector<1x1x4xf32> to vector<18x26x4xf32>
    %42 = arith.mulf %10, %41 : vector<18x26x4xf32>
    %43 = vector.shape_cast %12 : vector<1x4xf32> to vector<1x1x4xf32>
    %44 = vector.broadcast %43 : vector<1x1x4xf32> to vector<18x26x4xf32>
    %45 = arith.addf %42, %44 : vector<18x26x4xf32>
    %cst = arith.constant 0.000000e+00 : f32
    %46 = vector.broadcast %cst : f32 to vector<18x26x4xf32>
    %47 = arith.maximumf %45, %46 : vector<18x26x4xf32>
    %48 = vector.broadcast %39 : vector<18x26x1xf32> to vector<18x26x4xf32>
    %49 = arith.mulf %47, %48 : vector<18x26x4xf32>
    %50 = vector.extract_strided_slice %49 {offsets = [0, 0, 0], sizes = [16, 24, 4], strides = [1, 1, 1]} : vector<18x26x4xf32> to vector<16x24x4xf32>
    %51 = vector.shape_cast %50 : vector<16x24x4xf32> to vector<384x4xf32>
    %c0_18 = arith.constant 0 : index
    %c0_19 = arith.constant 0 : index
    %c0_20 = arith.constant 0 : index
    %52 = vector.load %arg7[%c0_18, %c0_19, %c0_20] : memref<9x4x8xf32, #tpu.memory_space<vmem>>, vector<1x4x8xf32>
    %53 = vector.shape_cast %52 : vector<1x4x8xf32> to vector<4x8xf32>
    %cst_21 = arith.constant dense<0.000000e+00> : vector<384x8xf32>
    %54 = tpu.matmul %51, %53, %cst_21 {dimension_numbers = #tpu.dot_dimension_numbers<[1], [0], [0], [1], [0, 0, 1, 1], [], []>} : vector<384x4xf32>, vector<4x8xf32>, vector<384x8xf32> -> vector<384x8xf32>
    %55 = vector.extract_strided_slice %49 {offsets = [0, 1, 0], sizes = [16, 24, 4], strides = [1, 1, 1]} : vector<18x26x4xf32> to vector<16x24x4xf32>
    %56 = vector.shape_cast %55 : vector<16x24x4xf32> to vector<384x4xf32>
    %c1 = arith.constant 1 : index
    %c0_22 = arith.constant 0 : index
    %c0_23 = arith.constant 0 : index
    %57 = vector.load %arg7[%c1, %c0_22, %c0_23] : memref<9x4x8xf32, #tpu.memory_space<vmem>>, vector<1x4x8xf32>
    %58 = vector.shape_cast %57 : vector<1x4x8xf32> to vector<4x8xf32>
    %cst_24 = arith.constant dense<0.000000e+00> : vector<384x8xf32>
    %59 = tpu.matmul %56, %58, %cst_24 {dimension_numbers = #tpu.dot_dimension_numbers<[1], [0], [0], [1], [0, 0, 1, 1], [], []>} : vector<384x4xf32>, vector<4x8xf32>, vector<384x8xf32> -> vector<384x8xf32>
    %60 = arith.addf %54, %59 : vector<384x8xf32>
    %61 = vector.extract_strided_slice %49 {offsets = [0, 2, 0], sizes = [16, 24, 4], strides = [1, 1, 1]} : vector<18x26x4xf32> to vector<16x24x4xf32>
    %62 = vector.shape_cast %61 : vector<16x24x4xf32> to vector<384x4xf32>
    %c2 = arith.constant 2 : index
    %c0_25 = arith.constant 0 : index
    %c0_26 = arith.constant 0 : index
    %63 = vector.load %arg7[%c2, %c0_25, %c0_26] : memref<9x4x8xf32, #tpu.memory_space<vmem>>, vector<1x4x8xf32>
    %64 = vector.shape_cast %63 : vector<1x4x8xf32> to vector<4x8xf32>
    %cst_27 = arith.constant dense<0.000000e+00> : vector<384x8xf32>
    %65 = tpu.matmul %62, %64, %cst_27 {dimension_numbers = #tpu.dot_dimension_numbers<[1], [0], [0], [1], [0, 0, 1, 1], [], []>} : vector<384x4xf32>, vector<4x8xf32>, vector<384x8xf32> -> vector<384x8xf32>
    %66 = arith.addf %60, %65 : vector<384x8xf32>
    %67 = vector.extract_strided_slice %49 {offsets = [1, 0, 0], sizes = [16, 24, 4], strides = [1, 1, 1]} : vector<18x26x4xf32> to vector<16x24x4xf32>
    %68 = vector.shape_cast %67 : vector<16x24x4xf32> to vector<384x4xf32>
    %c3 = arith.constant 3 : index
    %c0_28 = arith.constant 0 : index
    %c0_29 = arith.constant 0 : index
    %69 = vector.load %arg7[%c3, %c0_28, %c0_29] : memref<9x4x8xf32, #tpu.memory_space<vmem>>, vector<1x4x8xf32>
    %70 = vector.shape_cast %69 : vector<1x4x8xf32> to vector<4x8xf32>
    %cst_30 = arith.constant dense<0.000000e+00> : vector<384x8xf32>
    %71 = tpu.matmul %68, %70, %cst_30 {dimension_numbers = #tpu.dot_dimension_numbers<[1], [0], [0], [1], [0, 0, 1, 1], [], []>} : vector<384x4xf32>, vector<4x8xf32>, vector<384x8xf32> -> vector<384x8xf32>
    %72 = arith.addf %66, %71 : vector<384x8xf32>
    %73 = vector.extract_strided_slice %49 {offsets = [1, 1, 0], sizes = [16, 24, 4], strides = [1, 1, 1]} : vector<18x26x4xf32> to vector<16x24x4xf32>
    %74 = vector.shape_cast %73 : vector<16x24x4xf32> to vector<384x4xf32>
    %c4 = arith.constant 4 : index
    %c0_31 = arith.constant 0 : index
    %c0_32 = arith.constant 0 : index
    %75 = vector.load %arg7[%c4, %c0_31, %c0_32] : memref<9x4x8xf32, #tpu.memory_space<vmem>>, vector<1x4x8xf32>
    %76 = vector.shape_cast %75 : vector<1x4x8xf32> to vector<4x8xf32>
    %cst_33 = arith.constant dense<0.000000e+00> : vector<384x8xf32>
    %77 = tpu.matmul %74, %76, %cst_33 {dimension_numbers = #tpu.dot_dimension_numbers<[1], [0], [0], [1], [0, 0, 1, 1], [], []>} : vector<384x4xf32>, vector<4x8xf32>, vector<384x8xf32> -> vector<384x8xf32>
    %78 = arith.addf %72, %77 : vector<384x8xf32>
    %79 = vector.extract_strided_slice %49 {offsets = [1, 2, 0], sizes = [16, 24, 4], strides = [1, 1, 1]} : vector<18x26x4xf32> to vector<16x24x4xf32>
    %80 = vector.shape_cast %79 : vector<16x24x4xf32> to vector<384x4xf32>
    %c5 = arith.constant 5 : index
    %c0_34 = arith.constant 0 : index
    %c0_35 = arith.constant 0 : index
    %81 = vector.load %arg7[%c5, %c0_34, %c0_35] : memref<9x4x8xf32, #tpu.memory_space<vmem>>, vector<1x4x8xf32>
    %82 = vector.shape_cast %81 : vector<1x4x8xf32> to vector<4x8xf32>
    %cst_36 = arith.constant dense<0.000000e+00> : vector<384x8xf32>
    %83 = tpu.matmul %80, %82, %cst_36 {dimension_numbers = #tpu.dot_dimension_numbers<[1], [0], [0], [1], [0, 0, 1, 1], [], []>} : vector<384x4xf32>, vector<4x8xf32>, vector<384x8xf32> -> vector<384x8xf32>
    %84 = arith.addf %78, %83 : vector<384x8xf32>
    %85 = vector.extract_strided_slice %49 {offsets = [2, 0, 0], sizes = [16, 24, 4], strides = [1, 1, 1]} : vector<18x26x4xf32> to vector<16x24x4xf32>
    %86 = vector.shape_cast %85 : vector<16x24x4xf32> to vector<384x4xf32>
    %c6 = arith.constant 6 : index
    %c0_37 = arith.constant 0 : index
    %c0_38 = arith.constant 0 : index
    %87 = vector.load %arg7[%c6, %c0_37, %c0_38] : memref<9x4x8xf32, #tpu.memory_space<vmem>>, vector<1x4x8xf32>
    %88 = vector.shape_cast %87 : vector<1x4x8xf32> to vector<4x8xf32>
    %cst_39 = arith.constant dense<0.000000e+00> : vector<384x8xf32>
    %89 = tpu.matmul %86, %88, %cst_39 {dimension_numbers = #tpu.dot_dimension_numbers<[1], [0], [0], [1], [0, 0, 1, 1], [], []>} : vector<384x4xf32>, vector<4x8xf32>, vector<384x8xf32> -> vector<384x8xf32>
    %90 = arith.addf %84, %89 : vector<384x8xf32>
    %91 = vector.extract_strided_slice %49 {offsets = [2, 1, 0], sizes = [16, 24, 4], strides = [1, 1, 1]} : vector<18x26x4xf32> to vector<16x24x4xf32>
    %92 = vector.shape_cast %91 : vector<16x24x4xf32> to vector<384x4xf32>
    %c7 = arith.constant 7 : index
    %c0_40 = arith.constant 0 : index
    %c0_41 = arith.constant 0 : index
    %93 = vector.load %arg7[%c7, %c0_40, %c0_41] : memref<9x4x8xf32, #tpu.memory_space<vmem>>, vector<1x4x8xf32>
    %94 = vector.shape_cast %93 : vector<1x4x8xf32> to vector<4x8xf32>
    %cst_42 = arith.constant dense<0.000000e+00> : vector<384x8xf32>
    %95 = tpu.matmul %92, %94, %cst_42 {dimension_numbers = #tpu.dot_dimension_numbers<[1], [0], [0], [1], [0, 0, 1, 1], [], []>} : vector<384x4xf32>, vector<4x8xf32>, vector<384x8xf32> -> vector<384x8xf32>
    %96 = arith.addf %90, %95 : vector<384x8xf32>
    %97 = vector.extract_strided_slice %49 {offsets = [2, 2, 0], sizes = [16, 24, 4], strides = [1, 1, 1]} : vector<18x26x4xf32> to vector<16x24x4xf32>
    %98 = vector.shape_cast %97 : vector<16x24x4xf32> to vector<384x4xf32>
    %c8 = arith.constant 8 : index
    %c0_43 = arith.constant 0 : index
    %c0_44 = arith.constant 0 : index
    %99 = vector.load %arg7[%c8, %c0_43, %c0_44] : memref<9x4x8xf32, #tpu.memory_space<vmem>>, vector<1x4x8xf32>
    %100 = vector.shape_cast %99 : vector<1x4x8xf32> to vector<4x8xf32>
    %cst_45 = arith.constant dense<0.000000e+00> : vector<384x8xf32>
    %101 = tpu.matmul %98, %100, %cst_45 {dimension_numbers = #tpu.dot_dimension_numbers<[1], [0], [0], [1], [0, 0, 1, 1], [], []>} : vector<384x4xf32>, vector<4x8xf32>, vector<384x8xf32> -> vector<384x8xf32>
    %102 = arith.addf %96, %101 : vector<384x8xf32>
    %c0_46 = arith.constant 0 : index
    %c0_47 = arith.constant 0 : index
    %103 = vector.load %arg8[%c0_46, %c0_47] : memref<1x8xf32, #tpu.memory_space<vmem>>, vector<1x8xf32>
    %104 = vector.broadcast %103 : vector<1x8xf32> to vector<384x8xf32>
    %105 = arith.addf %102, %104 : vector<384x8xf32>
    %106 = vector.shape_cast %105 : vector<384x8xf32> to vector<16x24x8xf32>
    %107 = tpu.iota {dimensions = array<i32: 1>} : vector<1x24x1xi32>
    %c1_i32_48 = arith.constant 1 : i32
    %108 = vector.broadcast %c1_i32_48 : i32 to vector<1x24x1xi32>
    %109 = arith.cmpi sge, %107, %108 : vector<1x24x1xi32>
    %c16_i32_49 = arith.constant 16 : i32
    %110 = vector.broadcast %c16_i32_49 : i32 to vector<1x24x1xi32>
    %111 = arith.cmpi sle, %107, %110 : vector<1x24x1xi32>
    %112 = arith.andi %109, %111 : vector<1x24x1xi1>
    %113 = arith.extui %112 : vector<1x24x1xi1> to vector<1x24x1xi32>
    %114 = arith.sitofp %113 : vector<1x24x1xi32> to vector<1x24x1xf32>
    %115 = vector.broadcast %114 : vector<1x24x1xf32> to vector<16x24x8xf32>
    %116 = arith.mulf %106, %115 : vector<16x24x8xf32>
    %117 = vector.shape_cast %116 : vector<16x24x8xf32> to vector<384x8xf32>
    %cst_50 = arith.constant dense<0.000000e+00> : vector<8xf32>
    %118 = vector.multi_reduction <add>, %117, %cst_50 [0] : vector<384x8xf32> to vector<8xf32>
    %119 = vector.shape_cast %118 : vector<8xf32> to vector<1x8xf32>
    %c0_51 = arith.constant 0 : index
    %c0_52 = arith.constant 0 : index
    %c0_53 = arith.constant 0 : index
    %c0_54 = arith.constant 0 : index
    %120 = vector.load %arg11[%c0_51, %c0_52, %c0_53, %c0_54] : memref<1x1x1x8xf32, #tpu.memory_space<vmem>>, vector<1x1x1x8xf32>
    %121 = vector.shape_cast %120 : vector<1x1x1x8xf32> to vector<1x8xf32>
    %122 = vector.shape_cast %119 : vector<1x8xf32> to vector<1x1x1x8xf32>
    tpu.vector_store %arg11[%c0_51, %c0_52, %c0_53, %c0_54], %122 {strides = array<i32>} : memref<1x1x1x8xf32, #tpu.memory_space<vmem>>, vector<1x1x1x8xf32>,
    %123 = arith.mulf %117, %117 : vector<384x8xf32>
    %cst_55 = arith.constant dense<0.000000e+00> : vector<8xf32>
    %124 = vector.multi_reduction <add>, %123, %cst_55 [0] : vector<384x8xf32> to vector<8xf32>
    %125 = vector.shape_cast %124 : vector<8xf32> to vector<1x8xf32>
    %c0_56 = arith.constant 0 : index
    %c0_57 = arith.constant 0 : index
    %c0_58 = arith.constant 0 : index
    %c0_59 = arith.constant 0 : index
    %126 = vector.load %arg12[%c0_56, %c0_57, %c0_58, %c0_59] : memref<1x1x1x8xf32, #tpu.memory_space<vmem>>, vector<1x1x1x8xf32>
    %127 = vector.shape_cast %126 : vector<1x1x1x8xf32> to vector<1x8xf32>
    %128 = vector.shape_cast %125 : vector<1x8xf32> to vector<1x1x1x8xf32>
    tpu.vector_store %arg12[%c0_56, %c0_57, %c0_58, %c0_59], %128 {strides = array<i32>} : memref<1x1x1x8xf32, #tpu.memory_space<vmem>>, vector<1x1x1x8xf32>,
    %c0_60 = arith.constant 0 : index
    %c0_61 = arith.constant 0 : index
    %c0_62 = arith.constant 0 : index
    %c0_63 = arith.constant 0 : index
    %129 = vector.load %arg10[%c0_60, %c0_61, %c0_62, %c0_63] : memref<1x16x24x8xf32, #tpu.memory_space<vmem>>, vector<1x16x24x8xf32>
    %130 = vector.shape_cast %129 : vector<1x16x24x8xf32> to vector<16x24x8xf32>
    %131 = vector.shape_cast %116 : vector<16x24x8xf32> to vector<1x16x24x8xf32>
    tpu.vector_store %arg10[%c0_60, %c0_61, %c0_62, %c0_63], %131 {strides = array<i32>} : memref<1x16x24x8xf32, #tpu.memory_space<vmem>>, vector<1x16x24x8xf32>,
    %c0_64 = arith.constant 0 : index
    %c0_65 = arith.constant 0 : index
    %c0_66 = arith.constant 0 : index
    %c0_67 = arith.constant 0 : index
    %132 = vector.load %arg3[%c0_64, %c0_65, %c0_66, %c0_67] : memref<1x16x26x4xf32, #tpu.memory_space<vmem>>, vector<1x16x26x4xf32>
    %133 = vector.shape_cast %132 : vector<1x16x26x4xf32> to vector<16x26x4xf32>
    %134 = vector.extract_strided_slice %133 {offsets = [0, 2, 0], sizes = [16, 16, 4], strides = [1, 1, 1]} : vector<16x26x4xf32> to vector<16x16x4xf32>
    %135 = vector.shape_cast %134 : vector<16x16x4xf32> to vector<256x4xf32>
    %c0_68 = arith.constant 0 : index
    %c0_69 = arith.constant 0 : index
    %136 = vector.load %arg9[%c0_68, %c0_69] : memref<4x8xf32, #tpu.memory_space<vmem>>, vector<4x8xf32>
    %cst_70 = arith.constant dense<0.000000e+00> : vector<256x8xf32>
    %137 = tpu.matmul %135, %136, %cst_70 {dimension_numbers = #tpu.dot_dimension_numbers<[1], [0], [0], [1], [0, 0, 1, 1], [], []>} : vector<256x4xf32>, vector<4x8xf32>, vector<256x8xf32> -> vector<256x8xf32>
    %138 = vector.shape_cast %137 : vector<256x8xf32> to vector<16x16x8xf32>
    %139 = tpu.iota {dimensions = array<i32: 1>} : vector<1x16x1xi32>
    %c16_i32_71 = arith.constant 16 : i32
    %140 = vector.broadcast %c16_i32_71 : i32 to vector<1x16x1xi32>
    %141 = arith.cmpi slt, %139, %140 : vector<1x16x1xi32>
    %142 = arith.extui %141 : vector<1x16x1xi1> to vector<1x16x1xi32>
    %143 = arith.sitofp %142 : vector<1x16x1xi32> to vector<1x16x1xf32>
    %144 = vector.broadcast %143 : vector<1x16x1xf32> to vector<16x16x8xf32>
    %145 = arith.mulf %138, %144 : vector<16x16x8xf32>
    %146 = vector.shape_cast %145 : vector<16x16x8xf32> to vector<256x8xf32>
    %cst_72 = arith.constant dense<0.000000e+00> : vector<8xf32>
    %147 = vector.multi_reduction <add>, %146, %cst_72 [0] : vector<256x8xf32> to vector<8xf32>
    %148 = vector.shape_cast %147 : vector<8xf32> to vector<1x8xf32>
    %c0_73 = arith.constant 0 : index
    %c0_74 = arith.constant 0 : index
    %c0_75 = arith.constant 0 : index
    %c0_76 = arith.constant 0 : index
    %149 = vector.load %arg14[%c0_73, %c0_74, %c0_75, %c0_76] : memref<1x1x1x8xf32, #tpu.memory_space<vmem>>, vector<1x1x1x8xf32>
    %150 = vector.shape_cast %149 : vector<1x1x1x8xf32> to vector<1x8xf32>
    %151 = vector.shape_cast %148 : vector<1x8xf32> to vector<1x1x1x8xf32>
    tpu.vector_store %arg14[%c0_73, %c0_74, %c0_75, %c0_76], %151 {strides = array<i32>} : memref<1x1x1x8xf32, #tpu.memory_space<vmem>>, vector<1x1x1x8xf32>,
    %152 = arith.mulf %146, %146 : vector<256x8xf32>
    %cst_77 = arith.constant dense<0.000000e+00> : vector<8xf32>
    %153 = vector.multi_reduction <add>, %152, %cst_77 [0] : vector<256x8xf32> to vector<8xf32>
    %154 = vector.shape_cast %153 : vector<8xf32> to vector<1x8xf32>
    %c0_78 = arith.constant 0 : index
    %c0_79 = arith.constant 0 : index
    %c0_80 = arith.constant 0 : index
    %c0_81 = arith.constant 0 : index
    %155 = vector.load %arg15[%c0_78, %c0_79, %c0_80, %c0_81] : memref<1x1x1x8xf32, #tpu.memory_space<vmem>>, vector<1x1x1x8xf32>
    %156 = vector.shape_cast %155 : vector<1x1x1x8xf32> to vector<1x8xf32>
    %157 = vector.shape_cast %154 : vector<1x8xf32> to vector<1x1x1x8xf32>
    tpu.vector_store %arg15[%c0_78, %c0_79, %c0_80, %c0_81], %157 {strides = array<i32>} : memref<1x1x1x8xf32, #tpu.memory_space<vmem>>, vector<1x1x1x8xf32>,
    %c0_82 = arith.constant 0 : index
    %c0_83 = arith.constant 0 : index
    %c0_84 = arith.constant 0 : index
    %c0_85 = arith.constant 0 : index
    %158 = vector.load %arg13[%c0_82, %c0_83, %c0_84, %c0_85] : memref<1x16x16x8xf32, #tpu.memory_space<vmem>>, vector<1x16x16x8xf32>
    %159 = vector.shape_cast %158 : vector<1x16x16x8xf32> to vector<16x16x8xf32>
    %160 = vector.shape_cast %145 : vector<16x16x8xf32> to vector<1x16x16x8xf32>
    tpu.vector_store %arg13[%c0_82, %c0_83, %c0_84, %c0_85], %160 {strides = array<i32>} : memref<1x16x16x8xf32, #tpu.memory_space<vmem>>, vector<1x16x16x8xf32>,
    return
  }
  func.func @transform_0(%arg0: i32, %arg1: i32) -> (i32, i32, i32, i32) {
    %c16_i32 = arith.constant 16 : i32
    %0 = arith.muli %arg1, %c16_i32 : i32
    %c1_i32 = arith.constant 1 : i32
    %1 = arith.subi %0, %c1_i32 : i32
    %c0_i32 = arith.constant 0 : i32
    %2 = arith.maxsi %1, %c0_i32 : i32
    %c0_i32_0 = arith.constant 0 : i32
    %c0_i32_1 = arith.constant 0 : i32
    %c0_i32_2 = arith.constant 0 : i32
    return %arg0, %2, %c0_i32_0, %c0_i32_1 : i32, i32, i32, i32
  }
  func.func @transform_1(%arg0: i32, %arg1: i32) -> (i32, i32, i32, i32) {
    %c0_i32 = arith.constant 0 : i32
    %c0_i32_0 = arith.constant 0 : i32
    %c0_i32_1 = arith.constant 0 : i32
    return %arg0, %arg1, %c0_i32, %c0_i32_0 : i32, i32, i32, i32
  }
  func.func @transform_2(%arg0: i32, %arg1: i32) -> (i32, i32, i32, i32) {
    %c16_i32 = arith.constant 16 : i32
    %0 = arith.muli %arg1, %c16_i32 : i32
    %c16_i32_0 = arith.constant 16 : i32
    %1 = arith.addi %0, %c16_i32_0 : i32
    %c15_i32 = arith.constant 15 : i32
    %2 = arith.minsi %1, %c15_i32 : i32
    %c0_i32 = arith.constant 0 : i32
    %c0_i32_1 = arith.constant 0 : i32
    %c0_i32_2 = arith.constant 0 : i32
    return %arg0, %2, %c0_i32, %c0_i32_1 : i32, i32, i32, i32
  }
  func.func @transform_3(%arg0: i32, %arg1: i32) -> (i32, i32) {
    %c0_i32 = arith.constant 0 : i32
    %c0_i32_0 = arith.constant 0 : i32
    %c0_i32_1 = arith.constant 0 : i32
    return %c0_i32, %c0_i32_0 : i32, i32
  }
  func.func @transform_4(%arg0: i32, %arg1: i32) -> (i32, i32) {
    %c0_i32 = arith.constant 0 : i32
    %c0_i32_0 = arith.constant 0 : i32
    %c0_i32_1 = arith.constant 0 : i32
    return %c0_i32, %c0_i32_0 : i32, i32
  }
  func.func @transform_5(%arg0: i32, %arg1: i32) -> (i32, i32, i32) {
    %c0_i32 = arith.constant 0 : i32
    %c0_i32_0 = arith.constant 0 : i32
    %c0_i32_1 = arith.constant 0 : i32
    %c0_i32_2 = arith.constant 0 : i32
    return %c0_i32, %c0_i32_0, %c0_i32_1 : i32, i32, i32
  }
  func.func @transform_6(%arg0: i32, %arg1: i32) -> (i32, i32) {
    %c0_i32 = arith.constant 0 : i32
    %c0_i32_0 = arith.constant 0 : i32
    %c0_i32_1 = arith.constant 0 : i32
    return %c0_i32, %c0_i32_0 : i32, i32
  }
  func.func @transform_7(%arg0: i32, %arg1: i32) -> (i32, i32) {
    %c0_i32 = arith.constant 0 : i32
    %c0_i32_0 = arith.constant 0 : i32
    %c0_i32_1 = arith.constant 0 : i32
    return %c0_i32, %c0_i32_0 : i32, i32
  }
  func.func @transform_8(%arg0: i32, %arg1: i32) -> (i32, i32, i32, i32) {
    %c0_i32 = arith.constant 0 : i32
    %c0_i32_0 = arith.constant 0 : i32
    %c0_i32_1 = arith.constant 0 : i32
    return %arg0, %arg1, %c0_i32, %c0_i32_0 : i32, i32, i32, i32
  }
  func.func @transform_9(%arg0: i32, %arg1: i32) -> (i32, i32, i32, i32) {
    %c0_i32 = arith.constant 0 : i32
    %c0_i32_0 = arith.constant 0 : i32
    %c0_i32_1 = arith.constant 0 : i32
    return %arg0, %arg1, %c0_i32, %c0_i32_0 : i32, i32, i32, i32
  }
  func.func @transform_10(%arg0: i32, %arg1: i32) -> (i32, i32, i32, i32) {
    %c0_i32 = arith.constant 0 : i32
    %c0_i32_0 = arith.constant 0 : i32
    %c0_i32_1 = arith.constant 0 : i32
    return %arg0, %arg1, %c0_i32, %c0_i32_0 : i32, i32, i32, i32
  }
  func.func @transform_11(%arg0: i32, %arg1: i32) -> (i32, i32, i32, i32) {
    %c0_i32 = arith.constant 0 : i32
    %c0_i32_0 = arith.constant 0 : i32
    %c0_i32_1 = arith.constant 0 : i32
    return %arg0, %arg1, %c0_i32, %c0_i32_0 : i32, i32, i32, i32
  }
  func.func @transform_12(%arg0: i32, %arg1: i32) -> (i32, i32, i32, i32) {
    %c0_i32 = arith.constant 0 : i32
    %c0_i32_0 = arith.constant 0 : i32
    %c0_i32_1 = arith.constant 0 : i32
    return %arg0, %arg1, %c0_i32, %c0_i32_0 : i32, i32, i32, i32
  }
  func.func @transform_13(%arg0: i32, %arg1: i32) -> (i32, i32, i32, i32) {
    %c0_i32 = arith.constant 0 : i32
    %c0_i32_0 = arith.constant 0 : i32
    %c0_i32_1 = arith.constant 0 : i32
    return %arg0, %arg1, %c0_i32, %c0_i32_0 : i32, i32, i32, i32
  }
}

</mosaic_0001>

<llo_original>
// kernel: tpu_custom_call.1
$region0: #{tpu_custom_call.1}
  #allocation0 [shape = 'u32[]', space=smem, size = 0x4, offset = 0x4, fixed_abs, tag = 'smem constant byte address 0x4 - core index']
  #allocation1 [shape = 'u32[144,128]{1,0:T(1,128)}', space=vmem, size = 0x12000, scoped, tag = 'internal scratch']
  %s0 = inlined_call_operand.vmem [shape: f32[2,16,26,4], index: 0, kind: input, shape index: {}]
  %s1 = inlined_call_operand.vmem [shape: f32[2,16,26,4], index: 1, kind: input, shape index: {}]
  %s2 = inlined_call_operand.vmem [shape: f32[2,16,26,4], index: 2, kind: input, shape index: {}]
  %s3 = inlined_call_operand.vmem [shape: f32[1,4], index: 3, kind: input, shape index: {}]
  %s4 = inlined_call_operand.vmem [shape: f32[1,4], index: 4, kind: input, shape index: {}]
  %s5 = inlined_call_operand.vmem [shape: f32[9,4,8], index: 5, kind: input, shape index: {}]
  %s6 = inlined_call_operand.vmem [shape: f32[1,8], index: 6, kind: input, shape index: {}]
  %s7 = inlined_call_operand.vmem [shape: f32[4,8], index: 7, kind: input, shape index: {}]
  %s8 = inlined_call_operand.vmem [shape: f32[2,16,24,8], index: 8, kind: output, shape index: {0}]
  %s9 = inlined_call_operand.hbm [shape: f32[2,1,1,8], index: 9, kind: output, shape index: {1}]
  %s10 = inlined_call_operand.hbm [shape: f32[2,1,1,8], index: 10, kind: output, shape index: {2}]
  %s11 = inlined_call_operand.vmem [shape: f32[2,16,16,8], index: 11, kind: output, shape index: {3}]
  %s12 = inlined_call_operand.hbm [shape: f32[2,1,1,8], index: 12, kind: output, shape index: {4}]
  %s13 = inlined_call_operand.hbm [shape: f32[2,1,1,8], index: 13, kind: output, shape index: {5}]
  %14 = xla_tuple %s8, %s9, %s10, %s11, %s12, %s13
  %s15 = sld [smem:[#allocation0]]
  $region105: #{tpu_custom_call.1} parent=0
    _
  %s17 = ssub.s32 1, %s15
  %s18 = scalar_select 0, %s17, %s15
  $region1: #{tpu_custom_call.1} parent=0
    #allocation2 [shape = 'u8[1024]{0}', space=vmem, size = 0x400, scoped, tag = 'output window, operand 1']
    #allocation3 [shape = 's32[2]{0}', space=sflag, size = 0x8, scoped, tag = 'scoped memory for tpu_custom_call.1']
    #allocation4 [shape = 'u8[1024]{0}', space=vmem, size = 0x400, scoped, tag = 'output window, operand 2']
    #allocation5 [shape = 's32[2]{0}', space=sflag, size = 0x8, scoped, tag = 'scoped memory for tpu_custom_call.1']
    #allocation6 [shape = 'u8[1024]{0}', space=vmem, size = 0x400, scoped, tag = 'output window, operand 4']
    #allocation7 [shape = 'u8[1024]{0}', space=vmem, size = 0x400, scoped, tag = 'output window, operand 5']
    #allocation8 [shape = 's32[2]{0}', space=sflag, size = 0x8, scoped, tag = 'scoped memory for tpu_custom_call.1']
    %19 = vsyncpa [#allocation3], 0
    %s20 = scalar_lea.sflag [#allocation3], 1
    %21 = vsyncpa %s20, 0
    %22 = vsyncpa [#allocation5], 0
    %s23 = scalar_lea.sflag [#allocation5], 1
    %24 = vsyncpa %s23, 0
    %25 = vsyncpa [#allocation8], 0
    %s26 = scalar_lea.sflag [#allocation8], 1
    %27 = vsyncpa %s26, 0
    loop: start=0, step=1, limit=4
    $region2: #{tpu_custom_call.1} parent=1 // loop_pre_header
      _
    $region3: #{tpu_custom_call.1} parent=1 // loop_header
      %s29 = sphi 0, %s33
      %p30 = scmp.ge.s32.totalorder %s29, 4
      %s36 = sphi 0, %s48
      %s37 = sphi 0, %s44
      %s38 = sphi 0, %s36
      %s39 = sphi 0, %s37
      %s40 = sphi 0, %s38
      %s41 = sphi 0, %s39
      %s61 = sphi 0, %s63
      %s64 = sphi 0, %s61
      %s65 = sphi 0, %s64
      %s81 = sphi 0, %s65
      %s89 = sphi 0, %s91
      %s92 = sphi 0, %s89
      %s93 = sphi 0, %s92
      %s109 = sphi 0, %s93
      %s125 = sphi 0, %s127
      %s128 = sphi 0, %s125
      %s129 = sphi 0, %s128
      %s145 = sphi 0, %s129
      %s149 = sphi 0, %s149
      %s151 = sphi 0, %s149
      %s152 = sphi 0, %s151
      %s166 = sphi 0, %s152
      %s170 = sphi 0, %s170
      %s172 = sphi 0, %s170
      %s173 = sphi 0, %s172
      %s187 = sphi 0, %s173
      %s191 = sphi 0, %s191
      %s193 = sphi 0, %s191
      %s194 = sphi 0, %s193
      %s208 = sphi 0, %s194
      %s212 = sphi 0, %s212
      %s214 = sphi 0, %s212
      %s215 = sphi 0, %s214
      %s229 = sphi 0, %s215
      %s233 = sphi 0, %s233
      %s235 = sphi 0, %s233
      %s236 = sphi 0, %s235
      %s250 = sphi 0, %s236
      %s258 = sphi 0, %s260
      %s261 = sphi 0, %s258
      %s262 = sphi 0, %s261
      %s278 = sphi 0, %s262
      %s286 = sphi 0, %s288
      %s289 = sphi 0, %s286
      %s290 = sphi 0, %s289
      %s306 = sphi 0, %s290
      %s314 = sphi 0, %s316
      %s317 = sphi 0, %s314
      %s318 = sphi 0, %s317
      %s334 = sphi 0, %s318
      %s342 = sphi 0, %s344
      %s345 = sphi 0, %s342
      %s346 = sphi 0, %s345
      %s362 = sphi 0, %s346
      %s370 = sphi 0, %s372
      %s373 = sphi 0, %s370
      %s374 = sphi 0, %s373
      %s390 = sphi 0, %s374
      %s398 = sphi 0, %s400
      %s401 = sphi 0, %s398
      %s402 = sphi 0, %s401
      %s418 = sphi 0, %s402
    $region4: #{tpu_custom_call.1} parent=1 // loop_header_branch
      %32 = sbr.rel (%p30) target = $region8
    $region5: #{tpu_custom_call.1} parent=1 // loop_body
      %s34 = ssub.s32 %s29, 1
      %s35 = ssub.s32 %s29, 2
      %s42 = sadd.s32 1, %s37
      %p43 = scmp.ge.s32.totalorder %s42, 1
      %s44 = scalar_select %p43, 0, %s42
      %s45 = sadd.s32 1, %s36
      %s46 = scalar_select %p43, %s45, %s36
      %p47 = scmp.ge.s32.totalorder %s46, 2
      %s48 = scalar_select %p47, 0, %s46
      %s49 = smul.u32 %s37, 16
      %s50 = ssub.s32 %s49, 1
      %p51 = scmp.gt.s32.totalorder %s50, 0
      %s52 = scalar_select %p51, %s50, 0
      %s53 = smul.u32 %s44, 16
      %s54 = ssub.s32 %s53, 1
      %p55 = scmp.gt.s32.totalorder %s54, 0
      %s56 = scalar_select %p55, %s54, 0
      %s57 = ssub.s32 %s36, %s48
      %s58 = ssub.s32 %s52, %s56
      %s59 = sor.u32 %s57, %s58
      %p60 = scmp.eq.s32.totalorder %s59, 0
      %s62 = sadd.s32 %s61, 1
      %s63 = scalar_select %p60, %s61, %s62
      %p66 = pneg %p60
      %p67 = scmp.eq.s32.totalorder %s29, 1
      %p68 = por %p66, %p67
      %p69 = scmp.ne.s32.totalorder %s61, %s64
      %p70 = scmp.eq.s32.totalorder %s29, 0
      %p71 = por %p69, %p70
      %p72 = scmp.ne.s32.totalorder %s61, %s64
      %p73 = scmp.eq.s32.totalorder %s34, 1
      %p74 = por %p72, %p73
      %p75 = scmp.ne.s32.totalorder %s64, %s65
      %p76 = scmp.eq.s32.totalorder %s34, 0
      %p77 = por %p75, %p76
      %p78 = scmp.ne.s32.totalorder %s64, %s65
      %p79 = scmp.eq.s32.totalorder %s35, 1
      %p80 = por %p78, %p79
      %p82 = scmp.ne.s32.totalorder %s65, %s81
      %p83 = scmp.eq.s32.totalorder %s35, 0
      %p84 = por %p82, %p83
      %s85 = ssub.s32 %s36, %s48
      %s86 = ssub.s32 %s37, %s44
      %s87 = sor.u32 %s85, %s86
      %p88 = scmp.eq.s32.totalorder %s87, 0
      %s90 = sadd.s32 %s89, 1
      %s91 = scalar_select %p88, %s89, %s90
      %p94 = pneg %p88
      %p95 = scmp.eq.s32.totalorder %s29, 1
      %p96 = por %p94, %p95
      %p97 = scmp.ne.s32.totalorder %s89, %s92
      %p98 = scmp.eq.s32.totalorder %s29, 0
      %p99 = por %p97, %p98
      %p100 = scmp.ne.s32.totalorder %s89, %s92
      %p101 = scmp.eq.s32.totalorder %s34, 1
      %p102 = por %p100, %p101
      %p103 = scmp.ne.s32.totalorder %s92, %s93
      %p104 = scmp.eq.s32.totalorder %s34, 0
      %p105 = por %p103, %p104
      %p106 = scmp.ne.s32.totalorder %s92, %s93
      %p107 = scmp.eq.s32.totalorder %s35, 1
      %p108 = por %p106, %p107
      %p110 = scmp.ne.s32.totalorder %s93, %s109
      %p111 = scmp.eq.s32.totalorder %s35, 0
      %p112 = por %p110, %p111
      %s113 = smul.u32 %s37, 16
      %s114 = sadd.s32 %s113, 16
      %p115 = scmp.lt.s32.totalorder %s114, 15
      %s116 = scalar_select %p115, %s114, 15
      %s117 = smul.u32 %s44, 16
      %s118 = sadd.s32 %s117, 16
      %p119 = scmp.lt.s32.totalorder %s118, 15
      %s120 = scalar_select %p119, %s118, 15
      %s121 = ssub.s32 %s36, %s48
      %s122 = ssub.s32 %s116, %s120
      %s123 = sor.u32 %s121, %s122
      %p124 = scmp.eq.s32.totalorder %s123, 0
      %s126 = sadd.s32 %s125, 1
      %s127 = scalar_select %p124, %s125, %s126
      %p130 = pneg %p124
      %p131 = scmp.eq.s32.totalorder %s29, 1
      %p132 = por %p130, %p131
      %p133 = scmp.ne.s32.totalorder %s125, %s128
      %p134 = scmp.eq.s32.totalorder %s29, 0
      %p135 = por %p133, %p134
      %p136 = scmp.ne.s32.totalorder %s125, %s128
      %p137 = scmp.eq.s32.totalorder %s34, 1
      %p138 = por %p136, %p137
      %p139 = scmp.ne.s32.totalorder %s128, %s129
      %p140 = scmp.eq.s32.totalorder %s34, 0
      %p141 = por %p139, %p140
      %p142 = scmp.ne.s32.totalorder %s128, %s129
      %p143 = scmp.eq.s32.totalorder %s35, 1
      %p144 = por %p142, %p143
      %p146 = scmp.ne.s32.totalorder %s129, %s145
      %p147 = scmp.eq.s32.totalorder %s35, 0
      %p148 = por %p146, %p147
      %s150 = sadd.s32 %s149, 1
      %p153 = scmp.eq.s32.totalorder %s29, 1
      %p154 = scmp.ne.s32.totalorder %s149, %s151
      %p155 = scmp.eq.s32.totalorder %s29, 0
      %p156 = por %p154, %p155
      %p157 = scmp.ne.s32.totalorder %s149, %s151
      %p158 = scmp.eq.s32.totalorder %s34, 1
      %p159 = por %p157, %p158
      %p160 = scmp.ne.s32.totalorder %s151, %s152
      %p161 = scmp.eq.s32.totalorder %s34, 0
      %p162 = por %p160, %p161
      %p163 = scmp.ne.s32.totalorder %s151, %s152
      %p164 = scmp.eq.s32.totalorder %s35, 1
      %p165 = por %p163, %p164
      %p167 = scmp.ne.s32.totalorder %s152, %s166
      %p168 = scmp.eq.s32.totalorder %s35, 0
      %p169 = por %p167, %p168
      %s171 = sadd.s32 %s170, 1
      %p174 = scmp.eq.s32.totalorder %s29, 1
      %p175 = scmp.ne.s32.totalorder %s170, %s172
      %p176 = scmp.eq.s32.totalorder %s29, 0
      %p177 = por %p175, %p176
      %p178 = scmp.ne.s32.totalorder %s170, %s172
      %p179 = scmp.eq.s32.totalorder %s34, 1
      %p180 = por %p178, %p179
      %p181 = scmp.ne.s32.totalorder %s172, %s173
      %p182 = scmp.eq.s32.totalorder %s34, 0
      %p183 = por %p181, %p182
      %p184 = scmp.ne.s32.totalorder %s172, %s173
      %p185 = scmp.eq.s32.totalorder %s35, 1
      %p186 = por %p184, %p185
      %p188 = scmp.ne.s32.totalorder %s173, %s187
      %p189 = scmp.eq.s32.totalorder %s35, 0
      %p190 = por %p188, %p189
      %s192 = sadd.s32 %s191, 1
      %p195 = scmp.eq.s32.totalorder %s29, 1
      %p196 = scmp.ne.s32.totalorder %s191, %s193
      %p197 = scmp.eq.s32.totalorder %s29, 0
      %p198 = por %p196, %p197
      %p199 = scmp.ne.s32.totalorder %s191, %s193
      %p200 = scmp.eq.s32.totalorder %s34, 1
      %p201 = por %p199, %p200
      %p202 = scmp.ne.s32.totalorder %s193, %s194
      %p203 = scmp.eq.s32.totalorder %s34, 0
      %p204 = por %p202, %p203
      %p205 = scmp.ne.s32.totalorder %s193, %s194
      %p206 = scmp.eq.s32.totalorder %s35, 1
      %p207 = por %p205, %p206
      %p209 = scmp.ne.s32.totalorder %s194, %s208
      %p210 = scmp.eq.s32.totalorder %s35, 0
      %p211 = por %p209, %p210
      %s213 = sadd.s32 %s212, 1
      %p216 = scmp.eq.s32.totalorder %s29, 1
      %p217 = scmp.ne.s32.totalorder %s212, %s214
      %p218 = scmp.eq.s32.totalorder %s29, 0
      %p219 = por %p217, %p218
      %p220 = scmp.ne.s32.totalorder %s212, %s214
      %p221 = scmp.eq.s32.totalorder %s34, 1
      %p222 = por %p220, %p221
      %p223 = scmp.ne.s32.totalorder %s214, %s215
      %p224 = scmp.eq.s32.totalorder %s34, 0
      %p225 = por %p223, %p224
      %p226 = scmp.ne.s32.totalorder %s214, %s215
      %p227 = scmp.eq.s32.totalorder %s35, 1
      %p228 = por %p226, %p227
      %p230 = scmp.ne.s32.totalorder %s215, %s229
      %p231 = scmp.eq.s32.totalorder %s35, 0
      %p232 = por %p230, %p231
      %s234 = sadd.s32 %s233, 1
      %p237 = scmp.eq.s32.totalorder %s29, 1
      %p238 = scmp.ne.s32.totalorder %s233, %s235
      %p239 = scmp.eq.s32.totalorder %s29, 0
      %p240 = por %p238, %p239
      %p241 = scmp.ne.s32.totalorder %s233, %s235
      %p242 = scmp.eq.s32.totalorder %s34, 1
      %p243 = por %p241, %p242
      %p244 = scmp.ne.s32.totalorder %s235, %s236
      %p245 = scmp.eq.s32.totalorder %s34, 0
      %p246 = por %p244, %p245
      %p247 = scmp.ne.s32.totalorder %s235, %s236
      %p248 = scmp.eq.s32.totalorder %s35, 1
      %p249 = por %p247, %p248
      %p251 = scmp.ne.s32.totalorder %s236, %s250
      %p252 = scmp.eq.s32.totalorder %s35, 0
      %p253 = por %p251, %p252
      %s254 = ssub.s32 %s36, %s48
      %s255 = ssub.s32 %s37, %s44
      %s256 = sor.u32 %s254, %s255
      %p257 = scmp.eq.s32.totalorder %s256, 0
      %s259 = sadd.s32 %s258, 1
      %s260 = scalar_select %p257, %s258, %s259
      %p263 = pneg %p257
      %p264 = scmp.eq.s32.totalorder %s29, 1
      %p265 = por %p263, %p264
      %p266 = scmp.ne.s32.totalorder %s258, %s261
      %p267 = scmp.eq.s32.totalorder %s29, 0
      %p268 = por %p266, %p267
      %p269 = scmp.ne.s32.totalorder %s258, %s261
      %p270 = scmp.eq.s32.totalorder %s34, 1
      %p271 = por %p269, %p270
      %p272 = scmp.ne.s32.totalorder %s261, %s262
      %p273 = scmp.eq.s32.totalorder %s34, 0
      %p274 = por %p272, %p273
      %p275 = scmp.ne.s32.totalorder %s261, %s262
      %p276 = scmp.eq.s32.totalorder %s35, 1
      %p277 = por %p275, %p276
      %p279 = scmp.ne.s32.totalorder %s262, %s278
      %p280 = scmp.eq.s32.totalorder %s35, 0
      %p281 = por %p279, %p280
      %s282 = ssub.s32 %s36, %s48
      %s283 = ssub.s32 %s37, %s44
      %s284 = sor.u32 %s282, %s283
      %p285 = scmp.eq.s32.totalorder %s284, 0
      %s287 = sadd.s32 %s286, 1
      %s288 = scalar_select %p285, %s286, %s287
      %p291 = pneg %p285
      %p292 = scmp.eq.s32.totalorder %s29, 1
      %p293 = por %p291, %p292
      %p294 = scmp.ne.s32.totalorder %s286, %s289
      %p295 = scmp.eq.s32.totalorder %s29, 0
      %p296 = por %p294, %p295
      %p297 = scmp.ne.s32.totalorder %s286, %s289
      %p298 = scmp.eq.s32.totalorder %s34, 1
      %p299 = por %p297, %p298
      %p300 = scmp.ne.s32.totalorder %s289, %s290
      %p301 = scmp.eq.s32.totalorder %s34, 0
      %p302 = por %p300, %p301
      %p303 = scmp.ne.s32.totalorder %s289, %s290
      %p304 = scmp.eq.s32.totalorder %s35, 1
      %p305 = por %p303, %p304
      %p307 = scmp.ne.s32.totalorder %s290, %s306
      %p308 = scmp.eq.s32.totalorder %s35, 0
      %p309 = por %p307, %p308
      %s310 = ssub.s32 %s36, %s48
      %s311 = ssub.s32 %s37, %s44
      %s312 = sor.u32 %s310, %s311
      %p313 = scmp.eq.s32.totalorder %s312, 0
      %s315 = sadd.s32 %s314, 1
      %s316 = scalar_select %p313, %s314, %s315
      %p319 = pneg %p313
      %p320 = scmp.eq.s32.totalorder %s29, 1
      %p321 = por %p319, %p320
      %p322 = scmp.ne.s32.totalorder %s314, %s317
      %p323 = scmp.eq.s32.totalorder %s29, 0
      %p324 = por %p322, %p323
      %p325 = scmp.ne.s32.totalorder %s314, %s317
      %p326 = scmp.eq.s32.totalorder %s34, 1
      %p327 = por %p325, %p326
      %p328 = scmp.ne.s32.totalorder %s317, %s318
      %p329 = scmp.eq.s32.totalorder %s34, 0
      %p330 = por %p328, %p329
      %p331 = scmp.ne.s32.totalorder %s317, %s318
      %p332 = scmp.eq.s32.totalorder %s35, 1
      %p333 = por %p331, %p332
      %p335 = scmp.ne.s32.totalorder %s318, %s334
      %p336 = scmp.eq.s32.totalorder %s35, 0
      %p337 = por %p335, %p336
      %s338 = ssub.s32 %s36, %s48
      %s339 = ssub.s32 %s37, %s44
      %s340 = sor.u32 %s338, %s339
      %p341 = scmp.eq.s32.totalorder %s340, 0
      %s343 = sadd.s32 %s342, 1
      %s344 = scalar_select %p341, %s342, %s343
      %p347 = pneg %p341
      %p348 = scmp.eq.s32.totalorder %s29, 1
      %p349 = por %p347, %p348
      %p350 = scmp.ne.s32.totalorder %s342, %s345
      %p351 = scmp.eq.s32.totalorder %s29, 0
      %p352 = por %p350, %p351
      %p353 = scmp.ne.s32.totalorder %s342, %s345
      %p354 = scmp.eq.s32.totalorder %s34, 1
      %p355 = por %p353, %p354
      %p356 = scmp.ne.s32.totalorder %s345, %s346
      %p357 = scmp.eq.s32.totalorder %s34, 0
      %p358 = por %p356, %p357
      %p359 = scmp.ne.s32.totalorder %s345, %s346
      %p360 = scmp.eq.s32.totalorder %s35, 1
      %p361 = por %p359, %p360
      %p363 = scmp.ne.s32.totalorder %s346, %s362
      %p364 = scmp.eq.s32.totalorder %s35, 0
      %p365 = por %p363, %p364
      %s366 = ssub.s32 %s36, %s48
      %s367 = ssub.s32 %s37, %s44
      %s368 = sor.u32 %s366, %s367
      %p369 = scmp.eq.s32.totalorder %s368, 0
      %s371 = sadd.s32 %s370, 1
      %s372 = scalar_select %p369, %s370, %s371
      %p375 = pneg %p369
      %p376 = scmp.eq.s32.totalorder %s29, 1
      %p377 = por %p375, %p376
      %p378 = scmp.ne.s32.totalorder %s370, %s373
      %p379 = scmp.eq.s32.totalorder %s29, 0
      %p380 = por %p378, %p379
      %p381 = scmp.ne.s32.totalorder %s370, %s373
      %p382 = scmp.eq.s32.totalorder %s34, 1
      %p383 = por %p381, %p382
      %p384 = scmp.ne.s32.totalorder %s373, %s374
      %p385 = scmp.eq.s32.totalorder %s34, 0
      %p386 = por %p384, %p385
      %p387 = scmp.ne.s32.totalorder %s373, %s374
      %p388 = scmp.eq.s32.totalorder %s35, 1
      %p389 = por %p387, %p388
      %p391 = scmp.ne.s32.totalorder %s374, %s390
      %p392 = scmp.eq.s32.totalorder %s35, 0
      %p393 = por %p391, %p392
      %s394 = ssub.s32 %s36, %s48
      %s395 = ssub.s32 %s37, %s44
      %s396 = sor.u32 %s394, %s395
      %p397 = scmp.eq.s32.totalorder %s396, 0
      %s399 = sadd.s32 %s398, 1
      %s400 = scalar_select %p397, %s398, %s399
      %p403 = pneg %p397
      %p404 = scmp.eq.s32.totalorder %s29, 1
      %p405 = por %p403, %p404
      %p406 = scmp.ne.s32.totalorder %s398, %s401
      %p407 = scmp.eq.s32.totalorder %s29, 0
      %p408 = por %p406, %p407
      %p409 = scmp.ne.s32.totalorder %s398, %s401
      %p410 = scmp.eq.s32.totalorder %s34, 1
      %p411 = por %p409, %p410
      %p412 = scmp.ne.s32.totalorder %s401, %s402
      %p413 = scmp.eq.s32.totalorder %s34, 0
      %p414 = por %p412, %p413
      %p415 = scmp.ne.s32.totalorder %s401, %s402
      %p416 = scmp.eq.s32.totalorder %s35, 1
      %p417 = por %p415, %p416
      %p419 = scmp.ne.s32.totalorder %s402, %s418
      %p420 = scmp.eq.s32.totalorder %s35, 0
      %p421 = por %p419, %p420
      %p422 = scmp.le.s32.totalorder 1, %s29
      %p423 = scmp.lt.s32.totalorder %s29, 3
      %p424 = pnand %p422, %p423
      %p425 = pneg %p424
      // Predicated region
      $region9: #{tpu_custom_call.1} parent=5 // pred_check
        _
      $region10: #{tpu_custom_call.1} parent=5 // pred_check_branch
        %427 = sbr.rel (%p424) target = $region12
      $region11: #{tpu_custom_call.1} parent=5 // pred_region
        %s428 = ssub.s32 %s29, 1
        // Predicated region
        $region13: #{tpu_custom_call.1} parent=11 // pred_check
          %p429 = pneg %p162
        $region14: #{tpu_custom_call.1} parent=11 // pred_check_branch
          %431 = sbr.rel (%p429) target = $region16
        $region15: #{tpu_custom_call.1} parent=11 // pred_region
          _
        $region16: #{tpu_custom_call.1} parent=11 // pred_fallthru
          _
        // Predicated region
        $region17: #{tpu_custom_call.1} parent=11 // pred_check
          %p432 = pneg %p183
        $region18: #{tpu_custom_call.1} parent=11 // pred_check_branch
          %434 = sbr.rel (%p432) target = $region20
        $region19: #{tpu_custom_call.1} parent=11 // pred_region
          _
        $region20: #{tpu_custom_call.1} parent=11 // pred_fallthru
          _
        // Predicated region
        $region21: #{tpu_custom_call.1} parent=11 // pred_check
          %p435 = pneg %p204
        $region22: #{tpu_custom_call.1} parent=11 // pred_check_branch
          %437 = sbr.rel (%p435) target = $region24
        $region23: #{tpu_custom_call.1} parent=11 // pred_region
          _
        $region24: #{tpu_custom_call.1} parent=11 // pred_fallthru
          _
        // Predicated region
        $region25: #{tpu_custom_call.1} parent=11 // pred_check
          %p438 = pneg %p225
        $region26: #{tpu_custom_call.1} parent=11 // pred_check_branch
          %440 = sbr.rel (%p438) target = $region28
        $region27: #{tpu_custom_call.1} parent=11 // pred_region
          _
        $region28: #{tpu_custom_call.1} parent=11 // pred_fallthru
          _
        // Predicated region
        $region29: #{tpu_custom_call.1} parent=11 // pred_check
          %p441 = pneg %p246
        $region30: #{tpu_custom_call.1} parent=11 // pred_check_branch
          %443 = sbr.rel (%p441) target = $region32
        $region31: #{tpu_custom_call.1} parent=11 // pred_region
          _
        $region32: #{tpu_custom_call.1} parent=11 // pred_fallthru
          _
      $region12: #{tpu_custom_call.1} parent=5 // pred_fallthru
        _
      %p444 = scmp.lt.s32.totalorder %s29, 2
      // Predicated region
      $region33: #{tpu_custom_call.1} parent=5 // pred_check
        %p445 = pneg %p444
      $region34: #{tpu_custom_call.1} parent=5 // pred_check_branch
        %447 = sbr.rel (%p445) target = $region36
      $region35: #{tpu_custom_call.1} parent=5 // pred_region
        // Predicated region
        $region37: #{tpu_custom_call.1} parent=35 // pred_check
          %p448 = pneg %p71
        $region38: #{tpu_custom_call.1} parent=35 // pred_check_branch
          %450 = sbr.rel (%p448) target = $region40
        $region39: #{tpu_custom_call.1} parent=35 // pred_region
          %s451 = smul.u32 %s37, 16
          %s452 = ssub.s32 %s451, 1
          %p453 = scmp.gt.s32.totalorder %s452, 0
          %s454 = scalar_select %p453, %s452, 0
          %p455 = scmp.lt.s32.totalorder %s36, 1
          %s456 = scalar_select %p455, %s36, 1
          %p457 = scmp.lt.s32.totalorder %s454, 15
          %s458 = scalar_select %p457, %s454, 15
          %s459 = smul.addr %s458, 4
          %s460 = smul.addr %s456, 64
          %s461 = sadd.s32 %s459, %s460
          %s462 = smul.addr %s461, 8
          %s463 = scalar_lea.vmem %s0, %s462
          %s464 = smul.u32 %s37, 16
          %s465 = ssub.s32 %s464, 1
          %p466 = scmp.gt.s32.totalorder %s465, 0
          %s467 = scalar_select %p466, %s465, 0
        $region40: #{tpu_custom_call.1} parent=35 // pred_fallthru
          _
        // Predicated region
        $region41: #{tpu_custom_call.1} parent=35 // pred_check
          %p468 = pneg %p99
        $region42: #{tpu_custom_call.1} parent=35 // pred_check_branch
          %470 = sbr.rel (%p468) target = $region44
        $region43: #{tpu_custom_call.1} parent=35 // pred_region
          %s471 = smul.u32 16, %s37
          %p472 = scmp.lt.s32.totalorder %s36, 1
          %s473 = scalar_select %p472, %s36, 1
          %p474 = scmp.lt.s32.totalorder %s471, 15
          %s475 = scalar_select %p474, %s471, 15
          %s476 = smul.addr %s475, 4
          %s477 = smul.addr %s473, 64
          %s478 = sadd.s32 %s476, %s477
          %s479 = smul.addr %s478, 8
          %s480 = scalar_lea.vmem %s1, %s479
          %s481 = smul.u32 16, %s37
        $region44: #{tpu_custom_call.1} parent=35 // pred_fallthru
          _
        // Predicated region
        $region45: #{tpu_custom_call.1} parent=35 // pred_check
          %p482 = pneg %p135
        $region46: #{tpu_custom_call.1} parent=35 // pred_check_branch
          %484 = sbr.rel (%p482) target = $region48
        $region47: #{tpu_custom_call.1} parent=35 // pred_region
          %s485 = smul.u32 %s37, 16
          %s486 = sadd.s32 %s485, 16
          %p487 = scmp.lt.s32.totalorder %s486, 15
          %s488 = scalar_select %p487, %s486, 15
          %p489 = scmp.lt.s32.totalorder %s36, 1
          %s490 = scalar_select %p489, %s36, 1
          %p491 = scmp.lt.s32.totalorder %s488, 15
          %s492 = scalar_select %p491, %s488, 15
          %s493 = smul.addr %s492, 4
          %s494 = smul.addr %s490, 64
          %s495 = sadd.s32 %s493, %s494
          %s496 = smul.addr %s495, 8
          %s497 = scalar_lea.vmem %s2, %s496
          %s498 = smul.u32 %s37, 16
          %s499 = sadd.s32 %s498, 16
          %p500 = scmp.lt.s32.totalorder %s499, 15
          %s501 = scalar_select %p500, %s499, 15
        $region48: #{tpu_custom_call.1} parent=35 // pred_fallthru
          _
      $region36: #{tpu_custom_call.1} parent=5 // pred_fallthru
        _
      %p502 = scmp.le.s32.totalorder 1, %s29
      %p503 = scmp.lt.s32.totalorder %s29, 3
      %p504 = pnand %p502, %p503
      %p505 = pneg %p504
      // Predicated region
      $region49: #{tpu_custom_call.1} parent=5 // pred_check
        _
      $region50: #{tpu_custom_call.1} parent=5 // pred_check_branch
        %507 = sbr.rel (%p504) target = $region52
      $region51: #{tpu_custom_call.1} parent=5 // pred_region
        %s508 = ssub.s32 %s29, 1
        %s509 = smul.u32 %s39, 16
        %s510 = ssub.s32 %s509, 1
        %p511 = scmp.gt.s32.totalorder %s510, 0
        %s512 = scalar_select %p511, %s510, 0
        %p513 = scmp.lt.s32.totalorder %s38, 1
        %s514 = scalar_select %p513, %s38, 1
        %p515 = scmp.lt.s32.totalorder %s512, 15
        %s516 = scalar_select %p515, %s512, 15
        %s517 = smul.addr %s516, 4
        %s518 = smul.addr %s514, 64
        %s519 = sadd.s32 %s517, %s518
        %s520 = smul.addr %s519, 8
        %s521 = scalar_lea.vmem %s0, %s520
        %p522 = pneg %p77
        %p523 = pneg %p74
        %s524 = smul.u32 16, %s39
        %p525 = scmp.lt.s32.totalorder %s38, 1
        %s526 = scalar_select %p525, %s38, 1
        %p527 = scmp.lt.s32.totalorder %s524, 15
        %s528 = scalar_select %p527, %s524, 15
        %s529 = smul.addr %s528, 4
        %s530 = smul.addr %s526, 64
        %s531 = sadd.s32 %s529, %s530
        %s532 = smul.addr %s531, 8
        %s533 = scalar_lea.vmem %s1, %s532
        %p534 = pneg %p105
        %p535 = pneg %p102
        %s536 = smul.u32 %s39, 16
        %s537 = sadd.s32 %s536, 16
        %p538 = scmp.lt.s32.totalorder %s537, 15
        %s539 = scalar_select %p538, %s537, 15
        %p540 = scmp.lt.s32.totalorder %s38, 1
        %s541 = scalar_select %p540, %s38, 1
        %p542 = scmp.lt.s32.totalorder %s539, 15
        %s543 = scalar_select %p542, %s539, 15
        %s544 = smul.addr %s543, 4
        %s545 = smul.addr %s541, 64
        %s546 = sadd.s32 %s544, %s545
        %s547 = smul.addr %s546, 8
        %s548 = scalar_lea.vmem %s2, %s547
        %p549 = pneg %p141
        %p550 = pneg %p138
        %p551 = pneg %p162
        %p552 = pneg %p159
        %p553 = pneg %p183
        %p554 = pneg %p180
        %p555 = pneg %p204
        %p556 = pneg %p201
        %p557 = pneg %p225
        %p558 = pneg %p222
        %p559 = pneg %p246
        %p560 = pneg %p243
        %p561 = pneg %p274
        %p562 = pneg %p271
        %s563 = smul.u32 16, %s39
        %p564 = scmp.lt.s32.totalorder %s38, 1
        %s565 = scalar_select %p564, %s38, 1
        %p566 = scmp.lt.s32.totalorder %s563, 15
        %s567 = scalar_select %p566, %s563, 15
        %s568 = smul.addr %s567, 3
        %s569 = smul.addr %s565, 48
        %s570 = sadd.s32 %s568, %s569
        %s571 = smul.addr %s570, 8
        %s572 = scalar_lea.vmem %s8, %s571
        %p573 = pneg %p302
        %p574 = pneg %p299
        %s575 = sand.u32 %s289, 1
        %s576 = scalar_lea.sflag [#allocation3], %s575
        %s577 = sand.u32 %s289, 1
        %s578 = scalar_lea.vmem [#allocation2], %s577
        %p579 = pneg %p330
        %p580 = pneg %p327
        %s581 = sand.u32 %s34, 1
        %s582 = scalar_lea.sflag [#allocation5], %s581
        %s583 = sand.u32 %s317, 1
        %s584 = scalar_lea.vmem [#allocation4], %s583
        %p585 = pneg %p358
        %p586 = pneg %p355
        %s587 = smul.u32 16, %s39
        %p588 = scmp.lt.s32.totalorder %s38, 1
        %s589 = scalar_select %p588, %s38, 1
        %p590 = scmp.lt.s32.totalorder %s587, 15
        %s591 = scalar_select %p590, %s587, 15
        %s592 = smul.addr %s591, 2
        %s593 = smul.addr %s589, 32
        %s594 = sadd.s32 %s592, %s593
        %s595 = smul.addr %s594, 8
        %s596 = scalar_lea.vmem %s11, %s595
        %p597 = pneg %p386
        %p598 = pneg %p383
        %s599 = sand.u32 %s34, 1
        %s600 = scalar_lea.sflag [#allocation5], %s599
        %s601 = sand.u32 %s373, 1
        %s602 = scalar_lea.vmem [#allocation6], %s601
        %p603 = pneg %p414
        %p604 = pneg %p411
        %s605 = sand.u32 %s401, 1
        %s606 = scalar_lea.sflag [#allocation8], %s605
        %s607 = sand.u32 %s401, 1
        %s608 = scalar_lea.vmem [#allocation7], %s607
        %s609 = smul.u32 %s39, 16
        %s610 = ssub.s32 %s609, 1
        %p611 = scmp.gt.s32.totalorder %s610, 0
        %s612 = scalar_select %p611, %s610, 0
        %p613 = scmp.lt.s32.totalorder %s38, 1
        %s614 = scalar_select %p613, %s38, 1
        %p615 = scmp.lt.s32.totalorder %s612, 15
        %s616 = scalar_select %p615, %s612, 15
        %s617 = smul.addr %s616, 4
        %s618 = smul.addr %s614, 64
        %s619 = sadd.s32 %s617, %s618
        %s620 = smul.addr %s619, 8
        %s621 = scalar_lea.vmem %s0, %s620
        %s622 = smul.u32 %s39, 16
        %s623 = ssub.s32 %s622, 1
        %p624 = scmp.gt.s32.totalorder %s623, 0
        %s625 = scalar_select %p624, %s623, 0
        %s626 = smul.u32 16, %s39
        %p627 = scmp.lt.s32.totalorder %s38, 1
        %s628 = scalar_select %p627, %s38, 1
        %p629 = scmp.lt.s32.totalorder %s626, 15
        %s630 = scalar_select %p629, %s626, 15
        %s631 = smul.addr %s630, 4
        %s632 = smul.addr %s628, 64
        %s633 = sadd.s32 %s631, %s632
        %s634 = smul.addr %s633, 8
        %s635 = scalar_lea.vmem %s1, %s634
        %s636 = smul.u32 16, %s39
        %s637 = smul.u32 %s39, 16
        %s638 = sadd.s32 %s637, 16
        %p639 = scmp.lt.s32.totalorder %s638, 15
        %s640 = scalar_select %p639, %s638, 15
        %p641 = scmp.lt.s32.totalorder %s38, 1
        %s642 = scalar_select %p641, %s38, 1
        %p643 = scmp.lt.s32.totalorder %s640, 15
        %s644 = scalar_select %p643, %s640, 15
        %s645 = smul.addr %s644, 4
        %s646 = smul.addr %s642, 64
        %s647 = sadd.s32 %s645, %s646
        %s648 = smul.addr %s647, 8
        %s649 = scalar_lea.vmem %s2, %s648
        %s650 = smul.u32 %s39, 16
        %s651 = sadd.s32 %s650, 16
        %p652 = scmp.lt.s32.totalorder %s651, 15
        %s653 = scalar_select %p652, %s651, 15
        %s654 = smul.u32 16, %s39
        %p655 = scmp.lt.s32.totalorder %s38, 1
        %s656 = scalar_select %p655, %s38, 1
        %p657 = scmp.lt.s32.totalorder %s654, 15
        %s658 = scalar_select %p657, %s654, 15
        %s659 = smul.addr %s658, 3
        %s660 = smul.addr %s656, 48
        %s661 = sadd.s32 %s659, %s660
        %s662 = smul.addr %s661, 8
        %s663 = scalar_lea.vmem %s8, %s662
        %s664 = smul.u32 16, %s39
        %s665 = smul.u32 16, %s39
        %p666 = scmp.lt.s32.totalorder %s38, 1
        %s667 = scalar_select %p666, %s38, 1
        %p668 = scmp.lt.s32.totalorder %s665, 15
        %s669 = scalar_select %p668, %s665, 15
        %s670 = smul.addr %s669, 2
        %s671 = smul.addr %s667, 32
        %s672 = sadd.s32 %s670, %s671
        %s673 = smul.addr %s672, 8
        %s674 = scalar_lea.vmem %s11, %s673
        %s675 = smul.u32 16, %s39
        %p676 = scmp.gt.s32.totalorder %s39, 0
        %p677 = scmp.lt.s32.totalorder %s39, 0
        %v678 = vld [vmem:[%s621] sm:$0xff]
        %v679 = vld [vmem:[%s621 + $0x8] sm:$0xff]
        %v680 = vld [vmem:[%s621 + $0x10] sm:$0xff]
        %v681 = vld [vmem:[%s621 + $0x18] sm:$0x3]
        %v682 = vld [vmem:[%s635] sm:$0xff]
        %v683 = vld [vmem:[%s635 + $0x8] sm:$0xff]
        %v684 = vld [vmem:[%s635 + $0x10] sm:$0xff]
        %v685 = vld [vmem:[%s635 + $0x18] sm:$0x3]
        %v686 = vld [vmem:[%s635 + $0x20] sm:$0xff]
        %v687 = vld [vmem:[%s635 + $0x28] sm:$0xff]
        %v688 = vld [vmem:[%s635 + $0x30] sm:$0xff]
        %v689 = vld [vmem:[%s635 + $0x38] sm:$0x3]
        %v690 = vld [vmem:[%s635 + $0x40] sm:$0xff]
        %v691 = vld [vmem:[%s635 + $0x48] sm:$0xff]
        %v692 = vld [vmem:[%s635 + $0x50] sm:$0xff]
        %v693 = vld [vmem:[%s635 + $0x58] sm:$0x3]
        %v694 = vld [vmem:[%s635 + $0x60] sm:$0xff]
        %v695 = vld [vmem:[%s635 + $0x68] sm:$0xff]
        %v696 = vld [vmem:[%s635 + $0x70] sm:$0xff]
        %v697 = vld [vmem:[%s635 + $0x78] sm:$0x3]
        %v698 = vld [vmem:[%s635 + $0x80] sm:$0xff]
        %v699 = vld [vmem:[%s635 + $0x88] sm:$0xff]
        %v700 = vld [vmem:[%s635 + $0x90] sm:$0xff]
        %v701 = vld [vmem:[%s635 + $0x98] sm:$0x3]
        %v702 = vld [vmem:[%s635 + $0xa0] sm:$0xff]
        %v703 = vld [vmem:[%s635 + $0xa8] sm:$0xff]
        %v704 = vld [vmem:[%s635 + $0xb0] sm:$0xff]
        %v705 = vld [vmem:[%s635 + $0xb8] sm:$0x3]
        %v706 = vld [vmem:[%s635 + $0xc0] sm:$0xff]
        %v707 = vld [vmem:[%s635 + $0xc8] sm:$0xff]
        %v708 = vld [vmem:[%s635 + $0xd0] sm:$0xff]
        %v709 = vld [vmem:[%s635 + $0xd8] sm:$0x3]
        %v710 = vld [vmem:[%s635 + $0xe0] sm:$0xff]
        %v711 = vld [vmem:[%s635 + $0xe8] sm:$0xff]
        %v712 = vld [vmem:[%s635 + $0xf0] sm:$0xff]
        %v713 = vld [vmem:[%s635 + $0xf8] sm:$0x3]
        %v714 = vld [vmem:[%s635 + $0x100] sm:$0xff]
        %v715 = vld [vmem:[%s635 + $0x108] sm:$0xff]
        %v716 = vld [vmem:[%s635 + $0x110] sm:$0xff]
        %v717 = vld [vmem:[%s635 + $0x118] sm:$0x3]
        %v718 = vld [vmem:[%s635 + $0x120] sm:$0xff]
        %v719 = vld [vmem:[%s635 + $0x128] sm:$0xff]
        %v720 = vld [vmem:[%s635 + $0x130] sm:$0xff]
        %v721 = vld [vmem:[%s635 + $0x138] sm:$0x3]
        %v722 = vld [vmem:[%s635 + $0x140] sm:$0xff]
        %v723 = vld [vmem:[%s635 + $0x148] sm:$0xff]
        %v724 = vld [vmem:[%s635 + $0x150] sm:$0xff]
        %v725 = vld [vmem:[%s635 + $0x158] sm:$0x3]
        %v726 = vld [vmem:[%s635 + $0x160] sm:$0xff]
        %v727 = vld [vmem:[%s635 + $0x168] sm:$0xff]
        %v728 = vld [vmem:[%s635 + $0x170] sm:$0xff]
        %v729 = vld [vmem:[%s635 + $0x178] sm:$0x3]
        %v730 = vld [vmem:[%s635 + $0x180] sm:$0xff]
        %v731 = vld [vmem:[%s635 + $0x188] sm:$0xff]
        %v732 = vld [vmem:[%s635 + $0x190] sm:$0xff]
        %v733 = vld [vmem:[%s635 + $0x198] sm:$0x3]
        %v734 = vld [vmem:[%s635 + $0x1a0] sm:$0xff]
        %v735 = vld [vmem:[%s635 + $0x1a8] sm:$0xff]
        %v736 = vld [vmem:[%s635 + $0x1b0] sm:$0xff]
        %v737 = vld [vmem:[%s635 + $0x1b8] sm:$0x3]
        %v738 = vld [vmem:[%s635 + $0x1c0] sm:$0xff]
        %v739 = vld [vmem:[%s635 + $0x1c8] sm:$0xff]
        %v740 = vld [vmem:[%s635 + $0x1d0] sm:$0xff]
        %v741 = vld [vmem:[%s635 + $0x1d8] sm:$0x3]
        %v742 = vld [vmem:[%s635 + $0x1e0] sm:$0xff]
        %v743 = vld [vmem:[%s635 + $0x1e8] sm:$0xff]
        %v744 = vld [vmem:[%s635 + $0x1f0] sm:$0xff]
        %v745 = vld [vmem:[%s635 + $0x1f8] sm:$0x3]
        %v746 = vld [vmem:[%s649] sm:$0xff]
        %v747 = vld [vmem:[%s649 + $0x8] sm:$0xff]
        %v748 = vld [vmem:[%s649 + $0x10] sm:$0xff]
        %v749 = vld [vmem:[%s649 + $0x18] sm:$0x3]
        %v750 = vld [vmem:[%s3] sm:$0x1]
        %v751 = vld [vmem:[%s4] sm:$0x1]
        %v752 = vlaneseq
        %v753 = vshrl.u32 %v752, 7
        %v754 = vadd.s32 %v753, 8
        %v755 = vadd.s32 %v753, 16
        %v756 = vadd.s32 %v753, 24
        %vm757 = vcmp.ge.s32.totalorder %v753, 2
        %vm758 = vcmp.ge.s32.totalorder %v754, 2
        %vm759 = vcmp.ge.s32.totalorder %v755, 2
        %vm760 = vcmp.ge.s32.totalorder %v756, 2
        %vm761 = vcmp.le.s32.totalorder %v753, 17
        %vm762 = vcmp.le.s32.totalorder %v754, 17
        %vm763 = vcmp.le.s32.totalorder %v755, 17
        %vm764 = vcmp.le.s32.totalorder %v756, 17
        %vm765 = vmand %vm757, %vm761
        %vm766 = vmand %vm758, %vm762
        %vm767 = vmand %vm759, %vm763
        %vm768 = vmand %vm760, %vm764
        %s769 = scalar_select %p676, 1, 0
        %v770 = vstv %s769
        %vm771 = vcmp.eq.s32.totalorder %v770, 1
        %s772 = scalar_select %p677, 1, 0
        %v773 = vstv %s772
        %vm774 = vcmp.eq.s32.totalorder %v773, 1
        %v775 = vsel %vm765, 1, 0
        %v776 = vsel %vm766, 1, 0
        %v777 = vsel %vm767, 1, 0
        %v778 = vsel %vm768, 1, 0
        %vm779 = vcmp.eq.s32.totalorder %v775, 1
        %vm780 = vcmp.eq.s32.totalorder %v776, 1
        %vm781 = vcmp.eq.s32.totalorder %v777, 1
        %vm782 = vcmp.eq.s32.totalorder %v778, 1
        %v783 = vsel %vm771, 1, 0
        %v784 = vsel %vm774, 1, 0
        %vm785 = vcmp.eq.s32.totalorder %v783, 1
        %vm786 = vcmp.eq.s32.totalorder %v784, 1
        %vm787 = vmand %vm779, %vm785
        %vm788 = vmand %vm780, %vm785
        %vm789 = vmand %vm781, %vm785
        %vm790 = vmand %vm782, %vm785
        %vm791 = vmand %vm779, 1
        %vm792 = vmand %vm780, 1
        %vm793 = vmand %vm781, 1
        %vm794 = vmand %vm782, 1
        %vm795 = vmand %vm779, %vm786
        %vm796 = vmand %vm780, %vm786
        %vm797 = vmand %vm781, %vm786
        %vm798 = vmand %vm782, %vm786
        %v799 = vsel %vm787, 1, 0
        %v800 = vsel %vm788, 1, 0
        %v801 = vsel %vm789, 1, 0
        %v802 = vsel %vm790, 1, 0
        %v803 = vsel %vm791, 1, 0
        %v804 = vsel %vm792, 1, 0
        %v805 = vsel %vm793, 1, 0
        %v806 = vsel %vm794, 1, 0
        %v807 = vsel %vm795, 1, 0
        %v808 = vsel %vm796, 1, 0
        %v809 = vsel %vm797, 1, 0
        %v810 = vsel %vm798, 1, 0
        %v811 = vcvt.s32.f32 %v799
        %v812 = vcvt.s32.f32 %v800
        %v813 = vcvt.s32.f32 %v801
        %v814 = vcvt.s32.f32 %v802
        %v815 = vcvt.s32.f32 %v803
        %v816 = vcvt.s32.f32 %v804
        %v817 = vcvt.s32.f32 %v805
        %v818 = vcvt.s32.f32 %v806
        %v819 = vcvt.s32.f32 %v807
        %v820 = vcvt.s32.f32 %v808
        %v821 = vcvt.s32.f32 %v809
        %v822 = vcvt.s32.f32 %v810
        %v824 = vlaneseq
        %v825 = vshrl.u32 %v824, 7
        %v826 = vsub.s32 0, %v825
        %v827 = vrot.slane %v750, %v826
        %v829 = vmul.f32 %v678, %v827
        %v830 = vmul.f32 %v679, %v827
        %v831 = vmul.f32 %v680, %v827
        %v832 = vmul.f32 %v681, %v827
        %v833 = vmul.f32 %v682, %v827
        %v834 = vmul.f32 %v683, %v827
        %v835 = vmul.f32 %v684, %v827
        %v836 = vmul.f32 %v685, %v827
        %v837 = vmul.f32 %v686, %v827
        %v838 = vmul.f32 %v687, %v827
        %v839 = vmul.f32 %v688, %v827
        %v840 = vmul.f32 %v689, %v827
        %v841 = vmul.f32 %v690, %v827
        %v842 = vmul.f32 %v691, %v827
        %v843 = vmul.f32 %v692, %v827
        %v844 = vmul.f32 %v693, %v827
        %v845 = vmul.f32 %v694, %v827
        %v846 = vmul.f32 %v695, %v827
        %v847 = vmul.f32 %v696, %v827
        %v848 = vmul.f32 %v697, %v827
        %v849 = vmul.f32 %v698, %v827
        %v850 = vmul.f32 %v699, %v827
        %v851 = vmul.f32 %v700, %v827
        %v852 = vmul.f32 %v701, %v827
        %v853 = vmul.f32 %v702, %v827
        %v854 = vmul.f32 %v703, %v827
        %v855 = vmul.f32 %v704, %v827
        %v856 = vmul.f32 %v705, %v827
        %v857 = vmul.f32 %v706, %v827
        %v858 = vmul.f32 %v707, %v827
        %v859 = vmul.f32 %v708, %v827
        %v860 = vmul.f32 %v709, %v827
        %v861 = vmul.f32 %v710, %v827
        %v862 = vmul.f32 %v711, %v827
        %v863 = vmul.f32 %v712, %v827
        %v864 = vmul.f32 %v713, %v827
        %v865 = vmul.f32 %v714, %v827
        %v866 = vmul.f32 %v715, %v827
        %v867 = vmul.f32 %v716, %v827
        %v868 = vmul.f32 %v717, %v827
        %v869 = vmul.f32 %v718, %v827
        %v870 = vmul.f32 %v719, %v827
        %v871 = vmul.f32 %v720, %v827
        %v872 = vmul.f32 %v721, %v827
        %v873 = vmul.f32 %v722, %v827
        %v874 = vmul.f32 %v723, %v827
        %v875 = vmul.f32 %v724, %v827
        %v876 = vmul.f32 %v725, %v827
        %v877 = vmul.f32 %v726, %v827
        %v878 = vmul.f32 %v727, %v827
        %v879 = vmul.f32 %v728, %v827
        %v880 = vmul.f32 %v729, %v827
        %v881 = vmul.f32 %v730, %v827
        %v882 = vmul.f32 %v731, %v827
        %v883 = vmul.f32 %v732, %v827
        %v884 = vmul.f32 %v733, %v827
        %v885 = vmul.f32 %v734, %v827
        %v886 = vmul.f32 %v735, %v827
        %v887 = vmul.f32 %v736, %v827
        %v888 = vmul.f32 %v737, %v827
        %v889 = vmul.f32 %v738, %v827
        %v890 = vmul.f32 %v739, %v827
        %v891 = vmul.f32 %v740, %v827
        %v892 = vmul.f32 %v741, %v827
        %v893 = vmul.f32 %v742, %v827
        %v894 = vmul.f32 %v743, %v827
        %v895 = vmul.f32 %v744, %v827
        %v896 = vmul.f32 %v745, %v827
        %v897 = vmul.f32 %v746, %v827
        %v898 = vmul.f32 %v747, %v827
        %v899 = vmul.f32 %v748, %v827
        %v900 = vmul.f32 %v749, %v827
        %v902 = vlaneseq
        %v903 = vshrl.u32 %v902, 7
        %v904 = vsub.s32 0, %v903
        %v905 = vrot.slane %v751, %v904
        %v907 = vadd.f32 %v829, %v905
        %v908 = vadd.f32 %v830, %v905
        %v909 = vadd.f32 %v831, %v905
        %v910 = vadd.f32 %v832, %v905
        %v911 = vadd.f32 %v833, %v905
        %v912 = vadd.f32 %v834, %v905
        %v913 = vadd.f32 %v835, %v905
        %v914 = vadd.f32 %v836, %v905
        %v915 = vadd.f32 %v837, %v905
        %v916 = vadd.f32 %v838, %v905
        %v917 = vadd.f32 %v839, %v905
        %v918 = vadd.f32 %v840, %v905
        %v919 = vadd.f32 %v841, %v905
        %v920 = vadd.f32 %v842, %v905
        %v921 = vadd.f32 %v843, %v905
        %v922 = vadd.f32 %v844, %v905
        %v923 = vadd.f32 %v845, %v905
        %v924 = vadd.f32 %v846, %v905
        %v925 = vadd.f32 %v847, %v905
        %v926 = vadd.f32 %v848, %v905
        %v927 = vadd.f32 %v849, %v905
        %v928 = vadd.f32 %v850, %v905
        %v929 = vadd.f32 %v851, %v905
        %v930 = vadd.f32 %v852, %v905
        %v931 = vadd.f32 %v853, %v905
        %v932 = vadd.f32 %v854, %v905
        %v933 = vadd.f32 %v855, %v905
        %v934 = vadd.f32 %v856, %v905
        %v935 = vadd.f32 %v857, %v905
        %v936 = vadd.f32 %v858, %v905
        %v937 = vadd.f32 %v859, %v905
        %v938 = vadd.f32 %v860, %v905
        %v939 = vadd.f32 %v861, %v905
        %v940 = vadd.f32 %v862, %v905
        %v941 = vadd.f32 %v863, %v905
        %v942 = vadd.f32 %v864, %v905
        %v943 = vadd.f32 %v865, %v905
        %v944 = vadd.f32 %v866, %v905
        %v945 = vadd.f32 %v867, %v905
        %v946 = vadd.f32 %v868, %v905
        %v947 = vadd.f32 %v869, %v905
        %v948 = vadd.f32 %v870, %v905
        %v949 = vadd.f32 %v871, %v905
        %v950 = vadd.f32 %v872, %v905
        %v951 = vadd.f32 %v873, %v905
        %v952 = vadd.f32 %v874, %v905
        %v953 = vadd.f32 %v875, %v905
        %v954 = vadd.f32 %v876, %v905
        %v955 = vadd.f32 %v877, %v905
        %v956 = vadd.f32 %v878, %v905
        %v957 = vadd.f32 %v879, %v905
        %v958 = vadd.f32 %v880, %v905
        %v959 = vadd.f32 %v881, %v905
        %v960 = vadd.f32 %v882, %v905
        %v961 = vadd.f32 %v883, %v905
        %v962 = vadd.f32 %v884, %v905
        %v963 = vadd.f32 %v885, %v905
        %v964 = vadd.f32 %v886, %v905
        %v965 = vadd.f32 %v887, %v905
        %v966 = vadd.f32 %v888, %v905
        %v967 = vadd.f32 %v889, %v905
        %v968 = vadd.f32 %v890, %v905
        %v969 = vadd.f32 %v891, %v905
        %v970 = vadd.f32 %v892, %v905
        %v971 = vadd.f32 %v893, %v905
        %v972 = vadd.f32 %v894, %v905
        %v973 = vadd.f32 %v895, %v905
        %v974 = vadd.f32 %v896, %v905
        %v975 = vadd.f32 %v897, %v905
        %v976 = vadd.f32 %v898, %v905
        %v977 = vadd.f32 %v899, %v905
        %v978 = vadd.f32 %v900, %v905
        %v979 = vmax.f32 %v907, 0.0
        %v980 = vmax.f32 %v908, 0.0
        %v981 = vmax.f32 %v909, 0.0
        %v982 = vmax.f32 %v910, 0.0
        %v983 = vmax.f32 %v911, 0.0
        %v984 = vmax.f32 %v912, 0.0
        %v985 = vmax.f32 %v913, 0.0
        %v986 = vmax.f32 %v914, 0.0
        %v987 = vmax.f32 %v915, 0.0
        %v988 = vmax.f32 %v916, 0.0
        %v989 = vmax.f32 %v917, 0.0
        %v990 = vmax.f32 %v918, 0.0
        %v991 = vmax.f32 %v919, 0.0
        %v992 = vmax.f32 %v920, 0.0
        %v993 = vmax.f32 %v921, 0.0
        %v994 = vmax.f32 %v922, 0.0
        %v995 = vmax.f32 %v923, 0.0
        %v996 = vmax.f32 %v924, 0.0
        %v997 = vmax.f32 %v925, 0.0
        %v998 = vmax.f32 %v926, 0.0
        %v999 = vmax.f32 %v927, 0.0
        %v1000 = vmax.f32 %v928, 0.0
        %v1001 = vmax.f32 %v929, 0.0
        %v1002 = vmax.f32 %v930, 0.0
        %v1003 = vmax.f32 %v931, 0.0
        %v1004 = vmax.f32 %v932, 0.0
        %v1005 = vmax.f32 %v933, 0.0
        %v1006 = vmax.f32 %v934, 0.0
        %v1007 = vmax.f32 %v935, 0.0
        %v1008 = vmax.f32 %v936, 0.0
        %v1009 = vmax.f32 %v937, 0.0
        %v1010 = vmax.f32 %v938, 0.0
        %v1011 = vmax.f32 %v939, 0.0
        %v1012 = vmax.f32 %v940, 0.0
        %v1013 = vmax.f32 %v941, 0.0
        %v1014 = vmax.f32 %v942, 0.0
        %v1015 = vmax.f32 %v943, 0.0
        %v1016 = vmax.f32 %v944, 0.0
        %v1017 = vmax.f32 %v945, 0.0
        %v1018 = vmax.f32 %v946, 0.0
        %v1019 = vmax.f32 %v947, 0.0
        %v1020 = vmax.f32 %v948, 0.0
        %v1021 = vmax.f32 %v949, 0.0
        %v1022 = vmax.f32 %v950, 0.0
        %v1023 = vmax.f32 %v951, 0.0
        %v1024 = vmax.f32 %v952, 0.0
        %v1025 = vmax.f32 %v953, 0.0
        %v1026 = vmax.f32 %v954, 0.0
        %v1027 = vmax.f32 %v955, 0.0
        %v1028 = vmax.f32 %v956, 0.0
        %v1029 = vmax.f32 %v957, 0.0
        %v1030 = vmax.f32 %v958, 0.0
        %v1031 = vmax.f32 %v959, 0.0
        %v1032 = vmax.f32 %v960, 0.0
        %v1033 = vmax.f32 %v961, 0.0
        %v1034 = vmax.f32 %v962, 0.0
        %v1035 = vmax.f32 %v963, 0.0
        %v1036 = vmax.f32 %v964, 0.0
        %v1037 = vmax.f32 %v965, 0.0
        %v1038 = vmax.f32 %v966, 0.0
        %v1039 = vmax.f32 %v967, 0.0
        %v1040 = vmax.f32 %v968, 0.0
        %v1041 = vmax.f32 %v969, 0.0
        %v1042 = vmax.f32 %v970, 0.0
        %v1043 = vmax.f32 %v971, 0.0
        %v1044 = vmax.f32 %v972, 0.0
        %v1045 = vmax.f32 %v973, 0.0
        %v1046 = vmax.f32 %v974, 0.0
        %v1047 = vmax.f32 %v975, 0.0
        %v1048 = vmax.f32 %v976, 0.0
        %v1049 = vmax.f32 %v977, 0.0
        %v1050 = vmax.f32 %v978, 0.0
        %v1051 = vmul.f32 %v979, %v811
        %v1052 = vmul.f32 %v980, %v812
        %v1053 = vmul.f32 %v981, %v813
        %v1054 = vmul.f32 %v982, %v814
        %v1055 = vmul.f32 %v983, %v815
        %v1056 = vmul.f32 %v984, %v816
        %v1057 = vmul.f32 %v985, %v817
        %v1058 = vmul.f32 %v986, %v818
        %v1059 = vmul.f32 %v987, %v815
        %v1060 = vmul.f32 %v988, %v816
        %v1061 = vmul.f32 %v989, %v817
        %v1062 = vmul.f32 %v990, %v818
        %v1063 = vmul.f32 %v991, %v815
        %v1064 = vmul.f32 %v992, %v816
        %v1065 = vmul.f32 %v993, %v817
        %v1066 = vmul.f32 %v994, %v818
        %v1067 = vmul.f32 %v995, %v815
        %v1068 = vmul.f32 %v996, %v816
        %v1069 = vmul.f32 %v997, %v817
        %v1070 = vmul.f32 %v998, %v818
        %v1071 = vmul.f32 %v999, %v815
        %v1072 = vmul.f32 %v1000, %v816
        %v1073 = vmul.f32 %v1001, %v817
        %v1074 = vmul.f32 %v1002, %v818
        %v1075 = vmul.f32 %v1003, %v815
        %v1076 = vmul.f32 %v1004, %v816
        %v1077 = vmul.f32 %v1005, %v817
        %v1078 = vmul.f32 %v1006, %v818
        %v1079 = vmul.f32 %v1007, %v815
        %v1080 = vmul.f32 %v1008, %v816
        %v1081 = vmul.f32 %v1009, %v817
        %v1082 = vmul.f32 %v1010, %v818
        %v1083 = vmul.f32 %v1011, %v815
        %v1084 = vmul.f32 %v1012, %v816
        %v1085 = vmul.f32 %v1013, %v817
        %v1086 = vmul.f32 %v1014, %v818
        %v1087 = vmul.f32 %v1015, %v815
        %v1088 = vmul.f32 %v1016, %v816
        %v1089 = vmul.f32 %v1017, %v817
        %v1090 = vmul.f32 %v1018, %v818
        %v1091 = vmul.f32 %v1019, %v815
        %v1092 = vmul.f32 %v1020, %v816
        %v1093 = vmul.f32 %v1021, %v817
        %v1094 = vmul.f32 %v1022, %v818
        %v1095 = vmul.f32 %v1023, %v815
        %v1096 = vmul.f32 %v1024, %v816
        %v1097 = vmul.f32 %v1025, %v817
        %v1098 = vmul.f32 %v1026, %v818
        %v1099 = vmul.f32 %v1027, %v815
        %v1100 = vmul.f32 %v1028, %v816
        %v1101 = vmul.f32 %v1029, %v817
        %v1102 = vmul.f32 %v1030, %v818
        %v1103 = vmul.f32 %v1031, %v815
        %v1104 = vmul.f32 %v1032, %v816
        %v1105 = vmul.f32 %v1033, %v817
        %v1106 = vmul.f32 %v1034, %v818
        %v1107 = vmul.f32 %v1035, %v815
        %v1108 = vmul.f32 %v1036, %v816
        %v1109 = vmul.f32 %v1037, %v817
        %v1110 = vmul.f32 %v1038, %v818
        %v1111 = vmul.f32 %v1039, %v815
        %v1112 = vmul.f32 %v1040, %v816
        %v1113 = vmul.f32 %v1041, %v817
        %v1114 = vmul.f32 %v1042, %v818
        %v1115 = vmul.f32 %v1043, %v815
        %v1116 = vmul.f32 %v1044, %v816
        %v1117 = vmul.f32 %v1045, %v817
        %v1118 = vmul.f32 %v1046, %v818
        %v1119 = vmul.f32 %v1047, %v819
        %v1120 = vmul.f32 %v1048, %v820
        %v1121 = vmul.f32 %v1049, %v821
        %v1122 = vmul.f32 %v1050, %v822
        %v1123 = vld [vmem:[%s5] sm:$0xf]
        %vm1188 = vcmask 1046528
        %v1189 = vrot.slane %v1051, 1
        %v1190 = vrot.slane %v1052, 1
        %v1191 = vsel %vm1188, %v1189, %v1190
        %v1192 = vrot.slane %v1053, 1
        %v1193 = vsel %vm1188, %v1190, %v1192
        %v1194 = vrot.slane %v1054, 1
        %v1195 = vsel %vm1188, %v1192, %v1194
        %v1196 = vrot.slane %v1055, 1
        %v1197 = vrot.slane %v1056, 1
        %v1198 = vsel %vm1188, %v1196, %v1197
        %v1199 = vrot.slane %v1057, 1
        %v1200 = vsel %vm1188, %v1197, %v1199
        %v1201 = vrot.slane %v1058, 1
        %v1202 = vsel %vm1188, %v1199, %v1201
        %v1203 = vrot.slane %v1059, 1
        %v1204 = vrot.slane %v1060, 1
        %v1205 = vsel %vm1188, %v1203, %v1204
        %v1206 = vrot.slane %v1061, 1
        %v1207 = vsel %vm1188, %v1204, %v1206
        %v1208 = vrot.slane %v1062, 1
        %v1209 = vsel %vm1188, %v1206, %v1208
        %v1210 = vrot.slane %v1063, 1
        %v1211 = vrot.slane %v1064, 1
        %v1212 = vsel %vm1188, %v1210, %v1211
        %v1213 = vrot.slane %v1065, 1
        %v1214 = vsel %vm1188, %v1211, %v1213
        %v1215 = vrot.slane %v1066, 1
        %v1216 = vsel %vm1188, %v1213, %v1215
        %v1217 = vrot.slane %v1067, 1
        %v1218 = vrot.slane %v1068, 1
        %v1219 = vsel %vm1188, %v1217, %v1218
        %v1220 = vrot.slane %v1069, 1
        %v1221 = vsel %vm1188, %v1218, %v1220
        %v1222 = vrot.slane %v1070, 1
        %v1223 = vsel %vm1188, %v1220, %v1222
        %v1224 = vrot.slane %v1071, 1
        %v1225 = vrot.slane %v1072, 1
        %v1226 = vsel %vm1188, %v1224, %v1225
        %v1227 = vrot.slane %v1073, 1
        %v1228 = vsel %vm1188, %v1225, %v1227
        %v1229 = vrot.slane %v1074, 1
        %v1230 = vsel %vm1188, %v1227, %v1229
        %v1231 = vrot.slane %v1075, 1
        %v1232 = vrot.slane %v1076, 1
        %v1233 = vsel %vm1188, %v1231, %v1232
        %v1234 = vrot.slane %v1077, 1
        %v1235 = vsel %vm1188, %v1232, %v1234
        %v1236 = vrot.slane %v1078, 1
        %v1237 = vsel %vm1188, %v1234, %v1236
        %v1238 = vrot.slane %v1079, 1
        %v1239 = vrot.slane %v1080, 1
        %v1240 = vsel %vm1188, %v1238, %v1239
        %v1241 = vrot.slane %v1081, 1
        %v1242 = vsel %vm1188, %v1239, %v1241
        %v1243 = vrot.slane %v1082, 1
        %v1244 = vsel %vm1188, %v1241, %v1243
        %v1245 = vrot.slane %v1083, 1
        %v1246 = vrot.slane %v1084, 1
        %v1247 = vsel %vm1188, %v1245, %v1246
        %v1248 = vrot.slane %v1085, 1
        %v1249 = vsel %vm1188, %v1246, %v1248
        %v1250 = vrot.slane %v1086, 1
        %v1251 = vsel %vm1188, %v1248, %v1250
        %v1252 = vrot.slane %v1087, 1
        %v1253 = vrot.slane %v1088, 1
        %v1254 = vsel %vm1188, %v1252, %v1253
        %v1255 = vrot.slane %v1089, 1
        %v1256 = vsel %vm1188, %v1253, %v1255
        %v1257 = vrot.slane %v1090, 1
        %v1258 = vsel %vm1188, %v1255, %v1257
        %v1259 = vrot.slane %v1091, 1
        %v1260 = vrot.slane %v1092, 1
        %v1261 = vsel %vm1188, %v1259, %v1260
        %v1262 = vrot.slane %v1093, 1
        %v1263 = vsel %vm1188, %v1260, %v1262
        %v1264 = vrot.slane %v1094, 1
        %v1265 = vsel %vm1188, %v1262, %v1264
        %v1266 = vrot.slane %v1095, 1
        %v1267 = vrot.slane %v1096, 1
        %v1268 = vsel %vm1188, %v1266, %v1267
        %v1269 = vrot.slane %v1097, 1
        %v1270 = vsel %vm1188, %v1267, %v1269
        %v1271 = vrot.slane %v1098, 1
        %v1272 = vsel %vm1188, %v1269, %v1271
        %v1273 = vrot.slane %v1099, 1
        %v1274 = vrot.slane %v1100, 1
        %v1275 = vsel %vm1188, %v1273, %v1274
        %v1276 = vrot.slane %v1101, 1
        %v1277 = vsel %vm1188, %v1274, %v1276
        %v1278 = vrot.slane %v1102, 1
        %v1279 = vsel %vm1188, %v1276, %v1278
        %v1280 = vrot.slane %v1103, 1
        %v1281 = vrot.slane %v1104, 1
        %v1282 = vsel %vm1188, %v1280, %v1281
        %v1283 = vrot.slane %v1105, 1
        %v1284 = vsel %vm1188, %v1281, %v1283
        %v1285 = vrot.slane %v1106, 1
        %v1286 = vsel %vm1188, %v1283, %v1285
        %v1287 = vrot.slane %v1107, 1
        %v1288 = vrot.slane %v1108, 1
        %v1289 = vsel %vm1188, %v1287, %v1288
        %v1290 = vrot.slane %v1109, 1
        %v1291 = vsel %vm1188, %v1288, %v1290
        %v1292 = vrot.slane %v1110, 1
        %v1293 = vsel %vm1188, %v1290, %v1292
        %v1294 = vrot.slane %v1111, 1
        %v1295 = vrot.slane %v1112, 1
        %v1296 = vsel %vm1188, %v1294, %v1295
        %v1297 = vrot.slane %v1113, 1
        %v1298 = vsel %vm1188, %v1295, %v1297
        %v1299 = vrot.slane %v1114, 1
        %v1300 = vsel %vm1188, %v1297, %v1299
        %s1301 = scalar_lea.vmem %s5, 4
        %v1302 = vld [vmem:[%s1301] sm:$0xf]
        %vm1303 = vcmask 31744
        %v1304 = vsel %vm1303, %v1191, 0
        %v1306 = vsel %vm1303, %v1193, 0
        %v1308 = vsel %vm1303, %v1195, 0
        %v1310 = vsel %vm1303, %v1198, 0
        %v1312 = vsel %vm1303, %v1200, 0
        %v1314 = vsel %vm1303, %v1202, 0
        %v1316 = vsel %vm1303, %v1205, 0
        %v1318 = vsel %vm1303, %v1207, 0
        %v1320 = vsel %vm1303, %v1209, 0
        %v1322 = vsel %vm1303, %v1212, 0
        %v1324 = vsel %vm1303, %v1214, 0
        %v1326 = vsel %vm1303, %v1216, 0
        %v1328 = vsel %vm1303, %v1219, 0
        %v1330 = vsel %vm1303, %v1221, 0
        %v1332 = vsel %vm1303, %v1223, 0
        %v1334 = vsel %vm1303, %v1226, 0
        %v1336 = vsel %vm1303, %v1228, 0
        %v1338 = vsel %vm1303, %v1230, 0
        %v1340 = vsel %vm1303, %v1233, 0
        %v1342 = vsel %vm1303, %v1235, 0
        %v1344 = vsel %vm1303, %v1237, 0
        %v1346 = vsel %vm1303, %v1240, 0
        %v1348 = vsel %vm1303, %v1242, 0
        %v1350 = vsel %vm1303, %v1244, 0
        %v1352 = vsel %vm1303, %v1247, 0
        %v1354 = vsel %vm1303, %v1249, 0
        %v1356 = vsel %vm1303, %v1251, 0
        %v1358 = vsel %vm1303, %v1254, 0
        %v1360 = vsel %vm1303, %v1256, 0
        %v1362 = vsel %vm1303, %v1258, 0
        %v1364 = vsel %vm1303, %v1261, 0
        %v1366 = vsel %vm1303, %v1263, 0
        %v1368 = vsel %vm1303, %v1265, 0
        %v1370 = vsel %vm1303, %v1268, 0
        %v1372 = vsel %vm1303, %v1270, 0
        %v1374 = vsel %vm1303, %v1272, 0
        %v1376 = vsel %vm1303, %v1275, 0
        %v1378 = vsel %vm1303, %v1277, 0
        %v1380 = vsel %vm1303, %v1279, 0
        %v1382 = vsel %vm1303, %v1282, 0
        %v1384 = vsel %vm1303, %v1284, 0
        %v1386 = vsel %vm1303, %v1286, 0
        %v1388 = vsel %vm1303, %v1289, 0
        %v1390 = vsel %vm1303, %v1291, 0
        %v1392 = vsel %vm1303, %v1293, 0
        %v1394 = vsel %vm1303, %v1296, 0
        %v1396 = vsel %vm1303, %v1298, 0
        %v1398 = vsel %vm1303, %v1300, 0
        %vm1400 = vcmask 1043456
        %v1402 = vsel %vm1400, %v1302, 0
        %1404 = vmatprep.subr.mxu0 0.0
        %1405 = vmatpush1.msra.mxu0 %v1402
        %1406 = vmatprep.subr.mxu0 0.0
        %1407 = vmatpush1.msra.mxu0 0.0
        %1408 = vmatprep.subr.mxu0 0.0
        %1409 = vmatpush1.msra.mxu0 0.0
        %1410 = vmatprep.subr.mxu0 0.0
        %1411 = vmatpush1.msra.mxu0 0.0
        %1412 = vmatprep.subr.mxu0 0.0
        %1413 = vmatpush1.msra.mxu0 0.0
        %1414 = vmatprep.subr.mxu0 0.0
        %1415 = vmatpush1.msra.mxu0 0.0
        %1416 = vmatprep.subr.mxu0 0.0
        %1417 = vmatpush1.msra.mxu0 0.0
        %1418 = vmatprep.subr.mxu0 0.0
        %1419 = vmatpush1.msra.mxu0 0.0
        %1420 = vmatprep.subr.mxu0 0.0
        %1421 = vmatpush1.msra.mxu0 0.0
        %1422 = vmatprep.subr.mxu0 0.0
        %1423 = vmatpush1.msra.mxu0 0.0
        %1424 = vmatprep.subr.mxu0 0.0
        %1425 = vmatpush1.msra.mxu0 0.0
        %1426 = vmatprep.subr.mxu0 0.0
        %1427 = vmatpush1.msra.mxu0 0.0
        %1428 = vmatprep.subr.mxu0 0.0
        %1429 = vmatpush1.msra.mxu0 0.0
        %1430 = vmatprep.subr.mxu0 0.0
        %1431 = vmatpush1.msra.mxu0 0.0
        %1432 = vmatprep.subr.mxu0 0.0
        %1433 = vmatpush1.msra.mxu0 0.0
        %1434 = vmatprep.subr.mxu0 0.0
        %1435 = vmatpush1.msra.mxu0 0.0
        %1436 = vmatprep.subr.mxu0 0.0
        %1437 = vmatpush1.msra.mxu0 0.0
        %1438 = vmatprep.subr.mxu0 0.0
        %1439 = vmatpush1.msra.mxu0 0.0
        %1440 = vmatprep.subr.mxu0 0.0
        %1441 = vmatpush1.msra.mxu0 0.0
        %1442 = vmatprep.subr.mxu0 0.0
        %1443 = vmatpush1.msra.mxu0 0.0
        %1444 = vmatprep.subr.mxu0 0.0
        %1445 = vmatpush1.msra.mxu0 0.0
        %1446 = vmatprep.subr.mxu0 0.0
        %1447 = vmatpush1.msra.mxu0 0.0
        %1448 = vmatprep.subr.mxu0 0.0
        %1449 = vmatpush1.msra.mxu0 0.0
        %1450 = vmatprep.subr.mxu0 0.0
        %1451 = vmatpush1.msra.mxu0 0.0
        %1452 = vmatprep.subr.mxu0 0.0
        %1453 = vmatpush1.msra.mxu0 0.0
        %1454 = vmatprep.subr.mxu0 0.0
        %1455 = vmatpush1.msra.mxu0 0.0
        %1456 = vmatprep.subr.mxu0 0.0
        %1457 = vmatpush1.msra.mxu0 0.0
        %1458 = vmatprep.subr.mxu0 0.0
        %1459 = vmatpush1.msra.mxu0 0.0
        %1460 = vmatprep.subr.mxu0 0.0
        %1461 = vmatpush1.msra.mxu0 0.0
        %1462 = vmatprep.subr.mxu0 0.0
        %1463 = vmatpush1.msra.mxu0 0.0
        %1464 = vmatprep.subr.mxu0 0.0
        %1465 = vmatpush1.msra.mxu0 0.0
        %1466 = vmatprep.subr.mxu0 0.0
        %1467 = vmatpush1.msra.mxu0 0.0
        %1468 = vmatprep.mubr.f32.mxu0 0.0
        %1469 = vmatmul.mubr.f32.gmra.mrb[0].mxu0 %v1304
        %v1470 = vpop.f32.mrb[0].mxu0
        %v1471 = vadd.f32 0.0, %v1470
        %v1472 = vpop.f32.mrb[0].mxu0
        %1473 = vmatprep.mubr.f32.mxu0 0.0
        %1474 = vmatmul.mubr.f32.gmra.mrb[0].mxu0 %v1306
        %v1475 = vpop.f32.mrb[0].mxu0
        %v1476 = vadd.f32 0.0, %v1475
        %v1477 = vpop.f32.mrb[0].mxu0
        %1478 = vmatprep.mubr.f32.mxu0 0.0
        %1479 = vmatmul.mubr.f32.gmra.mrb[0].mxu0 %v1308
        %v1480 = vpop.f32.mrb[0].mxu0
        %v1481 = vadd.f32 0.0, %v1480
        %v1482 = vpop.f32.mrb[0].mxu0
        %1483 = vmatprep.mubr.f32.mxu0 0.0
        %1484 = vmatmul.mubr.f32.gmra.mrb[0].mxu0 %v1310
        %v1485 = vpop.f32.mrb[0].mxu0
        %v1486 = vadd.f32 0.0, %v1485
        %v1487 = vpop.f32.mrb[0].mxu0
        %1488 = vmatprep.mubr.f32.mxu0 0.0
        %1489 = vmatmul.mubr.f32.gmra.mrb[0].mxu0 %v1312
        %v1490 = vpop.f32.mrb[0].mxu0
        %v1491 = vadd.f32 0.0, %v1490
        %v1492 = vpop.f32.mrb[0].mxu0
        %1493 = vmatprep.mubr.f32.mxu0 0.0
        %1494 = vmatmul.mubr.f32.gmra.mrb[0].mxu0 %v1314
        %v1495 = vpop.f32.mrb[0].mxu0
        %v1496 = vadd.f32 0.0, %v1495
        %v1497 = vpop.f32.mrb[0].mxu0
        %1498 = vmatprep.mubr.f32.mxu0 0.0
        %1499 = vmatmul.mubr.f32.gmra.mrb[0].mxu0 %v1316
        %v1500 = vpop.f32.mrb[0].mxu0
        %v1501 = vadd.f32 0.0, %v1500
        %v1502 = vpop.f32.mrb[0].mxu0
        %1503 = vmatprep.mubr.f32.mxu0 0.0
        %1504 = vmatmul.mubr.f32.gmra.mrb[0].mxu0 %v1318
        %v1505 = vpop.f32.mrb[0].mxu0
        %v1506 = vadd.f32 0.0, %v1505
        %v1507 = vpop.f32.mrb[0].mxu0
        %1508 = vmatprep.mubr.f32.mxu0 0.0
        %1509 = vmatmul.mubr.f32.gmra.mrb[0].mxu0 %v1320
        %v1510 = vpop.f32.mrb[0].mxu0
        %v1511 = vadd.f32 0.0, %v1510
        %v1512 = vpop.f32.mrb[0].mxu0
        %1513 = vmatprep.mubr.f32.mxu0 0.0
        %1514 = vmatmul.mubr.f32.gmra.mrb[0].mxu0 %v1322
        %v1515 = vpop.f32.mrb[0].mxu0
        %v1516 = vadd.f32 0.0, %v1515
        %v1517 = vpop.f32.mrb[0].mxu0
        %1518 = vmatprep.mubr.f32.mxu0 0.0
        %1519 = vmatmul.mubr.f32.gmra.mrb[0].mxu0 %v1324
        %v1520 = vpop.f32.mrb[0].mxu0
        %v1521 = vadd.f32 0.0, %v1520
        %v1522 = vpop.f32.mrb[0].mxu0
        %1523 = vmatprep.mubr.f32.mxu0 0.0
        %1524 = vmatmul.mubr.f32.gmra.mrb[0].mxu0 %v1326
        %v1525 = vpop.f32.mrb[0].mxu0
        %v1526 = vadd.f32 0.0, %v1525
        %v1527 = vpop.f32.mrb[0].mxu0
        %1528 = vmatprep.mubr.f32.mxu0 0.0
        %1529 = vmatmul.mubr.f32.gmra.mrb[0].mxu0 %v1328
        %v1530 = vpop.f32.mrb[0].mxu0
        %v1531 = vadd.f32 0.0, %v1530
        %v1532 = vpop.f32.mrb[0].mxu0
        %1533 = vmatprep.mubr.f32.mxu0 0.0
        %1534 = vmatmul.mubr.f32.gmra.mrb[0].mxu0 %v1330
        %v1535 = vpop.f32.mrb[0].mxu0
        %v1536 = vadd.f32 0.0, %v1535
        %v1537 = vpop.f32.mrb[0].mxu0
        %1538 = vmatprep.mubr.f32.mxu0 0.0
        %1539 = vmatmul.mubr.f32.gmra.mrb[0].mxu0 %v1332
        %v1540 = vpop.f32.mrb[0].mxu0
        %v1541 = vadd.f32 0.0, %v1540
        %v1542 = vpop.f32.mrb[0].mxu0
        %1543 = vmatprep.mubr.f32.mxu0 0.0
        %1544 = vmatmul.mubr.f32.gmra.mrb[0].mxu0 %v1334
        %v1545 = vpop.f32.mrb[0].mxu0
        %v1546 = vadd.f32 0.0, %v1545
        %v1547 = vpop.f32.mrb[0].mxu0
        %1548 = vmatprep.mubr.f32.mxu0 0.0
        %1549 = vmatmul.mubr.f32.gmra.mrb[0].mxu0 %v1336
        %v1550 = vpop.f32.mrb[0].mxu0
        %v1551 = vadd.f32 0.0, %v1550
        %v1552 = vpop.f32.mrb[0].mxu0
        %1553 = vmatprep.mubr.f32.mxu0 0.0
        %1554 = vmatmul.mubr.f32.gmra.mrb[0].mxu0 %v1338
        %v1555 = vpop.f32.mrb[0].mxu0
        %v1556 = vadd.f32 0.0, %v1555
        %v1557 = vpop.f32.mrb[0].mxu0
        %1558 = vmatprep.mubr.f32.mxu0 0.0
        %1559 = vmatmul.mubr.f32.gmra.mrb[0].mxu0 %v1340
        %v1560 = vpop.f32.mrb[0].mxu0
        %v1561 = vadd.f32 0.0, %v1560
        %v1562 = vpop.f32.mrb[0].mxu0
        %1563 = vmatprep.mubr.f32.mxu0 0.0
        %1564 = vmatmul.mubr.f32.gmra.mrb[0].mxu0 %v1342
        %v1565 = vpop.f32.mrb[0].mxu0
        %v1566 = vadd.f32 0.0, %v1565
        %v1567 = vpop.f32.mrb[0].mxu0
        %1568 = vmatprep.mubr.f32.mxu0 0.0
        %1569 = vmatmul.mubr.f32.gmra.mrb[0].mxu0 %v1344
        %v1570 = vpop.f32.mrb[0].mxu0
        %v1571 = vadd.f32 0.0, %v1570
        %v1572 = vpop.f32.mrb[0].mxu0
        %1573 = vmatprep.mubr.f32.mxu0 0.0
        %1574 = vmatmul.mubr.f32.gmra.mrb[0].mxu0 %v1346
        %v1575 = vpop.f32.mrb[0].mxu0
        %v1576 = vadd.f32 0.0, %v1575
        %v1577 = vpop.f32.mrb[0].mxu0
        %1578 = vmatprep.mubr.f32.mxu0 0.0
        %1579 = vmatmul.mubr.f32.gmra.mrb[0].mxu0 %v1348
        %v1580 = vpop.f32.mrb[0].mxu0
        %v1581 = vadd.f32 0.0, %v1580
        %v1582 = vpop.f32.mrb[0].mxu0
        %1583 = vmatprep.mubr.f32.mxu0 0.0
        %1584 = vmatmul.mubr.f32.gmra.mrb[0].mxu0 %v1350
        %v1585 = vpop.f32.mrb[0].mxu0
        %v1586 = vadd.f32 0.0, %v1585
        %v1587 = vpop.f32.mrb[0].mxu0
        %1588 = vmatprep.mubr.f32.mxu0 0.0
        %1589 = vmatmul.mubr.f32.gmra.mrb[0].mxu0 %v1352
        %v1590 = vpop.f32.mrb[0].mxu0
        %v1591 = vadd.f32 0.0, %v1590
        %v1592 = vpop.f32.mrb[0].mxu0
        %1593 = vmatprep.mubr.f32.mxu0 0.0
        %1594 = vmatmul.mubr.f32.gmra.mrb[0].mxu0 %v1354
        %v1595 = vpop.f32.mrb[0].mxu0
        %v1596 = vadd.f32 0.0, %v1595
        %v1597 = vpop.f32.mrb[0].mxu0
        %1598 = vmatprep.mubr.f32.mxu0 0.0
        %1599 = vmatmul.mubr.f32.gmra.mrb[0].mxu0 %v1356
        %v1600 = vpop.f32.mrb[0].mxu0
        %v1601 = vadd.f32 0.0, %v1600
        %v1602 = vpop.f32.mrb[0].mxu0
        %1603 = vmatprep.mubr.f32.mxu0 0.0
        %1604 = vmatmul.mubr.f32.gmra.mrb[0].mxu0 %v1358
        %v1605 = vpop.f32.mrb[0].mxu0
        %v1606 = vadd.f32 0.0, %v1605
        %v1607 = vpop.f32.mrb[0].mxu0
        %1608 = vmatprep.mubr.f32.mxu0 0.0
        %1609 = vmatmul.mubr.f32.gmra.mrb[0].mxu0 %v1360
        %v1610 = vpop.f32.mrb[0].mxu0
        %v1611 = vadd.f32 0.0, %v1610
        %v1612 = vpop.f32.mrb[0].mxu0
        %1613 = vmatprep.mubr.f32.mxu0 0.0
        %1614 = vmatmul.mubr.f32.gmra.mrb[0].mxu0 %v1362
        %v1615 = vpop.f32.mrb[0].mxu0
        %v1616 = vadd.f32 0.0, %v1615
        %v1617 = vpop.f32.mrb[0].mxu0
        %1618 = vmatprep.mubr.f32.mxu0 0.0
        %1619 = vmatmul.mubr.f32.gmra.mrb[0].mxu0 %v1364
        %v1620 = vpop.f32.mrb[0].mxu0
        %v1621 = vadd.f32 0.0, %v1620
        %v1622 = vpop.f32.mrb[0].mxu0
        %1623 = vmatprep.mubr.f32.mxu0 0.0
        %1624 = vmatmul.mubr.f32.gmra.mrb[0].mxu0 %v1366
        %v1625 = vpop.f32.mrb[0].mxu0
        %v1626 = vadd.f32 0.0, %v1625
        %v1627 = vpop.f32.mrb[0].mxu0
        %1628 = vmatprep.mubr.f32.mxu0 0.0
        %1629 = vmatmul.mubr.f32.gmra.mrb[0].mxu0 %v1368
        %v1630 = vpop.f32.mrb[0].mxu0
        %v1631 = vadd.f32 0.0, %v1630
        %v1632 = vpop.f32.mrb[0].mxu0
        %1633 = vmatprep.mubr.f32.mxu0 0.0
        %1634 = vmatmul.mubr.f32.gmra.mrb[0].mxu0 %v1370
        %v1635 = vpop.f32.mrb[0].mxu0
        %v1636 = vadd.f32 0.0, %v1635
        %v1637 = vpop.f32.mrb[0].mxu0
        %1638 = vmatprep.mubr.f32.mxu0 0.0
        %1639 = vmatmul.mubr.f32.gmra.mrb[0].mxu0 %v1372
        %v1640 = vpop.f32.mrb[0].mxu0
        %v1641 = vadd.f32 0.0, %v1640
        %v1642 = vpop.f32.mrb[0].mxu0
        %1643 = vmatprep.mubr.f32.mxu0 0.0
        %1644 = vmatmul.mubr.f32.gmra.mrb[0].mxu0 %v1374
        %v1645 = vpop.f32.mrb[0].mxu0
        %v1646 = vadd.f32 0.0, %v1645
        %v1647 = vpop.f32.mrb[0].mxu0
        %1648 = vmatprep.mubr.f32.mxu0 0.0
        %1649 = vmatmul.mubr.f32.gmra.mrb[0].mxu0 %v1376
        %v1650 = vpop.f32.mrb[0].mxu0
        %v1651 = vadd.f32 0.0, %v1650
        %v1652 = vpop.f32.mrb[0].mxu0
        %1653 = vmatprep.mubr.f32.mxu0 0.0
        %1654 = vmatmul.mubr.f32.gmra.mrb[0].mxu0 %v1378
        %v1655 = vpop.f32.mrb[0].mxu0
        %v1656 = vadd.f32 0.0, %v1655
        %v1657 = vpop.f32.mrb[0].mxu0
        %1658 = vmatprep.mubr.f32.mxu0 0.0
        %1659 = vmatmul.mubr.f32.gmra.mrb[0].mxu0 %v1380
        %v1660 = vpop.f32.mrb[0].mxu0
        %v1661 = vadd.f32 0.0, %v1660
        %v1662 = vpop.f32.mrb[0].mxu0
        %1663 = vmatprep.mubr.f32.mxu0 0.0
        %1664 = vmatmul.mubr.f32.gmra.mrb[0].mxu0 %v1382
        %v1665 = vpop.f32.mrb[0].mxu0
        %v1666 = vadd.f32 0.0, %v1665
        %v1667 = vpop.f32.mrb[0].mxu0
        %1668 = vmatprep.mubr.f32.mxu0 0.0
        %1669 = vmatmul.mubr.f32.gmra.mrb[0].mxu0 %v1384
        %v1670 = vpop.f32.mrb[0].mxu0
        %v1671 = vadd.f32 0.0, %v1670
        %v1672 = vpop.f32.mrb[0].mxu0
        %1673 = vmatprep.mubr.f32.mxu0 0.0
        %1674 = vmatmul.mubr.f32.gmra.mrb[0].mxu0 %v1386
        %v1675 = vpop.f32.mrb[0].mxu0
        %v1676 = vadd.f32 0.0, %v1675
        %v1677 = vpop.f32.mrb[0].mxu0
        %1678 = vmatprep.mubr.f32.mxu0 0.0
        %1679 = vmatmul.mubr.f32.gmra.mrb[0].mxu0 %v1388
        %v1680 = vpop.f32.mrb[0].mxu0
        %v1681 = vadd.f32 0.0, %v1680
        %v1682 = vpop.f32.mrb[0].mxu0
        %1683 = vmatprep.mubr.f32.mxu0 0.0
        %1684 = vmatmul.mubr.f32.gmra.mrb[0].mxu0 %v1390
        %v1685 = vpop.f32.mrb[0].mxu0
        %v1686 = vadd.f32 0.0, %v1685
        %v1687 = vpop.f32.mrb[0].mxu0
        %1688 = vmatprep.mubr.f32.mxu0 0.0
        %1689 = vmatmul.mubr.f32.gmra.mrb[0].mxu0 %v1392
        %v1690 = vpop.f32.mrb[0].mxu0
        %v1691 = vadd.f32 0.0, %v1690
        %v1692 = vpop.f32.mrb[0].mxu0
        %1693 = vmatprep.mubr.f32.mxu0 0.0
        %1694 = vmatmul.mubr.f32.gmra.mrb[0].mxu0 %v1394
        %v1695 = vpop.f32.mrb[0].mxu0
        %v1696 = vadd.f32 0.0, %v1695
        %v1697 = vpop.f32.mrb[0].mxu0
        %1698 = vmatprep.mubr.f32.mxu0 0.0
        %1699 = vmatmul.mubr.f32.gmra.mrb[0].mxu0 %v1396
        %v1700 = vpop.f32.mrb[0].mxu0
        %v1701 = vadd.f32 0.0, %v1700
        %v1702 = vpop.f32.mrb[0].mxu0
        %1703 = vmatprep.mubr.f32.mxu0 0.0
        %1704 = vmatmul.mubr.f32.gmra.mrb[0].mxu0 %v1398
        %v1705 = vpop.f32.mrb[0].mxu0
        %v1706 = vadd.f32 0.0, %v1705
        %v1707 = vpop.f32.mrb[0].mxu0
        %1708 = vdwg.mxu0
        %v1709 = vsel %vm1303, %v1051, 0
        %v1711 = vsel %vm1303, %v1052, 0
        %v1713 = vsel %vm1303, %v1053, 0
        %v1715 = vsel %vm1303, %v1055, 0
        %v1717 = vsel %vm1303, %v1056, 0
        %v1719 = vsel %vm1303, %v1057, 0
        %v1721 = vsel %vm1303, %v1059, 0
        %v1723 = vsel %vm1303, %v1060, 0
        %v1725 = vsel %vm1303, %v1061, 0
        %v1727 = vsel %vm1303, %v1063, 0
        %v1729 = vsel %vm1303, %v1064, 0
        %v1731 = vsel %vm1303, %v1065, 0
        %v1733 = vsel %vm1303, %v1067, 0
        %v1735 = vsel %vm1303, %v1068, 0
        %v1737 = vsel %vm1303, %v1069, 0
        %v1739 = vsel %vm1303, %v1071, 0
        %v1741 = vsel %vm1303, %v1072, 0
        %v1743 = vsel %vm1303, %v1073, 0
        %v1745 = vsel %vm1303, %v1075, 0
        %v1747 = vsel %vm1303, %v1076, 0
        %v1749 = vsel %vm1303, %v1077, 0
        %v1751 = vsel %vm1303, %v1079, 0
        %v1753 = vsel %vm1303, %v1080, 0
        %v1755 = vsel %vm1303, %v1081, 0
        %v1757 = vsel %vm1303, %v1083, 0
        %v1759 = vsel %vm1303, %v1084, 0
        %v1761 = vsel %vm1303, %v1085, 0
        %v1763 = vsel %vm1303, %v1087, 0
        %v1765 = vsel %vm1303, %v1088, 0
        %v1767 = vsel %vm1303, %v1089, 0
        %v1769 = vsel %vm1303, %v1091, 0
        %v1771 = vsel %vm1303, %v1092, 0
        %v1773 = vsel %vm1303, %v1093, 0
        %v1775 = vsel %vm1303, %v1095, 0
        %v1777 = vsel %vm1303, %v1096, 0
        %v1779 = vsel %vm1303, %v1097, 0
        %v1781 = vsel %vm1303, %v1099, 0
        %v1783 = vsel %vm1303, %v1100, 0
        %v1785 = vsel %vm1303, %v1101, 0
        %v1787 = vsel %vm1303, %v1103, 0
        %v1789 = vsel %vm1303, %v1104, 0
        %v1791 = vsel %vm1303, %v1105, 0
        %v1793 = vsel %vm1303, %v1107, 0
        %v1795 = vsel %vm1303, %v1108, 0
        %v1797 = vsel %vm1303, %v1109, 0
        %v1799 = vsel %vm1303, %v1111, 0
        %v1801 = vsel %vm1303, %v1112, 0
        %v1803 = vsel %vm1303, %v1113, 0
        %v1806 = vsel %vm1400, %v1123, 0
        %1808 = vmatprep.subr.mxu0 0.0
        %1809 = vmatpush1.msra.mxu0 %v1806
        %1810 = vmatprep.subr.mxu0 0.0
        %1811 = vmatpush1.msra.mxu0 0.0
        %1812 = vmatprep.subr.mxu0 0.0
        %1813 = vmatpush1.msra.mxu0 0.0
        %1814 = vmatprep.subr.mxu0 0.0
        %1815 = vmatpush1.msra.mxu0 0.0
        %1816 = vmatprep.subr.mxu0 0.0
        %1817 = vmatpush1.msra.mxu0 0.0
        %1818 = vmatprep.subr.mxu0 0.0
        %1819 = vmatpush1.msra.mxu0 0.0
        %1820 = vmatprep.subr.mxu0 0.0
        %1821 = vmatpush1.msra.mxu0 0.0
        %1822 = vmatprep.subr.mxu0 0.0
        %1823 = vmatpush1.msra.mxu0 0.0
        %1824 = vmatprep.subr.mxu0 0.0
        %1825 = vmatpush1.msra.mxu0 0.0
        %1826 = vmatprep.subr.mxu0 0.0
        %1827 = vmatpush1.msra.mxu0 0.0
        %1828 = vmatprep.subr.mxu0 0.0
        %1829 = vmatpush1.msra.mxu0 0.0
        %1830 = vmatprep.subr.mxu0 0.0
        %1831 = vmatpush1.msra.mxu0 0.0
        %1832 = vmatprep.subr.mxu0 0.0
        %1833 = vmatpush1.msra.mxu0 0.0
        %1834 = vmatprep.subr.mxu0 0.0
        %1835 = vmatpush1.msra.mxu0 0.0
        %1836 = vmatprep.subr.mxu0 0.0
        %1837 = vmatpush1.msra.mxu0 0.0
        %1838 = vmatprep.subr.mxu0 0.0
        %1839 = vmatpush1.msra.mxu0 0.0
        %1840 = vmatprep.subr.mxu0 0.0
        %1841 = vmatpush1.msra.mxu0 0.0
        %1842 = vmatprep.subr.mxu0 0.0
        %1843 = vmatpush1.msra.mxu0 0.0
        %1844 = vmatprep.subr.mxu0 0.0
        %1845 = vmatpush1.msra.mxu0 0.0
        %1846 = vmatprep.subr.mxu0 0.0
        %1847 = vmatpush1.msra.mxu0 0.0
        %1848 = vmatprep.subr.mxu0 0.0
        %1849 = vmatpush1.msra.mxu0 0.0
        %1850 = vmatprep.subr.mxu0 0.0
        %1851 = vmatpush1.msra.mxu0 0.0
        %1852 = vmatprep.subr.mxu0 0.0
        %1853 = vmatpush1.msra.mxu0 0.0
        %1854 = vmatprep.subr.mxu0 0.0
        %1855 = vmatpush1.msra.mxu0 0.0
        %1856 = vmatprep.subr.mxu0 0.0
        %1857 = vmatpush1.msra.mxu0 0.0
        %1858 = vmatprep.subr.mxu0 0.0
        %1859 = vmatpush1.msra.mxu0 0.0
        %1860 = vmatprep.subr.mxu0 0.0
        %1861 = vmatpush1.msra.mxu0 0.0
        %1862 = vmatprep.subr.mxu0 0.0
        %1863 = vmatpush1.msra.mxu0 0.0
        %1864 = vmatprep.subr.mxu0 0.0
        %1865 = vmatpush1.msra.mxu0 0.0
        %1866 = vmatprep.subr.mxu0 0.0
        %1867 = vmatpush1.msra.mxu0 0.0
        %1868 = vmatprep.subr.mxu0 0.0
        %1869 = vmatpush1.msra.mxu0 0.0
        %1870 = vmatprep.subr.mxu0 0.0
        %1871 = vmatpush1.msra.mxu0 0.0
        %1872 = vmatprep.mubr.f32.mxu0 0.0
        %1873 = vmatmul.mubr.f32.gmra.mrb[0].mxu0 %v1709
        %v1874 = vpop.f32.mrb[0].mxu0
        %v1875 = vadd.f32 %v1471, %v1874
        %v1876 = vpop.f32.mrb[0].mxu0
        %1877 = vmatprep.mubr.f32.mxu0 0.0
        %1878 = vmatmul.mubr.f32.gmra.mrb[0].mxu0 %v1711
        %v1879 = vpop.f32.mrb[0].mxu0
        %v1880 = vadd.f32 %v1476, %v1879
        %v1881 = vpop.f32.mrb[0].mxu0
        %1882 = vmatprep.mubr.f32.mxu0 0.0
        %1883 = vmatmul.mubr.f32.gmra.mrb[0].mxu0 %v1713
        %v1884 = vpop.f32.mrb[0].mxu0
        %v1885 = vadd.f32 %v1481, %v1884
        %v1886 = vpop.f32.mrb[0].mxu0
        %1887 = vmatprep.mubr.f32.mxu0 0.0
        %1888 = vmatmul.mubr.f32.gmra.mrb[0].mxu0 %v1715
        %v1889 = vpop.f32.mrb[0].mxu0
        %v1890 = vadd.f32 %v1486, %v1889
        %v1891 = vpop.f32.mrb[0].mxu0
        %1892 = vmatprep.mubr.f32.mxu0 0.0
        %1893 = vmatmul.mubr.f32.gmra.mrb[0].mxu0 %v1717
        %v1894 = vpop.f32.mrb[0].mxu0
        %v1895 = vadd.f32 %v1491, %v1894
        %v1896 = vpop.f32.mrb[0].mxu0
        %1897 = vmatprep.mubr.f32.mxu0 0.0
        %1898 = vmatmul.mubr.f32.gmra.mrb[0].mxu0 %v1719
        %v1899 = vpop.f32.mrb[0].mxu0
        %v1900 = vadd.f32 %v1496, %v1899
        %v1901 = vpop.f32.mrb[0].mxu0
        %1902 = vmatprep.mubr.f32.mxu0 0.0
        %1903 = vmatmul.mubr.f32.gmra.mrb[0].mxu0 %v1721
        %v1904 = vpop.f32.mrb[0].mxu0
        %v1905 = vadd.f32 %v1501, %v1904
        %v1906 = vpop.f32.mrb[0].mxu0
        %1907 = vmatprep.mubr.f32.mxu0 0.0
        %1908 = vmatmul.mubr.f32.gmra.mrb[0].mxu0 %v1723
        %v1909 = vpop.f32.mrb[0].mxu0
        %v1910 = vadd.f32 %v1506, %v1909
        %v1911 = vpop.f32.mrb[0].mxu0
        %1912 = vmatprep.mubr.f32.mxu0 0.0
        %1913 = vmatmul.mubr.f32.gmra.mrb[0].mxu0 %v1725
        %v1914 = vpop.f32.mrb[0].mxu0
        %v1915 = vadd.f32 %v1511, %v1914
        %v1916 = vpop.f32.mrb[0].mxu0
        %1917 = vmatprep.mubr.f32.mxu0 0.0
        %1918 = vmatmul.mubr.f32.gmra.mrb[0].mxu0 %v1727
        %v1919 = vpop.f32.mrb[0].mxu0
        %v1920 = vadd.f32 %v1516, %v1919
        %v1921 = vpop.f32.mrb[0].mxu0
        %1922 = vmatprep.mubr.f32.mxu0 0.0
        %1923 = vmatmul.mubr.f32.gmra.mrb[0].mxu0 %v1729
        %v1924 = vpop.f32.mrb[0].mxu0
        %v1925 = vadd.f32 %v1521, %v1924
        %v1926 = vpop.f32.mrb[0].mxu0
        %1927 = vmatprep.mubr.f32.mxu0 0.0
        %1928 = vmatmul.mubr.f32.gmra.mrb[0].mxu0 %v1731
        %v1929 = vpop.f32.mrb[0].mxu0
        %v1930 = vadd.f32 %v1526, %v1929
        %v1931 = vpop.f32.mrb[0].mxu0
        %1932 = vmatprep.mubr.f32.mxu0 0.0
        %1933 = vmatmul.mubr.f32.gmra.mrb[0].mxu0 %v1733
        %v1934 = vpop.f32.mrb[0].mxu0
        %v1935 = vadd.f32 %v1531, %v1934
        %v1936 = vpop.f32.mrb[0].mxu0
        %1937 = vmatprep.mubr.f32.mxu0 0.0
        %1938 = vmatmul.mubr.f32.gmra.mrb[0].mxu0 %v1735
        %v1939 = vpop.f32.mrb[0].mxu0
        %v1940 = vadd.f32 %v1536, %v1939
        %v1941 = vpop.f32.mrb[0].mxu0
        %1942 = vmatprep.mubr.f32.mxu0 0.0
        %1943 = vmatmul.mubr.f32.gmra.mrb[0].mxu0 %v1737
        %v1944 = vpop.f32.mrb[0].mxu0
        %v1945 = vadd.f32 %v1541, %v1944
        %v1946 = vpop.f32.mrb[0].mxu0
        %1947 = vmatprep.mubr.f32.mxu0 0.0
        %1948 = vmatmul.mubr.f32.gmra.mrb[0].mxu0 %v1739
        %v1949 = vpop.f32.mrb[0].mxu0
        %v1950 = vadd.f32 %v1546, %v1949
        %v1951 = vpop.f32.mrb[0].mxu0
        %1952 = vmatprep.mubr.f32.mxu0 0.0
        %1953 = vmatmul.mubr.f32.gmra.mrb[0].mxu0 %v1741
        %v1954 = vpop.f32.mrb[0].mxu0
        %v1955 = vadd.f32 %v1551, %v1954
        %v1956 = vpop.f32.mrb[0].mxu0
        %1957 = vmatprep.mubr.f32.mxu0 0.0
        %1958 = vmatmul.mubr.f32.gmra.mrb[0].mxu0 %v1743
        %v1959 = vpop.f32.mrb[0].mxu0
        %v1960 = vadd.f32 %v1556, %v1959
        %v1961 = vpop.f32.mrb[0].mxu0
        %1962 = vmatprep.mubr.f32.mxu0 0.0
        %1963 = vmatmul.mubr.f32.gmra.mrb[0].mxu0 %v1745
        %v1964 = vpop.f32.mrb[0].mxu0
        %v1965 = vadd.f32 %v1561, %v1964
        %v1966 = vpop.f32.mrb[0].mxu0
        %1967 = vmatprep.mubr.f32.mxu0 0.0
        %1968 = vmatmul.mubr.f32.gmra.mrb[0].mxu0 %v1747
        %v1969 = vpop.f32.mrb[0].mxu0
        %v1970 = vadd.f32 %v1566, %v1969
        %v1971 = vpop.f32.mrb[0].mxu0
        %1972 = vmatprep.mubr.f32.mxu0 0.0
        %1973 = vmatmul.mubr.f32.gmra.mrb[0].mxu0 %v1749
        %v1974 = vpop.f32.mrb[0].mxu0
        %v1975 = vadd.f32 %v1571, %v1974
        %v1976 = vpop.f32.mrb[0].mxu0
        %1977 = vmatprep.mubr.f32.mxu0 0.0
        %1978 = vmatmul.mubr.f32.gmra.mrb[0].mxu0 %v1751
        %v1979 = vpop.f32.mrb[0].mxu0
        %v1980 = vadd.f32 %v1576, %v1979
        %v1981 = vpop.f32.mrb[0].mxu0
        %1982 = vmatprep.mubr.f32.mxu0 0.0
        %1983 = vmatmul.mubr.f32.gmra.mrb[0].mxu0 %v1753
        %v1984 = vpop.f32.mrb[0].mxu0
        %v1985 = vadd.f32 %v1581, %v1984
        %v1986 = vpop.f32.mrb[0].mxu0
        %1987 = vmatprep.mubr.f32.mxu0 0.0
        %1988 = vmatmul.mubr.f32.gmra.mrb[0].mxu0 %v1755
        %v1989 = vpop.f32.mrb[0].mxu0
        %v1990 = vadd.f32 %v1586, %v1989
        %v1991 = vpop.f32.mrb[0].mxu0
        %1992 = vmatprep.mubr.f32.mxu0 0.0
        %1993 = vmatmul.mubr.f32.gmra.mrb[0].mxu0 %v1757
        %v1994 = vpop.f32.mrb[0].mxu0
        %v1995 = vadd.f32 %v1591, %v1994
        %v1996 = vpop.f32.mrb[0].mxu0
        %1997 = vmatprep.mubr.f32.mxu0 0.0
        %1998 = vmatmul.mubr.f32.gmra.mrb[0].mxu0 %v1759
        %v1999 = vpop.f32.mrb[0].mxu0
        %v2000 = vadd.f32 %v1596, %v1999
        %v2001 = vpop.f32.mrb[0].mxu0
        %2002 = vmatprep.mubr.f32.mxu0 0.0
        %2003 = vmatmul.mubr.f32.gmra.mrb[0].mxu0 %v1761
        %v2004 = vpop.f32.mrb[0].mxu0
        %v2005 = vadd.f32 %v1601, %v2004
        %v2006 = vpop.f32.mrb[0].mxu0
        %2007 = vmatprep.mubr.f32.mxu0 0.0
        %2008 = vmatmul.mubr.f32.gmra.mrb[0].mxu0 %v1763
        %v2009 = vpop.f32.mrb[0].mxu0
        %v2010 = vadd.f32 %v1606, %v2009
        %v2011 = vpop.f32.mrb[0].mxu0
        %2012 = vmatprep.mubr.f32.mxu0 0.0
        %2013 = vmatmul.mubr.f32.gmra.mrb[0].mxu0 %v1765
        %v2014 = vpop.f32.mrb[0].mxu0
        %v2015 = vadd.f32 %v1611, %v2014
        %v2016 = vpop.f32.mrb[0].mxu0
        %2017 = vmatprep.mubr.f32.mxu0 0.0
        %2018 = vmatmul.mubr.f32.gmra.mrb[0].mxu0 %v1767
        %v2019 = vpop.f32.mrb[0].mxu0
        %v2020 = vadd.f32 %v1616, %v2019
        %v2021 = vpop.f32.mrb[0].mxu0
        %2022 = vmatprep.mubr.f32.mxu0 0.0
        %2023 = vmatmul.mubr.f32.gmra.mrb[0].mxu0 %v1769
        %v2024 = vpop.f32.mrb[0].mxu0
        %v2025 = vadd.f32 %v1621, %v2024
        %v2026 = vpop.f32.mrb[0].mxu0
        %2027 = vmatprep.mubr.f32.mxu0 0.0
        %2028 = vmatmul.mubr.f32.gmra.mrb[0].mxu0 %v1771
        %v2029 = vpop.f32.mrb[0].mxu0
        %v2030 = vadd.f32 %v1626, %v2029
        %v2031 = vpop.f32.mrb[0].mxu0
        %2032 = vmatprep.mubr.f32.mxu0 0.0
        %2033 = vmatmul.mubr.f32.gmra.mrb[0].mxu0 %v1773
        %v2034 = vpop.f32.mrb[0].mxu0
        %v2035 = vadd.f32 %v1631, %v2034
        %v2036 = vpop.f32.mrb[0].mxu0
        %2037 = vmatprep.mubr.f32.mxu0 0.0
        %2038 = vmatmul.mubr.f32.gmra.mrb[0].mxu0 %v1775
        %v2039 = vpop.f32.mrb[0].mxu0
        %v2040 = vadd.f32 %v1636, %v2039
        %v2041 = vpop.f32.mrb[0].mxu0
        %2042 = vmatprep.mubr.f32.mxu0 0.0
        %2043 = vmatmul.mubr.f32.gmra.mrb[0].mxu0 %v1777
        %v2044 = vpop.f32.mrb[0].mxu0
        %v2045 = vadd.f32 %v1641, %v2044
        %v2046 = vpop.f32.mrb[0].mxu0
        %2047 = vmatprep.mubr.f32.mxu0 0.0
        %2048 = vmatmul.mubr.f32.gmra.mrb[0].mxu0 %v1779
        %v2049 = vpop.f32.mrb[0].mxu0
        %v2050 = vadd.f32 %v1646, %v2049
        %v2051 = vpop.f32.mrb[0].mxu0
        %2052 = vmatprep.mubr.f32.mxu0 0.0
        %2053 = vmatmul.mubr.f32.gmra.mrb[0].mxu0 %v1781
        %v2054 = vpop.f32.mrb[0].mxu0
        %v2055 = vadd.f32 %v1651, %v2054
        %v2056 = vpop.f32.mrb[0].mxu0
        %2057 = vmatprep.mubr.f32.mxu0 0.0
        %2058 = vmatmul.mubr.f32.gmra.mrb[0].mxu0 %v1783
        %v2059 = vpop.f32.mrb[0].mxu0
        %v2060 = vadd.f32 %v1656, %v2059
        %v2061 = vpop.f32.mrb[0].mxu0
        %2062 = vmatprep.mubr.f32.mxu0 0.0
        %2063 = vmatmul.mubr.f32.gmra.mrb[0].mxu0 %v1785
        %v2064 = vpop.f32.mrb[0].mxu0
        %v2065 = vadd.f32 %v1661, %v2064
        %v2066 = vpop.f32.mrb[0].mxu0
        %2067 = vmatprep.mubr.f32.mxu0 0.0
        %2068 = vmatmul.mubr.f32.gmra.mrb[0].mxu0 %v1787
        %v2069 = vpop.f32.mrb[0].mxu0
        %v2070 = vadd.f32 %v1666, %v2069
        %v2071 = vpop.f32.mrb[0].mxu0
        %2072 = vmatprep.mubr.f32.mxu0 0.0
        %2073 = vmatmul.mubr.f32.gmra.mrb[0].mxu0 %v1789
        %v2074 = vpop.f32.mrb[0].mxu0
        %v2075 = vadd.f32 %v1671, %v2074
        %v2076 = vpop.f32.mrb[0].mxu0
        %2077 = vmatprep.mubr.f32.mxu0 0.0
        %2078 = vmatmul.mubr.f32.gmra.mrb[0].mxu0 %v1791
        %v2079 = vpop.f32.mrb[0].mxu0
        %v2080 = vadd.f32 %v1676, %v2079
        %v2081 = vpop.f32.mrb[0].mxu0
        %2082 = vmatprep.mubr.f32.mxu0 0.0
        %2083 = vmatmul.mubr.f32.gmra.mrb[0].mxu0 %v1793
        %v2084 = vpop.f32.mrb[0].mxu0
        %v2085 = vadd.f32 %v1681, %v2084
        %v2086 = vpop.f32.mrb[0].mxu0
        %2087 = vmatprep.mubr.f32.mxu0 0.0
        %2088 = vmatmul.mubr.f32.gmra.mrb[0].mxu0 %v1795
        %v2089 = vpop.f32.mrb[0].mxu0
        %v2090 = vadd.f32 %v1686, %v2089
        %v2091 = vpop.f32.mrb[0].mxu0
        %2092 = vmatprep.mubr.f32.mxu0 0.0
        %2093 = vmatmul.mubr.f32.gmra.mrb[0].mxu0 %v1797
        %v2094 = vpop.f32.mrb[0].mxu0
        %v2095 = vadd.f32 %v1691, %v2094
        %v2096 = vpop.f32.mrb[0].mxu0
        %2097 = vmatprep.mubr.f32.mxu0 0.0
        %2098 = vmatmul.mubr.f32.gmra.mrb[0].mxu0 %v1799
        %v2099 = vpop.f32.mrb[0].mxu0
        %v2100 = vadd.f32 %v1696, %v2099
        %v2101 = vpop.f32.mrb[0].mxu0
        %2102 = vmatprep.mubr.f32.mxu0 0.0
        %2103 = vmatmul.mubr.f32.gmra.mrb[0].mxu0 %v1801
        %v2104 = vpop.f32.mrb[0].mxu0
        %v2105 = vadd.f32 %v1701, %v2104
        %v2106 = vpop.f32.mrb[0].mxu0
        %2107 = vmatprep.mubr.f32.mxu0 0.0
        %2108 = vmatmul.mubr.f32.gmra.mrb[0].mxu0 %v1803
        %v2109 = vpop.f32.mrb[0].mxu0
        %v2110 = vadd.f32 %v1706, %v2109
        %v2111 = vpop.f32.mrb[0].mxu0
        %2112 = vdwg.mxu0
        %vm2113 = vcmask 1045504
        %v2114 = vrot.slane %v1051, 2
        %v2115 = vrot.slane %v1052, 2
        %v2116 = vsel %vm2113, %v2114, %v2115
        %v2117 = vrot.slane %v1053, 2
        %v2118 = vsel %vm2113, %v2115, %v2117
        %v2119 = vrot.slane %v1054, 2
        %v2120 = vsel %vm2113, %v2117, %v2119
        %v2121 = vrot.slane %v1055, 2
        %v2122 = vrot.slane %v1056, 2
        %v2123 = vsel %vm2113, %v2121, %v2122
        %v2124 = vrot.slane %v1057, 2
        %v2125 = vsel %vm2113, %v2122, %v2124
        %v2126 = vrot.slane %v1058, 2
        %v2127 = vsel %vm2113, %v2124, %v2126
        %v2128 = vrot.slane %v1059, 2
        %v2129 = vrot.slane %v1060, 2
        %v2130 = vsel %vm2113, %v2128, %v2129
        %v2131 = vrot.slane %v1061, 2
        %v2132 = vsel %vm2113, %v2129, %v2131
        %v2133 = vrot.slane %v1062, 2
        %v2134 = vsel %vm2113, %v2131, %v2133
        %v2135 = vrot.slane %v1063, 2
        %v2136 = vrot.slane %v1064, 2
        %v2137 = vsel %vm2113, %v2135, %v2136
        %v2138 = vrot.slane %v1065, 2
        %v2139 = vsel %vm2113, %v2136, %v2138
        %v2140 = vrot.slane %v1066, 2
        %v2141 = vsel %vm2113, %v2138, %v2140
        %v2142 = vrot.slane %v1067, 2
        %v2143 = vrot.slane %v1068, 2
        %v2144 = vsel %vm2113, %v2142, %v2143
        %v2145 = vrot.slane %v1069, 2
        %v2146 = vsel %vm2113, %v2143, %v2145
        %v2147 = vrot.slane %v1070, 2
        %v2148 = vsel %vm2113, %v2145, %v2147
        %v2149 = vrot.slane %v1071, 2
        %v2150 = vrot.slane %v1072, 2
        %v2151 = vsel %vm2113, %v2149, %v2150
        %v2152 = vrot.slane %v1073, 2
        %v2153 = vsel %vm2113, %v2150, %v2152
        %v2154 = vrot.slane %v1074, 2
        %v2155 = vsel %vm2113, %v2152, %v2154
        %v2156 = vrot.slane %v1075, 2
        %v2157 = vrot.slane %v1076, 2
        %v2158 = vsel %vm2113, %v2156, %v2157
        %v2159 = vrot.slane %v1077, 2
        %v2160 = vsel %vm2113, %v2157, %v2159
        %v2161 = vrot.slane %v1078, 2
        %v2162 = vsel %vm2113, %v2159, %v2161
        %v2163 = vrot.slane %v1079, 2
        %v2164 = vrot.slane %v1080, 2
        %v2165 = vsel %vm2113, %v2163, %v2164
        %v2166 = vrot.slane %v1081, 2
        %v2167 = vsel %vm2113, %v2164, %v2166
        %v2168 = vrot.slane %v1082, 2
        %v2169 = vsel %vm2113, %v2166, %v2168
        %v2170 = vrot.slane %v1083, 2
        %v2171 = vrot.slane %v1084, 2
        %v2172 = vsel %vm2113, %v2170, %v2171
        %v2173 = vrot.slane %v1085, 2
        %v2174 = vsel %vm2113, %v2171, %v2173
        %v2175 = vrot.slane %v1086, 2
        %v2176 = vsel %vm2113, %v2173, %v2175
        %v2177 = vrot.slane %v1087, 2
        %v2178 = vrot.slane %v1088, 2
        %v2179 = vsel %vm2113, %v2177, %v2178
        %v2180 = vrot.slane %v1089, 2
        %v2181 = vsel %vm2113, %v2178, %v2180
        %v2182 = vrot.slane %v1090, 2
        %v2183 = vsel %vm2113, %v2180, %v2182
        %v2184 = vrot.slane %v1091, 2
        %v2185 = vrot.slane %v1092, 2
        %v2186 = vsel %vm2113, %v2184, %v2185
        %v2187 = vrot.slane %v1093, 2
        %v2188 = vsel %vm2113, %v2185, %v2187
        %v2189 = vrot.slane %v1094, 2
        %v2190 = vsel %vm2113, %v2187, %v2189
        %v2191 = vrot.slane %v1095, 2
        %v2192 = vrot.slane %v1096, 2
        %v2193 = vsel %vm2113, %v2191, %v2192
        %v2194 = vrot.slane %v1097, 2
        %v2195 = vsel %vm2113, %v2192, %v2194
        %v2196 = vrot.slane %v1098, 2
        %v2197 = vsel %vm2113, %v2194, %v2196
        %v2198 = vrot.slane %v1099, 2
        %v2199 = vrot.slane %v1100, 2
        %v2200 = vsel %vm2113, %v2198, %v2199
        %v2201 = vrot.slane %v1101, 2
        %v2202 = vsel %vm2113, %v2199, %v2201
        %v2203 = vrot.slane %v1102, 2
        %v2204 = vsel %vm2113, %v2201, %v2203
        %v2205 = vrot.slane %v1103, 2
        %v2206 = vrot.slane %v1104, 2
        %v2207 = vsel %vm2113, %v2205, %v2206
        %v2208 = vrot.slane %v1105, 2
        %v2209 = vsel %vm2113, %v2206, %v2208
        %v2210 = vrot.slane %v1106, 2
        %v2211 = vsel %vm2113, %v2208, %v2210
        %v2212 = vrot.slane %v1107, 2
        %v2213 = vrot.slane %v1108, 2
        %v2214 = vsel %vm2113, %v2212, %v2213
        %v2215 = vrot.slane %v1109, 2
        %v2216 = vsel %vm2113, %v2213, %v2215
        %v2217 = vrot.slane %v1110, 2
        %v2218 = vsel %vm2113, %v2215, %v2217
        %v2219 = vrot.slane %v1111, 2
        %v2220 = vrot.slane %v1112, 2
        %v2221 = vsel %vm2113, %v2219, %v2220
        %v2222 = vrot.slane %v1113, 2
        %v2223 = vsel %vm2113, %v2220, %v2222
        %v2224 = vrot.slane %v1114, 2
        %v2225 = vsel %vm2113, %v2222, %v2224
        %s2226 = scalar_lea.vmem %s5, 8
        %v2227 = vld [vmem:[%s2226] sm:$0xf]
        %v2228 = vsel %vm1303, %v2116, 0
        %v2230 = vsel %vm1303, %v2118, 0
        %v2232 = vsel %vm1303, %v2120, 0
        %v2234 = vsel %vm1303, %v2123, 0
        %v2236 = vsel %vm1303, %v2125, 0
        %v2238 = vsel %vm1303, %v2127, 0
        %v2240 = vsel %vm1303, %v2130, 0
        %v2242 = vsel %vm1303, %v2132, 0
        %v2244 = vsel %vm1303, %v2134, 0
        %v2246 = vsel %vm1303, %v2137, 0
        %v2248 = vsel %vm1303, %v2139, 0
        %v2250 = vsel %vm1303, %v2141, 0
        %v2252 = vsel %vm1303, %v2144, 0
        %v2254 = vsel %vm1303, %v2146, 0
        %v2256 = vsel %vm1303, %v2148, 0
        %v2258 = vsel %vm1303, %v2151, 0
        %v2260 = vsel %vm1303, %v2153, 0
        %v2262 = vsel %vm1303, %v2155, 0
        %v2264 = vsel %vm1303, %v2158, 0
        %v2266 = vsel %vm1303, %v2160, 0
        %v2268 = vsel %vm1303, %v2162, 0
        %v2270 = vsel %vm1303, %v2165, 0
        %v2272 = vsel %vm1303, %v2167, 0
        %v2274 = vsel %vm1303, %v2169, 0
        %v2276 = vsel %vm1303, %v2172, 0
        %v2278 = vsel %vm1303, %v2174, 0
        %v2280 = vsel %vm1303, %v2176, 0
        %v2282 = vsel %vm1303, %v2179, 0
        %v2284 = vsel %vm1303, %v2181, 0
        %v2286 = vsel %vm1303, %v2183, 0
        %v2288 = vsel %vm1303, %v2186, 0
        %v2290 = vsel %vm1303, %v2188, 0
        %v2292 = vsel %vm1303, %v2190, 0
        %v2294 = vsel %vm1303, %v2193, 0
        %v2296 = vsel %vm1303, %v2195, 0
        %v2298 = vsel %vm1303, %v2197, 0
        %v2300 = vsel %vm1303, %v2200, 0
        %v2302 = vsel %vm1303, %v2202, 0
        %v2304 = vsel %vm1303, %v2204, 0
        %v2306 = vsel %vm1303, %v2207, 0
        %v2308 = vsel %vm1303, %v2209, 0
        %v2310 = vsel %vm1303, %v2211, 0
        %v2312 = vsel %vm1303, %v2214, 0
        %v2314 = vsel %vm1303, %v2216, 0
        %v2316 = vsel %vm1303, %v2218, 0
        %v2318 = vsel %vm1303, %v2221, 0
        %v2320 = vsel %vm1303, %v2223, 0
        %v2322 = vsel %vm1303, %v2225, 0
        %v2325 = vsel %vm1400, %v2227, 0
        %2327 = vmatprep.subr.mxu0 0.0
        %2328 = vmatpush1.msra.mxu0 %v2325
        %2329 = vmatprep.subr.mxu0 0.0
        %2330 = vmatpush1.msra.mxu0 0.0
        %2331 = vmatprep.subr.mxu0 0.0
        %2332 = vmatpush1.msra.mxu0 0.0
        %2333 = vmatprep.subr.mxu0 0.0
        %2334 = vmatpush1.msra.mxu0 0.0
        %2335 = vmatprep.subr.mxu0 0.0
        %2336 = vmatpush1.msra.mxu0 0.0
        %2337 = vmatprep.subr.mxu0 0.0
        %2338 = vmatpush1.msra.mxu0 0.0
        %2339 = vmatprep.subr.mxu0 0.0
        %2340 = vmatpush1.msra.mxu0 0.0
        %2341 = vmatprep.subr.mxu0 0.0
        %2342 = vmatpush1.msra.mxu0 0.0
        %2343 = vmatprep.subr.mxu0 0.0
        %2344 = vmatpush1.msra.mxu0 0.0
        %2345 = vmatprep.subr.mxu0 0.0
        %2346 = vmatpush1.msra.mxu0 0.0
        %2347 = vmatprep.subr.mxu0 0.0
        %2348 = vmatpush1.msra.mxu0 0.0
        %2349 = vmatprep.subr.mxu0 0.0
        %2350 = vmatpush1.msra.mxu0 0.0
        %2351 = vmatprep.subr.mxu0 0.0
        %2352 = vmatpush1.msra.mxu0 0.0
        %2353 = vmatprep.subr.mxu0 0.0
        %2354 = vmatpush1.msra.mxu0 0.0
        %2355 = vmatprep.subr.mxu0 0.0
        %2356 = vmatpush1.msra.mxu0 0.0
        %2357 = vmatprep.subr.mxu0 0.0
        %2358 = vmatpush1.msra.mxu0 0.0
        %2359 = vmatprep.subr.mxu0 0.0
        %2360 = vmatpush1.msra.mxu0 0.0
        %2361 = vmatprep.subr.mxu0 0.0
        %2362 = vmatpush1.msra.mxu0 0.0
        %2363 = vmatprep.subr.mxu0 0.0
        %2364 = vmatpush1.msra.mxu0 0.0
        %2365 = vmatprep.subr.mxu0 0.0
        %2366 = vmatpush1.msra.mxu0 0.0
        %2367 = vmatprep.subr.mxu0 0.0
        %2368 = vmatpush1.msra.mxu0 0.0
        %2369 = vmatprep.subr.mxu0 0.0
        %2370 = vmatpush1.msra.mxu0 0.0
        %2371 = vmatprep.subr.mxu0 0.0
        %2372 = vmatpush1.msra.mxu0 0.0
        %2373 = vmatprep.subr.mxu0 0.0
        %2374 = vmatpush1.msra.mxu0 0.0
        %2375 = vmatprep.subr.mxu0 0.0
        %2376 = vmatpush1.msra.mxu0 0.0
        %2377 = vmatprep.subr.mxu0 0.0
        %2378 = vmatpush1.msra.mxu0 0.0
        %2379 = vmatprep.subr.mxu0 0.0
        %2380 = vmatpush1.msra.mxu0 0.0
        %2381 = vmatprep.subr.mxu0 0.0
        %2382 = vmatpush1.msra.mxu0 0.0
        %2383 = vmatprep.subr.mxu0 0.0
        %2384 = vmatpush1.msra.mxu0 0.0
        %2385 = vmatprep.subr.mxu0 0.0
        %2386 = vmatpush1.msra.mxu0 0.0
        %2387 = vmatprep.subr.mxu0 0.0
        %2388 = vmatpush1.msra.mxu0 0.0
        %2389 = vmatprep.subr.mxu0 0.0
        %2390 = vmatpush1.msra.mxu0 0.0
        %2391 = vmatprep.mubr.f32.mxu0 0.0
        %2392 = vmatmul.mubr.f32.gmra.mrb[0].mxu0 %v2228
        %v2393 = vpop.f32.mrb[0].mxu0
        %v2394 = vadd.f32 0.0, %v2393
        %v2395 = vpop.f32.mrb[0].mxu0
        %2396 = vmatprep.mubr.f32.mxu0 0.0
        %2397 = vmatmul.mubr.f32.gmra.mrb[0].mxu0 %v2230
        %v2398 = vpop.f32.mrb[0].mxu0
        %v2399 = vadd.f32 0.0, %v2398
        %v2400 = vpop.f32.mrb[0].mxu0
        %2401 = vmatprep.mubr.f32.mxu0 0.0
        %2402 = vmatmul.mubr.f32.gmra.mrb[0].mxu0 %v2232
        %v2403 = vpop.f32.mrb[0].mxu0
        %v2404 = vadd.f32 0.0, %v2403
        %v2405 = vpop.f32.mrb[0].mxu0
        %2406 = vmatprep.mubr.f32.mxu0 0.0
        %2407 = vmatmul.mubr.f32.gmra.mrb[0].mxu0 %v2234
        %v2408 = vpop.f32.mrb[0].mxu0
        %v2409 = vadd.f32 0.0, %v2408
        %v2410 = vpop.f32.mrb[0].mxu0
        %2411 = vmatprep.mubr.f32.mxu0 0.0
        %2412 = vmatmul.mubr.f32.gmra.mrb[0].mxu0 %v2236
        %v2413 = vpop.f32.mrb[0].mxu0
        %v2414 = vadd.f32 0.0, %v2413
        %v2415 = vpop.f32.mrb[0].mxu0
        %2416 = vmatprep.mubr.f32.mxu0 0.0
        %2417 = vmatmul.mubr.f32.gmra.mrb[0].mxu0 %v2238
        %v2418 = vpop.f32.mrb[0].mxu0
        %v2419 = vadd.f32 0.0, %v2418
        %v2420 = vpop.f32.mrb[0].mxu0
        %2421 = vmatprep.mubr.f32.mxu0 0.0
        %2422 = vmatmul.mubr.f32.gmra.mrb[0].mxu0 %v2240
        %v2423 = vpop.f32.mrb[0].mxu0
        %v2424 = vadd.f32 0.0, %v2423
        %v2425 = vpop.f32.mrb[0].mxu0
        %2426 = vmatprep.mubr.f32.mxu0 0.0
        %2427 = vmatmul.mubr.f32.gmra.mrb[0].mxu0 %v2242
        %v2428 = vpop.f32.mrb[0].mxu0
        %v2429 = vadd.f32 0.0, %v2428
        %v2430 = vpop.f32.mrb[0].mxu0
        %2431 = vmatprep.mubr.f32.mxu0 0.0
        %2432 = vmatmul.mubr.f32.gmra.mrb[0].mxu0 %v2244
        %v2433 = vpop.f32.mrb[0].mxu0
        %v2434 = vadd.f32 0.0, %v2433
        %v2435 = vpop.f32.mrb[0].mxu0
        %2436 = vmatprep.mubr.f32.mxu0 0.0
        %2437 = vmatmul.mubr.f32.gmra.mrb[0].mxu0 %v2246
        %v2438 = vpop.f32.mrb[0].mxu0
        %v2439 = vadd.f32 0.0, %v2438
        %v2440 = vpop.f32.mrb[0].mxu0
        %2441 = vmatprep.mubr.f32.mxu0 0.0
        %2442 = vmatmul.mubr.f32.gmra.mrb[0].mxu0 %v2248
        %v2443 = vpop.f32.mrb[0].mxu0
        %v2444 = vadd.f32 0.0, %v2443
        %v2445 = vpop.f32.mrb[0].mxu0
        %2446 = vmatprep.mubr.f32.mxu0 0.0
        %2447 = vmatmul.mubr.f32.gmra.mrb[0].mxu0 %v2250
        %v2448 = vpop.f32.mrb[0].mxu0
        %v2449 = vadd.f32 0.0, %v2448
        %v2450 = vpop.f32.mrb[0].mxu0
        %2451 = vmatprep.mubr.f32.mxu0 0.0
        %2452 = vmatmul.mubr.f32.gmra.mrb[0].mxu0 %v2252
        %v2453 = vpop.f32.mrb[0].mxu0
        %v2454 = vadd.f32 0.0, %v2453
        %v2455 = vpop.f32.mrb[0].mxu0
        %2456 = vmatprep.mubr.f32.mxu0 0.0
        %2457 = vmatmul.mubr.f32.gmra.mrb[0].mxu0 %v2254
        %v2458 = vpop.f32.mrb[0].mxu0
        %v2459 = vadd.f32 0.0, %v2458
        %v2460 = vpop.f32.mrb[0].mxu0
        %2461 = vmatprep.mubr.f32.mxu0 0.0
        %2462 = vmatmul.mubr.f32.gmra.mrb[0].mxu0 %v2256
        %v2463 = vpop.f32.mrb[0].mxu0
        %v2464 = vadd.f32 0.0, %v2463
        %v2465 = vpop.f32.mrb[0].mxu0
        %2466 = vmatprep.mubr.f32.mxu0 0.0
        %2467 = vmatmul.mubr.f32.gmra.mrb[0].mxu0 %v2258
        %v2468 = vpop.f32.mrb[0].mxu0
        %v2469 = vadd.f32 0.0, %v2468
        %v2470 = vpop.f32.mrb[0].mxu0
        %2471 = vmatprep.mubr.f32.mxu0 0.0
        %2472 = vmatmul.mubr.f32.gmra.mrb[0].mxu0 %v2260
        %v2473 = vpop.f32.mrb[0].mxu0
        %v2474 = vadd.f32 0.0, %v2473
        %v2475 = vpop.f32.mrb[0].mxu0
        %2476 = vmatprep.mubr.f32.mxu0 0.0
        %2477 = vmatmul.mubr.f32.gmra.mrb[0].mxu0 %v2262
        %v2478 = vpop.f32.mrb[0].mxu0
        %v2479 = vadd.f32 0.0, %v2478
        %v2480 = vpop.f32.mrb[0].mxu0
        %2481 = vmatprep.mubr.f32.mxu0 0.0
        %2482 = vmatmul.mubr.f32.gmra.mrb[0].mxu0 %v2264
        %v2483 = vpop.f32.mrb[0].mxu0
        %v2484 = vadd.f32 0.0, %v2483
        %v2485 = vpop.f32.mrb[0].mxu0
        %2486 = vmatprep.mubr.f32.mxu0 0.0
        %2487 = vmatmul.mubr.f32.gmra.mrb[0].mxu0 %v2266
        %v2488 = vpop.f32.mrb[0].mxu0
        %v2489 = vadd.f32 0.0, %v2488
        %v2490 = vpop.f32.mrb[0].mxu0
        %2491 = vmatprep.mubr.f32.mxu0 0.0
        %2492 = vmatmul.mubr.f32.gmra.mrb[0].mxu0 %v2268
        %v2493 = vpop.f32.mrb[0].mxu0
        %v2494 = vadd.f32 0.0, %v2493
        %v2495 = vpop.f32.mrb[0].mxu0
        %2496 = vmatprep.mubr.f32.mxu0 0.0
        %2497 = vmatmul.mubr.f32.gmra.mrb[0].mxu0 %v2270
        %v2498 = vpop.f32.mrb[0].mxu0
        %v2499 = vadd.f32 0.0, %v2498
        %v2500 = vpop.f32.mrb[0].mxu0
        %2501 = vmatprep.mubr.f32.mxu0 0.0
        %2502 = vmatmul.mubr.f32.gmra.mrb[0].mxu0 %v2272
        %v2503 = vpop.f32.mrb[0].mxu0
        %v2504 = vadd.f32 0.0, %v2503
        %v2505 = vpop.f32.mrb[0].mxu0
        %2506 = vmatprep.mubr.f32.mxu0 0.0
        %2507 = vmatmul.mubr.f32.gmra.mrb[0].mxu0 %v2274
        %v2508 = vpop.f32.mrb[0].mxu0
        %v2509 = vadd.f32 0.0, %v2508
        %v2510 = vpop.f32.mrb[0].mxu0
        %2511 = vmatprep.mubr.f32.mxu0 0.0
        %2512 = vmatmul.mubr.f32.gmra.mrb[0].mxu0 %v2276
        %v2513 = vpop.f32.mrb[0].mxu0
        %v2514 = vadd.f32 0.0, %v2513
        %v2515 = vpop.f32.mrb[0].mxu0
        %2516 = vmatprep.mubr.f32.mxu0 0.0
        %2517 = vmatmul.mubr.f32.gmra.mrb[0].mxu0 %v2278
        %v2518 = vpop.f32.mrb[0].mxu0
        %v2519 = vadd.f32 0.0, %v2518
        %v2520 = vpop.f32.mrb[0].mxu0
        %2521 = vmatprep.mubr.f32.mxu0 0.0
        %2522 = vmatmul.mubr.f32.gmra.mrb[0].mxu0 %v2280
        %v2523 = vpop.f32.mrb[0].mxu0
        %v2524 = vadd.f32 0.0, %v2523
        %v2525 = vpop.f32.mrb[0].mxu0
        %2526 = vmatprep.mubr.f32.mxu0 0.0
        %2527 = vmatmul.mubr.f32.gmra.mrb[0].mxu0 %v2282
        %v2528 = vpop.f32.mrb[0].mxu0
        %v2529 = vadd.f32 0.0, %v2528
        %v2530 = vpop.f32.mrb[0].mxu0
        %2531 = vmatprep.mubr.f32.mxu0 0.0
        %2532 = vmatmul.mubr.f32.gmra.mrb[0].mxu0 %v2284
        %v2533 = vpop.f32.mrb[0].mxu0
        %v2534 = vadd.f32 0.0, %v2533
        %v2535 = vpop.f32.mrb[0].mxu0
        %2536 = vmatprep.mubr.f32.mxu0 0.0
        %2537 = vmatmul.mubr.f32.gmra.mrb[0].mxu0 %v2286
        %v2538 = vpop.f32.mrb[0].mxu0
        %v2539 = vadd.f32 0.0, %v2538
        %v2540 = vpop.f32.mrb[0].mxu0
        %2541 = vmatprep.mubr.f32.mxu0 0.0
        %2542 = vmatmul.mubr.f32.gmra.mrb[0].mxu0 %v2288
        %v2543 = vpop.f32.mrb[0].mxu0
        %v2544 = vadd.f32 0.0, %v2543
        %v2545 = vpop.f32.mrb[0].mxu0
        %2546 = vmatprep.mubr.f32.mxu0 0.0
        %2547 = vmatmul.mubr.f32.gmra.mrb[0].mxu0 %v2290
        %v2548 = vpop.f32.mrb[0].mxu0
        %v2549 = vadd.f32 0.0, %v2548
        %v2550 = vpop.f32.mrb[0].mxu0
        %2551 = vmatprep.mubr.f32.mxu0 0.0
        %2552 = vmatmul.mubr.f32.gmra.mrb[0].mxu0 %v2292
        %v2553 = vpop.f32.mrb[0].mxu0
        %v2554 = vadd.f32 0.0, %v2553
        %v2555 = vpop.f32.mrb[0].mxu0
        %2556 = vmatprep.mubr.f32.mxu0 0.0
        %2557 = vmatmul.mubr.f32.gmra.mrb[0].mxu0 %v2294
        %v2558 = vpop.f32.mrb[0].mxu0
        %v2559 = vadd.f32 0.0, %v2558
        %v2560 = vpop.f32.mrb[0].mxu0
        %2561 = vmatprep.mubr.f32.mxu0 0.0
        %2562 = vmatmul.mubr.f32.gmra.mrb[0].mxu0 %v2296
        %v2563 = vpop.f32.mrb[0].mxu0
        %v2564 = vadd.f32 0.0, %v2563
        %v2565 = vpop.f32.mrb[0].mxu0
        %2566 = vmatprep.mubr.f32.mxu0 0.0
        %2567 = vmatmul.mubr.f32.gmra.mrb[0].mxu0 %v2298
        %v2568 = vpop.f32.mrb[0].mxu0
        %v2569 = vadd.f32 0.0, %v2568
        %v2570 = vpop.f32.mrb[0].mxu0
        %2571 = vmatprep.mubr.f32.mxu0 0.0
        %2572 = vmatmul.mubr.f32.gmra.mrb[0].mxu0 %v2300
        %v2573 = vpop.f32.mrb[0].mxu0
        %v2574 = vadd.f32 0.0, %v2573
        %v2575 = vpop.f32.mrb[0].mxu0
        %2576 = vmatprep.mubr.f32.mxu0 0.0
        %2577 = vmatmul.mubr.f32.gmra.mrb[0].mxu0 %v2302
        %v2578 = vpop.f32.mrb[0].mxu0
        %v2579 = vadd.f32 0.0, %v2578
        %v2580 = vpop.f32.mrb[0].mxu0
        %2581 = vmatprep.mubr.f32.mxu0 0.0
        %2582 = vmatmul.mubr.f32.gmra.mrb[0].mxu0 %v2304
        %v2583 = vpop.f32.mrb[0].mxu0
        %v2584 = vadd.f32 0.0, %v2583
        %v2585 = vpop.f32.mrb[0].mxu0
        %2586 = vmatprep.mubr.f32.mxu0 0.0
        %2587 = vmatmul.mubr.f32.gmra.mrb[0].mxu0 %v2306
        %v2588 = vpop.f32.mrb[0].mxu0
        %v2589 = vadd.f32 0.0, %v2588
        %v2590 = vpop.f32.mrb[0].mxu0
        %2591 = vmatprep.mubr.f32.mxu0 0.0
        %2592 = vmatmul.mubr.f32.gmra.mrb[0].mxu0 %v2308
        %v2593 = vpop.f32.mrb[0].mxu0
        %v2594 = vadd.f32 0.0, %v2593
        %v2595 = vpop.f32.mrb[0].mxu0
        %2596 = vmatprep.mubr.f32.mxu0 0.0
        %2597 = vmatmul.mubr.f32.gmra.mrb[0].mxu0 %v2310
        %v2598 = vpop.f32.mrb[0].mxu0
        %v2599 = vadd.f32 0.0, %v2598
        %v2600 = vpop.f32.mrb[0].mxu0
        %2601 = vmatprep.mubr.f32.mxu0 0.0
        %2602 = vmatmul.mubr.f32.gmra.mrb[0].mxu0 %v2312
        %v2603 = vpop.f32.mrb[0].mxu0
        %v2604 = vadd.f32 0.0, %v2603
        %v2605 = vpop.f32.mrb[0].mxu0
        %2606 = vmatprep.mubr.f32.mxu0 0.0
        %2607 = vmatmul.mubr.f32.gmra.mrb[0].mxu0 %v2314
        %v2608 = vpop.f32.mrb[0].mxu0
        %v2609 = vadd.f32 0.0, %v2608
        %v2610 = vpop.f32.mrb[0].mxu0
        %2611 = vmatprep.mubr.f32.mxu0 0.0
        %2612 = vmatmul.mubr.f32.gmra.mrb[0].mxu0 %v2316
        %v2613 = vpop.f32.mrb[0].mxu0
        %v2614 = vadd.f32 0.0, %v2613
        %v2615 = vpop.f32.mrb[0].mxu0
        %2616 = vmatprep.mubr.f32.mxu0 0.0
        %2617 = vmatmul.mubr.f32.gmra.mrb[0].mxu0 %v2318
        %v2618 = vpop.f32.mrb[0].mxu0
        %v2619 = vadd.f32 0.0, %v2618
        %v2620 = vpop.f32.mrb[0].mxu0
        %2621 = vmatprep.mubr.f32.mxu0 0.0
        %2622 = vmatmul.mubr.f32.gmra.mrb[0].mxu0 %v2320
        %v2623 = vpop.f32.mrb[0].mxu0
        %v2624 = vadd.f32 0.0, %v2623
        %v2625 = vpop.f32.mrb[0].mxu0
        %2626 = vmatprep.mubr.f32.mxu0 0.0
        %2627 = vmatmul.mubr.f32.gmra.mrb[0].mxu0 %v2322
        %v2628 = vpop.f32.mrb[0].mxu0
        %v2629 = vadd.f32 0.0, %v2628
        %v2630 = vpop.f32.mrb[0].mxu0
        %2631 = vdwg.mxu0
        %v2632 = vadd.f32 %v1875, %v2394
        %v2633 = vadd.f32 %v1880, %v2399
        %v2634 = vadd.f32 %v1885, %v2404
        %v2635 = vadd.f32 %v1890, %v2409
        %v2636 = vadd.f32 %v1895, %v2414
        %v2637 = vadd.f32 %v1900, %v2419
        %v2638 = vadd.f32 %v1905, %v2424
        %v2639 = vadd.f32 %v1910, %v2429
        %v2640 = vadd.f32 %v1915, %v2434
        %v2641 = vadd.f32 %v1920, %v2439
        %v2642 = vadd.f32 %v1925, %v2444
        %v2643 = vadd.f32 %v1930, %v2449
        %v2644 = vadd.f32 %v1935, %v2454
        %v2645 = vadd.f32 %v1940, %v2459
        %v2646 = vadd.f32 %v1945, %v2464
        %v2647 = vadd.f32 %v1950, %v2469
        %v2648 = vadd.f32 %v1955, %v2474
        %v2649 = vadd.f32 %v1960, %v2479
        %v2650 = vadd.f32 %v1965, %v2484
        %v2651 = vadd.f32 %v1970, %v2489
        %v2652 = vadd.f32 %v1975, %v2494
        %v2653 = vadd.f32 %v1980, %v2499
        %v2654 = vadd.f32 %v1985, %v2504
        %v2655 = vadd.f32 %v1990, %v2509
        %v2656 = vadd.f32 %v1995, %v2514
        %v2657 = vadd.f32 %v2000, %v2519
        %v2658 = vadd.f32 %v2005, %v2524
        %v2659 = vadd.f32 %v2010, %v2529
        %v2660 = vadd.f32 %v2015, %v2534
        %v2661 = vadd.f32 %v2020, %v2539
        %v2662 = vadd.f32 %v2025, %v2544
        %v2663 = vadd.f32 %v2030, %v2549
        %v2664 = vadd.f32 %v2035, %v2554
        %v2665 = vadd.f32 %v2040, %v2559
        %v2666 = vadd.f32 %v2045, %v2564
        %v2667 = vadd.f32 %v2050, %v2569
        %v2668 = vadd.f32 %v2055, %v2574
        %v2669 = vadd.f32 %v2060, %v2579
        %v2670 = vadd.f32 %v2065, %v2584
        %v2671 = vadd.f32 %v2070, %v2589
        %v2672 = vadd.f32 %v2075, %v2594
        %v2673 = vadd.f32 %v2080, %v2599
        %v2674 = vadd.f32 %v2085, %v2604
        %v2675 = vadd.f32 %v2090, %v2609
        %v2676 = vadd.f32 %v2095, %v2614
        %v2677 = vadd.f32 %v2100, %v2619
        %v2678 = vadd.f32 %v2105, %v2624
        %v2679 = vadd.f32 %v2110, %v2629
        %s2680 = scalar_lea.vmem %s5, 12
        %v2681 = vld [vmem:[%s2680] sm:$0xf]
        %v2683 = vsel %vm1303, %v1115, 0
        %v2686 = vsel %vm1303, %v1116, 0
        %v2689 = vsel %vm1303, %v1117, 0
        %v2692 = vsel %vm1400, %v2681, 0
        %2694 = vmatprep.subr.mxu0 0.0
        %2695 = vmatpush1.msra.mxu0 %v2692
        %2696 = vmatprep.subr.mxu0 0.0
        %2697 = vmatpush1.msra.mxu0 0.0
        %2698 = vmatprep.subr.mxu0 0.0
        %2699 = vmatpush1.msra.mxu0 0.0
        %2700 = vmatprep.subr.mxu0 0.0
        %2701 = vmatpush1.msra.mxu0 0.0
        %2702 = vmatprep.subr.mxu0 0.0
        %2703 = vmatpush1.msra.mxu0 0.0
        %2704 = vmatprep.subr.mxu0 0.0
        %2705 = vmatpush1.msra.mxu0 0.0
        %2706 = vmatprep.subr.mxu0 0.0
        %2707 = vmatpush1.msra.mxu0 0.0
        %2708 = vmatprep.subr.mxu0 0.0
        %2709 = vmatpush1.msra.mxu0 0.0
        %2710 = vmatprep.subr.mxu0 0.0
        %2711 = vmatpush1.msra.mxu0 0.0
        %2712 = vmatprep.subr.mxu0 0.0
        %2713 = vmatpush1.msra.mxu0 0.0
        %2714 = vmatprep.subr.mxu0 0.0
        %2715 = vmatpush1.msra.mxu0 0.0
        %2716 = vmatprep.subr.mxu0 0.0
        %2717 = vmatpush1.msra.mxu0 0.0
        %2718 = vmatprep.subr.mxu0 0.0
        %2719 = vmatpush1.msra.mxu0 0.0
        %2720 = vmatprep.subr.mxu0 0.0
        %2721 = vmatpush1.msra.mxu0 0.0
        %2722 = vmatprep.subr.mxu0 0.0
        %2723 = vmatpush1.msra.mxu0 0.0
        %2724 = vmatprep.subr.mxu0 0.0
        %2725 = vmatpush1.msra.mxu0 0.0
        %2726 = vmatprep.subr.mxu0 0.0
        %2727 = vmatpush1.msra.mxu0 0.0
        %2728 = vmatprep.subr.mxu0 0.0
        %2729 = vmatpush1.msra.mxu0 0.0
        %2730 = vmatprep.subr.mxu0 0.0
        %2731 = vmatpush1.msra.mxu0 0.0
        %2732 = vmatprep.subr.mxu0 0.0
        %2733 = vmatpush1.msra.mxu0 0.0
        %2734 = vmatprep.subr.mxu0 0.0
        %2735 = vmatpush1.msra.mxu0 0.0
        %2736 = vmatprep.subr.mxu0 0.0
        %2737 = vmatpush1.msra.mxu0 0.0
        %2738 = vmatprep.subr.mxu0 0.0
        %2739 = vmatpush1.msra.mxu0 0.0
        %2740 = vmatprep.subr.mxu0 0.0
        %2741 = vmatpush1.msra.mxu0 0.0
        %2742 = vmatprep.subr.mxu0 0.0
        %2743 = vmatpush1.msra.mxu0 0.0
        %2744 = vmatprep.subr.mxu0 0.0
        %2745 = vmatpush1.msra.mxu0 0.0
        %2746 = vmatprep.subr.mxu0 0.0
        %2747 = vmatpush1.msra.mxu0 0.0
        %2748 = vmatprep.subr.mxu0 0.0
        %2749 = vmatpush1.msra.mxu0 0.0
        %2750 = vmatprep.subr.mxu0 0.0
        %2751 = vmatpush1.msra.mxu0 0.0
        %2752 = vmatprep.subr.mxu0 0.0
        %2753 = vmatpush1.msra.mxu0 0.0
        %2754 = vmatprep.subr.mxu0 0.0
        %2755 = vmatpush1.msra.mxu0 0.0
        %2756 = vmatprep.subr.mxu0 0.0
        %2757 = vmatpush1.msra.mxu0 0.0
        %2758 = vmatprep.mubr.f32.mxu0 0.0
        %2759 = vmatmul.mubr.f32.gmra.mrb[0].mxu0 %v1715
        %v2760 = vpop.f32.mrb[0].mxu0
        %v2761 = vadd.f32 0.0, %v2760
        %v2762 = vpop.f32.mrb[0].mxu0
        %2763 = vmatprep.mubr.f32.mxu0 0.0
        %2764 = vmatmul.mubr.f32.gmra.mrb[0].mxu0 %v1717
        %v2765 = vpop.f32.mrb[0].mxu0
        %v2766 = vadd.f32 0.0, %v2765
        %v2767 = vpop.f32.mrb[0].mxu0
        %2768 = vmatprep.mubr.f32.mxu0 0.0
        %2769 = vmatmul.mubr.f32.gmra.mrb[0].mxu0 %v1719
        %v2770 = vpop.f32.mrb[0].mxu0
        %v2771 = vadd.f32 0.0, %v2770
        %v2772 = vpop.f32.mrb[0].mxu0
        %2773 = vmatprep.mubr.f32.mxu0 0.0
        %2774 = vmatmul.mubr.f32.gmra.mrb[0].mxu0 %v1721
        %v2775 = vpop.f32.mrb[0].mxu0
        %v2776 = vadd.f32 0.0, %v2775
        %v2777 = vpop.f32.mrb[0].mxu0
        %2778 = vmatprep.mubr.f32.mxu0 0.0
        %2779 = vmatmul.mubr.f32.gmra.mrb[0].mxu0 %v1723
        %v2780 = vpop.f32.mrb[0].mxu0
        %v2781 = vadd.f32 0.0, %v2780
        %v2782 = vpop.f32.mrb[0].mxu0
        %2783 = vmatprep.mubr.f32.mxu0 0.0
        %2784 = vmatmul.mubr.f32.gmra.mrb[0].mxu0 %v1725
        %v2785 = vpop.f32.mrb[0].mxu0
        %v2786 = vadd.f32 0.0, %v2785
        %v2787 = vpop.f32.mrb[0].mxu0
        %2788 = vmatprep.mubr.f32.mxu0 0.0
        %2789 = vmatmul.mubr.f32.gmra.mrb[0].mxu0 %v1727
        %v2790 = vpop.f32.mrb[0].mxu0
        %v2791 = vadd.f32 0.0, %v2790
        %v2792 = vpop.f32.mrb[0].mxu0
        %2793 = vmatprep.mubr.f32.mxu0 0.0
        %2794 = vmatmul.mubr.f32.gmra.mrb[0].mxu0 %v1729
        %v2795 = vpop.f32.mrb[0].mxu0
        %v2796 = vadd.f32 0.0, %v2795
        %v2797 = vpop.f32.mrb[0].mxu0
        %2798 = vmatprep.mubr.f32.mxu0 0.0
        %2799 = vmatmul.mubr.f32.gmra.mrb[0].mxu0 %v1731
        %v2800 = vpop.f32.mrb[0].mxu0
        %v2801 = vadd.f32 0.0, %v2800
        %v2802 = vpop.f32.mrb[0].mxu0
        %2803 = vmatprep.mubr.f32.mxu0 0.0
        %2804 = vmatmul.mubr.f32.gmra.mrb[0].mxu0 %v1733
        %v2805 = vpop.f32.mrb[0].mxu0
        %v2806 = vadd.f32 0.0, %v2805
        %v2807 = vpop.f32.mrb[0].mxu0
        %2808 = vmatprep.mubr.f32.mxu0 0.0
        %2809 = vmatmul.mubr.f32.gmra.mrb[0].mxu0 %v1735
        %v2810 = vpop.f32.mrb[0].mxu0
        %v2811 = vadd.f32 0.0, %v2810
        %v2812 = vpop.f32.mrb[0].mxu0
        %2813 = vmatprep.mubr.f32.mxu0 0.0
        %2814 = vmatmul.mubr.f32.gmra.mrb[0].mxu0 %v1737
        %v2815 = vpop.f32.mrb[0].mxu0
        %v2816 = vadd.f32 0.0, %v2815
        %v2817 = vpop.f32.mrb[0].mxu0
        %2818 = vmatprep.mubr.f32.mxu0 0.0
        %2819 = vmatmul.mubr.f32.gmra.mrb[0].mxu0 %v1739
        %v2820 = vpop.f32.mrb[0].mxu0
        %v2821 = vadd.f32 0.0, %v2820
        %v2822 = vpop.f32.mrb[0].mxu0
        %2823 = vmatprep.mubr.f32.mxu0 0.0
        %2824 = vmatmul.mubr.f32.gmra.mrb[0].mxu0 %v1741
        %v2825 = vpop.f32.mrb[0].mxu0
        %v2826 = vadd.f32 0.0, %v2825
        %v2827 = vpop.f32.mrb[0].mxu0
        %2828 = vmatprep.mubr.f32.mxu0 0.0
        %2829 = vmatmul.mubr.f32.gmra.mrb[0].mxu0 %v1743
        %v2830 = vpop.f32.mrb[0].mxu0
        %v2831 = vadd.f32 0.0, %v2830
        %v2832 = vpop.f32.mrb[0].mxu0
        %2833 = vmatprep.mubr.f32.mxu0 0.0
        %2834 = vmatmul.mubr.f32.gmra.mrb[0].mxu0 %v1745
        %v2835 = vpop.f32.mrb[0].mxu0
        %v2836 = vadd.f32 0.0, %v2835
        %v2837 = vpop.f32.mrb[0].mxu0
        %2838 = vmatprep.mubr.f32.mxu0 0.0
        %2839 = vmatmul.mubr.f32.gmra.mrb[0].mxu0 %v1747
        %v2840 = vpop.f32.mrb[0].mxu0
        %v2841 = vadd.f32 0.0, %v2840
        %v2842 = vpop.f32.mrb[0].mxu0
        %2843 = vmatprep.mubr.f32.mxu0 0.0
        %2844 = vmatmul.mubr.f32.gmra.mrb[0].mxu0 %v1749
        %v2845 = vpop.f32.mrb[0].mxu0
        %v2846 = vadd.f32 0.0, %v2845
        %v2847 = vpop.f32.mrb[0].mxu0
        %2848 = vmatprep.mubr.f32.mxu0 0.0
        %2849 = vmatmul.mubr.f32.gmra.mrb[0].mxu0 %v1751
        %v2850 = vpop.f32.mrb[0].mxu0
        %v2851 = vadd.f32 0.0, %v2850
        %v2852 = vpop.f32.mrb[0].mxu0
        %2853 = vmatprep.mubr.f32.mxu0 0.0
        %2854 = vmatmul.mubr.f32.gmra.mrb[0].mxu0 %v1753
        %v2855 = vpop.f32.mrb[0].mxu0
        %v2856 = vadd.f32 0.0, %v2855
        %v2857 = vpop.f32.mrb[0].mxu0
        %2858 = vmatprep.mubr.f32.mxu0 0.0
        %2859 = vmatmul.mubr.f32.gmra.mrb[0].mxu0 %v1755
        %v2860 = vpop.f32.mrb[0].mxu0
        %v2861 = vadd.f32 0.0, %v2860
        %v2862 = vpop.f32.mrb[0].mxu0
        %2863 = vmatprep.mubr.f32.mxu0 0.0
        %2864 = vmatmul.mubr.f32.gmra.mrb[0].mxu0 %v1757
        %v2865 = vpop.f32.mrb[0].mxu0
        %v2866 = vadd.f32 0.0, %v2865
        %v2867 = vpop.f32.mrb[0].mxu0
        %2868 = vmatprep.mubr.f32.mxu0 0.0
        %2869 = vmatmul.mubr.f32.gmra.mrb[0].mxu0 %v1759
        %v2870 = vpop.f32.mrb[0].mxu0
        %v2871 = vadd.f32 0.0, %v2870
        %v2872 = vpop.f32.mrb[0].mxu0
        %2873 = vmatprep.mubr.f32.mxu0 0.0
        %2874 = vmatmul.mubr.f32.gmra.mrb[0].mxu0 %v1761
        %v2875 = vpop.f32.mrb[0].mxu0
        %v2876 = vadd.f32 0.0, %v2875
        %v2877 = vpop.f32.mrb[0].mxu0
        %2878 = vmatprep.mubr.f32.mxu0 0.0
        %2879 = vmatmul.mubr.f32.gmra.mrb[0].mxu0 %v1763
        %v2880 = vpop.f32.mrb[0].mxu0
        %v2881 = vadd.f32 0.0, %v2880
        %v2882 = vpop.f32.mrb[0].mxu0
        %2883 = vmatprep.mubr.f32.mxu0 0.0
        %2884 = vmatmul.mubr.f32.gmra.mrb[0].mxu0 %v1765
        %v2885 = vpop.f32.mrb[0].mxu0
        %v2886 = vadd.f32 0.0, %v2885
        %v2887 = vpop.f32.mrb[0].mxu0
        %2888 = vmatprep.mubr.f32.mxu0 0.0
        %2889 = vmatmul.mubr.f32.gmra.mrb[0].mxu0 %v1767
        %v2890 = vpop.f32.mrb[0].mxu0
        %v2891 = vadd.f32 0.0, %v2890
        %v2892 = vpop.f32.mrb[0].mxu0
        %2893 = vmatprep.mubr.f32.mxu0 0.0
        %2894 = vmatmul.mubr.f32.gmra.mrb[0].mxu0 %v1769
        %v2895 = vpop.f32.mrb[0].mxu0
        %v2896 = vadd.f32 0.0, %v2895
        %v2897 = vpop.f32.mrb[0].mxu0
        %2898 = vmatprep.mubr.f32.mxu0 0.0
        %2899 = vmatmul.mubr.f32.gmra.mrb[0].mxu0 %v1771
        %v2900 = vpop.f32.mrb[0].mxu0
        %v2901 = vadd.f32 0.0, %v2900
        %v2902 = vpop.f32.mrb[0].mxu0
        %2903 = vmatprep.mubr.f32.mxu0 0.0
        %2904 = vmatmul.mubr.f32.gmra.mrb[0].mxu0 %v1773
        %v2905 = vpop.f32.mrb[0].mxu0
        %v2906 = vadd.f32 0.0, %v2905
        %v2907 = vpop.f32.mrb[0].mxu0
        %2908 = vmatprep.mubr.f32.mxu0 0.0
        %2909 = vmatmul.mubr.f32.gmra.mrb[0].mxu0 %v1775
        %v2910 = vpop.f32.mrb[0].mxu0
        %v2911 = vadd.f32 0.0, %v2910
        %v2912 = vpop.f32.mrb[0].mxu0
        %2913 = vmatprep.mubr.f32.mxu0 0.0
        %2914 = vmatmul.mubr.f32.gmra.mrb[0].mxu0 %v1777
        %v2915 = vpop.f32.mrb[0].mxu0
        %v2916 = vadd.f32 0.0, %v2915
        %v2917 = vpop.f32.mrb[0].mxu0
        %2918 = vmatprep.mubr.f32.mxu0 0.0
        %2919 = vmatmul.mubr.f32.gmra.mrb[0].mxu0 %v1779
        %v2920 = vpop.f32.mrb[0].mxu0
        %v2921 = vadd.f32 0.0, %v2920
        %v2922 = vpop.f32.mrb[0].mxu0
        %2923 = vmatprep.mubr.f32.mxu0 0.0
        %2924 = vmatmul.mubr.f32.gmra.mrb[0].mxu0 %v1781
        %v2925 = vpop.f32.mrb[0].mxu0
        %v2926 = vadd.f32 0.0, %v2925
        %v2927 = vpop.f32.mrb[0].mxu0
        %2928 = vmatprep.mubr.f32.mxu0 0.0
        %2929 = vmatmul.mubr.f32.gmra.mrb[0].mxu0 %v1783
        %v2930 = vpop.f32.mrb[0].mxu0
        %v2931 = vadd.f32 0.0, %v2930
        %v2932 = vpop.f32.mrb[0].mxu0
        %2933 = vmatprep.mubr.f32.mxu0 0.0
        %2934 = vmatmul.mubr.f32.gmra.mrb[0].mxu0 %v1785
        %v2935 = vpop.f32.mrb[0].mxu0
        %v2936 = vadd.f32 0.0, %v2935
        %v2937 = vpop.f32.mrb[0].mxu0
        %2938 = vmatprep.mubr.f32.mxu0 0.0
        %2939 = vmatmul.mubr.f32.gmra.mrb[0].mxu0 %v1787
        %v2940 = vpop.f32.mrb[0].mxu0
        %v2941 = vadd.f32 0.0, %v2940
        %v2942 = vpop.f32.mrb[0].mxu0
        %2943 = vmatprep.mubr.f32.mxu0 0.0
        %2944 = vmatmul.mubr.f32.gmra.mrb[0].mxu0 %v1789
        %v2945 = vpop.f32.mrb[0].mxu0
        %v2946 = vadd.f32 0.0, %v2945
        %v2947 = vpop.f32.mrb[0].mxu0
        %2948 = vmatprep.mubr.f32.mxu0 0.0
        %2949 = vmatmul.mubr.f32.gmra.mrb[0].mxu0 %v1791
        %v2950 = vpop.f32.mrb[0].mxu0
        %v2951 = vadd.f32 0.0, %v2950
        %v2952 = vpop.f32.mrb[0].mxu0
        %2953 = vmatprep.mubr.f32.mxu0 0.0
        %2954 = vmatmul.mubr.f32.gmra.mrb[0].mxu0 %v1793
        %v2955 = vpop.f32.mrb[0].mxu0
        %v2956 = vadd.f32 0.0, %v2955
        %v2957 = vpop.f32.mrb[0].mxu0
        %2958 = vmatprep.mubr.f32.mxu0 0.0
        %2959 = vmatmul.mubr.f32.gmra.mrb[0].mxu0 %v1795
        %v2960 = vpop.f32.mrb[0].mxu0
        %v2961 = vadd.f32 0.0, %v2960
        %v2962 = vpop.f32.mrb[0].mxu0
        %2963 = vmatprep.mubr.f32.mxu0 0.0
        %2964 = vmatmul.mubr.f32.gmra.mrb[0].mxu0 %v1797
        %v2965 = vpop.f32.mrb[0].mxu0
        %v2966 = vadd.f32 0.0, %v2965
        %v2967 = vpop.f32.mrb[0].mxu0
        %2968 = vmatprep.mubr.f32.mxu0 0.0
        %2969 = vmatmul.mubr.f32.gmra.mrb[0].mxu0 %v1799
        %v2970 = vpop.f32.mrb[0].mxu0
        %v2971 = vadd.f32 0.0, %v2970
        %v2972 = vpop.f32.mrb[0].mxu0
        %2973 = vmatprep.mubr.f32.mxu0 0.0
        %2974 = vmatmul.mubr.f32.gmra.mrb[0].mxu0 %v1801
        %v2975 = vpop.f32.mrb[0].mxu0
        %v2976 = vadd.f32 0.0, %v2975
        %v2977 = vpop.f32.mrb[0].mxu0
        %2978 = vmatprep.mubr.f32.mxu0 0.0
        %2979 = vmatmul.mubr.f32.gmra.mrb[0].mxu0 %v1803
        %v2980 = vpop.f32.mrb[0].mxu0
        %v2981 = vadd.f32 0.0, %v2980
        %v2982 = vpop.f32.mrb[0].mxu0
        %2983 = vmatprep.mubr.f32.mxu0 0.0
        %2984 = vmatmul.mubr.f32.gmra.mrb[0].mxu0 %v2683
        %v2985 = vpop.f32.mrb[0].mxu0
        %v2986 = vadd.f32 0.0, %v2985
        %v2987 = vpop.f32.mrb[0].mxu0
        %2988 = vmatprep.mubr.f32.mxu0 0.0
        %2989 = vmatmul.mubr.f32.gmra.mrb[0].mxu0 %v2686
        %v2990 = vpop.f32.mrb[0].mxu0
        %v2991 = vadd.f32 0.0, %v2990
        %v2992 = vpop.f32.mrb[0].mxu0
        %2993 = vmatprep.mubr.f32.mxu0 0.0
        %2994 = vmatmul.mubr.f32.gmra.mrb[0].mxu0 %v2689
        %v2995 = vpop.f32.mrb[0].mxu0
        %v2996 = vadd.f32 0.0, %v2995
        %v2997 = vpop.f32.mrb[0].mxu0
        %2998 = vdwg.mxu0
        %v2999 = vadd.f32 %v2632, %v2761
        %v3000 = vadd.f32 %v2633, %v2766
        %v3001 = vadd.f32 %v2634, %v2771
        %v3002 = vadd.f32 %v2635, %v2776
        %v3003 = vadd.f32 %v2636, %v2781
        %v3004 = vadd.f32 %v2637, %v2786
        %v3005 = vadd.f32 %v2638, %v2791
        %v3006 = vadd.f32 %v2639, %v2796
        %v3007 = vadd.f32 %v2640, %v2801
        %v3008 = vadd.f32 %v2641, %v2806
        %v3009 = vadd.f32 %v2642, %v2811
        %v3010 = vadd.f32 %v2643, %v2816
        %v3011 = vadd.f32 %v2644, %v2821
        %v3012 = vadd.f32 %v2645, %v2826
        %v3013 = vadd.f32 %v2646, %v2831
        %v3014 = vadd.f32 %v2647, %v2836
        %v3015 = vadd.f32 %v2648, %v2841
        %v3016 = vadd.f32 %v2649, %v2846
        %v3017 = vadd.f32 %v2650, %v2851
        %v3018 = vadd.f32 %v2651, %v2856
        %v3019 = vadd.f32 %v2652, %v2861
        %v3020 = vadd.f32 %v2653, %v2866
        %v3021 = vadd.f32 %v2654, %v2871
        %v3022 = vadd.f32 %v2655, %v2876
        %v3023 = vadd.f32 %v2656, %v2881
        %v3024 = vadd.f32 %v2657, %v2886
        %v3025 = vadd.f32 %v2658, %v2891
        %v3026 = vadd.f32 %v2659, %v2896
        %v3027 = vadd.f32 %v2660, %v2901
        %v3028 = vadd.f32 %v2661, %v2906
        %v3029 = vadd.f32 %v2662, %v2911
        %v3030 = vadd.f32 %v2663, %v2916
        %v3031 = vadd.f32 %v2664, %v2921
        %v3032 = vadd.f32 %v2665, %v2926
        %v3033 = vadd.f32 %v2666, %v2931
        %v3034 = vadd.f32 %v2667, %v2936
        %v3035 = vadd.f32 %v2668, %v2941
        %v3036 = vadd.f32 %v2669, %v2946
        %v3037 = vadd.f32 %v2670, %v2951
        %v3038 = vadd.f32 %v2671, %v2956
        %v3039 = vadd.f32 %v2672, %v2961
        %v3040 = vadd.f32 %v2673, %v2966
        %v3041 = vadd.f32 %v2674, %v2971
        %v3042 = vadd.f32 %v2675, %v2976
        %v3043 = vadd.f32 %v2676, %v2981
        %v3044 = vadd.f32 %v2677, %v2986
        %v3045 = vadd.f32 %v2678, %v2991
        %v3046 = vadd.f32 %v2679, %v2996
        %v3048 = vrot.slane %v1115, 1
        %v3049 = vrot.slane %v1116, 1
        %v3050 = vsel %vm1188, %v3048, %v3049
        %v3051 = vrot.slane %v1117, 1
        %v3052 = vsel %vm1188, %v3049, %v3051
        %v3053 = vrot.slane %v1118, 1
        %v3054 = vsel %vm1188, %v3051, %v3053
        %s3055 = scalar_lea.vmem %s5, 16
        %v3056 = vld [vmem:[%s3055] sm:$0xf]
        %v3057 = vsel %vm1303, %v3050, 0
        %v3059 = vsel %vm1303, %v3052, 0
        %v3061 = vsel %vm1303, %v3054, 0
        %v3064 = vsel %vm1400, %v3056, 0
        %3066 = vmatprep.subr.mxu0 0.0
        %3067 = vmatpush1.msra.mxu0 %v3064
        %3068 = vmatprep.subr.mxu0 0.0
        %3069 = vmatpush1.msra.mxu0 0.0
        %3070 = vmatprep.subr.mxu0 0.0
        %3071 = vmatpush1.msra.mxu0 0.0
        %3072 = vmatprep.subr.mxu0 0.0
        %3073 = vmatpush1.msra.mxu0 0.0
        %3074 = vmatprep.subr.mxu0 0.0
        %3075 = vmatpush1.msra.mxu0 0.0
        %3076 = vmatprep.subr.mxu0 0.0
        %3077 = vmatpush1.msra.mxu0 0.0
        %3078 = vmatprep.subr.mxu0 0.0
        %3079 = vmatpush1.msra.mxu0 0.0
        %3080 = vmatprep.subr.mxu0 0.0
        %3081 = vmatpush1.msra.mxu0 0.0
        %3082 = vmatprep.subr.mxu0 0.0
        %3083 = vmatpush1.msra.mxu0 0.0
        %3084 = vmatprep.subr.mxu0 0.0
        %3085 = vmatpush1.msra.mxu0 0.0
        %3086 = vmatprep.subr.mxu0 0.0
        %3087 = vmatpush1.msra.mxu0 0.0
        %3088 = vmatprep.subr.mxu0 0.0
        %3089 = vmatpush1.msra.mxu0 0.0
        %3090 = vmatprep.subr.mxu0 0.0
        %3091 = vmatpush1.msra.mxu0 0.0
        %3092 = vmatprep.subr.mxu0 0.0
        %3093 = vmatpush1.msra.mxu0 0.0
        %3094 = vmatprep.subr.mxu0 0.0
        %3095 = vmatpush1.msra.mxu0 0.0
        %3096 = vmatprep.subr.mxu0 0.0
        %3097 = vmatpush1.msra.mxu0 0.0
        %3098 = vmatprep.subr.mxu0 0.0
        %3099 = vmatpush1.msra.mxu0 0.0
        %3100 = vmatprep.subr.mxu0 0.0
        %3101 = vmatpush1.msra.mxu0 0.0
        %3102 = vmatprep.subr.mxu0 0.0
        %3103 = vmatpush1.msra.mxu0 0.0
        %3104 = vmatprep.subr.mxu0 0.0
        %3105 = vmatpush1.msra.mxu0 0.0
        %3106 = vmatprep.subr.mxu0 0.0
        %3107 = vmatpush1.msra.mxu0 0.0
        %3108 = vmatprep.subr.mxu0 0.0
        %3109 = vmatpush1.msra.mxu0 0.0
        %3110 = vmatprep.subr.mxu0 0.0
        %3111 = vmatpush1.msra.mxu0 0.0
        %3112 = vmatprep.subr.mxu0 0.0
        %3113 = vmatpush1.msra.mxu0 0.0
        %3114 = vmatprep.subr.mxu0 0.0
        %3115 = vmatpush1.msra.mxu0 0.0
        %3116 = vmatprep.subr.mxu0 0.0
        %3117 = vmatpush1.msra.mxu0 0.0
        %3118 = vmatprep.subr.mxu0 0.0
        %3119 = vmatpush1.msra.mxu0 0.0
        %3120 = vmatprep.subr.mxu0 0.0
        %3121 = vmatpush1.msra.mxu0 0.0
        %3122 = vmatprep.subr.mxu0 0.0
        %3123 = vmatpush1.msra.mxu0 0.0
        %3124 = vmatprep.subr.mxu0 0.0
        %3125 = vmatpush1.msra.mxu0 0.0
        %3126 = vmatprep.subr.mxu0 0.0
        %3127 = vmatpush1.msra.mxu0 0.0
        %3128 = vmatprep.subr.mxu0 0.0
        %3129 = vmatpush1.msra.mxu0 0.0
        %3130 = vmatprep.mubr.f32.mxu0 0.0
        %3131 = vmatmul.mubr.f32.gmra.mrb[0].mxu0 %v1310
        %v3132 = vpop.f32.mrb[0].mxu0
        %v3133 = vadd.f32 0.0, %v3132
        %v3134 = vpop.f32.mrb[0].mxu0
        %3135 = vmatprep.mubr.f32.mxu0 0.0
        %3136 = vmatmul.mubr.f32.gmra.mrb[0].mxu0 %v1312
        %v3137 = vpop.f32.mrb[0].mxu0
        %v3138 = vadd.f32 0.0, %v3137
        %v3139 = vpop.f32.mrb[0].mxu0
        %3140 = vmatprep.mubr.f32.mxu0 0.0
        %3141 = vmatmul.mubr.f32.gmra.mrb[0].mxu0 %v1314
        %v3142 = vpop.f32.mrb[0].mxu0
        %v3143 = vadd.f32 0.0, %v3142
        %v3144 = vpop.f32.mrb[0].mxu0
        %3145 = vmatprep.mubr.f32.mxu0 0.0
        %3146 = vmatmul.mubr.f32.gmra.mrb[0].mxu0 %v1316
        %v3147 = vpop.f32.mrb[0].mxu0
        %v3148 = vadd.f32 0.0, %v3147
        %v3149 = vpop.f32.mrb[0].mxu0
        %3150 = vmatprep.mubr.f32.mxu0 0.0
        %3151 = vmatmul.mubr.f32.gmra.mrb[0].mxu0 %v1318
        %v3152 = vpop.f32.mrb[0].mxu0
        %v3153 = vadd.f32 0.0, %v3152
        %v3154 = vpop.f32.mrb[0].mxu0
        %3155 = vmatprep.mubr.f32.mxu0 0.0
        %3156 = vmatmul.mubr.f32.gmra.mrb[0].mxu0 %v1320
        %v3157 = vpop.f32.mrb[0].mxu0
        %v3158 = vadd.f32 0.0, %v3157
        %v3159 = vpop.f32.mrb[0].mxu0
        %3160 = vmatprep.mubr.f32.mxu0 0.0
        %3161 = vmatmul.mubr.f32.gmra.mrb[0].mxu0 %v1322
        %v3162 = vpop.f32.mrb[0].mxu0
        %v3163 = vadd.f32 0.0, %v3162
        %v3164 = vpop.f32.mrb[0].mxu0
        %3165 = vmatprep.mubr.f32.mxu0 0.0
        %3166 = vmatmul.mubr.f32.gmra.mrb[0].mxu0 %v1324
        %v3167 = vpop.f32.mrb[0].mxu0
        %v3168 = vadd.f32 0.0, %v3167
        %v3169 = vpop.f32.mrb[0].mxu0
        %3170 = vmatprep.mubr.f32.mxu0 0.0
        %3171 = vmatmul.mubr.f32.gmra.mrb[0].mxu0 %v1326
        %v3172 = vpop.f32.mrb[0].mxu0
        %v3173 = vadd.f32 0.0, %v3172
        %v3174 = vpop.f32.mrb[0].mxu0
        %3175 = vmatprep.mubr.f32.mxu0 0.0
        %3176 = vmatmul.mubr.f32.gmra.mrb[0].mxu0 %v1328
        %v3177 = vpop.f32.mrb[0].mxu0
        %v3178 = vadd.f32 0.0, %v3177
        %v3179 = vpop.f32.mrb[0].mxu0
        %3180 = vmatprep.mubr.f32.mxu0 0.0
        %3181 = vmatmul.mubr.f32.gmra.mrb[0].mxu0 %v1330
        %v3182 = vpop.f32.mrb[0].mxu0
        %v3183 = vadd.f32 0.0, %v3182
        %v3184 = vpop.f32.mrb[0].mxu0
        %3185 = vmatprep.mubr.f32.mxu0 0.0
        %3186 = vmatmul.mubr.f32.gmra.mrb[0].mxu0 %v1332
        %v3187 = vpop.f32.mrb[0].mxu0
        %v3188 = vadd.f32 0.0, %v3187
        %v3189 = vpop.f32.mrb[0].mxu0
        %3190 = vmatprep.mubr.f32.mxu0 0.0
        %3191 = vmatmul.mubr.f32.gmra.mrb[0].mxu0 %v1334
        %v3192 = vpop.f32.mrb[0].mxu0
        %v3193 = vadd.f32 0.0, %v3192
        %v3194 = vpop.f32.mrb[0].mxu0
        %3195 = vmatprep.mubr.f32.mxu0 0.0
        %3196 = vmatmul.mubr.f32.gmra.mrb[0].mxu0 %v1336
        %v3197 = vpop.f32.mrb[0].mxu0
        %v3198 = vadd.f32 0.0, %v3197
        %v3199 = vpop.f32.mrb[0].mxu0
        %3200 = vmatprep.mubr.f32.mxu0 0.0
        %3201 = vmatmul.mubr.f32.gmra.mrb[0].mxu0 %v1338
        %v3202 = vpop.f32.mrb[0].mxu0
        %v3203 = vadd.f32 0.0, %v3202
        %v3204 = vpop.f32.mrb[0].mxu0
        %3205 = vmatprep.mubr.f32.mxu0 0.0
        %3206 = vmatmul.mubr.f32.gmra.mrb[0].mxu0 %v1340
        %v3207 = vpop.f32.mrb[0].mxu0
        %v3208 = vadd.f32 0.0, %v3207
        %v3209 = vpop.f32.mrb[0].mxu0
        %3210 = vmatprep.mubr.f32.mxu0 0.0
        %3211 = vmatmul.mubr.f32.gmra.mrb[0].mxu0 %v1342
        %v3212 = vpop.f32.mrb[0].mxu0
        %v3213 = vadd.f32 0.0, %v3212
        %v3214 = vpop.f32.mrb[0].mxu0
        %3215 = vmatprep.mubr.f32.mxu0 0.0
        %3216 = vmatmul.mubr.f32.gmra.mrb[0].mxu0 %v1344
        %v3217 = vpop.f32.mrb[0].mxu0
        %v3218 = vadd.f32 0.0, %v3217
        %v3219 = vpop.f32.mrb[0].mxu0
        %3220 = vmatprep.mubr.f32.mxu0 0.0
        %3221 = vmatmul.mubr.f32.gmra.mrb[0].mxu0 %v1346
        %v3222 = vpop.f32.mrb[0].mxu0
        %v3223 = vadd.f32 0.0, %v3222
        %v3224 = vpop.f32.mrb[0].mxu0
        %3225 = vmatprep.mubr.f32.mxu0 0.0
        %3226 = vmatmul.mubr.f32.gmra.mrb[0].mxu0 %v1348
        %v3227 = vpop.f32.mrb[0].mxu0
        %v3228 = vadd.f32 0.0, %v3227
        %v3229 = vpop.f32.mrb[0].mxu0
        %3230 = vmatprep.mubr.f32.mxu0 0.0
        %3231 = vmatmul.mubr.f32.gmra.mrb[0].mxu0 %v1350
        %v3232 = vpop.f32.mrb[0].mxu0
        %v3233 = vadd.f32 0.0, %v3232
        %v3234 = vpop.f32.mrb[0].mxu0
        %3235 = vmatprep.mubr.f32.mxu0 0.0
        %3236 = vmatmul.mubr.f32.gmra.mrb[0].mxu0 %v1352
        %v3237 = vpop.f32.mrb[0].mxu0
        %v3238 = vadd.f32 0.0, %v3237
        %v3239 = vpop.f32.mrb[0].mxu0
        %3240 = vmatprep.mubr.f32.mxu0 0.0
        %3241 = vmatmul.mubr.f32.gmra.mrb[0].mxu0 %v1354
        %v3242 = vpop.f32.mrb[0].mxu0
        %v3243 = vadd.f32 0.0, %v3242
        %v3244 = vpop.f32.mrb[0].mxu0
        %3245 = vmatprep.mubr.f32.mxu0 0.0
        %3246 = vmatmul.mubr.f32.gmra.mrb[0].mxu0 %v1356
        %v3247 = vpop.f32.mrb[0].mxu0
        %v3248 = vadd.f32 0.0, %v3247
        %v3249 = vpop.f32.mrb[0].mxu0
        %3250 = vmatprep.mubr.f32.mxu0 0.0
        %3251 = vmatmul.mubr.f32.gmra.mrb[0].mxu0 %v1358
        %v3252 = vpop.f32.mrb[0].mxu0
        %v3253 = vadd.f32 0.0, %v3252
        %v3254 = vpop.f32.mrb[0].mxu0
        %3255 = vmatprep.mubr.f32.mxu0 0.0
        %3256 = vmatmul.mubr.f32.gmra.mrb[0].mxu0 %v1360
        %v3257 = vpop.f32.mrb[0].mxu0
        %v3258 = vadd.f32 0.0, %v3257
        %v3259 = vpop.f32.mrb[0].mxu0
        %3260 = vmatprep.mubr.f32.mxu0 0.0
        %3261 = vmatmul.mubr.f32.gmra.mrb[0].mxu0 %v1362
        %v3262 = vpop.f32.mrb[0].mxu0
        %v3263 = vadd.f32 0.0, %v3262
        %v3264 = vpop.f32.mrb[0].mxu0
        %3265 = vmatprep.mubr.f32.mxu0 0.0
        %3266 = vmatmul.mubr.f32.gmra.mrb[0].mxu0 %v1364
        %v3267 = vpop.f32.mrb[0].mxu0
        %v3268 = vadd.f32 0.0, %v3267
        %v3269 = vpop.f32.mrb[0].mxu0
        %3270 = vmatprep.mubr.f32.mxu0 0.0
        %3271 = vmatmul.mubr.f32.gmra.mrb[0].mxu0 %v1366
        %v3272 = vpop.f32.mrb[0].mxu0
        %v3273 = vadd.f32 0.0, %v3272
        %v3274 = vpop.f32.mrb[0].mxu0
        %3275 = vmatprep.mubr.f32.mxu0 0.0
        %3276 = vmatmul.mubr.f32.gmra.mrb[0].mxu0 %v1368
        %v3277 = vpop.f32.mrb[0].mxu0
        %v3278 = vadd.f32 0.0, %v3277
        %v3279 = vpop.f32.mrb[0].mxu0
        %3280 = vmatprep.mubr.f32.mxu0 0.0
        %3281 = vmatmul.mubr.f32.gmra.mrb[0].mxu0 %v1370
        %v3282 = vpop.f32.mrb[0].mxu0
        %v3283 = vadd.f32 0.0, %v3282
        %v3284 = vpop.f32.mrb[0].mxu0
        %3285 = vmatprep.mubr.f32.mxu0 0.0
        %3286 = vmatmul.mubr.f32.gmra.mrb[0].mxu0 %v1372
        %v3287 = vpop.f32.mrb[0].mxu0
        %v3288 = vadd.f32 0.0, %v3287
        %v3289 = vpop.f32.mrb[0].mxu0
        %3290 = vmatprep.mubr.f32.mxu0 0.0
        %3291 = vmatmul.mubr.f32.gmra.mrb[0].mxu0 %v1374
        %v3292 = vpop.f32.mrb[0].mxu0
        %v3293 = vadd.f32 0.0, %v3292
        %v3294 = vpop.f32.mrb[0].mxu0
        %3295 = vmatprep.mubr.f32.mxu0 0.0
        %3296 = vmatmul.mubr.f32.gmra.mrb[0].mxu0 %v1376
        %v3297 = vpop.f32.mrb[0].mxu0
        %v3298 = vadd.f32 0.0, %v3297
        %v3299 = vpop.f32.mrb[0].mxu0
        %3300 = vmatprep.mubr.f32.mxu0 0.0
        %3301 = vmatmul.mubr.f32.gmra.mrb[0].mxu0 %v1378
        %v3302 = vpop.f32.mrb[0].mxu0
        %v3303 = vadd.f32 0.0, %v3302
        %v3304 = vpop.f32.mrb[0].mxu0
        %3305 = vmatprep.mubr.f32.mxu0 0.0
        %3306 = vmatmul.mubr.f32.gmra.mrb[0].mxu0 %v1380
        %v3307 = vpop.f32.mrb[0].mxu0
        %v3308 = vadd.f32 0.0, %v3307
        %v3309 = vpop.f32.mrb[0].mxu0
        %3310 = vmatprep.mubr.f32.mxu0 0.0
        %3311 = vmatmul.mubr.f32.gmra.mrb[0].mxu0 %v1382
        %v3312 = vpop.f32.mrb[0].mxu0
        %v3313 = vadd.f32 0.0, %v3312
        %v3314 = vpop.f32.mrb[0].mxu0
        %3315 = vmatprep.mubr.f32.mxu0 0.0
        %3316 = vmatmul.mubr.f32.gmra.mrb[0].mxu0 %v1384
        %v3317 = vpop.f32.mrb[0].mxu0
        %v3318 = vadd.f32 0.0, %v3317
        %v3319 = vpop.f32.mrb[0].mxu0
        %3320 = vmatprep.mubr.f32.mxu0 0.0
        %3321 = vmatmul.mubr.f32.gmra.mrb[0].mxu0 %v1386
        %v3322 = vpop.f32.mrb[0].mxu0
        %v3323 = vadd.f32 0.0, %v3322
        %v3324 = vpop.f32.mrb[0].mxu0
        %3325 = vmatprep.mubr.f32.mxu0 0.0
        %3326 = vmatmul.mubr.f32.gmra.mrb[0].mxu0 %v1388
        %v3327 = vpop.f32.mrb[0].mxu0
        %v3328 = vadd.f32 0.0, %v3327
        %v3329 = vpop.f32.mrb[0].mxu0
        %3330 = vmatprep.mubr.f32.mxu0 0.0
        %3331 = vmatmul.mubr.f32.gmra.mrb[0].mxu0 %v1390
        %v3332 = vpop.f32.mrb[0].mxu0
        %v3333 = vadd.f32 0.0, %v3332
        %v3334 = vpop.f32.mrb[0].mxu0
        %3335 = vmatprep.mubr.f32.mxu0 0.0
        %3336 = vmatmul.mubr.f32.gmra.mrb[0].mxu0 %v1392
        %v3337 = vpop.f32.mrb[0].mxu0
        %v3338 = vadd.f32 0.0, %v3337
        %v3339 = vpop.f32.mrb[0].mxu0
        %3340 = vmatprep.mubr.f32.mxu0 0.0
        %3341 = vmatmul.mubr.f32.gmra.mrb[0].mxu0 %v1394
        %v3342 = vpop.f32.mrb[0].mxu0
        %v3343 = vadd.f32 0.0, %v3342
        %v3344 = vpop.f32.mrb[0].mxu0
        %3345 = vmatprep.mubr.f32.mxu0 0.0
        %3346 = vmatmul.mubr.f32.gmra.mrb[0].mxu0 %v1396
        %v3347 = vpop.f32.mrb[0].mxu0
        %v3348 = vadd.f32 0.0, %v3347
        %v3349 = vpop.f32.mrb[0].mxu0
        %3350 = vmatprep.mubr.f32.mxu0 0.0
        %3351 = vmatmul.mubr.f32.gmra.mrb[0].mxu0 %v1398
        %v3352 = vpop.f32.mrb[0].mxu0
        %v3353 = vadd.f32 0.0, %v3352
        %v3354 = vpop.f32.mrb[0].mxu0
        %3355 = vmatprep.mubr.f32.mxu0 0.0
        %3356 = vmatmul.mubr.f32.gmra.mrb[0].mxu0 %v3057
        %v3357 = vpop.f32.mrb[0].mxu0
        %v3358 = vadd.f32 0.0, %v3357
        %v3359 = vpop.f32.mrb[0].mxu0
        %3360 = vmatprep.mubr.f32.mxu0 0.0
        %3361 = vmatmul.mubr.f32.gmra.mrb[0].mxu0 %v3059
        %v3362 = vpop.f32.mrb[0].mxu0
        %v3363 = vadd.f32 0.0, %v3362
        %v3364 = vpop.f32.mrb[0].mxu0
        %3365 = vmatprep.mubr.f32.mxu0 0.0
        %3366 = vmatmul.mubr.f32.gmra.mrb[0].mxu0 %v3061
        %v3367 = vpop.f32.mrb[0].mxu0
        %v3368 = vadd.f32 0.0, %v3367
        %v3369 = vpop.f32.mrb[0].mxu0
        %3370 = vdwg.mxu0
        %v3371 = vadd.f32 %v2999, %v3133
        %v3372 = vadd.f32 %v3000, %v3138
        %v3373 = vadd.f32 %v3001, %v3143
        %v3374 = vadd.f32 %v3002, %v3148
        %v3375 = vadd.f32 %v3003, %v3153
        %v3376 = vadd.f32 %v3004, %v3158
        %v3377 = vadd.f32 %v3005, %v3163
        %v3378 = vadd.f32 %v3006, %v3168
        %v3379 = vadd.f32 %v3007, %v3173
        %v3380 = vadd.f32 %v3008, %v3178
        %v3381 = vadd.f32 %v3009, %v3183
        %v3382 = vadd.f32 %v3010, %v3188
        %v3383 = vadd.f32 %v3011, %v3193
        %v3384 = vadd.f32 %v3012, %v3198
        %v3385 = vadd.f32 %v3013, %v3203
        %v3386 = vadd.f32 %v3014, %v3208
        %v3387 = vadd.f32 %v3015, %v3213
        %v3388 = vadd.f32 %v3016, %v3218
        %v3389 = vadd.f32 %v3017, %v3223
        %v3390 = vadd.f32 %v3018, %v3228
        %v3391 = vadd.f32 %v3019, %v3233
        %v3392 = vadd.f32 %v3020, %v3238
        %v3393 = vadd.f32 %v3021, %v3243
        %v3394 = vadd.f32 %v3022, %v3248
        %v3395 = vadd.f32 %v3023, %v3253
        %v3396 = vadd.f32 %v3024, %v3258
        %v3397 = vadd.f32 %v3025, %v3263
        %v3398 = vadd.f32 %v3026, %v3268
        %v3399 = vadd.f32 %v3027, %v3273
        %v3400 = vadd.f32 %v3028, %v3278
        %v3401 = vadd.f32 %v3029, %v3283
        %v3402 = vadd.f32 %v3030, %v3288
        %v3403 = vadd.f32 %v3031, %v3293
        %v3404 = vadd.f32 %v3032, %v3298
        %v3405 = vadd.f32 %v3033, %v3303
        %v3406 = vadd.f32 %v3034, %v3308
        %v3407 = vadd.f32 %v3035, %v3313
        %v3408 = vadd.f32 %v3036, %v3318
        %v3409 = vadd.f32 %v3037, %v3323
        %v3410 = vadd.f32 %v3038, %v3328
        %v3411 = vadd.f32 %v3039, %v3333
        %v3412 = vadd.f32 %v3040, %v3338
        %v3413 = vadd.f32 %v3041, %v3343
        %v3414 = vadd.f32 %v3042, %v3348
        %v3415 = vadd.f32 %v3043, %v3353
        %v3416 = vadd.f32 %v3044, %v3358
        %v3417 = vadd.f32 %v3045, %v3363
        %v3418 = vadd.f32 %v3046, %v3368
        %v3419 = vrot.slane %v1115, 2
        %v3420 = vrot.slane %v1116, 2
        %v3421 = vsel %vm2113, %v3419, %v3420
        %v3422 = vrot.slane %v1117, 2
        %v3423 = vsel %vm2113, %v3420, %v3422
        %v3424 = vrot.slane %v1118, 2
        %v3425 = vsel %vm2113, %v3422, %v3424
        %s3426 = scalar_lea.vmem %s5, 20
        %v3427 = vld [vmem:[%s3426] sm:$0xf]
        %v3428 = vsel %vm1303, %v3421, 0
        %v3430 = vsel %vm1303, %v3423, 0
        %v3432 = vsel %vm1303, %v3425, 0
        %v3435 = vsel %vm1400, %v3427, 0
        %3437 = vmatprep.subr.mxu0 0.0
        %3438 = vmatpush1.msra.mxu0 %v3435
        %3439 = vmatprep.subr.mxu0 0.0
        %3440 = vmatpush1.msra.mxu0 0.0
        %3441 = vmatprep.subr.mxu0 0.0
        %3442 = vmatpush1.msra.mxu0 0.0
        %3443 = vmatprep.subr.mxu0 0.0
        %3444 = vmatpush1.msra.mxu0 0.0
        %3445 = vmatprep.subr.mxu0 0.0
        %3446 = vmatpush1.msra.mxu0 0.0
        %3447 = vmatprep.subr.mxu0 0.0
        %3448 = vmatpush1.msra.mxu0 0.0
        %3449 = vmatprep.subr.mxu0 0.0
        %3450 = vmatpush1.msra.mxu0 0.0
        %3451 = vmatprep.subr.mxu0 0.0
        %3452 = vmatpush1.msra.mxu0 0.0
        %3453 = vmatprep.subr.mxu0 0.0
        %3454 = vmatpush1.msra.mxu0 0.0
        %3455 = vmatprep.subr.mxu0 0.0
        %3456 = vmatpush1.msra.mxu0 0.0
        %3457 = vmatprep.subr.mxu0 0.0
        %3458 = vmatpush1.msra.mxu0 0.0
        %3459 = vmatprep.subr.mxu0 0.0
        %3460 = vmatpush1.msra.mxu0 0.0
        %3461 = vmatprep.subr.mxu0 0.0
        %3462 = vmatpush1.msra.mxu0 0.0
        %3463 = vmatprep.subr.mxu0 0.0
        %3464 = vmatpush1.msra.mxu0 0.0
        %3465 = vmatprep.subr.mxu0 0.0
        %3466 = vmatpush1.msra.mxu0 0.0
        %3467 = vmatprep.subr.mxu0 0.0
        %3468 = vmatpush1.msra.mxu0 0.0
        %3469 = vmatprep.subr.mxu0 0.0
        %3470 = vmatpush1.msra.mxu0 0.0
        %3471 = vmatprep.subr.mxu0 0.0
        %3472 = vmatpush1.msra.mxu0 0.0
        %3473 = vmatprep.subr.mxu0 0.0
        %3474 = vmatpush1.msra.mxu0 0.0
        %3475 = vmatprep.subr.mxu0 0.0
        %3476 = vmatpush1.msra.mxu0 0.0
        %3477 = vmatprep.subr.mxu0 0.0
        %3478 = vmatpush1.msra.mxu0 0.0
        %3479 = vmatprep.subr.mxu0 0.0
        %3480 = vmatpush1.msra.mxu0 0.0
        %3481 = vmatprep.subr.mxu0 0.0
        %3482 = vmatpush1.msra.mxu0 0.0
        %3483 = vmatprep.subr.mxu0 0.0
        %3484 = vmatpush1.msra.mxu0 0.0
        %3485 = vmatprep.subr.mxu0 0.0
        %3486 = vmatpush1.msra.mxu0 0.0
        %3487 = vmatprep.subr.mxu0 0.0
        %3488 = vmatpush1.msra.mxu0 0.0
        %3489 = vmatprep.subr.mxu0 0.0
        %3490 = vmatpush1.msra.mxu0 0.0
        %3491 = vmatprep.subr.mxu0 0.0
        %3492 = vmatpush1.msra.mxu0 0.0
        %3493 = vmatprep.subr.mxu0 0.0
        %3494 = vmatpush1.msra.mxu0 0.0
        %3495 = vmatprep.subr.mxu0 0.0
        %3496 = vmatpush1.msra.mxu0 0.0
        %3497 = vmatprep.subr.mxu0 0.0
        %3498 = vmatpush1.msra.mxu0 0.0
        %3499 = vmatprep.subr.mxu0 0.0
        %3500 = vmatpush1.msra.mxu0 0.0
        %3501 = vmatprep.mubr.f32.mxu0 0.0
        %3502 = vmatmul.mubr.f32.gmra.mrb[0].mxu0 %v2234
        %v3503 = vpop.f32.mrb[0].mxu0
        %v3504 = vadd.f32 0.0, %v3503
        %v3505 = vpop.f32.mrb[0].mxu0
        %3506 = vmatprep.mubr.f32.mxu0 0.0
        %3507 = vmatmul.mubr.f32.gmra.mrb[0].mxu0 %v2236
        %v3508 = vpop.f32.mrb[0].mxu0
        %v3509 = vadd.f32 0.0, %v3508
        %v3510 = vpop.f32.mrb[0].mxu0
        %3511 = vmatprep.mubr.f32.mxu0 0.0
        %3512 = vmatmul.mubr.f32.gmra.mrb[0].mxu0 %v2238
        %v3513 = vpop.f32.mrb[0].mxu0
        %v3514 = vadd.f32 0.0, %v3513
        %v3515 = vpop.f32.mrb[0].mxu0
        %3516 = vmatprep.mubr.f32.mxu0 0.0
        %3517 = vmatmul.mubr.f32.gmra.mrb[0].mxu0 %v2240
        %v3518 = vpop.f32.mrb[0].mxu0
        %v3519 = vadd.f32 0.0, %v3518
        %v3520 = vpop.f32.mrb[0].mxu0
        %3521 = vmatprep.mubr.f32.mxu0 0.0
        %3522 = vmatmul.mubr.f32.gmra.mrb[0].mxu0 %v2242
        %v3523 = vpop.f32.mrb[0].mxu0
        %v3524 = vadd.f32 0.0, %v3523
        %v3525 = vpop.f32.mrb[0].mxu0
        %3526 = vmatprep.mubr.f32.mxu0 0.0
        %3527 = vmatmul.mubr.f32.gmra.mrb[0].mxu0 %v2244
        %v3528 = vpop.f32.mrb[0].mxu0
        %v3529 = vadd.f32 0.0, %v3528
        %v3530 = vpop.f32.mrb[0].mxu0
        %3531 = vmatprep.mubr.f32.mxu0 0.0
        %3532 = vmatmul.mubr.f32.gmra.mrb[0].mxu0 %v2246
        %v3533 = vpop.f32.mrb[0].mxu0
        %v3534 = vadd.f32 0.0, %v3533
        %v3535 = vpop.f32.mrb[0].mxu0
        %3536 = vmatprep.mubr.f32.mxu0 0.0
        %3537 = vmatmul.mubr.f32.gmra.mrb[0].mxu0 %v2248
        %v3538 = vpop.f32.mrb[0].mxu0
        %v3539 = vadd.f32 0.0, %v3538
        %v3540 = vpop.f32.mrb[0].mxu0
        %3541 = vmatprep.mubr.f32.mxu0 0.0
        %3542 = vmatmul.mubr.f32.gmra.mrb[0].mxu0 %v2250
        %v3543 = vpop.f32.mrb[0].mxu0
        %v3544 = vadd.f32 0.0, %v3543
        %v3545 = vpop.f32.mrb[0].mxu0
        %3546 = vmatprep.mubr.f32.mxu0 0.0
        %3547 = vmatmul.mubr.f32.gmra.mrb[0].mxu0 %v2252
        %v3548 = vpop.f32.mrb[0].mxu0
        %v3549 = vadd.f32 0.0, %v3548
        %v3550 = vpop.f32.mrb[0].mxu0
        %3551 = vmatprep.mubr.f32.mxu0 0.0
        %3552 = vmatmul.mubr.f32.gmra.mrb[0].mxu0 %v2254
        %v3553 = vpop.f32.mrb[0].mxu0
        %v3554 = vadd.f32 0.0, %v3553
        %v3555 = vpop.f32.mrb[0].mxu0
        %3556 = vmatprep.mubr.f32.mxu0 0.0
        %3557 = vmatmul.mubr.f32.gmra.mrb[0].mxu0 %v2256
        %v3558 = vpop.f32.mrb[0].mxu0
        %v3559 = vadd.f32 0.0, %v3558
        %v3560 = vpop.f32.mrb[0].mxu0
        %3561 = vmatprep.mubr.f32.mxu0 0.0
        %3562 = vmatmul.mubr.f32.gmra.mrb[0].mxu0 %v2258
        %v3563 = vpop.f32.mrb[0].mxu0
        %v3564 = vadd.f32 0.0, %v3563
        %v3565 = vpop.f32.mrb[0].mxu0
        %3566 = vmatprep.mubr.f32.mxu0 0.0
        %3567 = vmatmul.mubr.f32.gmra.mrb[0].mxu0 %v2260
        %v3568 = vpop.f32.mrb[0].mxu0
        %v3569 = vadd.f32 0.0, %v3568
        %v3570 = vpop.f32.mrb[0].mxu0
        %3571 = vmatprep.mubr.f32.mxu0 0.0
        %3572 = vmatmul.mubr.f32.gmra.mrb[0].mxu0 %v2262
        %v3573 = vpop.f32.mrb[0].mxu0
        %v3574 = vadd.f32 0.0, %v3573
        %v3575 = vpop.f32.mrb[0].mxu0
        %3576 = vmatprep.mubr.f32.mxu0 0.0
        %3577 = vmatmul.mubr.f32.gmra.mrb[0].mxu0 %v2264
        %v3578 = vpop.f32.mrb[0].mxu0
        %v3579 = vadd.f32 0.0, %v3578
        %v3580 = vpop.f32.mrb[0].mxu0
        %3581 = vmatprep.mubr.f32.mxu0 0.0
        %3582 = vmatmul.mubr.f32.gmra.mrb[0].mxu0 %v2266
        %v3583 = vpop.f32.mrb[0].mxu0
        %v3584 = vadd.f32 0.0, %v3583
        %v3585 = vpop.f32.mrb[0].mxu0
        %3586 = vmatprep.mubr.f32.mxu0 0.0
        %3587 = vmatmul.mubr.f32.gmra.mrb[0].mxu0 %v2268
        %v3588 = vpop.f32.mrb[0].mxu0
        %v3589 = vadd.f32 0.0, %v3588
        %v3590 = vpop.f32.mrb[0].mxu0
        %3591 = vmatprep.mubr.f32.mxu0 0.0
        %3592 = vmatmul.mubr.f32.gmra.mrb[0].mxu0 %v2270
        %v3593 = vpop.f32.mrb[0].mxu0
        %v3594 = vadd.f32 0.0, %v3593
        %v3595 = vpop.f32.mrb[0].mxu0
        %3596 = vmatprep.mubr.f32.mxu0 0.0
        %3597 = vmatmul.mubr.f32.gmra.mrb[0].mxu0 %v2272
        %v3598 = vpop.f32.mrb[0].mxu0
        %v3599 = vadd.f32 0.0, %v3598
        %v3600 = vpop.f32.mrb[0].mxu0
        %3601 = vmatprep.mubr.f32.mxu0 0.0
        %3602 = vmatmul.mubr.f32.gmra.mrb[0].mxu0 %v2274
        %v3603 = vpop.f32.mrb[0].mxu0
        %v3604 = vadd.f32 0.0, %v3603
        %v3605 = vpop.f32.mrb[0].mxu0
        %3606 = vmatprep.mubr.f32.mxu0 0.0
        %3607 = vmatmul.mubr.f32.gmra.mrb[0].mxu0 %v2276
        %v3608 = vpop.f32.mrb[0].mxu0
        %v3609 = vadd.f32 0.0, %v3608
        %v3610 = vpop.f32.mrb[0].mxu0
        %3611 = vmatprep.mubr.f32.mxu0 0.0
        %3612 = vmatmul.mubr.f32.gmra.mrb[0].mxu0 %v2278
        %v3613 = vpop.f32.mrb[0].mxu0
        %v3614 = vadd.f32 0.0, %v3613
        %v3615 = vpop.f32.mrb[0].mxu0
        %3616 = vmatprep.mubr.f32.mxu0 0.0
        %3617 = vmatmul.mubr.f32.gmra.mrb[0].mxu0 %v2280
        %v3618 = vpop.f32.mrb[0].mxu0
        %v3619 = vadd.f32 0.0, %v3618
        %v3620 = vpop.f32.mrb[0].mxu0
        %3621 = vmatprep.mubr.f32.mxu0 0.0
        %3622 = vmatmul.mubr.f32.gmra.mrb[0].mxu0 %v2282
        %v3623 = vpop.f32.mrb[0].mxu0
        %v3624 = vadd.f32 0.0, %v3623
        %v3625 = vpop.f32.mrb[0].mxu0
        %3626 = vmatprep.mubr.f32.mxu0 0.0
        %3627 = vmatmul.mubr.f32.gmra.mrb[0].mxu0 %v2284
        %v3628 = vpop.f32.mrb[0].mxu0
        %v3629 = vadd.f32 0.0, %v3628
        %v3630 = vpop.f32.mrb[0].mxu0
        %3631 = vmatprep.mubr.f32.mxu0 0.0
        %3632 = vmatmul.mubr.f32.gmra.mrb[0].mxu0 %v2286
        %v3633 = vpop.f32.mrb[0].mxu0
        %v3634 = vadd.f32 0.0, %v3633
        %v3635 = vpop.f32.mrb[0].mxu0
        %3636 = vmatprep.mubr.f32.mxu0 0.0
        %3637 = vmatmul.mubr.f32.gmra.mrb[0].mxu0 %v2288
        %v3638 = vpop.f32.mrb[0].mxu0
        %v3639 = vadd.f32 0.0, %v3638
        %v3640 = vpop.f32.mrb[0].mxu0
        %3641 = vmatprep.mubr.f32.mxu0 0.0
        %3642 = vmatmul.mubr.f32.gmra.mrb[0].mxu0 %v2290
        %v3643 = vpop.f32.mrb[0].mxu0
        %v3644 = vadd.f32 0.0, %v3643
        %v3645 = vpop.f32.mrb[0].mxu0
        %3646 = vmatprep.mubr.f32.mxu0 0.0
        %3647 = vmatmul.mubr.f32.gmra.mrb[0].mxu0 %v2292
        %v3648 = vpop.f32.mrb[0].mxu0
        %v3649 = vadd.f32 0.0, %v3648
        %v3650 = vpop.f32.mrb[0].mxu0
        %3651 = vmatprep.mubr.f32.mxu0 0.0
        %3652 = vmatmul.mubr.f32.gmra.mrb[0].mxu0 %v2294
        %v3653 = vpop.f32.mrb[0].mxu0
        %v3654 = vadd.f32 0.0, %v3653
        %v3655 = vpop.f32.mrb[0].mxu0
        %3656 = vmatprep.mubr.f32.mxu0 0.0
        %3657 = vmatmul.mubr.f32.gmra.mrb[0].mxu0 %v2296
        %v3658 = vpop.f32.mrb[0].mxu0
        %v3659 = vadd.f32 0.0, %v3658
        %v3660 = vpop.f32.mrb[0].mxu0
        %3661 = vmatprep.mubr.f32.mxu0 0.0
        %3662 = vmatmul.mubr.f32.gmra.mrb[0].mxu0 %v2298
        %v3663 = vpop.f32.mrb[0].mxu0
        %v3664 = vadd.f32 0.0, %v3663
        %v3665 = vpop.f32.mrb[0].mxu0
        %3666 = vmatprep.mubr.f32.mxu0 0.0
        %3667 = vmatmul.mubr.f32.gmra.mrb[0].mxu0 %v2300
        %v3668 = vpop.f32.mrb[0].mxu0
        %v3669 = vadd.f32 0.0, %v3668
        %v3670 = vpop.f32.mrb[0].mxu0
        %3671 = vmatprep.mubr.f32.mxu0 0.0
        %3672 = vmatmul.mubr.f32.gmra.mrb[0].mxu0 %v2302
        %v3673 = vpop.f32.mrb[0].mxu0
        %v3674 = vadd.f32 0.0, %v3673
        %v3675 = vpop.f32.mrb[0].mxu0
        %3676 = vmatprep.mubr.f32.mxu0 0.0
        %3677 = vmatmul.mubr.f32.gmra.mrb[0].mxu0 %v2304
        %v3678 = vpop.f32.mrb[0].mxu0
        %v3679 = vadd.f32 0.0, %v3678
        %v3680 = vpop.f32.mrb[0].mxu0
        %3681 = vmatprep.mubr.f32.mxu0 0.0
        %3682 = vmatmul.mubr.f32.gmra.mrb[0].mxu0 %v2306
        %v3683 = vpop.f32.mrb[0].mxu0
        %v3684 = vadd.f32 0.0, %v3683
        %v3685 = vpop.f32.mrb[0].mxu0
        %3686 = vmatprep.mubr.f32.mxu0 0.0
        %3687 = vmatmul.mubr.f32.gmra.mrb[0].mxu0 %v2308
        %v3688 = vpop.f32.mrb[0].mxu0
        %v3689 = vadd.f32 0.0, %v3688
        %v3690 = vpop.f32.mrb[0].mxu0
        %3691 = vmatprep.mubr.f32.mxu0 0.0
        %3692 = vmatmul.mubr.f32.gmra.mrb[0].mxu0 %v2310
        %v3693 = vpop.f32.mrb[0].mxu0
        %v3694 = vadd.f32 0.0, %v3693
        %v3695 = vpop.f32.mrb[0].mxu0
        %3696 = vmatprep.mubr.f32.mxu0 0.0
        %3697 = vmatmul.mubr.f32.gmra.mrb[0].mxu0 %v2312
        %v3698 = vpop.f32.mrb[0].mxu0
        %v3699 = vadd.f32 0.0, %v3698
        %v3700 = vpop.f32.mrb[0].mxu0
        %3701 = vmatprep.mubr.f32.mxu0 0.0
        %3702 = vmatmul.mubr.f32.gmra.mrb[0].mxu0 %v2314
        %v3703 = vpop.f32.mrb[0].mxu0
        %v3704 = vadd.f32 0.0, %v3703
        %v3705 = vpop.f32.mrb[0].mxu0
        %3706 = vmatprep.mubr.f32.mxu0 0.0
        %3707 = vmatmul.mubr.f32.gmra.mrb[0].mxu0 %v2316
        %v3708 = vpop.f32.mrb[0].mxu0
        %v3709 = vadd.f32 0.0, %v3708
        %v3710 = vpop.f32.mrb[0].mxu0
        %3711 = vmatprep.mubr.f32.mxu0 0.0
        %3712 = vmatmul.mubr.f32.gmra.mrb[0].mxu0 %v2318
        %v3713 = vpop.f32.mrb[0].mxu0
        %v3714 = vadd.f32 0.0, %v3713
        %v3715 = vpop.f32.mrb[0].mxu0
        %3716 = vmatprep.mubr.f32.mxu0 0.0
        %3717 = vmatmul.mubr.f32.gmra.mrb[0].mxu0 %v2320
        %v3718 = vpop.f32.mrb[0].mxu0
        %v3719 = vadd.f32 0.0, %v3718
        %v3720 = vpop.f32.mrb[0].mxu0
        %3721 = vmatprep.mubr.f32.mxu0 0.0
        %3722 = vmatmul.mubr.f32.gmra.mrb[0].mxu0 %v2322
        %v3723 = vpop.f32.mrb[0].mxu0
        %v3724 = vadd.f32 0.0, %v3723
        %v3725 = vpop.f32.mrb[0].mxu0
        %3726 = vmatprep.mubr.f32.mxu0 0.0
        %3727 = vmatmul.mubr.f32.gmra.mrb[0].mxu0 %v3428
        %v3728 = vpop.f32.mrb[0].mxu0
        %v3729 = vadd.f32 0.0, %v3728
        %v3730 = vpop.f32.mrb[0].mxu0
        %3731 = vmatprep.mubr.f32.mxu0 0.0
        %3732 = vmatmul.mubr.f32.gmra.mrb[0].mxu0 %v3430
        %v3733 = vpop.f32.mrb[0].mxu0
        %v3734 = vadd.f32 0.0, %v3733
        %v3735 = vpop.f32.mrb[0].mxu0
        %3736 = vmatprep.mubr.f32.mxu0 0.0
        %3737 = vmatmul.mubr.f32.gmra.mrb[0].mxu0 %v3432
        %v3738 = vpop.f32.mrb[0].mxu0
        %v3739 = vadd.f32 0.0, %v3738
        %v3740 = vpop.f32.mrb[0].mxu0
        %3741 = vdwg.mxu0
        %v3742 = vadd.f32 %v3371, %v3504
        %v3743 = vadd.f32 %v3372, %v3509
        %v3744 = vadd.f32 %v3373, %v3514
        %v3745 = vadd.f32 %v3374, %v3519
        %v3746 = vadd.f32 %v3375, %v3524
        %v3747 = vadd.f32 %v3376, %v3529
        %v3748 = vadd.f32 %v3377, %v3534
        %v3749 = vadd.f32 %v3378, %v3539
        %v3750 = vadd.f32 %v3379, %v3544
        %v3751 = vadd.f32 %v3380, %v3549
        %v3752 = vadd.f32 %v3381, %v3554
        %v3753 = vadd.f32 %v3382, %v3559
        %v3754 = vadd.f32 %v3383, %v3564
        %v3755 = vadd.f32 %v3384, %v3569
        %v3756 = vadd.f32 %v3385, %v3574
        %v3757 = vadd.f32 %v3386, %v3579
        %v3758 = vadd.f32 %v3387, %v3584
        %v3759 = vadd.f32 %v3388, %v3589
        %v3760 = vadd.f32 %v3389, %v3594
        %v3761 = vadd.f32 %v3390, %v3599
        %v3762 = vadd.f32 %v3391, %v3604
        %v3763 = vadd.f32 %v3392, %v3609
        %v3764 = vadd.f32 %v3393, %v3614
        %v3765 = vadd.f32 %v3394, %v3619
        %v3766 = vadd.f32 %v3395, %v3624
        %v3767 = vadd.f32 %v3396, %v3629
        %v3768 = vadd.f32 %v3397, %v3634
        %v3769 = vadd.f32 %v3398, %v3639
        %v3770 = vadd.f32 %v3399, %v3644
        %v3771 = vadd.f32 %v3400, %v3649
        %v3772 = vadd.f32 %v3401, %v3654
        %v3773 = vadd.f32 %v3402, %v3659
        %v3774 = vadd.f32 %v3403, %v3664
        %v3775 = vadd.f32 %v3404, %v3669
        %v3776 = vadd.f32 %v3405, %v3674
        %v3777 = vadd.f32 %v3406, %v3679
        %v3778 = vadd.f32 %v3407, %v3684
        %v3779 = vadd.f32 %v3408, %v3689
        %v3780 = vadd.f32 %v3409, %v3694
        %v3781 = vadd.f32 %v3410, %v3699
        %v3782 = vadd.f32 %v3411, %v3704
        %v3783 = vadd.f32 %v3412, %v3709
        %v3784 = vadd.f32 %v3413, %v3714
        %v3785 = vadd.f32 %v3414, %v3719
        %v3786 = vadd.f32 %v3415, %v3724
        %v3787 = vadd.f32 %v3416, %v3729
        %v3788 = vadd.f32 %v3417, %v3734
        %v3789 = vadd.f32 %v3418, %v3739
        %s3790 = scalar_lea.vmem %s5, 24
        %v3791 = vld [vmem:[%s3790] sm:$0xf]
        %v3793 = vsel %vm1303, %v1119, 0
        %v3796 = vsel %vm1303, %v1120, 0
        %v3799 = vsel %vm1303, %v1121, 0
        %v3802 = vsel %vm1400, %v3791, 0
        %3804 = vmatprep.subr.mxu0 0.0
        %3805 = vmatpush1.msra.mxu0 %v3802
        %3806 = vmatprep.subr.mxu0 0.0
        %3807 = vmatpush1.msra.mxu0 0.0
        %3808 = vmatprep.subr.mxu0 0.0
        %3809 = vmatpush1.msra.mxu0 0.0
        %3810 = vmatprep.subr.mxu0 0.0
        %3811 = vmatpush1.msra.mxu0 0.0
        %3812 = vmatprep.subr.mxu0 0.0
        %3813 = vmatpush1.msra.mxu0 0.0
        %3814 = vmatprep.subr.mxu0 0.0
        %3815 = vmatpush1.msra.mxu0 0.0
        %3816 = vmatprep.subr.mxu0 0.0
        %3817 = vmatpush1.msra.mxu0 0.0
        %3818 = vmatprep.subr.mxu0 0.0
        %3819 = vmatpush1.msra.mxu0 0.0
        %3820 = vmatprep.subr.mxu0 0.0
        %3821 = vmatpush1.msra.mxu0 0.0
        %3822 = vmatprep.subr.mxu0 0.0
        %3823 = vmatpush1.msra.mxu0 0.0
        %3824 = vmatprep.subr.mxu0 0.0
        %3825 = vmatpush1.msra.mxu0 0.0
        %3826 = vmatprep.subr.mxu0 0.0
        %3827 = vmatpush1.msra.mxu0 0.0
        %3828 = vmatprep.subr.mxu0 0.0
        %3829 = vmatpush1.msra.mxu0 0.0
        %3830 = vmatprep.subr.mxu0 0.0
        %3831 = vmatpush1.msra.mxu0 0.0
        %3832 = vmatprep.subr.mxu0 0.0
        %3833 = vmatpush1.msra.mxu0 0.0
        %3834 = vmatprep.subr.mxu0 0.0
        %3835 = vmatpush1.msra.mxu0 0.0
        %3836 = vmatprep.subr.mxu0 0.0
        %3837 = vmatpush1.msra.mxu0 0.0
        %3838 = vmatprep.subr.mxu0 0.0
        %3839 = vmatpush1.msra.mxu0 0.0
        %3840 = vmatprep.subr.mxu0 0.0
        %3841 = vmatpush1.msra.mxu0 0.0
        %3842 = vmatprep.subr.mxu0 0.0
        %3843 = vmatpush1.msra.mxu0 0.0
        %3844 = vmatprep.subr.mxu0 0.0
        %3845 = vmatpush1.msra.mxu0 0.0
        %3846 = vmatprep.subr.mxu0 0.0
        %3847 = vmatpush1.msra.mxu0 0.0
        %3848 = vmatprep.subr.mxu0 0.0
        %3849 = vmatpush1.msra.mxu0 0.0
        %3850 = vmatprep.subr.mxu0 0.0
        %3851 = vmatpush1.msra.mxu0 0.0
        %3852 = vmatprep.subr.mxu0 0.0
        %3853 = vmatpush1.msra.mxu0 0.0
        %3854 = vmatprep.subr.mxu0 0.0
        %3855 = vmatpush1.msra.mxu0 0.0
        %3856 = vmatprep.subr.mxu0 0.0
        %3857 = vmatpush1.msra.mxu0 0.0
        %3858 = vmatprep.subr.mxu0 0.0
        %3859 = vmatpush1.msra.mxu0 0.0
        %3860 = vmatprep.subr.mxu0 0.0
        %3861 = vmatpush1.msra.mxu0 0.0
        %3862 = vmatprep.subr.mxu0 0.0
        %3863 = vmatpush1.msra.mxu0 0.0
        %3864 = vmatprep.subr.mxu0 0.0
        %3865 = vmatpush1.msra.mxu0 0.0
        %3866 = vmatprep.subr.mxu0 0.0
        %3867 = vmatpush1.msra.mxu0 0.0
        %3868 = vmatprep.mubr.f32.mxu0 0.0
        %3869 = vmatmul.mubr.f32.gmra.mrb[0].mxu0 %v1721
        %v3870 = vpop.f32.mrb[0].mxu0
        %v3871 = vadd.f32 0.0, %v3870
        %v3872 = vpop.f32.mrb[0].mxu0
        %3873 = vmatprep.mubr.f32.mxu0 0.0
        %3874 = vmatmul.mubr.f32.gmra.mrb[0].mxu0 %v1723
        %v3875 = vpop.f32.mrb[0].mxu0
        %v3876 = vadd.f32 0.0, %v3875
        %v3877 = vpop.f32.mrb[0].mxu0
        %3878 = vmatprep.mubr.f32.mxu0 0.0
        %3879 = vmatmul.mubr.f32.gmra.mrb[0].mxu0 %v1725
        %v3880 = vpop.f32.mrb[0].mxu0
        %v3881 = vadd.f32 0.0, %v3880
        %v3882 = vpop.f32.mrb[0].mxu0
        %3883 = vmatprep.mubr.f32.mxu0 0.0
        %3884 = vmatmul.mubr.f32.gmra.mrb[0].mxu0 %v1727
        %v3885 = vpop.f32.mrb[0].mxu0
        %v3886 = vadd.f32 0.0, %v3885
        %v3887 = vpop.f32.mrb[0].mxu0
        %3888 = vmatprep.mubr.f32.mxu0 0.0
        %3889 = vmatmul.mubr.f32.gmra.mrb[0].mxu0 %v1729
        %v3890 = vpop.f32.mrb[0].mxu0
        %v3891 = vadd.f32 0.0, %v3890
        %v3892 = vpop.f32.mrb[0].mxu0
        %3893 = vmatprep.mubr.f32.mxu0 0.0
        %3894 = vmatmul.mubr.f32.gmra.mrb[0].mxu0 %v1731
        %v3895 = vpop.f32.mrb[0].mxu0
        %v3896 = vadd.f32 0.0, %v3895
        %v3897 = vpop.f32.mrb[0].mxu0
        %3898 = vmatprep.mubr.f32.mxu0 0.0
        %3899 = vmatmul.mubr.f32.gmra.mrb[0].mxu0 %v1733
        %v3900 = vpop.f32.mrb[0].mxu0
        %v3901 = vadd.f32 0.0, %v3900
        %v3902 = vpop.f32.mrb[0].mxu0
        %3903 = vmatprep.mubr.f32.mxu0 0.0
        %3904 = vmatmul.mubr.f32.gmra.mrb[0].mxu0 %v1735
        %v3905 = vpop.f32.mrb[0].mxu0
        %v3906 = vadd.f32 0.0, %v3905
        %v3907 = vpop.f32.mrb[0].mxu0
        %3908 = vmatprep.mubr.f32.mxu0 0.0
        %3909 = vmatmul.mubr.f32.gmra.mrb[0].mxu0 %v1737
        %v3910 = vpop.f32.mrb[0].mxu0
        %v3911 = vadd.f32 0.0, %v3910
        %v3912 = vpop.f32.mrb[0].mxu0
        %3913 = vmatprep.mubr.f32.mxu0 0.0
        %3914 = vmatmul.mubr.f32.gmra.mrb[0].mxu0 %v1739
        %v3915 = vpop.f32.mrb[0].mxu0
        %v3916 = vadd.f32 0.0, %v3915
        %v3917 = vpop.f32.mrb[0].mxu0
        %3918 = vmatprep.mubr.f32.mxu0 0.0
        %3919 = vmatmul.mubr.f32.gmra.mrb[0].mxu0 %v1741
        %v3920 = vpop.f32.mrb[0].mxu0
        %v3921 = vadd.f32 0.0, %v3920
        %v3922 = vpop.f32.mrb[0].mxu0
        %3923 = vmatprep.mubr.f32.mxu0 0.0
        %3924 = vmatmul.mubr.f32.gmra.mrb[0].mxu0 %v1743
        %v3925 = vpop.f32.mrb[0].mxu0
        %v3926 = vadd.f32 0.0, %v3925
        %v3927 = vpop.f32.mrb[0].mxu0
        %3928 = vmatprep.mubr.f32.mxu0 0.0
        %3929 = vmatmul.mubr.f32.gmra.mrb[0].mxu0 %v1745
        %v3930 = vpop.f32.mrb[0].mxu0
        %v3931 = vadd.f32 0.0, %v3930
        %v3932 = vpop.f32.mrb[0].mxu0
        %3933 = vmatprep.mubr.f32.mxu0 0.0
        %3934 = vmatmul.mubr.f32.gmra.mrb[0].mxu0 %v1747
        %v3935 = vpop.f32.mrb[0].mxu0
        %v3936 = vadd.f32 0.0, %v3935
        %v3937 = vpop.f32.mrb[0].mxu0
        %3938 = vmatprep.mubr.f32.mxu0 0.0
        %3939 = vmatmul.mubr.f32.gmra.mrb[0].mxu0 %v1749
        %v3940 = vpop.f32.mrb[0].mxu0
        %v3941 = vadd.f32 0.0, %v3940
        %v3942 = vpop.f32.mrb[0].mxu0
        %3943 = vmatprep.mubr.f32.mxu0 0.0
        %3944 = vmatmul.mubr.f32.gmra.mrb[0].mxu0 %v1751
        %v3945 = vpop.f32.mrb[0].mxu0
        %v3946 = vadd.f32 0.0, %v3945
        %v3947 = vpop.f32.mrb[0].mxu0
        %3948 = vmatprep.mubr.f32.mxu0 0.0
        %3949 = vmatmul.mubr.f32.gmra.mrb[0].mxu0 %v1753
        %v3950 = vpop.f32.mrb[0].mxu0
        %v3951 = vadd.f32 0.0, %v3950
        %v3952 = vpop.f32.mrb[0].mxu0
        %3953 = vmatprep.mubr.f32.mxu0 0.0
        %3954 = vmatmul.mubr.f32.gmra.mrb[0].mxu0 %v1755
        %v3955 = vpop.f32.mrb[0].mxu0
        %v3956 = vadd.f32 0.0, %v3955
        %v3957 = vpop.f32.mrb[0].mxu0
        %3958 = vmatprep.mubr.f32.mxu0 0.0
        %3959 = vmatmul.mubr.f32.gmra.mrb[0].mxu0 %v1757
        %v3960 = vpop.f32.mrb[0].mxu0
        %v3961 = vadd.f32 0.0, %v3960
        %v3962 = vpop.f32.mrb[0].mxu0
        %3963 = vmatprep.mubr.f32.mxu0 0.0
        %3964 = vmatmul.mubr.f32.gmra.mrb[0].mxu0 %v1759
        %v3965 = vpop.f32.mrb[0].mxu0
        %v3966 = vadd.f32 0.0, %v3965
        %v3967 = vpop.f32.mrb[0].mxu0
        %3968 = vmatprep.mubr.f32.mxu0 0.0
        %3969 = vmatmul.mubr.f32.gmra.mrb[0].mxu0 %v1761
        %v3970 = vpop.f32.mrb[0].mxu0
        %v3971 = vadd.f32 0.0, %v3970
        %v3972 = vpop.f32.mrb[0].mxu0
        %3973 = vmatprep.mubr.f32.mxu0 0.0
        %3974 = vmatmul.mubr.f32.gmra.mrb[0].mxu0 %v1763
        %v3975 = vpop.f32.mrb[0].mxu0
        %v3976 = vadd.f32 0.0, %v3975
        %v3977 = vpop.f32.mrb[0].mxu0
        %3978 = vmatprep.mubr.f32.mxu0 0.0
        %3979 = vmatmul.mubr.f32.gmra.mrb[0].mxu0 %v1765
        %v3980 = vpop.f32.mrb[0].mxu0
        %v3981 = vadd.f32 0.0, %v3980
        %v3982 = vpop.f32.mrb[0].mxu0
        %3983 = vmatprep.mubr.f32.mxu0 0.0
        %3984 = vmatmul.mubr.f32.gmra.mrb[0].mxu0 %v1767
        %v3985 = vpop.f32.mrb[0].mxu0
        %v3986 = vadd.f32 0.0, %v3985
        %v3987 = vpop.f32.mrb[0].mxu0
        %3988 = vmatprep.mubr.f32.mxu0 0.0
        %3989 = vmatmul.mubr.f32.gmra.mrb[0].mxu0 %v1769
        %v3990 = vpop.f32.mrb[0].mxu0
        %v3991 = vadd.f32 0.0, %v3990
        %v3992 = vpop.f32.mrb[0].mxu0
        %3993 = vmatprep.mubr.f32.mxu0 0.0
        %3994 = vmatmul.mubr.f32.gmra.mrb[0].mxu0 %v1771
        %v3995 = vpop.f32.mrb[0].mxu0
        %v3996 = vadd.f32 0.0, %v3995
        %v3997 = vpop.f32.mrb[0].mxu0
        %3998 = vmatprep.mubr.f32.mxu0 0.0
        %3999 = vmatmul.mubr.f32.gmra.mrb[0].mxu0 %v1773
        %v4000 = vpop.f32.mrb[0].mxu0
        %v4001 = vadd.f32 0.0, %v4000
        %v4002 = vpop.f32.mrb[0].mxu0
        %4003 = vmatprep.mubr.f32.mxu0 0.0
        %4004 = vmatmul.mubr.f32.gmra.mrb[0].mxu0 %v1775
        %v4005 = vpop.f32.mrb[0].mxu0
        %v4006 = vadd.f32 0.0, %v4005
        %v4007 = vpop.f32.mrb[0].mxu0
        %4008 = vmatprep.mubr.f32.mxu0 0.0
        %4009 = vmatmul.mubr.f32.gmra.mrb[0].mxu0 %v1777
        %v4010 = vpop.f32.mrb[0].mxu0
        %v4011 = vadd.f32 0.0, %v4010
        %v4012 = vpop.f32.mrb[0].mxu0
        %4013 = vmatprep.mubr.f32.mxu0 0.0
        %4014 = vmatmul.mubr.f32.gmra.mrb[0].mxu0 %v1779
        %v4015 = vpop.f32.mrb[0].mxu0
        %v4016 = vadd.f32 0.0, %v4015
        %v4017 = vpop.f32.mrb[0].mxu0
        %4018 = vmatprep.mubr.f32.mxu0 0.0
        %4019 = vmatmul.mubr.f32.gmra.mrb[0].mxu0 %v1781
        %v4020 = vpop.f32.mrb[0].mxu0
        %v4021 = vadd.f32 0.0, %v4020
        %v4022 = vpop.f32.mrb[0].mxu0
        %4023 = vmatprep.mubr.f32.mxu0 0.0
        %4024 = vmatmul.mubr.f32.gmra.mrb[0].mxu0 %v1783
        %v4025 = vpop.f32.mrb[0].mxu0
        %v4026 = vadd.f32 0.0, %v4025
        %v4027 = vpop.f32.mrb[0].mxu0
        %4028 = vmatprep.mubr.f32.mxu0 0.0
        %4029 = vmatmul.mubr.f32.gmra.mrb[0].mxu0 %v1785
        %v4030 = vpop.f32.mrb[0].mxu0
        %v4031 = vadd.f32 0.0, %v4030
        %v4032 = vpop.f32.mrb[0].mxu0
        %4033 = vmatprep.mubr.f32.mxu0 0.0
        %4034 = vmatmul.mubr.f32.gmra.mrb[0].mxu0 %v1787
        %v4035 = vpop.f32.mrb[0].mxu0
        %v4036 = vadd.f32 0.0, %v4035
        %v4037 = vpop.f32.mrb[0].mxu0
        %4038 = vmatprep.mubr.f32.mxu0 0.0
        %4039 = vmatmul.mubr.f32.gmra.mrb[0].mxu0 %v1789
        %v4040 = vpop.f32.mrb[0].mxu0
        %v4041 = vadd.f32 0.0, %v4040
        %v4042 = vpop.f32.mrb[0].mxu0
        %4043 = vmatprep.mubr.f32.mxu0 0.0
        %4044 = vmatmul.mubr.f32.gmra.mrb[0].mxu0 %v1791
        %v4045 = vpop.f32.mrb[0].mxu0
        %v4046 = vadd.f32 0.0, %v4045
        %v4047 = vpop.f32.mrb[0].mxu0
        %4048 = vmatprep.mubr.f32.mxu0 0.0
        %4049 = vmatmul.mubr.f32.gmra.mrb[0].mxu0 %v1793
        %v4050 = vpop.f32.mrb[0].mxu0
        %v4051 = vadd.f32 0.0, %v4050
        %v4052 = vpop.f32.mrb[0].mxu0
        %4053 = vmatprep.mubr.f32.mxu0 0.0
        %4054 = vmatmul.mubr.f32.gmra.mrb[0].mxu0 %v1795
        %v4055 = vpop.f32.mrb[0].mxu0
        %v4056 = vadd.f32 0.0, %v4055
        %v4057 = vpop.f32.mrb[0].mxu0
        %4058 = vmatprep.mubr.f32.mxu0 0.0
        %4059 = vmatmul.mubr.f32.gmra.mrb[0].mxu0 %v1797
        %v4060 = vpop.f32.mrb[0].mxu0
        %v4061 = vadd.f32 0.0, %v4060
        %v4062 = vpop.f32.mrb[0].mxu0
        %4063 = vmatprep.mubr.f32.mxu0 0.0
        %4064 = vmatmul.mubr.f32.gmra.mrb[0].mxu0 %v1799
        %v4065 = vpop.f32.mrb[0].mxu0
        %v4066 = vadd.f32 0.0, %v4065
        %v4067 = vpop.f32.mrb[0].mxu0
        %4068 = vmatprep.mubr.f32.mxu0 0.0
        %4069 = vmatmul.mubr.f32.gmra.mrb[0].mxu0 %v1801
        %v4070 = vpop.f32.mrb[0].mxu0
        %v4071 = vadd.f32 0.0, %v4070
        %v4072 = vpop.f32.mrb[0].mxu0
        %4073 = vmatprep.mubr.f32.mxu0 0.0
        %4074 = vmatmul.mubr.f32.gmra.mrb[0].mxu0 %v1803
        %v4075 = vpop.f32.mrb[0].mxu0
        %v4076 = vadd.f32 0.0, %v4075
        %v4077 = vpop.f32.mrb[0].mxu0
        %4078 = vmatprep.mubr.f32.mxu0 0.0
        %4079 = vmatmul.mubr.f32.gmra.mrb[0].mxu0 %v2683
        %v4080 = vpop.f32.mrb[0].mxu0
        %v4081 = vadd.f32 0.0, %v4080
        %v4082 = vpop.f32.mrb[0].mxu0
        %4083 = vmatprep.mubr.f32.mxu0 0.0
        %4084 = vmatmul.mubr.f32.gmra.mrb[0].mxu0 %v2686
        %v4085 = vpop.f32.mrb[0].mxu0
        %v4086 = vadd.f32 0.0, %v4085
        %v4087 = vpop.f32.mrb[0].mxu0
        %4088 = vmatprep.mubr.f32.mxu0 0.0
        %4089 = vmatmul.mubr.f32.gmra.mrb[0].mxu0 %v2689
        %v4090 = vpop.f32.mrb[0].mxu0
        %v4091 = vadd.f32 0.0, %v4090
        %v4092 = vpop.f32.mrb[0].mxu0
        %4093 = vmatprep.mubr.f32.mxu0 0.0
        %4094 = vmatmul.mubr.f32.gmra.mrb[0].mxu0 %v3793
        %v4095 = vpop.f32.mrb[0].mxu0
        %v4096 = vadd.f32 0.0, %v4095
        %v4097 = vpop.f32.mrb[0].mxu0
        %4098 = vmatprep.mubr.f32.mxu0 0.0
        %4099 = vmatmul.mubr.f32.gmra.mrb[0].mxu0 %v3796
        %v4100 = vpop.f32.mrb[0].mxu0
        %v4101 = vadd.f32 0.0, %v4100
        %v4102 = vpop.f32.mrb[0].mxu0
        %4103 = vmatprep.mubr.f32.mxu0 0.0
        %4104 = vmatmul.mubr.f32.gmra.mrb[0].mxu0 %v3799
        %v4105 = vpop.f32.mrb[0].mxu0
        %v4106 = vadd.f32 0.0, %v4105
        %v4107 = vpop.f32.mrb[0].mxu0
        %4108 = vdwg.mxu0
        %v4109 = vadd.f32 %v3742, %v3871
        %v4110 = vadd.f32 %v3743, %v3876
        %v4111 = vadd.f32 %v3744, %v3881
        %v4112 = vadd.f32 %v3745, %v3886
        %v4113 = vadd.f32 %v3746, %v3891
        %v4114 = vadd.f32 %v3747, %v3896
        %v4115 = vadd.f32 %v3748, %v3901
        %v4116 = vadd.f32 %v3749, %v3906
        %v4117 = vadd.f32 %v3750, %v3911
        %v4118 = vadd.f32 %v3751, %v3916
        %v4119 = vadd.f32 %v3752, %v3921
        %v4120 = vadd.f32 %v3753, %v3926
        %v4121 = vadd.f32 %v3754, %v3931
        %v4122 = vadd.f32 %v3755, %v3936
        %v4123 = vadd.f32 %v3756, %v3941
        %v4124 = vadd.f32 %v3757, %v3946
        %v4125 = vadd.f32 %v3758, %v3951
        %v4126 = vadd.f32 %v3759, %v3956
        %v4127 = vadd.f32 %v3760, %v3961
        %v4128 = vadd.f32 %v3761, %v3966
        %v4129 = vadd.f32 %v3762, %v3971
        %v4130 = vadd.f32 %v3763, %v3976
        %v4131 = vadd.f32 %v3764, %v3981
        %v4132 = vadd.f32 %v3765, %v3986
        %v4133 = vadd.f32 %v3766, %v3991
        %v4134 = vadd.f32 %v3767, %v3996
        %v4135 = vadd.f32 %v3768, %v4001
        %v4136 = vadd.f32 %v3769, %v4006
        %v4137 = vadd.f32 %v3770, %v4011
        %v4138 = vadd.f32 %v3771, %v4016
        %v4139 = vadd.f32 %v3772, %v4021
        %v4140 = vadd.f32 %v3773, %v4026
        %v4141 = vadd.f32 %v3774, %v4031
        %v4142 = vadd.f32 %v3775, %v4036
        %v4143 = vadd.f32 %v3776, %v4041
        %v4144 = vadd.f32 %v3777, %v4046
        %v4145 = vadd.f32 %v3778, %v4051
        %v4146 = vadd.f32 %v3779, %v4056
        %v4147 = vadd.f32 %v3780, %v4061
        %v4148 = vadd.f32 %v3781, %v4066
        %v4149 = vadd.f32 %v3782, %v4071
        %v4150 = vadd.f32 %v3783, %v4076
        %v4151 = vadd.f32 %v3784, %v4081
        %v4152 = vadd.f32 %v3785, %v4086
        %v4153 = vadd.f32 %v3786, %v4091
        %v4154 = vadd.f32 %v3787, %v4096
        %v4155 = vadd.f32 %v3788, %v4101
        %v4156 = vadd.f32 %v3789, %v4106
        %v4158 = vrot.slane %v1119, 1
        %v4159 = vrot.slane %v1120, 1
        %v4160 = vsel %vm1188, %v4158, %v4159
        %v4161 = vrot.slane %v1121, 1
        %v4162 = vsel %vm1188, %v4159, %v4161
        %v4163 = vrot.slane %v1122, 1
        %v4164 = vsel %vm1188, %v4161, %v4163
        %s4165 = scalar_lea.vmem %s5, 28
        %v4166 = vld [vmem:[%s4165] sm:$0xf]
        %v4167 = vsel %vm1303, %v4160, 0
        %v4169 = vsel %vm1303, %v4162, 0
        %v4171 = vsel %vm1303, %v4164, 0
        %v4174 = vsel %vm1400, %v4166, 0
        %4176 = vmatprep.subr.mxu0 0.0
        %4177 = vmatpush1.msra.mxu0 %v4174
        %4178 = vmatprep.subr.mxu0 0.0
        %4179 = vmatpush1.msra.mxu0 0.0
        %4180 = vmatprep.subr.mxu0 0.0
        %4181 = vmatpush1.msra.mxu0 0.0
        %4182 = vmatprep.subr.mxu0 0.0
        %4183 = vmatpush1.msra.mxu0 0.0
        %4184 = vmatprep.subr.mxu0 0.0
        %4185 = vmatpush1.msra.mxu0 0.0
        %4186 = vmatprep.subr.mxu0 0.0
        %4187 = vmatpush1.msra.mxu0 0.0
        %4188 = vmatprep.subr.mxu0 0.0
        %4189 = vmatpush1.msra.mxu0 0.0
        %4190 = vmatprep.subr.mxu0 0.0
        %4191 = vmatpush1.msra.mxu0 0.0
        %4192 = vmatprep.subr.mxu0 0.0
        %4193 = vmatpush1.msra.mxu0 0.0
        %4194 = vmatprep.subr.mxu0 0.0
        %4195 = vmatpush1.msra.mxu0 0.0
        %4196 = vmatprep.subr.mxu0 0.0
        %4197 = vmatpush1.msra.mxu0 0.0
        %4198 = vmatprep.subr.mxu0 0.0
        %4199 = vmatpush1.msra.mxu0 0.0
        %4200 = vmatprep.subr.mxu0 0.0
        %4201 = vmatpush1.msra.mxu0 0.0
        %4202 = vmatprep.subr.mxu0 0.0
        %4203 = vmatpush1.msra.mxu0 0.0
        %4204 = vmatprep.subr.mxu0 0.0
        %4205 = vmatpush1.msra.mxu0 0.0
        %4206 = vmatprep.subr.mxu0 0.0
        %4207 = vmatpush1.msra.mxu0 0.0
        %4208 = vmatprep.subr.mxu0 0.0
        %4209 = vmatpush1.msra.mxu0 0.0
        %4210 = vmatprep.subr.mxu0 0.0
        %4211 = vmatpush1.msra.mxu0 0.0
        %4212 = vmatprep.subr.mxu0 0.0
        %4213 = vmatpush1.msra.mxu0 0.0
        %4214 = vmatprep.subr.mxu0 0.0
        %4215 = vmatpush1.msra.mxu0 0.0
        %4216 = vmatprep.subr.mxu0 0.0
        %4217 = vmatpush1.msra.mxu0 0.0
        %4218 = vmatprep.subr.mxu0 0.0
        %4219 = vmatpush1.msra.mxu0 0.0
        %4220 = vmatprep.subr.mxu0 0.0
        %4221 = vmatpush1.msra.mxu0 0.0
        %4222 = vmatprep.subr.mxu0 0.0
        %4223 = vmatpush1.msra.mxu0 0.0
        %4224 = vmatprep.subr.mxu0 0.0
        %4225 = vmatpush1.msra.mxu0 0.0
        %4226 = vmatprep.subr.mxu0 0.0
        %4227 = vmatpush1.msra.mxu0 0.0
        %4228 = vmatprep.subr.mxu0 0.0
        %4229 = vmatpush1.msra.mxu0 0.0
        %4230 = vmatprep.subr.mxu0 0.0
        %4231 = vmatpush1.msra.mxu0 0.0
        %4232 = vmatprep.subr.mxu0 0.0
        %4233 = vmatpush1.msra.mxu0 0.0
        %4234 = vmatprep.subr.mxu0 0.0
        %4235 = vmatpush1.msra.mxu0 0.0
        %4236 = vmatprep.subr.mxu0 0.0
        %4237 = vmatpush1.msra.mxu0 0.0
        %4238 = vmatprep.subr.mxu0 0.0
        %4239 = vmatpush1.msra.mxu0 0.0
        %4240 = vmatprep.mubr.f32.mxu0 0.0
        %4241 = vmatmul.mubr.f32.gmra.mrb[0].mxu0 %v1316
        %v4242 = vpop.f32.mrb[0].mxu0
        %v4243 = vadd.f32 0.0, %v4242
        %v4244 = vpop.f32.mrb[0].mxu0
        %4245 = vmatprep.mubr.f32.mxu0 0.0
        %4246 = vmatmul.mubr.f32.gmra.mrb[0].mxu0 %v1318
        %v4247 = vpop.f32.mrb[0].mxu0
        %v4248 = vadd.f32 0.0, %v4247
        %v4249 = vpop.f32.mrb[0].mxu0
        %4250 = vmatprep.mubr.f32.mxu0 0.0
        %4251 = vmatmul.mubr.f32.gmra.mrb[0].mxu0 %v1320
        %v4252 = vpop.f32.mrb[0].mxu0
        %v4253 = vadd.f32 0.0, %v4252
        %v4254 = vpop.f32.mrb[0].mxu0
        %4255 = vmatprep.mubr.f32.mxu0 0.0
        %4256 = vmatmul.mubr.f32.gmra.mrb[0].mxu0 %v1322
        %v4257 = vpop.f32.mrb[0].mxu0
        %v4258 = vadd.f32 0.0, %v4257
        %v4259 = vpop.f32.mrb[0].mxu0
        %4260 = vmatprep.mubr.f32.mxu0 0.0
        %4261 = vmatmul.mubr.f32.gmra.mrb[0].mxu0 %v1324
        %v4262 = vpop.f32.mrb[0].mxu0
        %v4263 = vadd.f32 0.0, %v4262
        %v4264 = vpop.f32.mrb[0].mxu0
        %4265 = vmatprep.mubr.f32.mxu0 0.0
        %4266 = vmatmul.mubr.f32.gmra.mrb[0].mxu0 %v1326
        %v4267 = vpop.f32.mrb[0].mxu0
        %v4268 = vadd.f32 0.0, %v4267
        %v4269 = vpop.f32.mrb[0].mxu0
        %4270 = vmatprep.mubr.f32.mxu0 0.0
        %4271 = vmatmul.mubr.f32.gmra.mrb[0].mxu0 %v1328
        %v4272 = vpop.f32.mrb[0].mxu0
        %v4273 = vadd.f32 0.0, %v4272
        %v4274 = vpop.f32.mrb[0].mxu0
        %4275 = vmatprep.mubr.f32.mxu0 0.0
        %4276 = vmatmul.mubr.f32.gmra.mrb[0].mxu0 %v1330
        %v4277 = vpop.f32.mrb[0].mxu0
        %v4278 = vadd.f32 0.0, %v4277
        %v4279 = vpop.f32.mrb[0].mxu0
        %4280 = vmatprep.mubr.f32.mxu0 0.0
        %4281 = vmatmul.mubr.f32.gmra.mrb[0].mxu0 %v1332
        %v4282 = vpop.f32.mrb[0].mxu0
        %v4283 = vadd.f32 0.0, %v4282
        %v4284 = vpop.f32.mrb[0].mxu0
        %4285 = vmatprep.mubr.f32.mxu0 0.0
        %4286 = vmatmul.mubr.f32.gmra.mrb[0].mxu0 %v1334
        %v4287 = vpop.f32.mrb[0].mxu0
        %v4288 = vadd.f32 0.0, %v4287
        %v4289 = vpop.f32.mrb[0].mxu0
        %4290 = vmatprep.mubr.f32.mxu0 0.0
        %4291 = vmatmul.mubr.f32.gmra.mrb[0].mxu0 %v1336
        %v4292 = vpop.f32.mrb[0].mxu0
        %v4293 = vadd.f32 0.0, %v4292
        %v4294 = vpop.f32.mrb[0].mxu0
        %4295 = vmatprep.mubr.f32.mxu0 0.0
        %4296 = vmatmul.mubr.f32.gmra.mrb[0].mxu0 %v1338
        %v4297 = vpop.f32.mrb[0].mxu0
        %v4298 = vadd.f32 0.0, %v4297
        %v4299 = vpop.f32.mrb[0].mxu0
        %4300 = vmatprep.mubr.f32.mxu0 0.0
        %4301 = vmatmul.mubr.f32.gmra.mrb[0].mxu0 %v1340
        %v4302 = vpop.f32.mrb[0].mxu0
        %v4303 = vadd.f32 0.0, %v4302
        %v4304 = vpop.f32.mrb[0].mxu0
        %4305 = vmatprep.mubr.f32.mxu0 0.0
        %4306 = vmatmul.mubr.f32.gmra.mrb[0].mxu0 %v1342
        %v4307 = vpop.f32.mrb[0].mxu0
        %v4308 = vadd.f32 0.0, %v4307
        %v4309 = vpop.f32.mrb[0].mxu0
        %4310 = vmatprep.mubr.f32.mxu0 0.0
        %4311 = vmatmul.mubr.f32.gmra.mrb[0].mxu0 %v1344
        %v4312 = vpop.f32.mrb[0].mxu0
        %v4313 = vadd.f32 0.0, %v4312
        %v4314 = vpop.f32.mrb[0].mxu0
        %4315 = vmatprep.mubr.f32.mxu0 0.0
        %4316 = vmatmul.mubr.f32.gmra.mrb[0].mxu0 %v1346
        %v4317 = vpop.f32.mrb[0].mxu0
        %v4318 = vadd.f32 0.0, %v4317
        %v4319 = vpop.f32.mrb[0].mxu0
        %4320 = vmatprep.mubr.f32.mxu0 0.0
        %4321 = vmatmul.mubr.f32.gmra.mrb[0].mxu0 %v1348
        %v4322 = vpop.f32.mrb[0].mxu0
        %v4323 = vadd.f32 0.0, %v4322
        %v4324 = vpop.f32.mrb[0].mxu0
        %4325 = vmatprep.mubr.f32.mxu0 0.0
        %4326 = vmatmul.mubr.f32.gmra.mrb[0].mxu0 %v1350
        %v4327 = vpop.f32.mrb[0].mxu0
        %v4328 = vadd.f32 0.0, %v4327
        %v4329 = vpop.f32.mrb[0].mxu0
        %4330 = vmatprep.mubr.f32.mxu0 0.0
        %4331 = vmatmul.mubr.f32.gmra.mrb[0].mxu0 %v1352
        %v4332 = vpop.f32.mrb[0].mxu0
        %v4333 = vadd.f32 0.0, %v4332
        %v4334 = vpop.f32.mrb[0].mxu0
        %4335 = vmatprep.mubr.f32.mxu0 0.0
        %4336 = vmatmul.mubr.f32.gmra.mrb[0].mxu0 %v1354
        %v4337 = vpop.f32.mrb[0].mxu0
        %v4338 = vadd.f32 0.0, %v4337
        %v4339 = vpop.f32.mrb[0].mxu0
        %4340 = vmatprep.mubr.f32.mxu0 0.0
        %4341 = vmatmul.mubr.f32.gmra.mrb[0].mxu0 %v1356
        %v4342 = vpop.f32.mrb[0].mxu0
        %v4343 = vadd.f32 0.0, %v4342
        %v4344 = vpop.f32.mrb[0].mxu0
        %4345 = vmatprep.mubr.f32.mxu0 0.0
        %4346 = vmatmul.mubr.f32.gmra.mrb[0].mxu0 %v1358
        %v4347 = vpop.f32.mrb[0].mxu0
        %v4348 = vadd.f32 0.0, %v4347
        %v4349 = vpop.f32.mrb[0].mxu0
        %4350 = vmatprep.mubr.f32.mxu0 0.0
        %4351 = vmatmul.mubr.f32.gmra.mrb[0].mxu0 %v1360
        %v4352 = vpop.f32.mrb[0].mxu0
        %v4353 = vadd.f32 0.0, %v4352
        %v4354 = vpop.f32.mrb[0].mxu0
        %4355 = vmatprep.mubr.f32.mxu0 0.0
        %4356 = vmatmul.mubr.f32.gmra.mrb[0].mxu0 %v1362
        %v4357 = vpop.f32.mrb[0].mxu0
        %v4358 = vadd.f32 0.0, %v4357
        %v4359 = vpop.f32.mrb[0].mxu0
        %4360 = vmatprep.mubr.f32.mxu0 0.0
        %4361 = vmatmul.mubr.f32.gmra.mrb[0].mxu0 %v1364
        %v4362 = vpop.f32.mrb[0].mxu0
        %v4363 = vadd.f32 0.0, %v4362
        %v4364 = vpop.f32.mrb[0].mxu0
        %4365 = vmatprep.mubr.f32.mxu0 0.0
        %4366 = vmatmul.mubr.f32.gmra.mrb[0].mxu0 %v1366
        %v4367 = vpop.f32.mrb[0].mxu0
        %v4368 = vadd.f32 0.0, %v4367
        %v4369 = vpop.f32.mrb[0].mxu0
        %4370 = vmatprep.mubr.f32.mxu0 0.0
        %4371 = vmatmul.mubr.f32.gmra.mrb[0].mxu0 %v1368
        %v4372 = vpop.f32.mrb[0].mxu0
        %v4373 = vadd.f32 0.0, %v4372
        %v4374 = vpop.f32.mrb[0].mxu0
        %4375 = vmatprep.mubr.f32.mxu0 0.0
        %4376 = vmatmul.mubr.f32.gmra.mrb[0].mxu0 %v1370
        %v4377 = vpop.f32.mrb[0].mxu0
        %v4378 = vadd.f32 0.0, %v4377
        %v4379 = vpop.f32.mrb[0].mxu0
        %4380 = vmatprep.mubr.f32.mxu0 0.0
        %4381 = vmatmul.mubr.f32.gmra.mrb[0].mxu0 %v1372
        %v4382 = vpop.f32.mrb[0].mxu0
        %v4383 = vadd.f32 0.0, %v4382
        %v4384 = vpop.f32.mrb[0].mxu0
        %4385 = vmatprep.mubr.f32.mxu0 0.0
        %4386 = vmatmul.mubr.f32.gmra.mrb[0].mxu0 %v1374
        %v4387 = vpop.f32.mrb[0].mxu0
        %v4388 = vadd.f32 0.0, %v4387
        %v4389 = vpop.f32.mrb[0].mxu0
        %4390 = vmatprep.mubr.f32.mxu0 0.0
        %4391 = vmatmul.mubr.f32.gmra.mrb[0].mxu0 %v1376
        %v4392 = vpop.f32.mrb[0].mxu0
        %v4393 = vadd.f32 0.0, %v4392
        %v4394 = vpop.f32.mrb[0].mxu0
        %4395 = vmatprep.mubr.f32.mxu0 0.0
        %4396 = vmatmul.mubr.f32.gmra.mrb[0].mxu0 %v1378
        %v4397 = vpop.f32.mrb[0].mxu0
        %v4398 = vadd.f32 0.0, %v4397
        %v4399 = vpop.f32.mrb[0].mxu0
        %4400 = vmatprep.mubr.f32.mxu0 0.0
        %4401 = vmatmul.mubr.f32.gmra.mrb[0].mxu0 %v1380
        %v4402 = vpop.f32.mrb[0].mxu0
        %v4403 = vadd.f32 0.0, %v4402
        %v4404 = vpop.f32.mrb[0].mxu0
        %4405 = vmatprep.mubr.f32.mxu0 0.0
        %4406 = vmatmul.mubr.f32.gmra.mrb[0].mxu0 %v1382
        %v4407 = vpop.f32.mrb[0].mxu0
        %v4408 = vadd.f32 0.0, %v4407
        %v4409 = vpop.f32.mrb[0].mxu0
        %4410 = vmatprep.mubr.f32.mxu0 0.0
        %4411 = vmatmul.mubr.f32.gmra.mrb[0].mxu0 %v1384
        %v4412 = vpop.f32.mrb[0].mxu0
        %v4413 = vadd.f32 0.0, %v4412
        %v4414 = vpop.f32.mrb[0].mxu0
        %4415 = vmatprep.mubr.f32.mxu0 0.0
        %4416 = vmatmul.mubr.f32.gmra.mrb[0].mxu0 %v1386
        %v4417 = vpop.f32.mrb[0].mxu0
        %v4418 = vadd.f32 0.0, %v4417
        %v4419 = vpop.f32.mrb[0].mxu0
        %4420 = vmatprep.mubr.f32.mxu0 0.0
        %4421 = vmatmul.mubr.f32.gmra.mrb[0].mxu0 %v1388
        %v4422 = vpop.f32.mrb[0].mxu0
        %v4423 = vadd.f32 0.0, %v4422
        %v4424 = vpop.f32.mrb[0].mxu0
        %4425 = vmatprep.mubr.f32.mxu0 0.0
        %4426 = vmatmul.mubr.f32.gmra.mrb[0].mxu0 %v1390
        %v4427 = vpop.f32.mrb[0].mxu0
        %v4428 = vadd.f32 0.0, %v4427
        %v4429 = vpop.f32.mrb[0].mxu0
        %4430 = vmatprep.mubr.f32.mxu0 0.0
        %4431 = vmatmul.mubr.f32.gmra.mrb[0].mxu0 %v1392
        %v4432 = vpop.f32.mrb[0].mxu0
        %v4433 = vadd.f32 0.0, %v4432
        %v4434 = vpop.f32.mrb[0].mxu0
        %4435 = vmatprep.mubr.f32.mxu0 0.0
        %4436 = vmatmul.mubr.f32.gmra.mrb[0].mxu0 %v1394
        %v4437 = vpop.f32.mrb[0].mxu0
        %v4438 = vadd.f32 0.0, %v4437
        %v4439 = vpop.f32.mrb[0].mxu0
        %4440 = vmatprep.mubr.f32.mxu0 0.0
        %4441 = vmatmul.mubr.f32.gmra.mrb[0].mxu0 %v1396
        %v4442 = vpop.f32.mrb[0].mxu0
        %v4443 = vadd.f32 0.0, %v4442
        %v4444 = vpop.f32.mrb[0].mxu0
        %4445 = vmatprep.mubr.f32.mxu0 0.0
        %4446 = vmatmul.mubr.f32.gmra.mrb[0].mxu0 %v1398
        %v4447 = vpop.f32.mrb[0].mxu0
        %v4448 = vadd.f32 0.0, %v4447
        %v4449 = vpop.f32.mrb[0].mxu0
        %4450 = vmatprep.mubr.f32.mxu0 0.0
        %4451 = vmatmul.mubr.f32.gmra.mrb[0].mxu0 %v3057
        %v4452 = vpop.f32.mrb[0].mxu0
        %v4453 = vadd.f32 0.0, %v4452
        %v4454 = vpop.f32.mrb[0].mxu0
        %4455 = vmatprep.mubr.f32.mxu0 0.0
        %4456 = vmatmul.mubr.f32.gmra.mrb[0].mxu0 %v3059
        %v4457 = vpop.f32.mrb[0].mxu0
        %v4458 = vadd.f32 0.0, %v4457
        %v4459 = vpop.f32.mrb[0].mxu0
        %4460 = vmatprep.mubr.f32.mxu0 0.0
        %4461 = vmatmul.mubr.f32.gmra.mrb[0].mxu0 %v3061
        %v4462 = vpop.f32.mrb[0].mxu0
        %v4463 = vadd.f32 0.0, %v4462
        %v4464 = vpop.f32.mrb[0].mxu0
        %4465 = vmatprep.mubr.f32.mxu0 0.0
        %4466 = vmatmul.mubr.f32.gmra.mrb[0].mxu0 %v4167
        %v4467 = vpop.f32.mrb[0].mxu0
        %v4468 = vadd.f32 0.0, %v4467
        %v4469 = vpop.f32.mrb[0].mxu0
        %4470 = vmatprep.mubr.f32.mxu0 0.0
        %4471 = vmatmul.mubr.f32.gmra.mrb[0].mxu0 %v4169
        %v4472 = vpop.f32.mrb[0].mxu0
        %v4473 = vadd.f32 0.0, %v4472
        %v4474 = vpop.f32.mrb[0].mxu0
        %4475 = vmatprep.mubr.f32.mxu0 0.0
        %4476 = vmatmul.mubr.f32.gmra.mrb[0].mxu0 %v4171
        %v4477 = vpop.f32.mrb[0].mxu0
        %v4478 = vadd.f32 0.0, %v4477
        %v4479 = vpop.f32.mrb[0].mxu0
        %4480 = vdwg.mxu0
        %v4481 = vadd.f32 %v4109, %v4243
        %v4482 = vadd.f32 %v4110, %v4248
        %v4483 = vadd.f32 %v4111, %v4253
        %v4484 = vadd.f32 %v4112, %v4258
        %v4485 = vadd.f32 %v4113, %v4263
        %v4486 = vadd.f32 %v4114, %v4268
        %v4487 = vadd.f32 %v4115, %v4273
        %v4488 = vadd.f32 %v4116, %v4278
        %v4489 = vadd.f32 %v4117, %v4283
        %v4490 = vadd.f32 %v4118, %v4288
        %v4491 = vadd.f32 %v4119, %v4293
        %v4492 = vadd.f32 %v4120, %v4298
        %v4493 = vadd.f32 %v4121, %v4303
        %v4494 = vadd.f32 %v4122, %v4308
        %v4495 = vadd.f32 %v4123, %v4313
        %v4496 = vadd.f32 %v4124, %v4318
        %v4497 = vadd.f32 %v4125, %v4323
        %v4498 = vadd.f32 %v4126, %v4328
        %v4499 = vadd.f32 %v4127, %v4333
        %v4500 = vadd.f32 %v4128, %v4338
        %v4501 = vadd.f32 %v4129, %v4343
        %v4502 = vadd.f32 %v4130, %v4348
        %v4503 = vadd.f32 %v4131, %v4353
        %v4504 = vadd.f32 %v4132, %v4358
        %v4505 = vadd.f32 %v4133, %v4363
        %v4506 = vadd.f32 %v4134, %v4368
        %v4507 = vadd.f32 %v4135, %v4373
        %v4508 = vadd.f32 %v4136, %v4378
        %v4509 = vadd.f32 %v4137, %v4383
        %v4510 = vadd.f32 %v4138, %v4388
        %v4511 = vadd.f32 %v4139, %v4393
        %v4512 = vadd.f32 %v4140, %v4398
        %v4513 = vadd.f32 %v4141, %v4403
        %v4514 = vadd.f32 %v4142, %v4408
        %v4515 = vadd.f32 %v4143, %v4413
        %v4516 = vadd.f32 %v4144, %v4418
        %v4517 = vadd.f32 %v4145, %v4423
        %v4518 = vadd.f32 %v4146, %v4428
        %v4519 = vadd.f32 %v4147, %v4433
        %v4520 = vadd.f32 %v4148, %v4438
        %v4521 = vadd.f32 %v4149, %v4443
        %v4522 = vadd.f32 %v4150, %v4448
        %v4523 = vadd.f32 %v4151, %v4453
        %v4524 = vadd.f32 %v4152, %v4458
        %v4525 = vadd.f32 %v4153, %v4463
        %v4526 = vadd.f32 %v4154, %v4468
        %v4527 = vadd.f32 %v4155, %v4473
        %v4528 = vadd.f32 %v4156, %v4478
        %v4529 = vrot.slane %v1119, 2
        %v4530 = vrot.slane %v1120, 2
        %v4531 = vsel %vm2113, %v4529, %v4530
        %v4532 = vrot.slane %v1121, 2
        %v4533 = vsel %vm2113, %v4530, %v4532
        %v4534 = vrot.slane %v1122, 2
        %v4535 = vsel %vm2113, %v4532, %v4534
        %s4536 = scalar_lea.vmem %s5, 32
        %v4537 = vld [vmem:[%s4536] sm:$0xf]
        %v4538 = vsel %vm1303, %v4531, 0
        %v4540 = vsel %vm1303, %v4533, 0
        %v4542 = vsel %vm1303, %v4535, 0
        %v4545 = vsel %vm1400, %v4537, 0
        %4547 = vmatprep.subr.mxu0 0.0
        %4548 = vmatpush1.msra.mxu0 %v4545
        %4549 = vmatprep.subr.mxu0 0.0
        %4550 = vmatpush1.msra.mxu0 0.0
        %4551 = vmatprep.subr.mxu0 0.0
        %4552 = vmatpush1.msra.mxu0 0.0
        %4553 = vmatprep.subr.mxu0 0.0
        %4554 = vmatpush1.msra.mxu0 0.0
        %4555 = vmatprep.subr.mxu0 0.0
        %4556 = vmatpush1.msra.mxu0 0.0
        %4557 = vmatprep.subr.mxu0 0.0
        %4558 = vmatpush1.msra.mxu0 0.0
        %4559 = vmatprep.subr.mxu0 0.0
        %4560 = vmatpush1.msra.mxu0 0.0
        %4561 = vmatprep.subr.mxu0 0.0
        %4562 = vmatpush1.msra.mxu0 0.0
        %4563 = vmatprep.subr.mxu0 0.0
        %4564 = vmatpush1.msra.mxu0 0.0
        %4565 = vmatprep.subr.mxu0 0.0
        %4566 = vmatpush1.msra.mxu0 0.0
        %4567 = vmatprep.subr.mxu0 0.0
        %4568 = vmatpush1.msra.mxu0 0.0
        %4569 = vmatprep.subr.mxu0 0.0
        %4570 = vmatpush1.msra.mxu0 0.0
        %4571 = vmatprep.subr.mxu0 0.0
        %4572 = vmatpush1.msra.mxu0 0.0
        %4573 = vmatprep.subr.mxu0 0.0
        %4574 = vmatpush1.msra.mxu0 0.0
        %4575 = vmatprep.subr.mxu0 0.0
        %4576 = vmatpush1.msra.mxu0 0.0
        %4577 = vmatprep.subr.mxu0 0.0
        %4578 = vmatpush1.msra.mxu0 0.0
        %4579 = vmatprep.subr.mxu0 0.0
        %4580 = vmatpush1.msra.mxu0 0.0
        %4581 = vmatprep.subr.mxu0 0.0
        %4582 = vmatpush1.msra.mxu0 0.0
        %4583 = vmatprep.subr.mxu0 0.0
        %4584 = vmatpush1.msra.mxu0 0.0
        %4585 = vmatprep.subr.mxu0 0.0
        %4586 = vmatpush1.msra.mxu0 0.0
        %4587 = vmatprep.subr.mxu0 0.0
        %4588 = vmatpush1.msra.mxu0 0.0
        %4589 = vmatprep.subr.mxu0 0.0
        %4590 = vmatpush1.msra.mxu0 0.0
        %4591 = vmatprep.subr.mxu0 0.0
        %4592 = vmatpush1.msra.mxu0 0.0
        %4593 = vmatprep.subr.mxu0 0.0
        %4594 = vmatpush1.msra.mxu0 0.0
        %4595 = vmatprep.subr.mxu0 0.0
        %4596 = vmatpush1.msra.mxu0 0.0
        %4597 = vmatprep.subr.mxu0 0.0
        %4598 = vmatpush1.msra.mxu0 0.0
        %4599 = vmatprep.subr.mxu0 0.0
        %4600 = vmatpush1.msra.mxu0 0.0
        %4601 = vmatprep.subr.mxu0 0.0
        %4602 = vmatpush1.msra.mxu0 0.0
        %4603 = vmatprep.subr.mxu0 0.0
        %4604 = vmatpush1.msra.mxu0 0.0
        %4605 = vmatprep.subr.mxu0 0.0
        %4606 = vmatpush1.msra.mxu0 0.0
        %4607 = vmatprep.subr.mxu0 0.0
        %4608 = vmatpush1.msra.mxu0 0.0
        %4609 = vmatprep.subr.mxu0 0.0
        %4610 = vmatpush1.msra.mxu0 0.0
        %4611 = vmatprep.mubr.f32.mxu0 0.0
        %4612 = vmatmul.mubr.f32.gmra.mrb[0].mxu0 %v2240
        %v4613 = vpop.f32.mrb[0].mxu0
        %v4614 = vadd.f32 0.0, %v4613
        %v4615 = vpop.f32.mrb[0].mxu0
        %4616 = vmatprep.mubr.f32.mxu0 0.0
        %4617 = vmatmul.mubr.f32.gmra.mrb[0].mxu0 %v2242
        %v4618 = vpop.f32.mrb[0].mxu0
        %v4619 = vadd.f32 0.0, %v4618
        %v4620 = vpop.f32.mrb[0].mxu0
        %4621 = vmatprep.mubr.f32.mxu0 0.0
        %4622 = vmatmul.mubr.f32.gmra.mrb[0].mxu0 %v2244
        %v4623 = vpop.f32.mrb[0].mxu0
        %v4624 = vadd.f32 0.0, %v4623
        %v4625 = vpop.f32.mrb[0].mxu0
        %4626 = vmatprep.mubr.f32.mxu0 0.0
        %4627 = vmatmul.mubr.f32.gmra.mrb[0].mxu0 %v2246
        %v4628 = vpop.f32.mrb[0].mxu0
        %v4629 = vadd.f32 0.0, %v4628
        %v4630 = vpop.f32.mrb[0].mxu0
        %4631 = vmatprep.mubr.f32.mxu0 0.0
        %4632 = vmatmul.mubr.f32.gmra.mrb[0].mxu0 %v2248
        %v4633 = vpop.f32.mrb[0].mxu0
        %v4634 = vadd.f32 0.0, %v4633
        %v4635 = vpop.f32.mrb[0].mxu0
        %4636 = vmatprep.mubr.f32.mxu0 0.0
        %4637 = vmatmul.mubr.f32.gmra.mrb[0].mxu0 %v2250
        %v4638 = vpop.f32.mrb[0].mxu0
        %v4639 = vadd.f32 0.0, %v4638
        %v4640 = vpop.f32.mrb[0].mxu0
        %4641 = vmatprep.mubr.f32.mxu0 0.0
        %4642 = vmatmul.mubr.f32.gmra.mrb[0].mxu0 %v2252
        %v4643 = vpop.f32.mrb[0].mxu0
        %v4644 = vadd.f32 0.0, %v4643
        %v4645 = vpop.f32.mrb[0].mxu0
        %4646 = vmatprep.mubr.f32.mxu0 0.0
        %4647 = vmatmul.mubr.f32.gmra.mrb[0].mxu0 %v2254
        %v4648 = vpop.f32.mrb[0].mxu0
        %v4649 = vadd.f32 0.0, %v4648
        %v4650 = vpop.f32.mrb[0].mxu0
        %4651 = vmatprep.mubr.f32.mxu0 0.0
        %4652 = vmatmul.mubr.f32.gmra.mrb[0].mxu0 %v2256
        %v4653 = vpop.f32.mrb[0].mxu0
        %v4654 = vadd.f32 0.0, %v4653
        %v4655 = vpop.f32.mrb[0].mxu0
        %4656 = vmatprep.mubr.f32.mxu0 0.0
        %4657 = vmatmul.mubr.f32.gmra.mrb[0].mxu0 %v2258
        %v4658 = vpop.f32.mrb[0].mxu0
        %v4659 = vadd.f32 0.0, %v4658
        %v4660 = vpop.f32.mrb[0].mxu0
        %4661 = vmatprep.mubr.f32.mxu0 0.0
        %4662 = vmatmul.mubr.f32.gmra.mrb[0].mxu0 %v2260
        %v4663 = vpop.f32.mrb[0].mxu0
        %v4664 = vadd.f32 0.0, %v4663
        %v4665 = vpop.f32.mrb[0].mxu0
        %4666 = vmatprep.mubr.f32.mxu0 0.0
        %4667 = vmatmul.mubr.f32.gmra.mrb[0].mxu0 %v2262
        %v4668 = vpop.f32.mrb[0].mxu0
        %v4669 = vadd.f32 0.0, %v4668
        %v4670 = vpop.f32.mrb[0].mxu0
        %4671 = vmatprep.mubr.f32.mxu0 0.0
        %4672 = vmatmul.mubr.f32.gmra.mrb[0].mxu0 %v2264
        %v4673 = vpop.f32.mrb[0].mxu0
        %v4674 = vadd.f32 0.0, %v4673
        %v4675 = vpop.f32.mrb[0].mxu0
        %4676 = vmatprep.mubr.f32.mxu0 0.0
        %4677 = vmatmul.mubr.f32.gmra.mrb[0].mxu0 %v2266
        %v4678 = vpop.f32.mrb[0].mxu0
        %v4679 = vadd.f32 0.0, %v4678
        %v4680 = vpop.f32.mrb[0].mxu0
        %4681 = vmatprep.mubr.f32.mxu0 0.0
        %4682 = vmatmul.mubr.f32.gmra.mrb[0].mxu0 %v2268
        %v4683 = vpop.f32.mrb[0].mxu0
        %v4684 = vadd.f32 0.0, %v4683
        %v4685 = vpop.f32.mrb[0].mxu0
        %4686 = vmatprep.mubr.f32.mxu0 0.0
        %4687 = vmatmul.mubr.f32.gmra.mrb[0].mxu0 %v2270
        %v4688 = vpop.f32.mrb[0].mxu0
        %v4689 = vadd.f32 0.0, %v4688
        %v4690 = vpop.f32.mrb[0].mxu0
        %4691 = vmatprep.mubr.f32.mxu0 0.0
        %4692 = vmatmul.mubr.f32.gmra.mrb[0].mxu0 %v2272
        %v4693 = vpop.f32.mrb[0].mxu0
        %v4694 = vadd.f32 0.0, %v4693
        %v4695 = vpop.f32.mrb[0].mxu0
        %4696 = vmatprep.mubr.f32.mxu0 0.0
        %4697 = vmatmul.mubr.f32.gmra.mrb[0].mxu0 %v2274
        %v4698 = vpop.f32.mrb[0].mxu0
        %v4699 = vadd.f32 0.0, %v4698
        %v4700 = vpop.f32.mrb[0].mxu0
        %4701 = vmatprep.mubr.f32.mxu0 0.0
        %4702 = vmatmul.mubr.f32.gmra.mrb[0].mxu0 %v2276
        %v4703 = vpop.f32.mrb[0].mxu0
        %v4704 = vadd.f32 0.0, %v4703
        %v4705 = vpop.f32.mrb[0].mxu0
        %4706 = vmatprep.mubr.f32.mxu0 0.0
        %4707 = vmatmul.mubr.f32.gmra.mrb[0].mxu0 %v2278
        %v4708 = vpop.f32.mrb[0].mxu0
        %v4709 = vadd.f32 0.0, %v4708
        %v4710 = vpop.f32.mrb[0].mxu0
        %4711 = vmatprep.mubr.f32.mxu0 0.0
        %4712 = vmatmul.mubr.f32.gmra.mrb[0].mxu0 %v2280
        %v4713 = vpop.f32.mrb[0].mxu0
        %v4714 = vadd.f32 0.0, %v4713
        %v4715 = vpop.f32.mrb[0].mxu0
        %4716 = vmatprep.mubr.f32.mxu0 0.0
        %4717 = vmatmul.mubr.f32.gmra.mrb[0].mxu0 %v2282
        %v4718 = vpop.f32.mrb[0].mxu0
        %v4719 = vadd.f32 0.0, %v4718
        %v4720 = vpop.f32.mrb[0].mxu0
        %4721 = vmatprep.mubr.f32.mxu0 0.0
        %4722 = vmatmul.mubr.f32.gmra.mrb[0].mxu0 %v2284
        %v4723 = vpop.f32.mrb[0].mxu0
        %v4724 = vadd.f32 0.0, %v4723
        %v4725 = vpop.f32.mrb[0].mxu0
        %4726 = vmatprep.mubr.f32.mxu0 0.0
        %4727 = vmatmul.mubr.f32.gmra.mrb[0].mxu0 %v2286
        %v4728 = vpop.f32.mrb[0].mxu0
        %v4729 = vadd.f32 0.0, %v4728
        %v4730 = vpop.f32.mrb[0].mxu0
        %4731 = vmatprep.mubr.f32.mxu0 0.0
        %4732 = vmatmul.mubr.f32.gmra.mrb[0].mxu0 %v2288
        %v4733 = vpop.f32.mrb[0].mxu0
        %v4734 = vadd.f32 0.0, %v4733
        %v4735 = vpop.f32.mrb[0].mxu0
        %4736 = vmatprep.mubr.f32.mxu0 0.0
        %4737 = vmatmul.mubr.f32.gmra.mrb[0].mxu0 %v2290
        %v4738 = vpop.f32.mrb[0].mxu0
        %v4739 = vadd.f32 0.0, %v4738
        %v4740 = vpop.f32.mrb[0].mxu0
        %4741 = vmatprep.mubr.f32.mxu0 0.0
        %4742 = vmatmul.mubr.f32.gmra.mrb[0].mxu0 %v2292
        %v4743 = vpop.f32.mrb[0].mxu0
        %v4744 = vadd.f32 0.0, %v4743
        %v4745 = vpop.f32.mrb[0].mxu0
        %4746 = vmatprep.mubr.f32.mxu0 0.0
        %4747 = vmatmul.mubr.f32.gmra.mrb[0].mxu0 %v2294
        %v4748 = vpop.f32.mrb[0].mxu0
        %v4749 = vadd.f32 0.0, %v4748
        %v4750 = vpop.f32.mrb[0].mxu0
        %4751 = vmatprep.mubr.f32.mxu0 0.0
        %4752 = vmatmul.mubr.f32.gmra.mrb[0].mxu0 %v2296
        %v4753 = vpop.f32.mrb[0].mxu0
        %v4754 = vadd.f32 0.0, %v4753
        %v4755 = vpop.f32.mrb[0].mxu0
        %4756 = vmatprep.mubr.f32.mxu0 0.0
        %4757 = vmatmul.mubr.f32.gmra.mrb[0].mxu0 %v2298
        %v4758 = vpop.f32.mrb[0].mxu0
        %v4759 = vadd.f32 0.0, %v4758
        %v4760 = vpop.f32.mrb[0].mxu0
        %4761 = vmatprep.mubr.f32.mxu0 0.0
        %4762 = vmatmul.mubr.f32.gmra.mrb[0].mxu0 %v2300
        %v4763 = vpop.f32.mrb[0].mxu0
        %v4764 = vadd.f32 0.0, %v4763
        %v4765 = vpop.f32.mrb[0].mxu0
        %4766 = vmatprep.mubr.f32.mxu0 0.0
        %4767 = vmatmul.mubr.f32.gmra.mrb[0].mxu0 %v2302
        %v4768 = vpop.f32.mrb[0].mxu0
        %v4769 = vadd.f32 0.0, %v4768
        %v4770 = vpop.f32.mrb[0].mxu0
        %4771 = vmatprep.mubr.f32.mxu0 0.0
        %4772 = vmatmul.mubr.f32.gmra.mrb[0].mxu0 %v2304
        %v4773 = vpop.f32.mrb[0].mxu0
        %v4774 = vadd.f32 0.0, %v4773
        %v4775 = vpop.f32.mrb[0].mxu0
        %4776 = vmatprep.mubr.f32.mxu0 0.0
        %4777 = vmatmul.mubr.f32.gmra.mrb[0].mxu0 %v2306
        %v4778 = vpop.f32.mrb[0].mxu0
        %v4779 = vadd.f32 0.0, %v4778
        %v4780 = vpop.f32.mrb[0].mxu0
        %4781 = vmatprep.mubr.f32.mxu0 0.0
        %4782 = vmatmul.mubr.f32.gmra.mrb[0].mxu0 %v2308
        %v4783 = vpop.f32.mrb[0].mxu0
        %v4784 = vadd.f32 0.0, %v4783
        %v4785 = vpop.f32.mrb[0].mxu0
        %4786 = vmatprep.mubr.f32.mxu0 0.0
        %4787 = vmatmul.mubr.f32.gmra.mrb[0].mxu0 %v2310
        %v4788 = vpop.f32.mrb[0].mxu0
        %v4789 = vadd.f32 0.0, %v4788
        %v4790 = vpop.f32.mrb[0].mxu0
        %4791 = vmatprep.mubr.f32.mxu0 0.0
        %4792 = vmatmul.mubr.f32.gmra.mrb[0].mxu0 %v2312
        %v4793 = vpop.f32.mrb[0].mxu0
        %v4794 = vadd.f32 0.0, %v4793
        %v4795 = vpop.f32.mrb[0].mxu0
        %4796 = vmatprep.mubr.f32.mxu0 0.0
        %4797 = vmatmul.mubr.f32.gmra.mrb[0].mxu0 %v2314
        %v4798 = vpop.f32.mrb[0].mxu0
        %v4799 = vadd.f32 0.0, %v4798
        %v4800 = vpop.f32.mrb[0].mxu0
        %4801 = vmatprep.mubr.f32.mxu0 0.0
        %4802 = vmatmul.mubr.f32.gmra.mrb[0].mxu0 %v2316
        %v4803 = vpop.f32.mrb[0].mxu0
        %v4804 = vadd.f32 0.0, %v4803
        %v4805 = vpop.f32.mrb[0].mxu0
        %4806 = vmatprep.mubr.f32.mxu0 0.0
        %4807 = vmatmul.mubr.f32.gmra.mrb[0].mxu0 %v2318
        %v4808 = vpop.f32.mrb[0].mxu0
        %v4809 = vadd.f32 0.0, %v4808
        %v4810 = vpop.f32.mrb[0].mxu0
        %4811 = vmatprep.mubr.f32.mxu0 0.0
        %4812 = vmatmul.mubr.f32.gmra.mrb[0].mxu0 %v2320
        %v4813 = vpop.f32.mrb[0].mxu0
        %v4814 = vadd.f32 0.0, %v4813
        %v4815 = vpop.f32.mrb[0].mxu0
        %4816 = vmatprep.mubr.f32.mxu0 0.0
        %4817 = vmatmul.mubr.f32.gmra.mrb[0].mxu0 %v2322
        %v4818 = vpop.f32.mrb[0].mxu0
        %v4819 = vadd.f32 0.0, %v4818
        %v4820 = vpop.f32.mrb[0].mxu0
        %4821 = vmatprep.mubr.f32.mxu0 0.0
        %4822 = vmatmul.mubr.f32.gmra.mrb[0].mxu0 %v3428
        %v4823 = vpop.f32.mrb[0].mxu0
        %v4824 = vadd.f32 0.0, %v4823
        %v4825 = vpop.f32.mrb[0].mxu0
        %4826 = vmatprep.mubr.f32.mxu0 0.0
        %4827 = vmatmul.mubr.f32.gmra.mrb[0].mxu0 %v3430
        %v4828 = vpop.f32.mrb[0].mxu0
        %v4829 = vadd.f32 0.0, %v4828
        %v4830 = vpop.f32.mrb[0].mxu0
        %4831 = vmatprep.mubr.f32.mxu0 0.0
        %4832 = vmatmul.mubr.f32.gmra.mrb[0].mxu0 %v3432
        %v4833 = vpop.f32.mrb[0].mxu0
        %v4834 = vadd.f32 0.0, %v4833
        %v4835 = vpop.f32.mrb[0].mxu0
        %4836 = vmatprep.mubr.f32.mxu0 0.0
        %4837 = vmatmul.mubr.f32.gmra.mrb[0].mxu0 %v4538
        %v4838 = vpop.f32.mrb[0].mxu0
        %v4839 = vadd.f32 0.0, %v4838
        %v4840 = vpop.f32.mrb[0].mxu0
        %4841 = vmatprep.mubr.f32.mxu0 0.0
        %4842 = vmatmul.mubr.f32.gmra.mrb[0].mxu0 %v4540
        %v4843 = vpop.f32.mrb[0].mxu0
        %v4844 = vadd.f32 0.0, %v4843
        %v4845 = vpop.f32.mrb[0].mxu0
        %4846 = vmatprep.mubr.f32.mxu0 0.0
        %4847 = vmatmul.mubr.f32.gmra.mrb[0].mxu0 %v4542
        %v4848 = vpop.f32.mrb[0].mxu0
        %v4849 = vadd.f32 0.0, %v4848
        %v4850 = vpop.f32.mrb[0].mxu0
        %4851 = vdwg.mxu0
        %v4852 = vadd.f32 %v4481, %v4614
        %v4853 = vadd.f32 %v4482, %v4619
        %v4854 = vadd.f32 %v4483, %v4624
        %v4855 = vadd.f32 %v4484, %v4629
        %v4856 = vadd.f32 %v4485, %v4634
        %v4857 = vadd.f32 %v4486, %v4639
        %v4858 = vadd.f32 %v4487, %v4644
        %v4859 = vadd.f32 %v4488, %v4649
        %v4860 = vadd.f32 %v4489, %v4654
        %v4861 = vadd.f32 %v4490, %v4659
        %v4862 = vadd.f32 %v4491, %v4664
        %v4863 = vadd.f32 %v4492, %v4669
        %v4864 = vadd.f32 %v4493, %v4674
        %v4865 = vadd.f32 %v4494, %v4679
        %v4866 = vadd.f32 %v4495, %v4684
        %v4867 = vadd.f32 %v4496, %v4689
        %v4868 = vadd.f32 %v4497, %v4694
        %v4869 = vadd.f32 %v4498, %v4699
        %v4870 = vadd.f32 %v4499, %v4704
        %v4871 = vadd.f32 %v4500, %v4709
        %v4872 = vadd.f32 %v4501, %v4714
        %v4873 = vadd.f32 %v4502, %v4719
        %v4874 = vadd.f32 %v4503, %v4724
        %v4875 = vadd.f32 %v4504, %v4729
        %v4876 = vadd.f32 %v4505, %v4734
        %v4877 = vadd.f32 %v4506, %v4739
        %v4878 = vadd.f32 %v4507, %v4744
        %v4879 = vadd.f32 %v4508, %v4749
        %v4880 = vadd.f32 %v4509, %v4754
        %v4881 = vadd.f32 %v4510, %v4759
        %v4882 = vadd.f32 %v4511, %v4764
        %v4883 = vadd.f32 %v4512, %v4769
        %v4884 = vadd.f32 %v4513, %v4774
        %v4885 = vadd.f32 %v4514, %v4779
        %v4886 = vadd.f32 %v4515, %v4784
        %v4887 = vadd.f32 %v4516, %v4789
        %v4888 = vadd.f32 %v4517, %v4794
        %v4889 = vadd.f32 %v4518, %v4799
        %v4890 = vadd.f32 %v4519, %v4804
        %v4891 = vadd.f32 %v4520, %v4809
        %v4892 = vadd.f32 %v4521, %v4814
        %v4893 = vadd.f32 %v4522, %v4819
        %v4894 = vadd.f32 %v4523, %v4824
        %v4895 = vadd.f32 %v4524, %v4829
        %v4896 = vadd.f32 %v4525, %v4834
        %v4897 = vadd.f32 %v4526, %v4839
        %v4898 = vadd.f32 %v4527, %v4844
        %v4899 = vadd.f32 %v4528, %v4849
        %v4900 = vld [vmem:[%s6] sm:$0x1]
        %v4902 = vlaneseq
        %v4903 = vshrl.u32 %v4902, 7
        %v4904 = vsub.s32 0, %v4903
        %v4905 = vrot.slane %v4900, %v4904
        %v4907 = vadd.f32 %v4852, %v4905
        %v4908 = vadd.f32 %v4853, %v4905
        %v4909 = vadd.f32 %v4854, %v4905
        %v4910 = vadd.f32 %v4855, %v4905
        %v4911 = vadd.f32 %v4856, %v4905
        %v4912 = vadd.f32 %v4857, %v4905
        %v4913 = vadd.f32 %v4858, %v4905
        %v4914 = vadd.f32 %v4859, %v4905
        %v4915 = vadd.f32 %v4860, %v4905
        %v4916 = vadd.f32 %v4861, %v4905
        %v4917 = vadd.f32 %v4862, %v4905
        %v4918 = vadd.f32 %v4863, %v4905
        %v4919 = vadd.f32 %v4864, %v4905
        %v4920 = vadd.f32 %v4865, %v4905
        %v4921 = vadd.f32 %v4866, %v4905
        %v4922 = vadd.f32 %v4867, %v4905
        %v4923 = vadd.f32 %v4868, %v4905
        %v4924 = vadd.f32 %v4869, %v4905
        %v4925 = vadd.f32 %v4870, %v4905
        %v4926 = vadd.f32 %v4871, %v4905
        %v4927 = vadd.f32 %v4872, %v4905
        %v4928 = vadd.f32 %v4873, %v4905
        %v4929 = vadd.f32 %v4874, %v4905
        %v4930 = vadd.f32 %v4875, %v4905
        %v4931 = vadd.f32 %v4876, %v4905
        %v4932 = vadd.f32 %v4877, %v4905
        %v4933 = vadd.f32 %v4878, %v4905
        %v4934 = vadd.f32 %v4879, %v4905
        %v4935 = vadd.f32 %v4880, %v4905
        %v4936 = vadd.f32 %v4881, %v4905
        %v4937 = vadd.f32 %v4882, %v4905
        %v4938 = vadd.f32 %v4883, %v4905
        %v4939 = vadd.f32 %v4884, %v4905
        %v4940 = vadd.f32 %v4885, %v4905
        %v4941 = vadd.f32 %v4886, %v4905
        %v4942 = vadd.f32 %v4887, %v4905
        %v4943 = vadd.f32 %v4888, %v4905
        %v4944 = vadd.f32 %v4889, %v4905
        %v4945 = vadd.f32 %v4890, %v4905
        %v4946 = vadd.f32 %v4891, %v4905
        %v4947 = vadd.f32 %v4892, %v4905
        %v4948 = vadd.f32 %v4893, %v4905
        %v4949 = vadd.f32 %v4894, %v4905
        %v4950 = vadd.f32 %v4895, %v4905
        %v4951 = vadd.f32 %v4896, %v4905
        %v4952 = vadd.f32 %v4897, %v4905
        %v4953 = vadd.f32 %v4898, %v4905
        %v4954 = vadd.f32 %v4899, %v4905
        %vm4955 = vcmp.ge.s32.totalorder %v753, 1
        %vm4956 = vcmp.ge.s32.totalorder %v754, 1
        %vm4957 = vcmp.ge.s32.totalorder %v755, 1
        %vm4958 = vcmp.le.s32.totalorder %v753, 16
        %vm4959 = vcmp.le.s32.totalorder %v754, 16
        %vm4960 = vcmp.le.s32.totalorder %v755, 16
        %vm4961 = vmand %vm4955, %vm4958
        %vm4962 = vmand %vm4956, %vm4959
        %vm4963 = vmand %vm4957, %vm4960
        %v4964 = vsel %vm4961, 1, 0
        %v4965 = vsel %vm4962, 1, 0
        %v4966 = vsel %vm4963, 1, 0
        %v4967 = vcvt.s32.f32 %v4964
        %v4968 = vcvt.s32.f32 %v4965
        %v4969 = vcvt.s32.f32 %v4966
        %v4970 = vmul.f32 %v4907, %v4967
        %v4971 = vmul.f32 %v4908, %v4968
        %v4972 = vmul.f32 %v4909, %v4969
        %v4973 = vmul.f32 %v4910, %v4967
        %v4974 = vmul.f32 %v4911, %v4968
        %v4975 = vmul.f32 %v4912, %v4969
        %v4976 = vmul.f32 %v4913, %v4967
        %v4977 = vmul.f32 %v4914, %v4968
        %v4978 = vmul.f32 %v4915, %v4969
        %v4979 = vmul.f32 %v4916, %v4967
        %v4980 = vmul.f32 %v4917, %v4968
        %v4981 = vmul.f32 %v4918, %v4969
        %v4982 = vmul.f32 %v4919, %v4967
        %v4983 = vmul.f32 %v4920, %v4968
        %v4984 = vmul.f32 %v4921, %v4969
        %v4985 = vmul.f32 %v4922, %v4967
        %v4986 = vmul.f32 %v4923, %v4968
        %v4987 = vmul.f32 %v4924, %v4969
        %v4988 = vmul.f32 %v4925, %v4967
        %v4989 = vmul.f32 %v4926, %v4968
        %v4990 = vmul.f32 %v4927, %v4969
        %v4991 = vmul.f32 %v4928, %v4967
        %v4992 = vmul.f32 %v4929, %v4968
        %v4993 = vmul.f32 %v4930, %v4969
        %v4994 = vmul.f32 %v4931, %v4967
        %v4995 = vmul.f32 %v4932, %v4968
        %v4996 = vmul.f32 %v4933, %v4969
        %v4997 = vmul.f32 %v4934, %v4967
        %v4998 = vmul.f32 %v4935, %v4968
        %v4999 = vmul.f32 %v4936, %v4969
        %v5000 = vmul.f32 %v4937, %v4967
        %v5001 = vmul.f32 %v4938, %v4968
        %v5002 = vmul.f32 %v4939, %v4969
        %v5003 = vmul.f32 %v4940, %v4967
        %v5004 = vmul.f32 %v4941, %v4968
        %v5005 = vmul.f32 %v4942, %v4969
        %v5006 = vmul.f32 %v4943, %v4967
        %v5007 = vmul.f32 %v4944, %v4968
        %v5008 = vmul.f32 %v4945, %v4969
        %v5009 = vmul.f32 %v4946, %v4967
        %v5010 = vmul.f32 %v4947, %v4968
        %v5011 = vmul.f32 %v4948, %v4969
        %v5012 = vmul.f32 %v4949, %v4967
        %v5013 = vmul.f32 %v4950, %v4968
        %v5014 = vmul.f32 %v4951, %v4969
        %v5015 = vmul.f32 %v4952, %v4967
        %v5016 = vmul.f32 %v4953, %v4968
        %v5017 = vmul.f32 %v4954, %v4969
        %vm5018 = vcmask 64512
        %v5019 = vsel %vm5018, %v4970, 0.0
        %v5020 = vsel %vm5018, %v4971, 0.0
        %v5021 = vadd.f32 %v5019, %v5020
        %v5022 = vsel %vm5018, %v4972, 0.0
        %v5023 = vadd.f32 %v5021, %v5022
        %v5024 = vsel %vm5018, %v4973, 0.0
        %v5025 = vadd.f32 %v5023, %v5024
        %v5026 = vsel %vm5018, %v4974, 0.0
        %v5027 = vadd.f32 %v5025, %v5026
        %v5028 = vsel %vm5018, %v4975, 0.0
        %v5029 = vadd.f32 %v5027, %v5028
        %v5030 = vsel %vm5018, %v4976, 0.0
        %v5031 = vadd.f32 %v5029, %v5030
        %v5032 = vsel %vm5018, %v4977, 0.0
        %v5033 = vadd.f32 %v5031, %v5032
        %v5034 = vsel %vm5018, %v4978, 0.0
        %v5035 = vadd.f32 %v5033, %v5034
        %v5036 = vsel %vm5018, %v4979, 0.0
        %v5037 = vadd.f32 %v5035, %v5036
        %v5038 = vsel %vm5018, %v4980, 0.0
        %v5039 = vadd.f32 %v5037, %v5038
        %v5040 = vsel %vm5018, %v4981, 0.0
        %v5041 = vadd.f32 %v5039, %v5040
        %v5042 = vsel %vm5018, %v4982, 0.0
        %v5043 = vadd.f32 %v5041, %v5042
        %v5044 = vsel %vm5018, %v4983, 0.0
        %v5045 = vadd.f32 %v5043, %v5044
        %v5046 = vsel %vm5018, %v4984, 0.0
        %v5047 = vadd.f32 %v5045, %v5046
        %v5048 = vsel %vm5018, %v4985, 0.0
        %v5049 = vadd.f32 %v5047, %v5048
        %v5050 = vsel %vm5018, %v4986, 0.0
        %v5051 = vadd.f32 %v5049, %v5050
        %v5052 = vsel %vm5018, %v4987, 0.0
        %v5053 = vadd.f32 %v5051, %v5052
        %v5054 = vsel %vm5018, %v4988, 0.0
        %v5055 = vadd.f32 %v5053, %v5054
        %v5056 = vsel %vm5018, %v4989, 0.0
        %v5057 = vadd.f32 %v5055, %v5056
        %v5058 = vsel %vm5018, %v4990, 0.0
        %v5059 = vadd.f32 %v5057, %v5058
        %v5060 = vsel %vm5018, %v4991, 0.0
        %v5061 = vadd.f32 %v5059, %v5060
        %v5062 = vsel %vm5018, %v4992, 0.0
        %v5063 = vadd.f32 %v5061, %v5062
        %v5064 = vsel %vm5018, %v4993, 0.0
        %v5065 = vadd.f32 %v5063, %v5064
        %v5066 = vsel %vm5018, %v4994, 0.0
        %v5067 = vadd.f32 %v5065, %v5066
        %v5068 = vsel %vm5018, %v4995, 0.0
        %v5069 = vadd.f32 %v5067, %v5068
        %v5070 = vsel %vm5018, %v4996, 0.0
        %v5071 = vadd.f32 %v5069, %v5070
        %v5072 = vsel %vm5018, %v4997, 0.0
        %v5073 = vadd.f32 %v5071, %v5072
        %v5074 = vsel %vm5018, %v4998, 0.0
        %v5075 = vadd.f32 %v5073, %v5074
        %v5076 = vsel %vm5018, %v4999, 0.0
        %v5077 = vadd.f32 %v5075, %v5076
        %v5078 = vsel %vm5018, %v5000, 0.0
        %v5079 = vadd.f32 %v5077, %v5078
        %v5080 = vsel %vm5018, %v5001, 0.0
        %v5081 = vadd.f32 %v5079, %v5080
        %v5082 = vsel %vm5018, %v5002, 0.0
        %v5083 = vadd.f32 %v5081, %v5082
        %v5084 = vsel %vm5018, %v5003, 0.0
        %v5085 = vadd.f32 %v5083, %v5084
        %v5086 = vsel %vm5018, %v5004, 0.0
        %v5087 = vadd.f32 %v5085, %v5086
        %v5088 = vsel %vm5018, %v5005, 0.0
        %v5089 = vadd.f32 %v5087, %v5088
        %v5090 = vsel %vm5018, %v5006, 0.0
        %v5091 = vadd.f32 %v5089, %v5090
        %v5092 = vsel %vm5018, %v5007, 0.0
        %v5093 = vadd.f32 %v5091, %v5092
        %v5094 = vsel %vm5018, %v5008, 0.0
        %v5095 = vadd.f32 %v5093, %v5094
        %v5096 = vsel %vm5018, %v5009, 0.0
        %v5097 = vadd.f32 %v5095, %v5096
        %v5098 = vsel %vm5018, %v5010, 0.0
        %v5099 = vadd.f32 %v5097, %v5098
        %v5100 = vsel %vm5018, %v5011, 0.0
        %v5101 = vadd.f32 %v5099, %v5100
        %v5102 = vsel %vm5018, %v5012, 0.0
        %v5103 = vadd.f32 %v5101, %v5102
        %v5104 = vsel %vm5018, %v5013, 0.0
        %v5105 = vadd.f32 %v5103, %v5104
        %v5106 = vsel %vm5018, %v5014, 0.0
        %v5107 = vadd.f32 %v5105, %v5106
        %v5108 = vsel %vm5018, %v5015, 0.0
        %v5109 = vadd.f32 %v5107, %v5108
        %v5110 = vsel %vm5018, %v5016, 0.0
        %v5111 = vadd.f32 %v5109, %v5110
        %v5112 = vsel %vm5018, %v5017, 0.0
        %v5113 = vadd.f32 %v5111, %v5112
        %v5114 = vrot.slane %v5113, 4
        %v5115 = vadd.f32 %v5113, %v5114
        %v5116 = vrot.slane %v5115, 2
        %v5117 = vadd.f32 %v5115, %v5116
        %v5118 = vrot.slane %v5117, 1
        %v5119 = vadd.f32 %v5117, %v5118
        %vm5120 = vcmask 57344
        %5121 = vst.msk [vmem:[%s578] sm:$0x1] %vm5120, %v5119
        %v5122 = vmul.f32 %v4970, %v4970
        %v5123 = vmul.f32 %v4971, %v4971
        %v5124 = vmul.f32 %v4972, %v4972
        %v5125 = vmul.f32 %v4973, %v4973
        %v5126 = vmul.f32 %v4974, %v4974
        %v5127 = vmul.f32 %v4975, %v4975
        %v5128 = vmul.f32 %v4976, %v4976
        %v5129 = vmul.f32 %v4977, %v4977
        %v5130 = vmul.f32 %v4978, %v4978
        %v5131 = vmul.f32 %v4979, %v4979
        %v5132 = vmul.f32 %v4980, %v4980
        %v5133 = vmul.f32 %v4981, %v4981
        %v5134 = vmul.f32 %v4982, %v4982
        %v5135 = vmul.f32 %v4983, %v4983
        %v5136 = vmul.f32 %v4984, %v4984
        %v5137 = vmul.f32 %v4985, %v4985
        %v5138 = vmul.f32 %v4986, %v4986
        %v5139 = vmul.f32 %v4987, %v4987
        %v5140 = vmul.f32 %v4988, %v4988
        %v5141 = vmul.f32 %v4989, %v4989
        %v5142 = vmul.f32 %v4990, %v4990
        %v5143 = vmul.f32 %v4991, %v4991
        %v5144 = vmul.f32 %v4992, %v4992
        %v5145 = vmul.f32 %v4993, %v4993
        %v5146 = vmul.f32 %v4994, %v4994
        %v5147 = vmul.f32 %v4995, %v4995
        %v5148 = vmul.f32 %v4996, %v4996
        %v5149 = vmul.f32 %v4997, %v4997
        %v5150 = vmul.f32 %v4998, %v4998
        %v5151 = vmul.f32 %v4999, %v4999
        %v5152 = vmul.f32 %v5000, %v5000
        %v5153 = vmul.f32 %v5001, %v5001
        %v5154 = vmul.f32 %v5002, %v5002
        %v5155 = vmul.f32 %v5003, %v5003
        %v5156 = vmul.f32 %v5004, %v5004
        %v5157 = vmul.f32 %v5005, %v5005
        %v5158 = vmul.f32 %v5006, %v5006
        %v5159 = vmul.f32 %v5007, %v5007
        %v5160 = vmul.f32 %v5008, %v5008
        %v5161 = vmul.f32 %v5009, %v5009
        %v5162 = vmul.f32 %v5010, %v5010
        %v5163 = vmul.f32 %v5011, %v5011
        %v5164 = vmul.f32 %v5012, %v5012
        %v5165 = vmul.f32 %v5013, %v5013
        %v5166 = vmul.f32 %v5014, %v5014
        %v5167 = vmul.f32 %v5015, %v5015
        %v5168 = vmul.f32 %v5016, %v5016
        %v5169 = vmul.f32 %v5017, %v5017
        %v5170 = vsel %vm5018, %v5122, 0.0
        %v5171 = vsel %vm5018, %v5123, 0.0
        %v5172 = vadd.f32 %v5170, %v5171
        %v5173 = vsel %vm5018, %v5124, 0.0
        %v5174 = vadd.f32 %v5172, %v5173
        %v5175 = vsel %vm5018, %v5125, 0.0
        %v5176 = vadd.f32 %v5174, %v5175
        %v5177 = vsel %vm5018, %v5126, 0.0
        %v5178 = vadd.f32 %v5176, %v5177
        %v5179 = vsel %vm5018, %v5127, 0.0
        %v5180 = vadd.f32 %v5178, %v5179
        %v5181 = vsel %vm5018, %v5128, 0.0
        %v5182 = vadd.f32 %v5180, %v5181
        %v5183 = vsel %vm5018, %v5129, 0.0
        %v5184 = vadd.f32 %v5182, %v5183
        %v5185 = vsel %vm5018, %v5130, 0.0
        %v5186 = vadd.f32 %v5184, %v5185
        %v5187 = vsel %vm5018, %v5131, 0.0
        %v5188 = vadd.f32 %v5186, %v5187
        %v5189 = vsel %vm5018, %v5132, 0.0
        %v5190 = vadd.f32 %v5188, %v5189
        %v5191 = vsel %vm5018, %v5133, 0.0
        %v5192 = vadd.f32 %v5190, %v5191
        %v5193 = vsel %vm5018, %v5134, 0.0
        %v5194 = vadd.f32 %v5192, %v5193
        %v5195 = vsel %vm5018, %v5135, 0.0
        %v5196 = vadd.f32 %v5194, %v5195
        %v5197 = vsel %vm5018, %v5136, 0.0
        %v5198 = vadd.f32 %v5196, %v5197
        %v5199 = vsel %vm5018, %v5137, 0.0
        %v5200 = vadd.f32 %v5198, %v5199
        %v5201 = vsel %vm5018, %v5138, 0.0
        %v5202 = vadd.f32 %v5200, %v5201
        %v5203 = vsel %vm5018, %v5139, 0.0
        %v5204 = vadd.f32 %v5202, %v5203
        %v5205 = vsel %vm5018, %v5140, 0.0
        %v5206 = vadd.f32 %v5204, %v5205
        %v5207 = vsel %vm5018, %v5141, 0.0
        %v5208 = vadd.f32 %v5206, %v5207
        %v5209 = vsel %vm5018, %v5142, 0.0
        %v5210 = vadd.f32 %v5208, %v5209
        %v5211 = vsel %vm5018, %v5143, 0.0
        %v5212 = vadd.f32 %v5210, %v5211
        %v5213 = vsel %vm5018, %v5144, 0.0
        %v5214 = vadd.f32 %v5212, %v5213
        %v5215 = vsel %vm5018, %v5145, 0.0
        %v5216 = vadd.f32 %v5214, %v5215
        %v5217 = vsel %vm5018, %v5146, 0.0
        %v5218 = vadd.f32 %v5216, %v5217
        %v5219 = vsel %vm5018, %v5147, 0.0
        %v5220 = vadd.f32 %v5218, %v5219
        %v5221 = vsel %vm5018, %v5148, 0.0
        %v5222 = vadd.f32 %v5220, %v5221
        %v5223 = vsel %vm5018, %v5149, 0.0
        %v5224 = vadd.f32 %v5222, %v5223
        %v5225 = vsel %vm5018, %v5150, 0.0
        %v5226 = vadd.f32 %v5224, %v5225
        %v5227 = vsel %vm5018, %v5151, 0.0
        %v5228 = vadd.f32 %v5226, %v5227
        %v5229 = vsel %vm5018, %v5152, 0.0
        %v5230 = vadd.f32 %v5228, %v5229
        %v5231 = vsel %vm5018, %v5153, 0.0
        %v5232 = vadd.f32 %v5230, %v5231
        %v5233 = vsel %vm5018, %v5154, 0.0
        %v5234 = vadd.f32 %v5232, %v5233
        %v5235 = vsel %vm5018, %v5155, 0.0
        %v5236 = vadd.f32 %v5234, %v5235
        %v5237 = vsel %vm5018, %v5156, 0.0
        %v5238 = vadd.f32 %v5236, %v5237
        %v5239 = vsel %vm5018, %v5157, 0.0
        %v5240 = vadd.f32 %v5238, %v5239
        %v5241 = vsel %vm5018, %v5158, 0.0
        %v5242 = vadd.f32 %v5240, %v5241
        %v5243 = vsel %vm5018, %v5159, 0.0
        %v5244 = vadd.f32 %v5242, %v5243
        %v5245 = vsel %vm5018, %v5160, 0.0
        %v5246 = vadd.f32 %v5244, %v5245
        %v5247 = vsel %vm5018, %v5161, 0.0
        %v5248 = vadd.f32 %v5246, %v5247
        %v5249 = vsel %vm5018, %v5162, 0.0
        %v5250 = vadd.f32 %v5248, %v5249
        %v5251 = vsel %vm5018, %v5163, 0.0
        %v5252 = vadd.f32 %v5250, %v5251
        %v5253 = vsel %vm5018, %v5164, 0.0
        %v5254 = vadd.f32 %v5252, %v5253
        %v5255 = vsel %vm5018, %v5165, 0.0
        %v5256 = vadd.f32 %v5254, %v5255
        %v5257 = vsel %vm5018, %v5166, 0.0
        %v5258 = vadd.f32 %v5256, %v5257
        %v5259 = vsel %vm5018, %v5167, 0.0
        %v5260 = vadd.f32 %v5258, %v5259
        %v5261 = vsel %vm5018, %v5168, 0.0
        %v5262 = vadd.f32 %v5260, %v5261
        %v5263 = vsel %vm5018, %v5169, 0.0
        %v5264 = vadd.f32 %v5262, %v5263
        %v5265 = vrot.slane %v5264, 4
        %v5266 = vadd.f32 %v5264, %v5265
        %v5267 = vrot.slane %v5266, 2
        %v5268 = vadd.f32 %v5266, %v5267
        %v5269 = vrot.slane %v5268, 1
        %v5270 = vadd.f32 %v5268, %v5269
        %5271 = vst.msk [vmem:[%s584] sm:$0x1] %vm5120, %v5270
        %5272 = vst.msk [vmem:[%s663] sm:$0xff] %vm5018, %v4970
        %5273 = vst.msk [vmem:[%s663 + $0x8] sm:$0xff] %vm5018, %v4971
        %5274 = vst.msk [vmem:[%s663 + $0x10] sm:$0xff] %vm5018, %v4972
        %5275 = vst.msk [vmem:[%s663 + $0x18] sm:$0xff] %vm5018, %v4973
        %5276 = vst.msk [vmem:[%s663 + $0x20] sm:$0xff] %vm5018, %v4974
        %5277 = vst.msk [vmem:[%s663 + $0x28] sm:$0xff] %vm5018, %v4975
        %5278 = vst.msk [vmem:[%s663 + $0x30] sm:$0xff] %vm5018, %v4976
        %5279 = vst.msk [vmem:[%s663 + $0x38] sm:$0xff] %vm5018, %v4977
        %5280 = vst.msk [vmem:[%s663 + $0x40] sm:$0xff] %vm5018, %v4978
        %5281 = vst.msk [vmem:[%s663 + $0x48] sm:$0xff] %vm5018, %v4979
        %5282 = vst.msk [vmem:[%s663 + $0x50] sm:$0xff] %vm5018, %v4980
        %5283 = vst.msk [vmem:[%s663 + $0x58] sm:$0xff] %vm5018, %v4981
        %5284 = vst.msk [vmem:[%s663 + $0x60] sm:$0xff] %vm5018, %v4982
        %5285 = vst.msk [vmem:[%s663 + $0x68] sm:$0xff] %vm5018, %v4983
        %5286 = vst.msk [vmem:[%s663 + $0x70] sm:$0xff] %vm5018, %v4984
        %5287 = vst.msk [vmem:[%s663 + $0x78] sm:$0xff] %vm5018, %v4985
        %5288 = vst.msk [vmem:[%s663 + $0x80] sm:$0xff] %vm5018, %v4986
        %5289 = vst.msk [vmem:[%s663 + $0x88] sm:$0xff] %vm5018, %v4987
        %5290 = vst.msk [vmem:[%s663 + $0x90] sm:$0xff] %vm5018, %v4988
        %5291 = vst.msk [vmem:[%s663 + $0x98] sm:$0xff] %vm5018, %v4989
        %5292 = vst.msk [vmem:[%s663 + $0xa0] sm:$0xff] %vm5018, %v4990
        %5293 = vst.msk [vmem:[%s663 + $0xa8] sm:$0xff] %vm5018, %v4991
        %5294 = vst.msk [vmem:[%s663 + $0xb0] sm:$0xff] %vm5018, %v4992
        %5295 = vst.msk [vmem:[%s663 + $0xb8] sm:$0xff] %vm5018, %v4993
        %5296 = vst.msk [vmem:[%s663 + $0xc0] sm:$0xff] %vm5018, %v4994
        %5297 = vst.msk [vmem:[%s663 + $0xc8] sm:$0xff] %vm5018, %v4995
        %5298 = vst.msk [vmem:[%s663 + $0xd0] sm:$0xff] %vm5018, %v4996
        %5299 = vst.msk [vmem:[%s663 + $0xd8] sm:$0xff] %vm5018, %v4997
        %5300 = vst.msk [vmem:[%s663 + $0xe0] sm:$0xff] %vm5018, %v4998
        %5301 = vst.msk [vmem:[%s663 + $0xe8] sm:$0xff] %vm5018, %v4999
        %5302 = vst.msk [vmem:[%s663 + $0xf0] sm:$0xff] %vm5018, %v5000
        %5303 = vst.msk [vmem:[%s663 + $0xf8] sm:$0xff] %vm5018, %v5001
        %5304 = vst.msk [vmem:[%s663 + $0x100] sm:$0xff] %vm5018, %v5002
        %5305 = vst.msk [vmem:[%s663 + $0x108] sm:$0xff] %vm5018, %v5003
        %5306 = vst.msk [vmem:[%s663 + $0x110] sm:$0xff] %vm5018, %v5004
        %5307 = vst.msk [vmem:[%s663 + $0x118] sm:$0xff] %vm5018, %v5005
        %5308 = vst.msk [vmem:[%s663 + $0x120] sm:$0xff] %vm5018, %v5006
        %5309 = vst.msk [vmem:[%s663 + $0x128] sm:$0xff] %vm5018, %v5007
        %5310 = vst.msk [vmem:[%s663 + $0x130] sm:$0xff] %vm5018, %v5008
        %5311 = vst.msk [vmem:[%s663 + $0x138] sm:$0xff] %vm5018, %v5009
        %5312 = vst.msk [vmem:[%s663 + $0x140] sm:$0xff] %vm5018, %v5010
        %5313 = vst.msk [vmem:[%s663 + $0x148] sm:$0xff] %vm5018, %v5011
        %5314 = vst.msk [vmem:[%s663 + $0x150] sm:$0xff] %vm5018, %v5012
        %5315 = vst.msk [vmem:[%s663 + $0x158] sm:$0xff] %vm5018, %v5013
        %5316 = vst.msk [vmem:[%s663 + $0x160] sm:$0xff] %vm5018, %v5014
        %5317 = vst.msk [vmem:[%s663 + $0x168] sm:$0xff] %vm5018, %v5015
        %5318 = vst.msk [vmem:[%s663 + $0x170] sm:$0xff] %vm5018, %v5016
        %5319 = vst.msk [vmem:[%s663 + $0x178] sm:$0xff] %vm5018, %v5017
        %v5320 = vld [vmem:[%s635] sm:$0xff]
        %v5321 = vld [vmem:[%s635 + $0x8] sm:$0xff]
        %v5322 = vld [vmem:[%s635 + $0x10] sm:$0xff]
        %v5323 = vld [vmem:[%s635 + $0x20] sm:$0xff]
        %v5324 = vld [vmem:[%s635 + $0x28] sm:$0xff]
        %v5325 = vld [vmem:[%s635 + $0x30] sm:$0xff]
        %v5326 = vld [vmem:[%s635 + $0x40] sm:$0xff]
        %v5327 = vld [vmem:[%s635 + $0x48] sm:$0xff]
        %v5328 = vld [vmem:[%s635 + $0x50] sm:$0xff]
        %v5329 = vld [vmem:[%s635 + $0x60] sm:$0xff]
        %v5330 = vld [vmem:[%s635 + $0x68] sm:$0xff]
        %v5331 = vld [vmem:[%s635 + $0x70] sm:$0xff]
        %v5332 = vld [vmem:[%s635 + $0x80] sm:$0xff]
        %v5333 = vld [vmem:[%s635 + $0x88] sm:$0xff]
        %v5334 = vld [vmem:[%s635 + $0x90] sm:$0xff]
        %v5335 = vld [vmem:[%s635 + $0xa0] sm:$0xff]
        %v5336 = vld [vmem:[%s635 + $0xa8] sm:$0xff]
        %v5337 = vld [vmem:[%s635 + $0xb0] sm:$0xff]
        %v5338 = vld [vmem:[%s635 + $0xc0] sm:$0xff]
        %v5339 = vld [vmem:[%s635 + $0xc8] sm:$0xff]
        %v5340 = vld [vmem:[%s635 + $0xd0] sm:$0xff]
        %v5341 = vld [vmem:[%s635 + $0xe0] sm:$0xff]
        %v5342 = vld [vmem:[%s635 + $0xe8] sm:$0xff]
        %v5343 = vld [vmem:[%s635 + $0xf0] sm:$0xff]
        %v5344 = vld [vmem:[%s635 + $0x100] sm:$0xff]
        %v5345 = vld [vmem:[%s635 + $0x108] sm:$0xff]
        %v5346 = vld [vmem:[%s635 + $0x110] sm:$0xff]
        %v5347 = vld [vmem:[%s635 + $0x120] sm:$0xff]
        %v5348 = vld [vmem:[%s635 + $0x128] sm:$0xff]
        %v5349 = vld [vmem:[%s635 + $0x130] sm:$0xff]
        %v5350 = vld [vmem:[%s635 + $0x140] sm:$0xff]
        %v5351 = vld [vmem:[%s635 + $0x148] sm:$0xff]
        %v5352 = vld [vmem:[%s635 + $0x150] sm:$0xff]
        %v5353 = vld [vmem:[%s635 + $0x160] sm:$0xff]
        %v5354 = vld [vmem:[%s635 + $0x168] sm:$0xff]
        %v5355 = vld [vmem:[%s635 + $0x170] sm:$0xff]
        %v5356 = vld [vmem:[%s635 + $0x180] sm:$0xff]
        %v5357 = vld [vmem:[%s635 + $0x188] sm:$0xff]
        %v5358 = vld [vmem:[%s635 + $0x190] sm:$0xff]
        %v5359 = vld [vmem:[%s635 + $0x1a0] sm:$0xff]
        %v5360 = vld [vmem:[%s635 + $0x1a8] sm:$0xff]
        %v5361 = vld [vmem:[%s635 + $0x1b0] sm:$0xff]
        %v5362 = vld [vmem:[%s635 + $0x1c0] sm:$0xff]
        %v5363 = vld [vmem:[%s635 + $0x1c8] sm:$0xff]
        %v5364 = vld [vmem:[%s635 + $0x1d0] sm:$0xff]
        %v5365 = vld [vmem:[%s635 + $0x1e0] sm:$0xff]
        %v5366 = vld [vmem:[%s635 + $0x1e8] sm:$0xff]
        %v5367 = vld [vmem:[%s635 + $0x1f0] sm:$0xff]
        %v5416 = vrot.slane %v5320, 2
        %v5417 = vrot.slane %v5321, 2
        %v5418 = vsel %vm2113, %v5416, %v5417
        %v5419 = vrot.slane %v5322, 2
        %v5420 = vsel %vm2113, %v5417, %v5419
        %v5421 = vrot.slane %v5323, 2
        %v5422 = vrot.slane %v5324, 2
        %v5423 = vsel %vm2113, %v5421, %v5422
        %v5424 = vrot.slane %v5325, 2
        %v5425 = vsel %vm2113, %v5422, %v5424
        %v5426 = vrot.slane %v5326, 2
        %v5427 = vrot.slane %v5327, 2
        %v5428 = vsel %vm2113, %v5426, %v5427
        %v5429 = vrot.slane %v5328, 2
        %v5430 = vsel %vm2113, %v5427, %v5429
        %v5431 = vrot.slane %v5329, 2
        %v5432 = vrot.slane %v5330, 2
        %v5433 = vsel %vm2113, %v5431, %v5432
        %v5434 = vrot.slane %v5331, 2
        %v5435 = vsel %vm2113, %v5432, %v5434
        %v5436 = vrot.slane %v5332, 2
        %v5437 = vrot.slane %v5333, 2
        %v5438 = vsel %vm2113, %v5436, %v5437
        %v5439 = vrot.slane %v5334, 2
        %v5440 = vsel %vm2113, %v5437, %v5439
        %v5441 = vrot.slane %v5335, 2
        %v5442 = vrot.slane %v5336, 2
        %v5443 = vsel %vm2113, %v5441, %v5442
        %v5444 = vrot.slane %v5337, 2
        %v5445 = vsel %vm2113, %v5442, %v5444
        %v5446 = vrot.slane %v5338, 2
        %v5447 = vrot.slane %v5339, 2
        %v5448 = vsel %vm2113, %v5446, %v5447
        %v5449 = vrot.slane %v5340, 2
        %v5450 = vsel %vm2113, %v5447, %v5449
        %v5451 = vrot.slane %v5341, 2
        %v5452 = vrot.slane %v5342, 2
        %v5453 = vsel %vm2113, %v5451, %v5452
        %v5454 = vrot.slane %v5343, 2
        %v5455 = vsel %vm2113, %v5452, %v5454
        %v5456 = vrot.slane %v5344, 2
        %v5457 = vrot.slane %v5345, 2
        %v5458 = vsel %vm2113, %v5456, %v5457
        %v5459 = vrot.slane %v5346, 2
        %v5460 = vsel %vm2113, %v5457, %v5459
        %v5461 = vrot.slane %v5347, 2
        %v5462 = vrot.slane %v5348, 2
        %v5463 = vsel %vm2113, %v5461, %v5462
        %v5464 = vrot.slane %v5349, 2
        %v5465 = vsel %vm2113, %v5462, %v5464
        %v5466 = vrot.slane %v5350, 2
        %v5467 = vrot.slane %v5351, 2
        %v5468 = vsel %vm2113, %v5466, %v5467
        %v5469 = vrot.slane %v5352, 2
        %v5470 = vsel %vm2113, %v5467, %v5469
        %v5471 = vrot.slane %v5353, 2
        %v5472 = vrot.slane %v5354, 2
        %v5473 = vsel %vm2113, %v5471, %v5472
        %v5474 = vrot.slane %v5355, 2
        %v5475 = vsel %vm2113, %v5472, %v5474
        %v5476 = vrot.slane %v5356, 2
        %v5477 = vrot.slane %v5357, 2
        %v5478 = vsel %vm2113, %v5476, %v5477
        %v5479 = vrot.slane %v5358, 2
        %v5480 = vsel %vm2113, %v5477, %v5479
        %v5481 = vrot.slane %v5359, 2
        %v5482 = vrot.slane %v5360, 2
        %v5483 = vsel %vm2113, %v5481, %v5482
        %v5484 = vrot.slane %v5361, 2
        %v5485 = vsel %vm2113, %v5482, %v5484
        %v5486 = vrot.slane %v5362, 2
        %v5487 = vrot.slane %v5363, 2
        %v5488 = vsel %vm2113, %v5486, %v5487
        %v5489 = vrot.slane %v5364, 2
        %v5490 = vsel %vm2113, %v5487, %v5489
        %v5491 = vrot.slane %v5365, 2
        %v5492 = vrot.slane %v5366, 2
        %v5493 = vsel %vm2113, %v5491, %v5492
        %v5494 = vrot.slane %v5367, 2
        %v5495 = vsel %vm2113, %v5492, %v5494
        %v5496 = vld [vmem:[%s7] sm:$0xf]
        %v5497 = vsel %vm1303, %v5418, 0
        %v5499 = vsel %vm1303, %v5420, 0
        %v5501 = vsel %vm1303, %v5423, 0
        %v5503 = vsel %vm1303, %v5425, 0
        %v5505 = vsel %vm1303, %v5428, 0
        %v5507 = vsel %vm1303, %v5430, 0
        %v5509 = vsel %vm1303, %v5433, 0
        %v5511 = vsel %vm1303, %v5435, 0
        %v5513 = vsel %vm1303, %v5438, 0
        %v5515 = vsel %vm1303, %v5440, 0
        %v5517 = vsel %vm1303, %v5443, 0
        %v5519 = vsel %vm1303, %v5445, 0
        %v5521 = vsel %vm1303, %v5448, 0
        %v5523 = vsel %vm1303, %v5450, 0
        %v5525 = vsel %vm1303, %v5453, 0
        %v5527 = vsel %vm1303, %v5455, 0
        %v5529 = vsel %vm1303, %v5458, 0
        %v5531 = vsel %vm1303, %v5460, 0
        %v5533 = vsel %vm1303, %v5463, 0
        %v5535 = vsel %vm1303, %v5465, 0
        %v5537 = vsel %vm1303, %v5468, 0
        %v5539 = vsel %vm1303, %v5470, 0
        %v5541 = vsel %vm1303, %v5473, 0
        %v5543 = vsel %vm1303, %v5475, 0
        %v5545 = vsel %vm1303, %v5478, 0
        %v5547 = vsel %vm1303, %v5480, 0
        %v5549 = vsel %vm1303, %v5483, 0
        %v5551 = vsel %vm1303, %v5485, 0
        %v5553 = vsel %vm1303, %v5488, 0
        %v5555 = vsel %vm1303, %v5490, 0
        %v5557 = vsel %vm1303, %v5493, 0
        %v5559 = vsel %vm1303, %v5495, 0
        %v5562 = vsel %vm1400, %v5496, 0
        %5564 = vmatprep.subr.mxu0 0.0
        %5565 = vmatpush1.msra.mxu0 %v5562
        %5566 = vmatprep.subr.mxu0 0.0
        %5567 = vmatpush1.msra.mxu0 0.0
        %5568 = vmatprep.subr.mxu0 0.0
        %5569 = vmatpush1.msra.mxu0 0.0
        %5570 = vmatprep.subr.mxu0 0.0
        %5571 = vmatpush1.msra.mxu0 0.0
        %5572 = vmatprep.subr.mxu0 0.0
        %5573 = vmatpush1.msra.mxu0 0.0
        %5574 = vmatprep.subr.mxu0 0.0
        %5575 = vmatpush1.msra.mxu0 0.0
        %5576 = vmatprep.subr.mxu0 0.0
        %5577 = vmatpush1.msra.mxu0 0.0
        %5578 = vmatprep.subr.mxu0 0.0
        %5579 = vmatpush1.msra.mxu0 0.0
        %5580 = vmatprep.subr.mxu0 0.0
        %5581 = vmatpush1.msra.mxu0 0.0
        %5582 = vmatprep.subr.mxu0 0.0
        %5583 = vmatpush1.msra.mxu0 0.0
        %5584 = vmatprep.subr.mxu0 0.0
        %5585 = vmatpush1.msra.mxu0 0.0
        %5586 = vmatprep.subr.mxu0 0.0
        %5587 = vmatpush1.msra.mxu0 0.0
        %5588 = vmatprep.subr.mxu0 0.0
        %5589 = vmatpush1.msra.mxu0 0.0
        %5590 = vmatprep.subr.mxu0 0.0
        %5591 = vmatpush1.msra.mxu0 0.0
        %5592 = vmatprep.subr.mxu0 0.0
        %5593 = vmatpush1.msra.mxu0 0.0
        %5594 = vmatprep.subr.mxu0 0.0
        %5595 = vmatpush1.msra.mxu0 0.0
        %5596 = vmatprep.subr.mxu0 0.0
        %5597 = vmatpush1.msra.mxu0 0.0
        %5598 = vmatprep.subr.mxu0 0.0
        %5599 = vmatpush1.msra.mxu0 0.0
        %5600 = vmatprep.subr.mxu0 0.0
        %5601 = vmatpush1.msra.mxu0 0.0
        %5602 = vmatprep.subr.mxu0 0.0
        %5603 = vmatpush1.msra.mxu0 0.0
        %5604 = vmatprep.subr.mxu0 0.0
        %5605 = vmatpush1.msra.mxu0 0.0
        %5606 = vmatprep.subr.mxu0 0.0
        %5607 = vmatpush1.msra.mxu0 0.0
        %5608 = vmatprep.subr.mxu0 0.0
        %5609 = vmatpush1.msra.mxu0 0.0
        %5610 = vmatprep.subr.mxu0 0.0
        %5611 = vmatpush1.msra.mxu0 0.0
        %5612 = vmatprep.subr.mxu0 0.0
        %5613 = vmatpush1.msra.mxu0 0.0
        %5614 = vmatprep.subr.mxu0 0.0
        %5615 = vmatpush1.msra.mxu0 0.0
        %5616 = vmatprep.subr.mxu0 0.0
        %5617 = vmatpush1.msra.mxu0 0.0
        %5618 = vmatprep.subr.mxu0 0.0
        %5619 = vmatpush1.msra.mxu0 0.0
        %5620 = vmatprep.subr.mxu0 0.0
        %5621 = vmatpush1.msra.mxu0 0.0
        %5622 = vmatprep.subr.mxu0 0.0
        %5623 = vmatpush1.msra.mxu0 0.0
        %5624 = vmatprep.subr.mxu0 0.0
        %5625 = vmatpush1.msra.mxu0 0.0
        %5626 = vmatprep.subr.mxu0 0.0
        %5627 = vmatpush1.msra.mxu0 0.0
        %5628 = vmatprep.mubr.f32.mxu0 0.0
        %5629 = vmatmul.mubr.f32.gmra.mrb[0].mxu0 %v5497
        %v5630 = vpop.f32.mrb[0].mxu0
        %v5631 = vadd.f32 0.0, %v5630
        %v5632 = vpop.f32.mrb[0].mxu0
        %5633 = vmatprep.mubr.f32.mxu0 0.0
        %5634 = vmatmul.mubr.f32.gmra.mrb[0].mxu0 %v5499
        %v5635 = vpop.f32.mrb[0].mxu0
        %v5636 = vadd.f32 0.0, %v5635
        %v5637 = vpop.f32.mrb[0].mxu0
        %5638 = vmatprep.mubr.f32.mxu0 0.0
        %5639 = vmatmul.mubr.f32.gmra.mrb[0].mxu0 %v5501
        %v5640 = vpop.f32.mrb[0].mxu0
        %v5641 = vadd.f32 0.0, %v5640
        %v5642 = vpop.f32.mrb[0].mxu0
        %5643 = vmatprep.mubr.f32.mxu0 0.0
        %5644 = vmatmul.mubr.f32.gmra.mrb[0].mxu0 %v5503
        %v5645 = vpop.f32.mrb[0].mxu0
        %v5646 = vadd.f32 0.0, %v5645
        %v5647 = vpop.f32.mrb[0].mxu0
        %5648 = vmatprep.mubr.f32.mxu0 0.0
        %5649 = vmatmul.mubr.f32.gmra.mrb[0].mxu0 %v5505
        %v5650 = vpop.f32.mrb[0].mxu0
        %v5651 = vadd.f32 0.0, %v5650
        %v5652 = vpop.f32.mrb[0].mxu0
        %5653 = vmatprep.mubr.f32.mxu0 0.0
        %5654 = vmatmul.mubr.f32.gmra.mrb[0].mxu0 %v5507
        %v5655 = vpop.f32.mrb[0].mxu0
        %v5656 = vadd.f32 0.0, %v5655
        %v5657 = vpop.f32.mrb[0].mxu0
        %5658 = vmatprep.mubr.f32.mxu0 0.0
        %5659 = vmatmul.mubr.f32.gmra.mrb[0].mxu0 %v5509
        %v5660 = vpop.f32.mrb[0].mxu0
        %v5661 = vadd.f32 0.0, %v5660
        %v5662 = vpop.f32.mrb[0].mxu0
        %5663 = vmatprep.mubr.f32.mxu0 0.0
        %5664 = vmatmul.mubr.f32.gmra.mrb[0].mxu0 %v5511
        %v5665 = vpop.f32.mrb[0].mxu0
        %v5666 = vadd.f32 0.0, %v5665
        %v5667 = vpop.f32.mrb[0].mxu0
        %5668 = vmatprep.mubr.f32.mxu0 0.0
        %5669 = vmatmul.mubr.f32.gmra.mrb[0].mxu0 %v5513
        %v5670 = vpop.f32.mrb[0].mxu0
        %v5671 = vadd.f32 0.0, %v5670
        %v5672 = vpop.f32.mrb[0].mxu0
        %5673 = vmatprep.mubr.f32.mxu0 0.0
        %5674 = vmatmul.mubr.f32.gmra.mrb[0].mxu0 %v5515
        %v5675 = vpop.f32.mrb[0].mxu0
        %v5676 = vadd.f32 0.0, %v5675
        %v5677 = vpop.f32.mrb[0].mxu0
        %5678 = vmatprep.mubr.f32.mxu0 0.0
        %5679 = vmatmul.mubr.f32.gmra.mrb[0].mxu0 %v5517
        %v5680 = vpop.f32.mrb[0].mxu0
        %v5681 = vadd.f32 0.0, %v5680
        %v5682 = vpop.f32.mrb[0].mxu0
        %5683 = vmatprep.mubr.f32.mxu0 0.0
        %5684 = vmatmul.mubr.f32.gmra.mrb[0].mxu0 %v5519
        %v5685 = vpop.f32.mrb[0].mxu0
        %v5686 = vadd.f32 0.0, %v5685
        %v5687 = vpop.f32.mrb[0].mxu0
        %5688 = vmatprep.mubr.f32.mxu0 0.0
        %5689 = vmatmul.mubr.f32.gmra.mrb[0].mxu0 %v5521
        %v5690 = vpop.f32.mrb[0].mxu0
        %v5691 = vadd.f32 0.0, %v5690
        %v5692 = vpop.f32.mrb[0].mxu0
        %5693 = vmatprep.mubr.f32.mxu0 0.0
        %5694 = vmatmul.mubr.f32.gmra.mrb[0].mxu0 %v5523
        %v5695 = vpop.f32.mrb[0].mxu0
        %v5696 = vadd.f32 0.0, %v5695
        %v5697 = vpop.f32.mrb[0].mxu0
        %5698 = vmatprep.mubr.f32.mxu0 0.0
        %5699 = vmatmul.mubr.f32.gmra.mrb[0].mxu0 %v5525
        %v5700 = vpop.f32.mrb[0].mxu0
        %v5701 = vadd.f32 0.0, %v5700
        %v5702 = vpop.f32.mrb[0].mxu0
        %5703 = vmatprep.mubr.f32.mxu0 0.0
        %5704 = vmatmul.mubr.f32.gmra.mrb[0].mxu0 %v5527
        %v5705 = vpop.f32.mrb[0].mxu0
        %v5706 = vadd.f32 0.0, %v5705
        %v5707 = vpop.f32.mrb[0].mxu0
        %5708 = vmatprep.mubr.f32.mxu0 0.0
        %5709 = vmatmul.mubr.f32.gmra.mrb[0].mxu0 %v5529
        %v5710 = vpop.f32.mrb[0].mxu0
        %v5711 = vadd.f32 0.0, %v5710
        %v5712 = vpop.f32.mrb[0].mxu0
        %5713 = vmatprep.mubr.f32.mxu0 0.0
        %5714 = vmatmul.mubr.f32.gmra.mrb[0].mxu0 %v5531
        %v5715 = vpop.f32.mrb[0].mxu0
        %v5716 = vadd.f32 0.0, %v5715
        %v5717 = vpop.f32.mrb[0].mxu0
        %5718 = vmatprep.mubr.f32.mxu0 0.0
        %5719 = vmatmul.mubr.f32.gmra.mrb[0].mxu0 %v5533
        %v5720 = vpop.f32.mrb[0].mxu0
        %v5721 = vadd.f32 0.0, %v5720
        %v5722 = vpop.f32.mrb[0].mxu0
        %5723 = vmatprep.mubr.f32.mxu0 0.0
        %5724 = vmatmul.mubr.f32.gmra.mrb[0].mxu0 %v5535
        %v5725 = vpop.f32.mrb[0].mxu0
        %v5726 = vadd.f32 0.0, %v5725
        %v5727 = vpop.f32.mrb[0].mxu0
        %5728 = vmatprep.mubr.f32.mxu0 0.0
        %5729 = vmatmul.mubr.f32.gmra.mrb[0].mxu0 %v5537
        %v5730 = vpop.f32.mrb[0].mxu0
        %v5731 = vadd.f32 0.0, %v5730
        %v5732 = vpop.f32.mrb[0].mxu0
        %5733 = vmatprep.mubr.f32.mxu0 0.0
        %5734 = vmatmul.mubr.f32.gmra.mrb[0].mxu0 %v5539
        %v5735 = vpop.f32.mrb[0].mxu0
        %v5736 = vadd.f32 0.0, %v5735
        %v5737 = vpop.f32.mrb[0].mxu0
        %5738 = vmatprep.mubr.f32.mxu0 0.0
        %5739 = vmatmul.mubr.f32.gmra.mrb[0].mxu0 %v5541
        %v5740 = vpop.f32.mrb[0].mxu0
        %v5741 = vadd.f32 0.0, %v5740
        %v5742 = vpop.f32.mrb[0].mxu0
        %5743 = vmatprep.mubr.f32.mxu0 0.0
        %5744 = vmatmul.mubr.f32.gmra.mrb[0].mxu0 %v5543
        %v5745 = vpop.f32.mrb[0].mxu0
        %v5746 = vadd.f32 0.0, %v5745
        %v5747 = vpop.f32.mrb[0].mxu0
        %5748 = vmatprep.mubr.f32.mxu0 0.0
        %5749 = vmatmul.mubr.f32.gmra.mrb[0].mxu0 %v5545
        %v5750 = vpop.f32.mrb[0].mxu0
        %v5751 = vadd.f32 0.0, %v5750
        %v5752 = vpop.f32.mrb[0].mxu0
        %5753 = vmatprep.mubr.f32.mxu0 0.0
        %5754 = vmatmul.mubr.f32.gmra.mrb[0].mxu0 %v5547
        %v5755 = vpop.f32.mrb[0].mxu0
        %v5756 = vadd.f32 0.0, %v5755
        %v5757 = vpop.f32.mrb[0].mxu0
        %5758 = vmatprep.mubr.f32.mxu0 0.0
        %5759 = vmatmul.mubr.f32.gmra.mrb[0].mxu0 %v5549
        %v5760 = vpop.f32.mrb[0].mxu0
        %v5761 = vadd.f32 0.0, %v5760
        %v5762 = vpop.f32.mrb[0].mxu0
        %5763 = vmatprep.mubr.f32.mxu0 0.0
        %5764 = vmatmul.mubr.f32.gmra.mrb[0].mxu0 %v5551
        %v5765 = vpop.f32.mrb[0].mxu0
        %v5766 = vadd.f32 0.0, %v5765
        %v5767 = vpop.f32.mrb[0].mxu0
        %5768 = vmatprep.mubr.f32.mxu0 0.0
        %5769 = vmatmul.mubr.f32.gmra.mrb[0].mxu0 %v5553
        %v5770 = vpop.f32.mrb[0].mxu0
        %v5771 = vadd.f32 0.0, %v5770
        %v5772 = vpop.f32.mrb[0].mxu0
        %5773 = vmatprep.mubr.f32.mxu0 0.0
        %5774 = vmatmul.mubr.f32.gmra.mrb[0].mxu0 %v5555
        %v5775 = vpop.f32.mrb[0].mxu0
        %v5776 = vadd.f32 0.0, %v5775
        %v5777 = vpop.f32.mrb[0].mxu0
        %5778 = vmatprep.mubr.f32.mxu0 0.0
        %5779 = vmatmul.mubr.f32.gmra.mrb[0].mxu0 %v5557
        %v5780 = vpop.f32.mrb[0].mxu0
        %v5781 = vadd.f32 0.0, %v5780
        %v5782 = vpop.f32.mrb[0].mxu0
        %5783 = vmatprep.mubr.f32.mxu0 0.0
        %5784 = vmatmul.mubr.f32.gmra.mrb[0].mxu0 %v5559
        %v5785 = vpop.f32.mrb[0].mxu0
        %v5786 = vadd.f32 0.0, %v5785
        %v5787 = vpop.f32.mrb[0].mxu0
        %5788 = vdwg.mxu0
        %vm5789 = vcmp.lt.s32.totalorder %v753, 16
        %vm5790 = vcmp.lt.s32.totalorder %v754, 16
        %v5791 = vsel %vm5789, 1, 0
        %v5792 = vsel %vm5790, 1, 0
        %v5793 = vcvt.s32.f32 %v5791
        %v5794 = vcvt.s32.f32 %v5792
        %v5795 = vmul.f32 %v5631, %v5793
        %v5796 = vmul.f32 %v5636, %v5794
        %v5797 = vmul.f32 %v5641, %v5793
        %v5798 = vmul.f32 %v5646, %v5794
        %v5799 = vmul.f32 %v5651, %v5793
        %v5800 = vmul.f32 %v5656, %v5794
        %v5801 = vmul.f32 %v5661, %v5793
        %v5802 = vmul.f32 %v5666, %v5794
        %v5803 = vmul.f32 %v5671, %v5793
        %v5804 = vmul.f32 %v5676, %v5794
        %v5805 = vmul.f32 %v5681, %v5793
        %v5806 = vmul.f32 %v5686, %v5794
        %v5807 = vmul.f32 %v5691, %v5793
        %v5808 = vmul.f32 %v5696, %v5794
        %v5809 = vmul.f32 %v5701, %v5793
        %v5810 = vmul.f32 %v5706, %v5794
        %v5811 = vmul.f32 %v5711, %v5793
        %v5812 = vmul.f32 %v5716, %v5794
        %v5813 = vmul.f32 %v5721, %v5793
        %v5814 = vmul.f32 %v5726, %v5794
        %v5815 = vmul.f32 %v5731, %v5793
        %v5816 = vmul.f32 %v5736, %v5794
        %v5817 = vmul.f32 %v5741, %v5793
        %v5818 = vmul.f32 %v5746, %v5794
        %v5819 = vmul.f32 %v5751, %v5793
        %v5820 = vmul.f32 %v5756, %v5794
        %v5821 = vmul.f32 %v5761, %v5793
        %v5822 = vmul.f32 %v5766, %v5794
        %v5823 = vmul.f32 %v5771, %v5793
        %v5824 = vmul.f32 %v5776, %v5794
        %v5825 = vmul.f32 %v5781, %v5793
        %v5826 = vmul.f32 %v5786, %v5794
        %v5827 = vsel %vm5018, %v5795, 0.0
        %v5828 = vsel %vm5018, %v5796, 0.0
        %v5829 = vadd.f32 %v5827, %v5828
        %v5830 = vsel %vm5018, %v5797, 0.0
        %v5831 = vadd.f32 %v5829, %v5830
        %v5832 = vsel %vm5018, %v5798, 0.0
        %v5833 = vadd.f32 %v5831, %v5832
        %v5834 = vsel %vm5018, %v5799, 0.0
        %v5835 = vadd.f32 %v5833, %v5834
        %v5836 = vsel %vm5018, %v5800, 0.0
        %v5837 = vadd.f32 %v5835, %v5836
        %v5838 = vsel %vm5018, %v5801, 0.0
        %v5839 = vadd.f32 %v5837, %v5838
        %v5840 = vsel %vm5018, %v5802, 0.0
        %v5841 = vadd.f32 %v5839, %v5840
        %v5842 = vsel %vm5018, %v5803, 0.0
        %v5843 = vadd.f32 %v5841, %v5842
        %v5844 = vsel %vm5018, %v5804, 0.0
        %v5845 = vadd.f32 %v5843, %v5844
        %v5846 = vsel %vm5018, %v5805, 0.0
        %v5847 = vadd.f32 %v5845, %v5846
        %v5848 = vsel %vm5018, %v5806, 0.0
        %v5849 = vadd.f32 %v5847, %v5848
        %v5850 = vsel %vm5018, %v5807, 0.0
        %v5851 = vadd.f32 %v5849, %v5850
        %v5852 = vsel %vm5018, %v5808, 0.0
        %v5853 = vadd.f32 %v5851, %v5852
        %v5854 = vsel %vm5018, %v5809, 0.0
        %v5855 = vadd.f32 %v5853, %v5854
        %v5856 = vsel %vm5018, %v5810, 0.0
        %v5857 = vadd.f32 %v5855, %v5856
        %v5858 = vsel %vm5018, %v5811, 0.0
        %v5859 = vadd.f32 %v5857, %v5858
        %v5860 = vsel %vm5018, %v5812, 0.0
        %v5861 = vadd.f32 %v5859, %v5860
        %v5862 = vsel %vm5018, %v5813, 0.0
        %v5863 = vadd.f32 %v5861, %v5862
        %v5864 = vsel %vm5018, %v5814, 0.0
        %v5865 = vadd.f32 %v5863, %v5864
        %v5866 = vsel %vm5018, %v5815, 0.0
        %v5867 = vadd.f32 %v5865, %v5866
        %v5868 = vsel %vm5018, %v5816, 0.0
        %v5869 = vadd.f32 %v5867, %v5868
        %v5870 = vsel %vm5018, %v5817, 0.0
        %v5871 = vadd.f32 %v5869, %v5870
        %v5872 = vsel %vm5018, %v5818, 0.0
        %v5873 = vadd.f32 %v5871, %v5872
        %v5874 = vsel %vm5018, %v5819, 0.0
        %v5875 = vadd.f32 %v5873, %v5874
        %v5876 = vsel %vm5018, %v5820, 0.0
        %v5877 = vadd.f32 %v5875, %v5876
        %v5878 = vsel %vm5018, %v5821, 0.0
        %v5879 = vadd.f32 %v5877, %v5878
        %v5880 = vsel %vm5018, %v5822, 0.0
        %v5881 = vadd.f32 %v5879, %v5880
        %v5882 = vsel %vm5018, %v5823, 0.0
        %v5883 = vadd.f32 %v5881, %v5882
        %v5884 = vsel %vm5018, %v5824, 0.0
        %v5885 = vadd.f32 %v5883, %v5884
        %v5886 = vsel %vm5018, %v5825, 0.0
        %v5887 = vadd.f32 %v5885, %v5886
        %v5888 = vsel %vm5018, %v5826, 0.0
        %v5889 = vadd.f32 %v5887, %v5888
        %v5890 = vrot.slane %v5889, 4
        %v5891 = vadd.f32 %v5889, %v5890
        %v5892 = vrot.slane %v5891, 2
        %v5893 = vadd.f32 %v5891, %v5892
        %v5894 = vrot.slane %v5893, 1
        %v5895 = vadd.f32 %v5893, %v5894
        %5896 = vst.msk [vmem:[%s602] sm:$0x1] %vm5120, %v5895
        %v5897 = vmul.f32 %v5795, %v5795
        %v5898 = vmul.f32 %v5796, %v5796
        %v5899 = vmul.f32 %v5797, %v5797
        %v5900 = vmul.f32 %v5798, %v5798
        %v5901 = vmul.f32 %v5799, %v5799
        %v5902 = vmul.f32 %v5800, %v5800
        %v5903 = vmul.f32 %v5801, %v5801
        %v5904 = vmul.f32 %v5802, %v5802
        %v5905 = vmul.f32 %v5803, %v5803
        %v5906 = vmul.f32 %v5804, %v5804
        %v5907 = vmul.f32 %v5805, %v5805
        %v5908 = vmul.f32 %v5806, %v5806
        %v5909 = vmul.f32 %v5807, %v5807
        %v5910 = vmul.f32 %v5808, %v5808
        %v5911 = vmul.f32 %v5809, %v5809
        %v5912 = vmul.f32 %v5810, %v5810
        %v5913 = vmul.f32 %v5811, %v5811
        %v5914 = vmul.f32 %v5812, %v5812
        %v5915 = vmul.f32 %v5813, %v5813
        %v5916 = vmul.f32 %v5814, %v5814
        %v5917 = vmul.f32 %v5815, %v5815
        %v5918 = vmul.f32 %v5816, %v5816
        %v5919 = vmul.f32 %v5817, %v5817
        %v5920 = vmul.f32 %v5818, %v5818
        %v5921 = vmul.f32 %v5819, %v5819
        %v5922 = vmul.f32 %v5820, %v5820
        %v5923 = vmul.f32 %v5821, %v5821
        %v5924 = vmul.f32 %v5822, %v5822
        %v5925 = vmul.f32 %v5823, %v5823
        %v5926 = vmul.f32 %v5824, %v5824
        %v5927 = vmul.f32 %v5825, %v5825
        %v5928 = vmul.f32 %v5826, %v5826
        %v5929 = vsel %vm5018, %v5897, 0.0
        %v5930 = vsel %vm5018, %v5898, 0.0
        %v5931 = vadd.f32 %v5929, %v5930
        %v5932 = vsel %vm5018, %v5899, 0.0
        %v5933 = vadd.f32 %v5931, %v5932
        %v5934 = vsel %vm5018, %v5900, 0.0
        %v5935 = vadd.f32 %v5933, %v5934
        %v5936 = vsel %vm5018, %v5901, 0.0
        %v5937 = vadd.f32 %v5935, %v5936
        %v5938 = vsel %vm5018, %v5902, 0.0
        %v5939 = vadd.f32 %v5937, %v5938
        %v5940 = vsel %vm5018, %v5903, 0.0
        %v5941 = vadd.f32 %v5939, %v5940
        %v5942 = vsel %vm5018, %v5904, 0.0
        %v5943 = vadd.f32 %v5941, %v5942
        %v5944 = vsel %vm5018, %v5905, 0.0
        %v5945 = vadd.f32 %v5943, %v5944
        %v5946 = vsel %vm5018, %v5906, 0.0
        %v5947 = vadd.f32 %v5945, %v5946
        %v5948 = vsel %vm5018, %v5907, 0.0
        %v5949 = vadd.f32 %v5947, %v5948
        %v5950 = vsel %vm5018, %v5908, 0.0
        %v5951 = vadd.f32 %v5949, %v5950
        %v5952 = vsel %vm5018, %v5909, 0.0
        %v5953 = vadd.f32 %v5951, %v5952
        %v5954 = vsel %vm5018, %v5910, 0.0
        %v5955 = vadd.f32 %v5953, %v5954
        %v5956 = vsel %vm5018, %v5911, 0.0
        %v5957 = vadd.f32 %v5955, %v5956
        %v5958 = vsel %vm5018, %v5912, 0.0
        %v5959 = vadd.f32 %v5957, %v5958
        %v5960 = vsel %vm5018, %v5913, 0.0
        %v5961 = vadd.f32 %v5959, %v5960
        %v5962 = vsel %vm5018, %v5914, 0.0
        %v5963 = vadd.f32 %v5961, %v5962
        %v5964 = vsel %vm5018, %v5915, 0.0
        %v5965 = vadd.f32 %v5963, %v5964
        %v5966 = vsel %vm5018, %v5916, 0.0
        %v5967 = vadd.f32 %v5965, %v5966
        %v5968 = vsel %vm5018, %v5917, 0.0
        %v5969 = vadd.f32 %v5967, %v5968
        %v5970 = vsel %vm5018, %v5918, 0.0
        %v5971 = vadd.f32 %v5969, %v5970
        %v5972 = vsel %vm5018, %v5919, 0.0
        %v5973 = vadd.f32 %v5971, %v5972
        %v5974 = vsel %vm5018, %v5920, 0.0
        %v5975 = vadd.f32 %v5973, %v5974
        %v5976 = vsel %vm5018, %v5921, 0.0
        %v5977 = vadd.f32 %v5975, %v5976
        %v5978 = vsel %vm5018, %v5922, 0.0
        %v5979 = vadd.f32 %v5977, %v5978
        %v5980 = vsel %vm5018, %v5923, 0.0
        %v5981 = vadd.f32 %v5979, %v5980
        %v5982 = vsel %vm5018, %v5924, 0.0
        %v5983 = vadd.f32 %v5981, %v5982
        %v5984 = vsel %vm5018, %v5925, 0.0
        %v5985 = vadd.f32 %v5983, %v5984
        %v5986 = vsel %vm5018, %v5926, 0.0
        %v5987 = vadd.f32 %v5985, %v5986
        %v5988 = vsel %vm5018, %v5927, 0.0
        %v5989 = vadd.f32 %v5987, %v5988
        %v5990 = vsel %vm5018, %v5928, 0.0
        %v5991 = vadd.f32 %v5989, %v5990
        %v5992 = vrot.slane %v5991, 4
        %v5993 = vadd.f32 %v5991, %v5992
        %v5994 = vrot.slane %v5993, 2
        %v5995 = vadd.f32 %v5993, %v5994
        %v5996 = vrot.slane %v5995, 1
        %v5997 = vadd.f32 %v5995, %v5996
        %5998 = vst.msk [vmem:[%s608] sm:$0x1] %vm5120, %v5997
        %5999 = vst.msk [vmem:[%s674] sm:$0xff] %vm5018, %v5795
        %6000 = vst.msk [vmem:[%s674 + $0x8] sm:$0xff] %vm5018, %v5796
        %6001 = vst.msk [vmem:[%s674 + $0x10] sm:$0xff] %vm5018, %v5797
        %6002 = vst.msk [vmem:[%s674 + $0x18] sm:$0xff] %vm5018, %v5798
        %6003 = vst.msk [vmem:[%s674 + $0x20] sm:$0xff] %vm5018, %v5799
        %6004 = vst.msk [vmem:[%s674 + $0x28] sm:$0xff] %vm5018, %v5800
        %6005 = vst.msk [vmem:[%s674 + $0x30] sm:$0xff] %vm5018, %v5801
        %6006 = vst.msk [vmem:[%s674 + $0x38] sm:$0xff] %vm5018, %v5802
        %6007 = vst.msk [vmem:[%s674 + $0x40] sm:$0xff] %vm5018, %v5803
        %6008 = vst.msk [vmem:[%s674 + $0x48] sm:$0xff] %vm5018, %v5804
        %6009 = vst.msk [vmem:[%s674 + $0x50] sm:$0xff] %vm5018, %v5805
        %6010 = vst.msk [vmem:[%s674 + $0x58] sm:$0xff] %vm5018, %v5806
        %6011 = vst.msk [vmem:[%s674 + $0x60] sm:$0xff] %vm5018, %v5807
        %6012 = vst.msk [vmem:[%s674 + $0x68] sm:$0xff] %vm5018, %v5808
        %6013 = vst.msk [vmem:[%s674 + $0x70] sm:$0xff] %vm5018, %v5809
        %6014 = vst.msk [vmem:[%s674 + $0x78] sm:$0xff] %vm5018, %v5810
        %6015 = vst.msk [vmem:[%s674 + $0x80] sm:$0xff] %vm5018, %v5811
        %6016 = vst.msk [vmem:[%s674 + $0x88] sm:$0xff] %vm5018, %v5812
        %6017 = vst.msk [vmem:[%s674 + $0x90] sm:$0xff] %vm5018, %v5813
        %6018 = vst.msk [vmem:[%s674 + $0x98] sm:$0xff] %vm5018, %v5814
        %6019 = vst.msk [vmem:[%s674 + $0xa0] sm:$0xff] %vm5018, %v5815
        %6020 = vst.msk [vmem:[%s674 + $0xa8] sm:$0xff] %vm5018, %v5816
        %6021 = vst.msk [vmem:[%s674 + $0xb0] sm:$0xff] %vm5018, %v5817
        %6022 = vst.msk [vmem:[%s674 + $0xb8] sm:$0xff] %vm5018, %v5818
        %6023 = vst.msk [vmem:[%s674 + $0xc0] sm:$0xff] %vm5018, %v5819
        %6024 = vst.msk [vmem:[%s674 + $0xc8] sm:$0xff] %vm5018, %v5820
        %6025 = vst.msk [vmem:[%s674 + $0xd0] sm:$0xff] %vm5018, %v5821
        %6026 = vst.msk [vmem:[%s674 + $0xd8] sm:$0xff] %vm5018, %v5822
        %6027 = vst.msk [vmem:[%s674 + $0xe0] sm:$0xff] %vm5018, %v5823
        %6028 = vst.msk [vmem:[%s674 + $0xe8] sm:$0xff] %vm5018, %v5824
        %6029 = vst.msk [vmem:[%s674 + $0xf0] sm:$0xff] %vm5018, %v5825
        %6030 = vst.msk [vmem:[%s674 + $0xf8] sm:$0xff] %vm5018, %v5826
        %s6031 = smul.u32 16, %s39
        %p6032 = scmp.lt.s32.totalorder %s38, 1
        %s6033 = scalar_select %p6032, %s38, 1
        %p6034 = scmp.lt.s32.totalorder %s6031, 15
        %s6035 = scalar_select %p6034, %s6031, 15
        %s6036 = smul.addr %s6035, 3
        %s6037 = smul.addr %s6033, 48
        %s6038 = sadd.s32 %s6036, %s6037
        %s6039 = smul.addr %s6038, 8
        %s6040 = scalar_lea.vmem %s8, %s6039
        %s6041 = sand.u32 %s289, 1
        %s6042 = scalar_lea.sflag [#allocation3], %s6041
        %s6043 = sand.u32 %s289, 1
        %s6044 = scalar_lea.vmem [#allocation2], %s6043
        %s6045 = sand.u32 %s34, 1
        %s6046 = scalar_lea.sflag [#allocation5], %s6045
        %s6047 = sand.u32 %s317, 1
        %s6048 = scalar_lea.vmem [#allocation4], %s6047
        %s6049 = smul.u32 16, %s39
        %p6050 = scmp.lt.s32.totalorder %s38, 1
        %s6051 = scalar_select %p6050, %s38, 1
        %p6052 = scmp.lt.s32.totalorder %s6049, 15
        %s6053 = scalar_select %p6052, %s6049, 15
        %s6054 = smul.addr %s6053, 2
        %s6055 = smul.addr %s6051, 32
        %s6056 = sadd.s32 %s6054, %s6055
        %s6057 = smul.addr %s6056, 8
        %s6058 = scalar_lea.vmem %s11, %s6057
        %s6059 = sand.u32 %s34, 1
        %s6060 = scalar_lea.sflag [#allocation5], %s6059
        %s6061 = sand.u32 %s373, 1
        %s6062 = scalar_lea.vmem [#allocation6], %s6061
        %s6063 = sand.u32 %s401, 1
        %s6064 = scalar_lea.sflag [#allocation8], %s6063
        %s6065 = sand.u32 %s401, 1
        %s6066 = scalar_lea.vmem [#allocation7], %s6065
        // Predicated region
        $region53: #{tpu_custom_call.1} parent=51 // pred_check
          %p6067 = pneg %p271
        $region54: #{tpu_custom_call.1} parent=51 // pred_check_branch
          %6069 = sbr.rel (%p6067) target = $region56
        $region55: #{tpu_custom_call.1} parent=51 // pred_region
          %s6070 = smul.u32 16, %s39
        $region56: #{tpu_custom_call.1} parent=51 // pred_fallthru
          _
        // Predicated region
        $region57: #{tpu_custom_call.1} parent=51 // pred_check
          %p6071 = pneg %p299
        $region58: #{tpu_custom_call.1} parent=51 // pred_check_branch
          %6073 = sbr.rel (%p6071) target = $region60
        $region59: #{tpu_custom_call.1} parent=51 // pred_region
          %s6075 = ssub.s32 16, 16
          %6076 = vsyncadd %s6042, %s6075
          %s6077 = sadd.s32 %s39, %s38
          %s6078 = smul.addr %s6077, 16
          %s6079 = scalar_lea.hbm %s9, %s6078
          %s6081 = sshll.u32 %s6044, 4
          %s6082 = int_to_ptr.vmem [resolvable:$true] %s6081
          %6084 = dma.vmem_to_hbm [thread:$0]  %s6082, 16, %s6079, %s6042
        $region60: #{tpu_custom_call.1} parent=51 // pred_fallthru
          _
        // Predicated region
        $region61: #{tpu_custom_call.1} parent=51 // pred_check
          %p6085 = pneg %p327
        $region62: #{tpu_custom_call.1} parent=51 // pred_check_branch
          %6087 = sbr.rel (%p6085) target = $region64
        $region63: #{tpu_custom_call.1} parent=51 // pred_region
          %s6089 = ssub.s32 16, 16
          %6090 = vsyncadd %s6046, %s6089
          %s6091 = sadd.s32 %s39, %s38
          %s6092 = smul.addr %s6091, 16
          %s6093 = scalar_lea.hbm %s10, %s6092
          %s6095 = sshll.u32 %s6048, 4
          %s6096 = int_to_ptr.vmem [resolvable:$true] %s6095
          %6098 = dma.vmem_to_hbm [thread:$0]  %s6096, 16, %s6093, %s6046
        $region64: #{tpu_custom_call.1} parent=51 // pred_fallthru
          _
        // Predicated region
        $region65: #{tpu_custom_call.1} parent=51 // pred_check
          %p6099 = pneg %p355
        $region66: #{tpu_custom_call.1} parent=51 // pred_check_branch
          %6101 = sbr.rel (%p6099) target = $region68
        $region67: #{tpu_custom_call.1} parent=51 // pred_region
          %s6102 = smul.u32 16, %s39
        $region68: #{tpu_custom_call.1} parent=51 // pred_fallthru
          _
        // Predicated region
        $region69: #{tpu_custom_call.1} parent=51 // pred_check
          %p6103 = pneg %p383
        $region70: #{tpu_custom_call.1} parent=51 // pred_check_branch
          %6105 = sbr.rel (%p6103) target = $region72
        $region71: #{tpu_custom_call.1} parent=51 // pred_region
          %s6107 = ssub.s32 16, 16
          %6108 = vsyncadd %s6060, %s6107
          %s6109 = sadd.s32 %s39, %s38
          %s6110 = smul.addr %s6109, 16
          %s6111 = scalar_lea.hbm %s12, %s6110
          %s6113 = sshll.u32 %s6062, 4
          %s6114 = int_to_ptr.vmem [resolvable:$true] %s6113
          %6116 = dma.vmem_to_hbm [thread:$0]  %s6114, 16, %s6111, %s6060
        $region72: #{tpu_custom_call.1} parent=51 // pred_fallthru
          _
        // Predicated region
        $region73: #{tpu_custom_call.1} parent=51 // pred_check
          %p6117 = pneg %p411
        $region74: #{tpu_custom_call.1} parent=51 // pred_check_branch
          %6119 = sbr.rel (%p6117) target = $region76
        $region75: #{tpu_custom_call.1} parent=51 // pred_region
          %s6121 = ssub.s32 16, 16
          %6122 = vsyncadd %s6064, %s6121
          %s6123 = sadd.s32 %s39, %s38
          %s6124 = smul.addr %s6123, 16
          %s6125 = scalar_lea.hbm %s13, %s6124
          %s6127 = sshll.u32 %s6066, 4
          %s6128 = int_to_ptr.vmem [resolvable:$true] %s6127
          %6130 = dma.vmem_to_hbm [thread:$0]  %s6128, 16, %s6125, %s6064
        $region76: #{tpu_custom_call.1} parent=51 // pred_fallthru
          _
      $region52: #{tpu_custom_call.1} parent=5 // pred_fallthru
        _
      %p6131 = scmp.le.s32.totalorder 2, %s29
      // Predicated region
      $region77: #{tpu_custom_call.1} parent=5 // pred_check
        %p6132 = pneg %p6131
      $region78: #{tpu_custom_call.1} parent=5 // pred_check_branch
        %6134 = sbr.rel (%p6132) target = $region80
      $region79: #{tpu_custom_call.1} parent=5 // pred_region
        %s6135 = ssub.s32 %s29, 2
        // Predicated region
        $region81: #{tpu_custom_call.1} parent=79 // pred_check
          %p6136 = pneg %p277
        $region82: #{tpu_custom_call.1} parent=79 // pred_check_branch
          %6138 = sbr.rel (%p6136) target = $region84
        $region83: #{tpu_custom_call.1} parent=79 // pred_region
          %s6139 = smul.u32 16, %s41
          %p6140 = scmp.lt.s32.totalorder %s40, 1
          %s6141 = scalar_select %p6140, %s40, 1
          %p6142 = scmp.lt.s32.totalorder %s6139, 15
          %s6143 = scalar_select %p6142, %s6139, 15
          %s6144 = smul.addr %s6143, 3
          %s6145 = smul.addr %s6141, 48
          %s6146 = sadd.s32 %s6144, %s6145
          %s6147 = smul.addr %s6146, 8
          %s6148 = scalar_lea.vmem %s8, %s6147
        $region84: #{tpu_custom_call.1} parent=79 // pred_fallthru
          _
        // Predicated region
        $region85: #{tpu_custom_call.1} parent=79 // pred_check
          %p6149 = pneg %p305
        $region86: #{tpu_custom_call.1} parent=79 // pred_check_branch
          %6151 = sbr.rel (%p6149) target = $region88
        $region87: #{tpu_custom_call.1} parent=79 // pred_region
          %s6152 = sand.u32 %s290, 1
          %s6153 = scalar_lea.sflag [#allocation3], %s6152
          %s6154 = sand.u32 %s290, 1
          %s6155 = scalar_lea.vmem [#allocation2], %s6154
          %6156 = dma.done %s6153, 16
        $region88: #{tpu_custom_call.1} parent=79 // pred_fallthru
          _
        // Predicated region
        $region89: #{tpu_custom_call.1} parent=79 // pred_check
          %p6157 = pneg %p333
        $region90: #{tpu_custom_call.1} parent=79 // pred_check_branch
          %6159 = sbr.rel (%p6157) target = $region92
        $region91: #{tpu_custom_call.1} parent=79 // pred_region
          %s6160 = sand.u32 %s35, 1
          %s6161 = scalar_lea.sflag [#allocation5], %s6160
          %s6162 = sand.u32 %s318, 1
          %s6163 = scalar_lea.vmem [#allocation4], %s6162
          %6164 = dma.done %s6161, 16
        $region92: #{tpu_custom_call.1} parent=79 // pred_fallthru
          _
        // Predicated region
        $region93: #{tpu_custom_call.1} parent=79 // pred_check
          %p6165 = pneg %p361
        $region94: #{tpu_custom_call.1} parent=79 // pred_check_branch
          %6167 = sbr.rel (%p6165) target = $region96
        $region95: #{tpu_custom_call.1} parent=79 // pred_region
          %s6168 = smul.u32 16, %s41
          %p6169 = scmp.lt.s32.totalorder %s40, 1
          %s6170 = scalar_select %p6169, %s40, 1
          %p6171 = scmp.lt.s32.totalorder %s6168, 15
          %s6172 = scalar_select %p6171, %s6168, 15
          %s6173 = smul.addr %s6172, 2
          %s6174 = smul.addr %s6170, 32
          %s6175 = sadd.s32 %s6173, %s6174
          %s6176 = smul.addr %s6175, 8
          %s6177 = scalar_lea.vmem %s11, %s6176
        $region96: #{tpu_custom_call.1} parent=79 // pred_fallthru
          _
        // Predicated region
        $region97: #{tpu_custom_call.1} parent=79 // pred_check
          %p6178 = pneg %p389
        $region98: #{tpu_custom_call.1} parent=79 // pred_check_branch
          %6180 = sbr.rel (%p6178) target = $region100
        $region99: #{tpu_custom_call.1} parent=79 // pred_region
          %s6181 = sand.u32 %s35, 1
          %s6182 = scalar_lea.sflag [#allocation5], %s6181
          %s6183 = sand.u32 %s374, 1
          %s6184 = scalar_lea.vmem [#allocation6], %s6183
          %6185 = dma.done %s6182, 16
        $region100: #{tpu_custom_call.1} parent=79 // pred_fallthru
          _
        // Predicated region
        $region101: #{tpu_custom_call.1} parent=79 // pred_check
          %p6186 = pneg %p417
        $region102: #{tpu_custom_call.1} parent=79 // pred_check_branch
          %6188 = sbr.rel (%p6186) target = $region104
        $region103: #{tpu_custom_call.1} parent=79 // pred_region
          %s6189 = sand.u32 %s402, 1
          %s6190 = scalar_lea.sflag [#allocation8], %s6189
          %s6191 = sand.u32 %s402, 1
          %s6192 = scalar_lea.vmem [#allocation7], %s6191
          %6193 = dma.done %s6190, 16
        $region104: #{tpu_custom_call.1} parent=79 // pred_fallthru
          _
      $region80: #{tpu_custom_call.1} parent=5 // pred_fallthru
        _
    $region6: #{tpu_custom_call.1} parent=1 // loop_footer
      %s33 = sadd.s32 1, %s29
    $region7: #{tpu_custom_call.1} parent=1 // loop_footer_branch
      %28 = sbr.rel target = $region3
    $region8: #{tpu_custom_call.1} parent=1 // loop_exit
      _
    %6194 = vsyncpa [#allocation3], 1
    %s6195 = scalar_lea.sflag [#allocation3], 1
    %6196 = vsyncpa %s6195, 1
    %6197 = vsyncpa [#allocation5], 1
    %s6198 = scalar_lea.sflag [#allocation5], 1
    %6199 = vsyncpa %s6198, 1
    %6200 = vsyncpa [#allocation8], 1
    %s6201 = scalar_lea.sflag [#allocation8], 1
    %6202 = vsyncpa %s6201, 1

</llo_original>
